<compile_context>
chip_gen: v7x
topology: tpu7x:2x2x1
jax: 0.10.0
libtpu: 0.0.40
codegen_flags: <defaults>
</compile_context>

<pallas_src>
import math
from functools import partial

import jax
import jax.numpy as jnp
from jax.experimental import pallas as pl
from jax.experimental.pallas import tpu as pltpu


def _window_attn_kernel(*refs, num_heads, has_qkv_bias):
    if has_qkv_bias:
        (x_ref, wq_ref, wk_ref, wv_ref, wp_ref, bp_ref,
         bq_ref, bk_ref, bv_ref, o_ref) = refs
    else:
        x_ref, wq_ref, wk_ref, wv_ref, wp_ref, bp_ref, o_ref = refs
        bq_ref = bk_ref = bv_ref = None

    bw, n, c = x_ref.shape
    hd = c // num_heads

    # bf16 MXU operands, f32 accumulation throughout.
    x2 = x_ref[...].reshape(bw * n, c).astype(jnp.bfloat16)

    # Fused QKV projection (PyTorch Linear: y = x @ W.T + b).  The softmax
    # scale 1/sqrt(hd) is already folded into wq / bq by the wrapper.
    qf = jnp.dot(x2, wq_ref[...], preferred_element_type=jnp.float32)
    kf = jnp.dot(x2, wk_ref[...], preferred_element_type=jnp.float32)
    vf = jnp.dot(x2, wv_ref[...], preferred_element_type=jnp.float32)
    if has_qkv_bias:
        qf = qf + bq_ref[...]
        kf = kf + bk_ref[...]
        vf = vf + bv_ref[...]
    q = qf.astype(jnp.bfloat16).reshape(bw, n, c)
    k = kf.astype(jnp.bfloat16).reshape(bw, n, c)
    v = vf.astype(jnp.bfloat16).reshape(bw, n, c)

    # Per-head attention.  The output projection is accumulated per head
    # (contraction K = hd against a row-slab of wp), so head outputs never go
    # through a masked 32-lane VMEM scratch store and the running result
    # stays lane-dense (C = 128 lanes) in registers.
    acc = None
    for h in range(num_heads):
        sl = slice(h * hd, (h + 1) * hd)
        qh = q[:, :, sl]
        kh = k[:, :, sl]
        vh = v[:, :, sl]

        s = jnp.einsum('bnd,bmd->bnm', qh, kh,
                       preferred_element_type=jnp.float32)
        s = s - jnp.max(s, axis=-1, keepdims=True)      # f32 softmax math
        p = jnp.exp(s)
        l = jnp.sum(p, axis=-1, keepdims=True)

        oh = jnp.einsum('bnm,bmd->bnd', p.astype(jnp.bfloat16), vh,
                        preferred_element_type=jnp.float32)
        # Normalize after P@V on the small (N, hd) tile; reciprocal -> EUP.
        oh = oh * pl.reciprocal(l, approx=True)

        contrib = jnp.dot(oh.astype(jnp.bfloat16).reshape(bw * n, hd),
                          wp_ref[sl, :],
                          preferred_element_type=jnp.float32)
        acc = contrib if acc is None else acc + contrib

    out = acc + bp_ref[...]
    o_ref[...] = out.reshape(bw, n, c).astype(o_ref.dtype)


def _tpu_vmem_bytes():
    try:
        info = pltpu.get_tpu_info()
        return int(getattr(info, "vmem_capacity_bytes", 128 * 1024 * 1024))
    except Exception:
        return 128 * 1024 * 1024


def _pick_block_w(B, N, C, *, vmem_bytes, prefer_even_grid):
    """Largest divisor of B whose working set fits a VMEM-derived budget."""
    per_window = (
        4 * N * C * 4      # x & out tiles, double-buffered (f32)
        + 3 * N * C * 2    # q/k/v intermediates (bf16)
        + 1 * N * C * 4    # f32 projection accumulator
        + 2 * N * N * 4    # scores + probs (f32)
    )
    budget = int(vmem_bytes * 0.5) - 2 * 1024 * 1024   # weights / spill headroom
    max_bw = max(1, budget // max(per_window, 1))
    # keep a single x tile under ~16 MiB regardless
    max_bw = min(max_bw, max(1, (16 * 1024 * 1024) // (N * C * 4)))
    limit = B
    if prefer_even_grid and B % 2 == 0:
        # v7x-like: 2 TensorCores share the parallel grid axis.
        limit = max(1, B // 2)
    best = 1
    for cand in range(1, min(limit, max_bw) + 1):
        if B % cand == 0:
            best = cand
    return best


def window_attention_3d(x, w_qkv, b_qkv, w_proj, b_proj, *, num_heads,
                        block_w=None):
    """x: (B_, N, C); w_qkv: (3C, C); b_qkv: (3C,) or None; w_proj: (C, C);
    b_proj: (C,).  Matches WindowAttention3D.forward with shift=False."""
    B, N, C = x.shape
    assert C % num_heads == 0
    hd = C // num_heads
    scale = 1.0 / math.sqrt(hd)

    f32, bf16 = jnp.float32, jnp.bfloat16

    # qkv Linear weight rows [0:C]=q, [C:2C]=k, [2C:3C]=v; pre-transpose so the
    # kernel does plain x @ W_t, fold the softmax scale into the q weights,
    # and cast weights to bf16 (one-time transform on tiny arrays).
    wq_t = (jnp.transpose(w_qkv[0 * C:1 * C]).astype(f32) * scale).astype(bf16)
    wk_t = jnp.transpose(w_qkv[1 * C:2 * C]).astype(bf16)
    wv_t = jnp.transpose(w_qkv[2 * C:3 * C]).astype(bf16)
    wp_t = jnp.transpose(w_proj).astype(bf16)
    bp = b_proj.reshape(1, C).astype(f32)

    has_qkv_bias = b_qkv is not None

    weight_spec = pl.BlockSpec((C, C), lambda i: (0, 0))
    bias_spec = pl.BlockSpec((1, C), lambda i: (0, 0))

    operands = [x, wq_t, wk_t, wv_t, wp_t, bp]
    in_specs = [None, weight_spec, weight_spec, weight_spec, weight_spec,
                bias_spec]
    if has_qkv_bias:
        bq = (b_qkv[0 * C:1 * C].astype(f32) * scale).reshape(1, C)
        bk = b_qkv[1 * C:2 * C].reshape(1, C).astype(f32)
        bv = b_qkv[2 * C:3 * C].reshape(1, C).astype(f32)
        operands += [bq, bk, bv]
        in_specs += [bias_spec, bias_spec, bias_spec]

    vmem_bytes = _tpu_vmem_bytes()
    prefer_even_grid = vmem_bytes <= 80 * 1024 * 1024   # v7x: 64 MiB, 2 TCs
    if block_w is None:
        block_w = _pick_block_w(B, N, C, vmem_bytes=vmem_bytes,
                                prefer_even_grid=prefer_even_grid)
    assert B % block_w == 0
    grid = (B // block_w,)

    in_specs[0] = pl.BlockSpec((block_w, N, C), lambda i: (i, 0, 0))
    out_spec = pl.BlockSpec((block_w, N, C), lambda i: (i, 0, 0))

    kernel = partial(_window_attn_kernel, num_heads=num_heads,
                     has_qkv_bias=has_qkv_bias)

    vmem_limit = int(min(vmem_bytes * 3 // 4, 100 * 1024 * 1024))

    return pl.pallas_call(
        kernel,
        out_shape=jax.ShapeDtypeStruct((B, N, C), x.dtype),
        grid=grid,
        in_specs=in_specs,
        out_specs=out_spec,
        compiler_params=pltpu.CompilerParams(
            dimension_semantics=("parallel",),
            vmem_limit_bytes=vmem_limit),
    )(*operands)


def _reference(x, w_qkv, b_qkv, w_proj, b_proj, num_heads):
    """Pure-JAX reference reproducing the PyTorch forward (shift=False, eval)."""
    hp = jax.lax.Precision.HIGHEST
    B_, N, C = x.shape
    hd = C // num_heads
    scale = 1.0 / math.sqrt(hd)
    qkv = jnp.einsum('bnc,dc->bnd', x, w_qkv, precision=hp)
    if b_qkv is not None:
        qkv = qkv + b_qkv
    qkv = qkv.reshape(B_, N, 3, num_heads, hd).transpose(2, 0, 3, 1, 4)
    q, k, v = qkv[0], qkv[1], qkv[2]                        # (B, H, N, hd)
    s = jnp.einsum('bhnd,bhmd->bhnm', q, k, precision=hp) * scale
    p = jax.nn.softmax(s, axis=-1)
    o = jnp.einsum('bhnm,bhmd->bhnd', p, v, precision=hp)
    o = o.transpose(0, 2, 1, 3).reshape(B_, N, C)
    return jnp.einsum('bnc,dc->bnd', o, w_proj, precision=hp) + b_proj


if __name__ == "__main__":
    # Small config consistent with the module:
    #   dim=128, num_heads=4 (head_dim=32), window_size=(4,4,4) -> N=64,
    #   B_ = batch * num_windows = 8, eval mode.
    dim, num_heads = 128, 4
    N = 64
    B_ = 8

    key = jax.random.PRNGKey(0)
    kx, kw1, kw2, kb1, kb2 = jax.random.split(key, 5)
    x = jax.random.normal(kx, (B_, N, dim), dtype=jnp.float32)
    w_qkv = jax.random.normal(kw1, (3 * dim, dim), dtype=jnp.float32) * 0.05
    w_proj = jax.random.normal(kw2, (dim, dim), dtype=jnp.float32) * 0.05
    b_proj = jax.random.normal(kb1, (dim,), dtype=jnp.float32) * 0.05
    b_qkv = jax.random.normal(kb2, (3 * dim,), dtype=jnp.float32) * 0.05

    # bf16 MXU operands -> compare against an f32 HIGHEST-precision reference
    # with a correspondingly loosened tolerance.
    tol = dict(atol=2e-2, rtol=2e-2)

    # Path 1: qkv_bias=False (module default).
    out = window_attention_3d(x, w_qkv, None, w_proj, b_proj,
                              num_heads=num_heads)
    out = jax.block_until_ready(out)
    ref = _reference(x, w_qkv, None, w_proj, b_proj, num_heads)
    assert out.shape == ref.shape and out.dtype == ref.dtype
    err = float(jnp.max(jnp.abs(out - ref)))
    assert jnp.allclose(out, ref, **tol), f"no-bias mismatch, max abs err = {err}"

    # Path 2: qkv_bias=True.
    out_b = window_attention_3d(x, w_qkv, b_qkv, w_proj, b_proj,
                                num_heads=num_heads)
    out_b = jax.block_until_ready(out_b)
    ref_b = _reference(x, w_qkv, b_qkv, w_proj, b_proj, num_heads)
    err_b = float(jnp.max(jnp.abs(out_b - ref_b)))
    assert jnp.allclose(out_b, ref_b, **tol), f"bias mismatch, max abs err = {err_b}"

    print("KERNEL_OK")
</pallas_src>

<mosaic_0001>
module attributes {stable_mosaic.version = 11 : i64} {
  func.func @_window_attn_kernel(%arg0: i32, %arg1: memref<8x64x128xf32, #tpu.memory_space<vmem>>, %arg2: memref<128x128xbf16, #tpu.memory_space<vmem>>, %arg3: memref<128x128xbf16, #tpu.memory_space<vmem>>, %arg4: memref<128x128xbf16, #tpu.memory_space<vmem>>, %arg5: memref<128x128xbf16, #tpu.memory_space<vmem>>, %arg6: memref<1x128xf32, #tpu.memory_space<vmem>>, %arg7: memref<8x64x128xf32, #tpu.memory_space<vmem>>) attributes {dimension_semantics = [#tpu.dimension_semantics<parallel>], iteration_bounds = array<i64: 1>, scalar_prefetch = 0 : i64, scratch_operands = 0 : i64, tpu.core_type = #tpu.core_type<tc>, window_params = [{transform_indices = @transform_0, window_bounds = array<i64: 8, 64, 128>}, {pipeline_mode = #tpu.pipeline_mode<synchronous>, transform_indices = @transform_1, window_bounds = array<i64: 128, 128>}, {pipeline_mode = #tpu.pipeline_mode<synchronous>, transform_indices = @transform_2, window_bounds = array<i64: 128, 128>}, {pipeline_mode = #tpu.pipeline_mode<synchronous>, transform_indices = @transform_3, window_bounds = array<i64: 128, 128>}, {pipeline_mode = #tpu.pipeline_mode<synchronous>, transform_indices = @transform_4, window_bounds = array<i64: 128, 128>}, {pipeline_mode = #tpu.pipeline_mode<synchronous>, transform_indices = @transform_5, window_bounds = array<i64: 1, 128>}, {transform_indices = @transform_6, window_bounds = array<i64: 8, 64, 128>}]} {
    %c0 = arith.constant 0 : index
    %c0_0 = arith.constant 0 : index
    %c0_1 = arith.constant 0 : index
    %0 = vector.load %arg1[%c0, %c0_0, %c0_1] : memref<8x64x128xf32, #tpu.memory_space<vmem>>, vector<8x64x128xf32>
    %1 = vector.shape_cast %0 : vector<8x64x128xf32> to vector<512x128xf32>
    %2 = arith.truncf %1 : vector<512x128xf32> to vector<512x128xbf16>
    %c0_2 = arith.constant 0 : index
    %c0_3 = arith.constant 0 : index
    %3 = vector.load %arg2[%c0_2, %c0_3] : memref<128x128xbf16, #tpu.memory_space<vmem>>, vector<128x128xbf16>
    %cst = arith.constant dense<0.000000e+00> : vector<512x128xf32>
    %4 = tpu.matmul %2, %3, %cst {dimension_numbers = #tpu.dot_dimension_numbers<[1], [0], [0], [1], [0, 0, 1, 1], [], []>} : vector<512x128xbf16>, vector<128x128xbf16>, vector<512x128xf32> -> vector<512x128xf32>
    %c0_4 = arith.constant 0 : index
    %c0_5 = arith.constant 0 : index
    %5 = vector.load %arg3[%c0_4, %c0_5] : memref<128x128xbf16, #tpu.memory_space<vmem>>, vector<128x128xbf16>
    %cst_6 = arith.constant dense<0.000000e+00> : vector<512x128xf32>
    %6 = tpu.matmul %2, %5, %cst_6 {dimension_numbers = #tpu.dot_dimension_numbers<[1], [0], [0], [1], [0, 0, 1, 1], [], []>} : vector<512x128xbf16>, vector<128x128xbf16>, vector<512x128xf32> -> vector<512x128xf32>
    %c0_7 = arith.constant 0 : index
    %c0_8 = arith.constant 0 : index
    %7 = vector.load %arg4[%c0_7, %c0_8] : memref<128x128xbf16, #tpu.memory_space<vmem>>, vector<128x128xbf16>
    %cst_9 = arith.constant dense<0.000000e+00> : vector<512x128xf32>
    %8 = tpu.matmul %2, %7, %cst_9 {dimension_numbers = #tpu.dot_dimension_numbers<[1], [0], [0], [1], [0, 0, 1, 1], [], []>} : vector<512x128xbf16>, vector<128x128xbf16>, vector<512x128xf32> -> vector<512x128xf32>
    %9 = arith.truncf %4 : vector<512x128xf32> to vector<512x128xbf16>
    %10 = vector.shape_cast %9 : vector<512x128xbf16> to vector<8x64x128xbf16>
    %11 = arith.truncf %6 : vector<512x128xf32> to vector<512x128xbf16>
    %12 = vector.shape_cast %11 : vector<512x128xbf16> to vector<8x64x128xbf16>
    %13 = arith.truncf %8 : vector<512x128xf32> to vector<512x128xbf16>
    %14 = vector.shape_cast %13 : vector<512x128xbf16> to vector<8x64x128xbf16>
    %15 = vector.extract_strided_slice %10 {offsets = [0, 0, 0], sizes = [8, 64, 32], strides = [1, 1, 1]} : vector<8x64x128xbf16> to vector<8x64x32xbf16>
    %16 = vector.extract_strided_slice %12 {offsets = [0, 0, 0], sizes = [8, 64, 32], strides = [1, 1, 1]} : vector<8x64x128xbf16> to vector<8x64x32xbf16>
    %17 = vector.extract_strided_slice %14 {offsets = [0, 0, 0], sizes = [8, 64, 32], strides = [1, 1, 1]} : vector<8x64x128xbf16> to vector<8x64x32xbf16>
    "tpu.trace_start"() <{level = 10 : i32, message = "bnd,bmd->bnm"}> : () -> ()
    %cst_10 = arith.constant dense<0.000000e+00> : vector<8x64x64xf32>
    %18 = tpu.matmul %15, %16, %cst_10 {dimension_numbers = #tpu.dot_dimension_numbers<[2], [2], [1], [1], [0, 0, 0, 1, 1, 1], [0], [0]>} : vector<8x64x32xbf16>, vector<8x64x32xbf16>, vector<8x64x64xf32> -> vector<8x64x64xf32>
    "tpu.trace_stop"() : () -> ()
    %cst_11 = arith.constant dense<0xFF800000> : vector<8x64xf32>
    %19 = vector.multi_reduction <maximumf>, %18, %cst_11 [2] : vector<8x64x64xf32> to vector<8x64xf32>
    %20 = vector.shape_cast %19 : vector<8x64xf32> to vector<8x64x1xf32>
    %21 = vector.broadcast %20 : vector<8x64x1xf32> to vector<8x64x64xf32>
    %22 = arith.subf %18, %21 : vector<8x64x64xf32>
    %23 = math.exp %22 : vector<8x64x64xf32>
    %cst_12 = arith.constant dense<0.000000e+00> : vector<8x64xf32>
    %24 = vector.multi_reduction <add>, %23, %cst_12 [2] : vector<8x64x64xf32> to vector<8x64xf32>
    %25 = vector.shape_cast %24 : vector<8x64xf32> to vector<8x64x1xf32>
    %26 = arith.truncf %23 : vector<8x64x64xf32> to vector<8x64x64xbf16>
    "tpu.trace_start"() <{level = 10 : i32, message = "bnm,bmd->bnd"}> : () -> ()
    %cst_13 = arith.constant dense<0.000000e+00> : vector<8x64x32xf32>
    %27 = tpu.matmul %26, %17, %cst_13 {dimension_numbers = #tpu.dot_dimension_numbers<[2], [1], [1], [2], [0, 0, 0, 1, 1, 2], [0], [0]>} : vector<8x64x64xbf16>, vector<8x64x32xbf16>, vector<8x64x32xf32> -> vector<8x64x32xf32>
    "tpu.trace_stop"() : () -> ()
    %28 = tpu.reciprocal %25 {approx = true} : vector<8x64x1xf32> -> vector<8x64x1xf32>
    %29 = vector.broadcast %28 : vector<8x64x1xf32> to vector<8x64x32xf32>
    %30 = arith.mulf %27, %29 : vector<8x64x32xf32>
    %31 = arith.truncf %30 : vector<8x64x32xf32> to vector<8x64x32xbf16>
    %32 = vector.shape_cast %31 : vector<8x64x32xbf16> to vector<512x32xbf16>
    %c0_14 = arith.constant 0 : index
    %c0_15 = arith.constant 0 : index
    %33 = vector.load %arg5[%c0_14, %c0_15] : memref<128x128xbf16, #tpu.memory_space<vmem>>, vector<32x128xbf16>
    %cst_16 = arith.constant dense<0.000000e+00> : vector<512x128xf32>
    %34 = tpu.matmul %32, %33, %cst_16 {dimension_numbers = #tpu.dot_dimension_numbers<[1], [0], [0], [1], [0, 0, 1, 1], [], []>} : vector<512x32xbf16>, vector<32x128xbf16>, vector<512x128xf32> -> vector<512x128xf32>
    %35 = vector.extract_strided_slice %10 {offsets = [0, 0, 32], sizes = [8, 64, 32], strides = [1, 1, 1]} : vector<8x64x128xbf16> to vector<8x64x32xbf16>
    %36 = vector.extract_strided_slice %12 {offsets = [0, 0, 32], sizes = [8, 64, 32], strides = [1, 1, 1]} : vector<8x64x128xbf16> to vector<8x64x32xbf16>
    %37 = vector.extract_strided_slice %14 {offsets = [0, 0, 32], sizes = [8, 64, 32], strides = [1, 1, 1]} : vector<8x64x128xbf16> to vector<8x64x32xbf16>
    "tpu.trace_start"() <{level = 10 : i32, message = "bnd,bmd->bnm"}> : () -> ()
    %cst_17 = arith.constant dense<0.000000e+00> : vector<8x64x64xf32>
    %38 = tpu.matmul %35, %36, %cst_17 {dimension_numbers = #tpu.dot_dimension_numbers<[2], [2], [1], [1], [0, 0, 0, 1, 1, 1], [0], [0]>} : vector<8x64x32xbf16>, vector<8x64x32xbf16>, vector<8x64x64xf32> -> vector<8x64x64xf32>
    "tpu.trace_stop"() : () -> ()
    %cst_18 = arith.constant dense<0xFF800000> : vector<8x64xf32>
    %39 = vector.multi_reduction <maximumf>, %38, %cst_18 [2] : vector<8x64x64xf32> to vector<8x64xf32>
    %40 = vector.shape_cast %39 : vector<8x64xf32> to vector<8x64x1xf32>
    %41 = vector.broadcast %40 : vector<8x64x1xf32> to vector<8x64x64xf32>
    %42 = arith.subf %38, %41 : vector<8x64x64xf32>
    %43 = math.exp %42 : vector<8x64x64xf32>
    %cst_19 = arith.constant dense<0.000000e+00> : vector<8x64xf32>
    %44 = vector.multi_reduction <add>, %43, %cst_19 [2] : vector<8x64x64xf32> to vector<8x64xf32>
    %45 = vector.shape_cast %44 : vector<8x64xf32> to vector<8x64x1xf32>
    %46 = arith.truncf %43 : vector<8x64x64xf32> to vector<8x64x64xbf16>
    "tpu.trace_start"() <{level = 10 : i32, message = "bnm,bmd->bnd"}> : () -> ()
    %cst_20 = arith.constant dense<0.000000e+00> : vector<8x64x32xf32>
    %47 = tpu.matmul %46, %37, %cst_20 {dimension_numbers = #tpu.dot_dimension_numbers<[2], [1], [1], [2], [0, 0, 0, 1, 1, 2], [0], [0]>} : vector<8x64x64xbf16>, vector<8x64x32xbf16>, vector<8x64x32xf32> -> vector<8x64x32xf32>
    "tpu.trace_stop"() : () -> ()
    %48 = tpu.reciprocal %45 {approx = true} : vector<8x64x1xf32> -> vector<8x64x1xf32>
    %49 = vector.broadcast %48 : vector<8x64x1xf32> to vector<8x64x32xf32>
    %50 = arith.mulf %47, %49 : vector<8x64x32xf32>
    %51 = arith.truncf %50 : vector<8x64x32xf32> to vector<8x64x32xbf16>
    %52 = vector.shape_cast %51 : vector<8x64x32xbf16> to vector<512x32xbf16>
    %c32 = arith.constant 32 : index
    %c0_21 = arith.constant 0 : index
    %53 = vector.load %arg5[%c32, %c0_21] : memref<128x128xbf16, #tpu.memory_space<vmem>>, vector<32x128xbf16>
    %cst_22 = arith.constant dense<0.000000e+00> : vector<512x128xf32>
    %54 = tpu.matmul %52, %53, %cst_22 {dimension_numbers = #tpu.dot_dimension_numbers<[1], [0], [0], [1], [0, 0, 1, 1], [], []>} : vector<512x32xbf16>, vector<32x128xbf16>, vector<512x128xf32> -> vector<512x128xf32>
    %55 = arith.addf %34, %54 : vector<512x128xf32>
    %56 = vector.extract_strided_slice %10 {offsets = [0, 0, 64], sizes = [8, 64, 32], strides = [1, 1, 1]} : vector<8x64x128xbf16> to vector<8x64x32xbf16>
    %57 = vector.extract_strided_slice %12 {offsets = [0, 0, 64], sizes = [8, 64, 32], strides = [1, 1, 1]} : vector<8x64x128xbf16> to vector<8x64x32xbf16>
    %58 = vector.extract_strided_slice %14 {offsets = [0, 0, 64], sizes = [8, 64, 32], strides = [1, 1, 1]} : vector<8x64x128xbf16> to vector<8x64x32xbf16>
    "tpu.trace_start"() <{level = 10 : i32, message = "bnd,bmd->bnm"}> : () -> ()
    %cst_23 = arith.constant dense<0.000000e+00> : vector<8x64x64xf32>
    %59 = tpu.matmul %56, %57, %cst_23 {dimension_numbers = #tpu.dot_dimension_numbers<[2], [2], [1], [1], [0, 0, 0, 1, 1, 1], [0], [0]>} : vector<8x64x32xbf16>, vector<8x64x32xbf16>, vector<8x64x64xf32> -> vector<8x64x64xf32>
    "tpu.trace_stop"() : () -> ()
    %cst_24 = arith.constant dense<0xFF800000> : vector<8x64xf32>
    %60 = vector.multi_reduction <maximumf>, %59, %cst_24 [2] : vector<8x64x64xf32> to vector<8x64xf32>
    %61 = vector.shape_cast %60 : vector<8x64xf32> to vector<8x64x1xf32>
    %62 = vector.broadcast %61 : vector<8x64x1xf32> to vector<8x64x64xf32>
    %63 = arith.subf %59, %62 : vector<8x64x64xf32>
    %64 = math.exp %63 : vector<8x64x64xf32>
    %cst_25 = arith.constant dense<0.000000e+00> : vector<8x64xf32>
    %65 = vector.multi_reduction <add>, %64, %cst_25 [2] : vector<8x64x64xf32> to vector<8x64xf32>
    %66 = vector.shape_cast %65 : vector<8x64xf32> to vector<8x64x1xf32>
    %67 = arith.truncf %64 : vector<8x64x64xf32> to vector<8x64x64xbf16>
    "tpu.trace_start"() <{level = 10 : i32, message = "bnm,bmd->bnd"}> : () -> ()
    %cst_26 = arith.constant dense<0.000000e+00> : vector<8x64x32xf32>
    %68 = tpu.matmul %67, %58, %cst_26 {dimension_numbers = #tpu.dot_dimension_numbers<[2], [1], [1], [2], [0, 0, 0, 1, 1, 2], [0], [0]>} : vector<8x64x64xbf16>, vector<8x64x32xbf16>, vector<8x64x32xf32> -> vector<8x64x32xf32>
    "tpu.trace_stop"() : () -> ()
    %69 = tpu.reciprocal %66 {approx = true} : vector<8x64x1xf32> -> vector<8x64x1xf32>
    %70 = vector.broadcast %69 : vector<8x64x1xf32> to vector<8x64x32xf32>
    %71 = arith.mulf %68, %70 : vector<8x64x32xf32>
    %72 = arith.truncf %71 : vector<8x64x32xf32> to vector<8x64x32xbf16>
    %73 = vector.shape_cast %72 : vector<8x64x32xbf16> to vector<512x32xbf16>
    %c64 = arith.constant 64 : index
    %c0_27 = arith.constant 0 : index
    %74 = vector.load %arg5[%c64, %c0_27] : memref<128x128xbf16, #tpu.memory_space<vmem>>, vector<32x128xbf16>
    %cst_28 = arith.constant dense<0.000000e+00> : vector<512x128xf32>
    %75 = tpu.matmul %73, %74, %cst_28 {dimension_numbers = #tpu.dot_dimension_numbers<[1], [0], [0], [1], [0, 0, 1, 1], [], []>} : vector<512x32xbf16>, vector<32x128xbf16>, vector<512x128xf32> -> vector<512x128xf32>
    %76 = arith.addf %55, %75 : vector<512x128xf32>
    %77 = vector.extract_strided_slice %10 {offsets = [0, 0, 96], sizes = [8, 64, 32], strides = [1, 1, 1]} : vector<8x64x128xbf16> to vector<8x64x32xbf16>
    %78 = vector.extract_strided_slice %12 {offsets = [0, 0, 96], sizes = [8, 64, 32], strides = [1, 1, 1]} : vector<8x64x128xbf16> to vector<8x64x32xbf16>
    %79 = vector.extract_strided_slice %14 {offsets = [0, 0, 96], sizes = [8, 64, 32], strides = [1, 1, 1]} : vector<8x64x128xbf16> to vector<8x64x32xbf16>
    "tpu.trace_start"() <{level = 10 : i32, message = "bnd,bmd->bnm"}> : () -> ()
    %cst_29 = arith.constant dense<0.000000e+00> : vector<8x64x64xf32>
    %80 = tpu.matmul %77, %78, %cst_29 {dimension_numbers = #tpu.dot_dimension_numbers<[2], [2], [1], [1], [0, 0, 0, 1, 1, 1], [0], [0]>} : vector<8x64x32xbf16>, vector<8x64x32xbf16>, vector<8x64x64xf32> -> vector<8x64x64xf32>
    "tpu.trace_stop"() : () -> ()
    %cst_30 = arith.constant dense<0xFF800000> : vector<8x64xf32>
    %81 = vector.multi_reduction <maximumf>, %80, %cst_30 [2] : vector<8x64x64xf32> to vector<8x64xf32>
    %82 = vector.shape_cast %81 : vector<8x64xf32> to vector<8x64x1xf32>
    %83 = vector.broadcast %82 : vector<8x64x1xf32> to vector<8x64x64xf32>
    %84 = arith.subf %80, %83 : vector<8x64x64xf32>
    %85 = math.exp %84 : vector<8x64x64xf32>
    %cst_31 = arith.constant dense<0.000000e+00> : vector<8x64xf32>
    %86 = vector.multi_reduction <add>, %85, %cst_31 [2] : vector<8x64x64xf32> to vector<8x64xf32>
    %87 = vector.shape_cast %86 : vector<8x64xf32> to vector<8x64x1xf32>
    %88 = arith.truncf %85 : vector<8x64x64xf32> to vector<8x64x64xbf16>
    "tpu.trace_start"() <{level = 10 : i32, message = "bnm,bmd->bnd"}> : () -> ()
    %cst_32 = arith.constant dense<0.000000e+00> : vector<8x64x32xf32>
    %89 = tpu.matmul %88, %79, %cst_32 {dimension_numbers = #tpu.dot_dimension_numbers<[2], [1], [1], [2], [0, 0, 0, 1, 1, 2], [0], [0]>} : vector<8x64x64xbf16>, vector<8x64x32xbf16>, vector<8x64x32xf32> -> vector<8x64x32xf32>
    "tpu.trace_stop"() : () -> ()
    %90 = tpu.reciprocal %87 {approx = true} : vector<8x64x1xf32> -> vector<8x64x1xf32>
    %91 = vector.broadcast %90 : vector<8x64x1xf32> to vector<8x64x32xf32>
    %92 = arith.mulf %89, %91 : vector<8x64x32xf32>
    %93 = arith.truncf %92 : vector<8x64x32xf32> to vector<8x64x32xbf16>
    %94 = vector.shape_cast %93 : vector<8x64x32xbf16> to vector<512x32xbf16>
    %c96 = arith.constant 96 : index
    %c0_33 = arith.constant 0 : index
    %95 = vector.load %arg5[%c96, %c0_33] : memref<128x128xbf16, #tpu.memory_space<vmem>>, vector<32x128xbf16>
    %cst_34 = arith.constant dense<0.000000e+00> : vector<512x128xf32>
    %96 = tpu.matmul %94, %95, %cst_34 {dimension_numbers = #tpu.dot_dimension_numbers<[1], [0], [0], [1], [0, 0, 1, 1], [], []>} : vector<512x32xbf16>, vector<32x128xbf16>, vector<512x128xf32> -> vector<512x128xf32>
    %97 = arith.addf %76, %96 : vector<512x128xf32>
    %c0_35 = arith.constant 0 : index
    %c0_36 = arith.constant 0 : index
    %98 = vector.load %arg6[%c0_35, %c0_36] : memref<1x128xf32, #tpu.memory_space<vmem>>, vector<1x128xf32>
    %99 = vector.broadcast %98 : vector<1x128xf32> to vector<512x128xf32>
    %100 = arith.addf %97, %99 : vector<512x128xf32>
    %101 = vector.shape_cast %100 : vector<512x128xf32> to vector<8x64x128xf32>
    %c0_37 = arith.constant 0 : index
    %c0_38 = arith.constant 0 : index
    %c0_39 = arith.constant 0 : index
    %102 = vector.load %arg7[%c0_37, %c0_38, %c0_39] : memref<8x64x128xf32, #tpu.memory_space<vmem>>, vector<8x64x128xf32>
    tpu.vector_store %arg7[%c0_37, %c0_38, %c0_39], %101 {strides = array<i32>} : memref<8x64x128xf32, #tpu.memory_space<vmem>>, vector<8x64x128xf32>,
    return
  }
  func.func @transform_0(%arg0: i32) -> (i32, i32, i32) {
    %c0_i32 = arith.constant 0 : i32
    %c0_i32_0 = arith.constant 0 : i32
    %c0_i32_1 = arith.constant 0 : i32
    return %arg0, %c0_i32, %c0_i32_0 : i32, i32, i32
  }
  func.func @transform_1(%arg0: i32) -> (i32, i32) {
    %c0_i32 = arith.constant 0 : i32
    %c0_i32_0 = arith.constant 0 : i32
    %c0_i32_1 = arith.constant 0 : i32
    return %c0_i32, %c0_i32_0 : i32, i32
  }
  func.func @transform_2(%arg0: i32) -> (i32, i32) {
    %c0_i32 = arith.constant 0 : i32
    %c0_i32_0 = arith.constant 0 : i32
    %c0_i32_1 = arith.constant 0 : i32
    return %c0_i32, %c0_i32_0 : i32, i32
  }
  func.func @transform_3(%arg0: i32) -> (i32, i32) {
    %c0_i32 = arith.constant 0 : i32
    %c0_i32_0 = arith.constant 0 : i32
    %c0_i32_1 = arith.constant 0 : i32
    return %c0_i32, %c0_i32_0 : i32, i32
  }
  func.func @transform_4(%arg0: i32) -> (i32, i32) {
    %c0_i32 = arith.constant 0 : i32
    %c0_i32_0 = arith.constant 0 : i32
    %c0_i32_1 = arith.constant 0 : i32
    return %c0_i32, %c0_i32_0 : i32, i32
  }
  func.func @transform_5(%arg0: i32) -> (i32, i32) {
    %c0_i32 = arith.constant 0 : i32
    %c0_i32_0 = arith.constant 0 : i32
    %c0_i32_1 = arith.constant 0 : i32
    return %c0_i32, %c0_i32_0 : i32, i32
  }
  func.func @transform_6(%arg0: i32) -> (i32, i32, i32) {
    %c0_i32 = arith.constant 0 : i32
    %c0_i32_0 = arith.constant 0 : i32
    %c0_i32_1 = arith.constant 0 : i32
    return %arg0, %c0_i32, %c0_i32_0 : i32, i32, i32
  }
}

</mosaic_0001>

<llo_original>
// kernel: tpu_custom_call.1
$region0: #{tpu_custom_call.1}
  #allocation0 [shape = 'u32[]', space=smem, size = 0x4, offset = 0x4, fixed_abs, tag = 'smem constant byte address 0x4 - core index']
  #allocation1 [shape = 'u32[144,128]{1,0:T(1,128)}', space=vmem, size = 0x12000, scoped, tag = 'internal scratch']
  %s0 = inlined_call_operand.hbm [shape: f32[8,64,128], index: 0, kind: input, shape index: {}]
  %s1 = inlined_call_operand.hbm [shape: bf16[128,128], index: 1, kind: input, shape index: {}]
  %s2 = inlined_call_operand.hbm [shape: bf16[128,128], index: 2, kind: input, shape index: {}]
  %s3 = inlined_call_operand.hbm [shape: bf16[128,128], index: 3, kind: input, shape index: {}]
  %s4 = inlined_call_operand.hbm [shape: bf16[128,128], index: 4, kind: input, shape index: {}]
  %s5 = inlined_call_operand.hbm [shape: f32[1,128], index: 5, kind: input, shape index: {}]
  %s6 = inlined_call_operand.hbm [shape: f32[8,64,128], index: 6, kind: output, shape index: {}]
  %s7 = sld [smem:[#allocation0]]
  $region58: #{tpu_custom_call.1} parent=0
    _
  %s9 = ssub.s32 1, %s7
  %s10 = scalar_select 0, %s9, %s7
  $region1: #{tpu_custom_call.1} parent=0
    #allocation2 [shape = 'u8[262144]{0}', space=vmem, size = 0x40000, scoped, tag = 'input window, operand 0, single buffered']
    #allocation3 [shape = 's32[1]{0}', space=sflag, size = 0x4, scoped, tag = 'scoped memory for tpu_custom_call.1']
    #allocation4 [shape = 's32[1]{0}', space=sflag, size = 0x4, scoped, tag = 'scoped memory for tpu_custom_call.1']
    #allocation5 [shape = 'u8[32768]{0}', space=vmem, size = 0x8000, scoped, tag = 'input window, operand 1, single buffered']
    #allocation6 [shape = 's32[1]{0}', space=sflag, size = 0x4, scoped, tag = 'scoped memory for tpu_custom_call.1']
    #allocation7 [shape = 'u8[32768]{0}', space=vmem, size = 0x8000, scoped, tag = 'input window, operand 2, single buffered']
    #allocation8 [shape = 'u8[32768]{0}', space=vmem, size = 0x8000, scoped, tag = 'input window, operand 3, single buffered']
    #allocation9 [shape = 's32[1]{0}', space=sflag, size = 0x4, scoped, tag = 'scoped memory for tpu_custom_call.1']
    #allocation10 [shape = 'u8[32768]{0}', space=vmem, size = 0x8000, scoped, tag = 'input window, operand 4, single buffered']
    #allocation11 [shape = 'u8[512]{0}', space=vmem, size = 0x400, scoped, tag = 'input window, operand 5, single buffered']
    #allocation12 [shape = 's32[1]{0}', space=sflag, size = 0x4, scoped, tag = 'scoped memory for tpu_custom_call.1']
    #allocation13 [shape = 'u8[262144]{0}', space=vmem, size = 0x40000, scoped, tag = 'output window, operand 0, single buffered']
    %11 = vsyncpa [#allocation3], 0
    %12 = vsyncpa [#allocation6], 0
    %13 = vsyncpa [#allocation9], 0
    %14 = vsyncpa [#allocation12], 0
    %15 = vsyncpa [#allocation4], 0
    // Predicated region
    $region2: #{tpu_custom_call.1} parent=1 // pred_check
      _
    $region3: #{tpu_custom_call.1} parent=1 // pred_check_branch
      %17 = sbr.rel (0) target = $region5
    $region4: #{tpu_custom_call.1} parent=1 // pred_region
      %s19 = ssub.s32 8192, 8192
      %20 = vsyncadd [#allocation3], %s19
      %s21 = sshll.u32 [#allocation2], 4
      %s22 = int_to_ptr.vmem [resolvable:$true] %s21
      %27 = dma.hbm_to_vmem [thread:$0]  %s0, 8192, %s22, [#allocation3], 128, 128, 8
    $region5: #{tpu_custom_call.1} parent=1 // pred_fallthru
      _
    // Predicated region
    $region6: #{tpu_custom_call.1} parent=1 // pred_check
      _
    $region7: #{tpu_custom_call.1} parent=1 // pred_check_branch
      %29 = sbr.rel (0) target = $region9
    $region8: #{tpu_custom_call.1} parent=1 // pred_region
      %s31 = ssub.s32 1024, 1024
      %32 = vsyncadd [#allocation6], %s31
      %s33 = sshll.u32 [#allocation5], 4
      %s34 = int_to_ptr.vmem [resolvable:$true] %s33
      %39 = dma.hbm_to_vmem [thread:$0]  %s1, 1024, %s34, [#allocation6], 64, 64, 4
    $region9: #{tpu_custom_call.1} parent=1 // pred_fallthru
      _
    // Predicated region
    $region10: #{tpu_custom_call.1} parent=1 // pred_check
      _
    $region11: #{tpu_custom_call.1} parent=1 // pred_check_branch
      %41 = sbr.rel (0) target = $region13
    $region12: #{tpu_custom_call.1} parent=1 // pred_region
      %s43 = ssub.s32 1024, 1024
      %44 = vsyncadd [#allocation6], %s43
      %s45 = sshll.u32 [#allocation7], 4
      %s46 = int_to_ptr.vmem [resolvable:$true] %s45
      %51 = dma.hbm_to_vmem [thread:$0]  %s2, 1024, %s46, [#allocation6], 64, 64, 4
    $region13: #{tpu_custom_call.1} parent=1 // pred_fallthru
      _
    // Predicated region
    $region14: #{tpu_custom_call.1} parent=1 // pred_check
      _
    $region15: #{tpu_custom_call.1} parent=1 // pred_check_branch
      %53 = sbr.rel (0) target = $region17
    $region16: #{tpu_custom_call.1} parent=1 // pred_region
      %s55 = ssub.s32 1024, 1024
      %56 = vsyncadd [#allocation9], %s55
      %s57 = sshll.u32 [#allocation8], 4
      %s58 = int_to_ptr.vmem [resolvable:$true] %s57
      %63 = dma.hbm_to_vmem [thread:$0]  %s3, 1024, %s58, [#allocation9], 64, 64, 4
    $region17: #{tpu_custom_call.1} parent=1 // pred_fallthru
      _
    // Predicated region
    $region18: #{tpu_custom_call.1} parent=1 // pred_check
      _
    $region19: #{tpu_custom_call.1} parent=1 // pred_check_branch
      %65 = sbr.rel (0) target = $region21
    $region20: #{tpu_custom_call.1} parent=1 // pred_region
      %s67 = ssub.s32 1024, 1024
      %68 = vsyncadd [#allocation9], %s67
      %s69 = sshll.u32 [#allocation10], 4
      %s70 = int_to_ptr.vmem [resolvable:$true] %s69
      %75 = dma.hbm_to_vmem [thread:$0]  %s4, 1024, %s70, [#allocation9], 64, 64, 4
    $region21: #{tpu_custom_call.1} parent=1 // pred_fallthru
      _
    // Predicated region
    $region22: #{tpu_custom_call.1} parent=1 // pred_check
      _
    $region23: #{tpu_custom_call.1} parent=1 // pred_check_branch
      %77 = sbr.rel (0) target = $region25
    $region24: #{tpu_custom_call.1} parent=1 // pred_region
      %s79 = ssub.s32 16, 16
      %80 = vsyncadd [#allocation12], %s79
      %s82 = sshll.u32 [#allocation11], 4
      %s83 = int_to_ptr.vmem [resolvable:$true] %s82
      %85 = dma.hbm_to_vmem [thread:$0]  %s5, 16, %s83, [#allocation12]
    $region25: #{tpu_custom_call.1} parent=1 // pred_fallthru
      _
    // Predicated region
    $region26: #{tpu_custom_call.1} parent=1 // pred_check
      _
    $region27: #{tpu_custom_call.1} parent=1 // pred_check_branch
      %87 = sbr.rel (0) target = $region29
    $region28: #{tpu_custom_call.1} parent=1 // pred_region
      %88 = dma.done [#allocation3], 8192
    $region29: #{tpu_custom_call.1} parent=1 // pred_fallthru
      _
    // Predicated region
    $region30: #{tpu_custom_call.1} parent=1 // pred_check
      _
    $region31: #{tpu_custom_call.1} parent=1 // pred_check_branch
      %90 = sbr.rel (0) target = $region33
    $region32: #{tpu_custom_call.1} parent=1 // pred_region
      %91 = dma.done [#allocation6], 1024
    $region33: #{tpu_custom_call.1} parent=1 // pred_fallthru
      _
    // Predicated region
    $region34: #{tpu_custom_call.1} parent=1 // pred_check
      _
    $region35: #{tpu_custom_call.1} parent=1 // pred_check_branch
      %93 = sbr.rel (0) target = $region37
    $region36: #{tpu_custom_call.1} parent=1 // pred_region
      %94 = dma.done [#allocation6], 1024
    $region37: #{tpu_custom_call.1} parent=1 // pred_fallthru
      _
    // Predicated region
    $region38: #{tpu_custom_call.1} parent=1 // pred_check
      _
    $region39: #{tpu_custom_call.1} parent=1 // pred_check_branch
      %96 = sbr.rel (0) target = $region41
    $region40: #{tpu_custom_call.1} parent=1 // pred_region
      %97 = dma.done [#allocation9], 1024
    $region41: #{tpu_custom_call.1} parent=1 // pred_fallthru
      _
    // Predicated region
    $region42: #{tpu_custom_call.1} parent=1 // pred_check
      _
    $region43: #{tpu_custom_call.1} parent=1 // pred_check_branch
      %99 = sbr.rel (0) target = $region45
    $region44: #{tpu_custom_call.1} parent=1 // pred_region
      %100 = dma.done [#allocation9], 1024
    $region45: #{tpu_custom_call.1} parent=1 // pred_fallthru
      _
    // Predicated region
    $region46: #{tpu_custom_call.1} parent=1 // pred_check
      _
    $region47: #{tpu_custom_call.1} parent=1 // pred_check_branch
      %102 = sbr.rel (0) target = $region49
    $region48: #{tpu_custom_call.1} parent=1 // pred_region
      %103 = dma.done [#allocation12], 16
    $region49: #{tpu_custom_call.1} parent=1 // pred_fallthru
      _
    %v105 = vld [vmem:[#allocation2] sm:$0xff]
    %v106 = vld [vmem:[#allocation2 + $0x8] sm:$0xff]
    %v107 = vld [vmem:[#allocation2 + $0x10] sm:$0xff]
    %v108 = vld [vmem:[#allocation2 + $0x18] sm:$0xff]
    %v109 = vld [vmem:[#allocation2 + $0x20] sm:$0xff]
    %v110 = vld [vmem:[#allocation2 + $0x28] sm:$0xff]
    %v111 = vld [vmem:[#allocation2 + $0x30] sm:$0xff]
    %v112 = vld [vmem:[#allocation2 + $0x38] sm:$0xff]
    %v113 = vld [vmem:[#allocation2 + $0x40] sm:$0xff]
    %v114 = vld [vmem:[#allocation2 + $0x48] sm:$0xff]
    %v115 = vld [vmem:[#allocation2 + $0x50] sm:$0xff]
    %v116 = vld [vmem:[#allocation2 + $0x58] sm:$0xff]
    %v117 = vld [vmem:[#allocation2 + $0x60] sm:$0xff]
    %v118 = vld [vmem:[#allocation2 + $0x68] sm:$0xff]
    %v119 = vld [vmem:[#allocation2 + $0x70] sm:$0xff]
    %v120 = vld [vmem:[#allocation2 + $0x78] sm:$0xff]
    %v121 = vld [vmem:[#allocation2 + $0x80] sm:$0xff]
    %v122 = vld [vmem:[#allocation2 + $0x88] sm:$0xff]
    %v123 = vld [vmem:[#allocation2 + $0x90] sm:$0xff]
    %v124 = vld [vmem:[#allocation2 + $0x98] sm:$0xff]
    %v125 = vld [vmem:[#allocation2 + $0xa0] sm:$0xff]
    %v126 = vld [vmem:[#allocation2 + $0xa8] sm:$0xff]
    %v127 = vld [vmem:[#allocation2 + $0xb0] sm:$0xff]
    %v128 = vld [vmem:[#allocation2 + $0xb8] sm:$0xff]
    %v129 = vld [vmem:[#allocation2 + $0xc0] sm:$0xff]
    %v130 = vld [vmem:[#allocation2 + $0xc8] sm:$0xff]
    %v131 = vld [vmem:[#allocation2 + $0xd0] sm:$0xff]
    %v132 = vld [vmem:[#allocation2 + $0xd8] sm:$0xff]
    %v133 = vld [vmem:[#allocation2 + $0xe0] sm:$0xff]
    %v134 = vld [vmem:[#allocation2 + $0xe8] sm:$0xff]
    %v135 = vld [vmem:[#allocation2 + $0xf0] sm:$0xff]
    %v136 = vld [vmem:[#allocation2 + $0xf8] sm:$0xff]
    %v137 = vld [vmem:[#allocation2 + $0x100] sm:$0xff]
    %v138 = vld [vmem:[#allocation2 + $0x108] sm:$0xff]
    %v139 = vld [vmem:[#allocation2 + $0x110] sm:$0xff]
    %v140 = vld [vmem:[#allocation2 + $0x118] sm:$0xff]
    %v141 = vld [vmem:[#allocation2 + $0x120] sm:$0xff]
    %v142 = vld [vmem:[#allocation2 + $0x128] sm:$0xff]
    %v143 = vld [vmem:[#allocation2 + $0x130] sm:$0xff]
    %v144 = vld [vmem:[#allocation2 + $0x138] sm:$0xff]
    %v145 = vld [vmem:[#allocation2 + $0x140] sm:$0xff]
    %v146 = vld [vmem:[#allocation2 + $0x148] sm:$0xff]
    %v147 = vld [vmem:[#allocation2 + $0x150] sm:$0xff]
    %v148 = vld [vmem:[#allocation2 + $0x158] sm:$0xff]
    %v149 = vld [vmem:[#allocation2 + $0x160] sm:$0xff]
    %v150 = vld [vmem:[#allocation2 + $0x168] sm:$0xff]
    %v151 = vld [vmem:[#allocation2 + $0x170] sm:$0xff]
    %v152 = vld [vmem:[#allocation2 + $0x178] sm:$0xff]
    %v153 = vld [vmem:[#allocation2 + $0x180] sm:$0xff]
    %v154 = vld [vmem:[#allocation2 + $0x188] sm:$0xff]
    %v155 = vld [vmem:[#allocation2 + $0x190] sm:$0xff]
    %v156 = vld [vmem:[#allocation2 + $0x198] sm:$0xff]
    %v157 = vld [vmem:[#allocation2 + $0x1a0] sm:$0xff]
    %v158 = vld [vmem:[#allocation2 + $0x1a8] sm:$0xff]
    %v159 = vld [vmem:[#allocation2 + $0x1b0] sm:$0xff]
    %v160 = vld [vmem:[#allocation2 + $0x1b8] sm:$0xff]
    %v161 = vld [vmem:[#allocation2 + $0x1c0] sm:$0xff]
    %v162 = vld [vmem:[#allocation2 + $0x1c8] sm:$0xff]
    %v163 = vld [vmem:[#allocation2 + $0x1d0] sm:$0xff]
    %v164 = vld [vmem:[#allocation2 + $0x1d8] sm:$0xff]
    %v165 = vld [vmem:[#allocation2 + $0x1e0] sm:$0xff]
    %v166 = vld [vmem:[#allocation2 + $0x1e8] sm:$0xff]
    %v167 = vld [vmem:[#allocation2 + $0x1f0] sm:$0xff]
    %v168 = vld [vmem:[#allocation2 + $0x1f8] sm:$0xff]
    %v169 = vpack.c.bf16 %v106, %v105
    %v170 = vpack.c.bf16 %v108, %v107
    %v171 = vpack.c.bf16 %v110, %v109
    %v172 = vpack.c.bf16 %v112, %v111
    %v173 = vpack.c.bf16 %v114, %v113
    %v174 = vpack.c.bf16 %v116, %v115
    %v175 = vpack.c.bf16 %v118, %v117
    %v176 = vpack.c.bf16 %v120, %v119
    %v177 = vpack.c.bf16 %v122, %v121
    %v178 = vpack.c.bf16 %v124, %v123
    %v179 = vpack.c.bf16 %v126, %v125
    %v180 = vpack.c.bf16 %v128, %v127
    %v181 = vpack.c.bf16 %v130, %v129
    %v182 = vpack.c.bf16 %v132, %v131
    %v183 = vpack.c.bf16 %v134, %v133
    %v184 = vpack.c.bf16 %v136, %v135
    %v185 = vpack.c.bf16 %v138, %v137
    %v186 = vpack.c.bf16 %v140, %v139
    %v187 = vpack.c.bf16 %v142, %v141
    %v188 = vpack.c.bf16 %v144, %v143
    %v189 = vpack.c.bf16 %v146, %v145
    %v190 = vpack.c.bf16 %v148, %v147
    %v191 = vpack.c.bf16 %v150, %v149
    %v192 = vpack.c.bf16 %v152, %v151
    %v193 = vpack.c.bf16 %v154, %v153
    %v194 = vpack.c.bf16 %v156, %v155
    %v195 = vpack.c.bf16 %v158, %v157
    %v196 = vpack.c.bf16 %v160, %v159
    %v197 = vpack.c.bf16 %v162, %v161
    %v198 = vpack.c.bf16 %v164, %v163
    %v199 = vpack.c.bf16 %v166, %v165
    %v200 = vpack.c.bf16 %v168, %v167
    %v201 = vld [vmem:[#allocation5] sm:$0xf]
    %v202 = vld [vmem:[#allocation5 + $0x4] sm:$0xf]
    %v203 = vld [vmem:[#allocation5 + $0x8] sm:$0xf]
    %v204 = vld [vmem:[#allocation5 + $0xc] sm:$0xf]
    %v205 = vld [vmem:[#allocation5 + $0x10] sm:$0xf]
    %v206 = vld [vmem:[#allocation5 + $0x14] sm:$0xf]
    %v207 = vld [vmem:[#allocation5 + $0x18] sm:$0xf]
    %v208 = vld [vmem:[#allocation5 + $0x1c] sm:$0xf]
    %v209 = vld [vmem:[#allocation5 + $0x20] sm:$0xf]
    %v210 = vld [vmem:[#allocation5 + $0x24] sm:$0xf]
    %v211 = vld [vmem:[#allocation5 + $0x28] sm:$0xf]
    %v212 = vld [vmem:[#allocation5 + $0x2c] sm:$0xf]
    %v213 = vld [vmem:[#allocation5 + $0x30] sm:$0xf]
    %v214 = vld [vmem:[#allocation5 + $0x34] sm:$0xf]
    %v215 = vld [vmem:[#allocation5 + $0x38] sm:$0xf]
    %v216 = vld [vmem:[#allocation5 + $0x3c] sm:$0xf]
    %v233 = vunpack.c.l.b16 %v201
    %v234 = vunpack.c.l.b16 %v202
    %v235 = vunpack.c.l.b16 %v203
    %v236 = vunpack.c.l.b16 %v204
    %v237 = vunpack.c.l.b16 %v205
    %v238 = vunpack.c.l.b16 %v206
    %v239 = vunpack.c.l.b16 %v207
    %v240 = vunpack.c.l.b16 %v208
    %v241 = vunpack.c.l.b16 %v209
    %v242 = vunpack.c.l.b16 %v210
    %v243 = vunpack.c.l.b16 %v211
    %v244 = vunpack.c.l.b16 %v212
    %v245 = vunpack.c.l.b16 %v213
    %v246 = vunpack.c.l.b16 %v214
    %v247 = vunpack.c.l.b16 %v215
    %v248 = vunpack.c.l.b16 %v216
    %v249 = vpack.c.b16 %v234, %v233
    %v250 = vpack.c.b16 %v236, %v235
    %v251 = vpack.c.b16 %v238, %v237
    %v252 = vpack.c.b16 %v240, %v239
    %v253 = vpack.c.b16 %v242, %v241
    %v254 = vpack.c.b16 %v244, %v243
    %v255 = vpack.c.b16 %v246, %v245
    %v256 = vpack.c.b16 %v248, %v247
    %265 = vmatprep.subr.bf16.mxu0 0
    %266 = vmatpush1.bf16.msra.mxu0 %v249
    %267 = vmatprep.subr.bf16.mxu0 0
    %268 = vmatpush1.bf16.msra.mxu0 %v250
    %269 = vmatprep.subr.bf16.mxu0 0
    %270 = vmatpush1.bf16.msra.mxu0 %v251
    %271 = vmatprep.subr.bf16.mxu0 0
    %272 = vmatpush1.bf16.msra.mxu0 %v252
    %273 = vmatprep.subr.bf16.mxu0 0
    %274 = vmatpush1.bf16.msra.mxu0 %v253
    %275 = vmatprep.subr.bf16.mxu0 0
    %276 = vmatpush1.bf16.msra.mxu0 %v254
    %277 = vmatprep.subr.bf16.mxu0 0
    %278 = vmatpush1.bf16.msra.mxu0 %v255
    %279 = vmatprep.subr.bf16.mxu0 0
    %280 = vmatpush1.bf16.msra.mxu0 %v256
    %281 = vmatprep.subr.bf16.mxu0 0
    %282 = vmatpush1.bf16.msra.mxu0 0
    %283 = vmatprep.subr.bf16.mxu0 0
    %284 = vmatpush1.bf16.msra.mxu0 0
    %285 = vmatprep.subr.bf16.mxu0 0
    %286 = vmatpush1.bf16.msra.mxu0 0
    %287 = vmatprep.subr.bf16.mxu0 0
    %288 = vmatpush1.bf16.msra.mxu0 0
    %289 = vmatprep.subr.bf16.mxu0 0
    %290 = vmatpush1.bf16.msra.mxu0 0
    %291 = vmatprep.subr.bf16.mxu0 0
    %292 = vmatpush1.bf16.msra.mxu0 0
    %293 = vmatprep.subr.bf16.mxu0 0
    %294 = vmatpush1.bf16.msra.mxu0 0
    %295 = vmatprep.subr.bf16.mxu0 0
    %296 = vmatpush1.bf16.msra.mxu0 0
    %297 = vmatprep.mubr.bf16.mxu0 0
    %298 = vmatmul.mubr.bf16.gmra.mrb[0].mxu0 %v169
    %v299 = vpop.f32.mrb[0].mxu0
    %v300 = vadd.f32 0.0, %v299
    %v301 = vpop.f32.mrb[0].mxu0
    %v302 = vpop.f32.mrb[0].mxu0
    %v303 = vadd.f32 0.0, %v302
    %v304 = vpop.f32.mrb[0].mxu0
    %305 = vmatprep.mubr.bf16.mxu0 0
    %306 = vmatmul.mubr.bf16.gmra.mrb[0].mxu0 %v170
    %v307 = vpop.f32.mrb[0].mxu0
    %v308 = vadd.f32 0.0, %v307
    %v309 = vpop.f32.mrb[0].mxu0
    %v310 = vpop.f32.mrb[0].mxu0
    %v311 = vadd.f32 0.0, %v310
    %v312 = vpop.f32.mrb[0].mxu0
    %313 = vmatprep.mubr.bf16.mxu0 0
    %314 = vmatmul.mubr.bf16.gmra.mrb[0].mxu0 %v171
    %v315 = vpop.f32.mrb[0].mxu0
    %v316 = vadd.f32 0.0, %v315
    %v317 = vpop.f32.mrb[0].mxu0
    %v318 = vpop.f32.mrb[0].mxu0
    %v319 = vadd.f32 0.0, %v318
    %v320 = vpop.f32.mrb[0].mxu0
    %321 = vmatprep.mubr.bf16.mxu0 0
    %322 = vmatmul.mubr.bf16.gmra.mrb[0].mxu0 %v172
    %v323 = vpop.f32.mrb[0].mxu0
    %v324 = vadd.f32 0.0, %v323
    %v325 = vpop.f32.mrb[0].mxu0
    %v326 = vpop.f32.mrb[0].mxu0
    %v327 = vadd.f32 0.0, %v326
    %v328 = vpop.f32.mrb[0].mxu0
    %329 = vmatprep.mubr.bf16.mxu0 0
    %330 = vmatmul.mubr.bf16.gmra.mrb[0].mxu0 %v173
    %v331 = vpop.f32.mrb[0].mxu0
    %v332 = vadd.f32 0.0, %v331
    %v333 = vpop.f32.mrb[0].mxu0
    %v334 = vpop.f32.mrb[0].mxu0
    %v335 = vadd.f32 0.0, %v334
    %v336 = vpop.f32.mrb[0].mxu0
    %337 = vmatprep.mubr.bf16.mxu0 0
    %338 = vmatmul.mubr.bf16.gmra.mrb[0].mxu0 %v174
    %v339 = vpop.f32.mrb[0].mxu0
    %v340 = vadd.f32 0.0, %v339
    %v341 = vpop.f32.mrb[0].mxu0
    %v342 = vpop.f32.mrb[0].mxu0
    %v343 = vadd.f32 0.0, %v342
    %v344 = vpop.f32.mrb[0].mxu0
    %345 = vmatprep.mubr.bf16.mxu0 0
    %346 = vmatmul.mubr.bf16.gmra.mrb[0].mxu0 %v175
    %v347 = vpop.f32.mrb[0].mxu0
    %v348 = vadd.f32 0.0, %v347
    %v349 = vpop.f32.mrb[0].mxu0
    %v350 = vpop.f32.mrb[0].mxu0
    %v351 = vadd.f32 0.0, %v350
    %v352 = vpop.f32.mrb[0].mxu0
    %353 = vmatprep.mubr.bf16.mxu0 0
    %354 = vmatmul.mubr.bf16.gmra.mrb[0].mxu0 %v176
    %v355 = vpop.f32.mrb[0].mxu0
    %v356 = vadd.f32 0.0, %v355
    %v357 = vpop.f32.mrb[0].mxu0
    %v358 = vpop.f32.mrb[0].mxu0
    %v359 = vadd.f32 0.0, %v358
    %v360 = vpop.f32.mrb[0].mxu0
    %361 = vmatprep.mubr.bf16.mxu0 0
    %362 = vmatmul.mubr.bf16.gmra.mrb[0].mxu0 %v177
    %v363 = vpop.f32.mrb[0].mxu0
    %v364 = vadd.f32 0.0, %v363
    %v365 = vpop.f32.mrb[0].mxu0
    %v366 = vpop.f32.mrb[0].mxu0
    %v367 = vadd.f32 0.0, %v366
    %v368 = vpop.f32.mrb[0].mxu0
    %369 = vmatprep.mubr.bf16.mxu0 0
    %370 = vmatmul.mubr.bf16.gmra.mrb[0].mxu0 %v178
    %v371 = vpop.f32.mrb[0].mxu0
    %v372 = vadd.f32 0.0, %v371
    %v373 = vpop.f32.mrb[0].mxu0
    %v374 = vpop.f32.mrb[0].mxu0
    %v375 = vadd.f32 0.0, %v374
    %v376 = vpop.f32.mrb[0].mxu0
    %377 = vmatprep.mubr.bf16.mxu0 0
    %378 = vmatmul.mubr.bf16.gmra.mrb[0].mxu0 %v179
    %v379 = vpop.f32.mrb[0].mxu0
    %v380 = vadd.f32 0.0, %v379
    %v381 = vpop.f32.mrb[0].mxu0
    %v382 = vpop.f32.mrb[0].mxu0
    %v383 = vadd.f32 0.0, %v382
    %v384 = vpop.f32.mrb[0].mxu0
    %385 = vmatprep.mubr.bf16.mxu0 0
    %386 = vmatmul.mubr.bf16.gmra.mrb[0].mxu0 %v180
    %v387 = vpop.f32.mrb[0].mxu0
    %v388 = vadd.f32 0.0, %v387
    %v389 = vpop.f32.mrb[0].mxu0
    %v390 = vpop.f32.mrb[0].mxu0
    %v391 = vadd.f32 0.0, %v390
    %v392 = vpop.f32.mrb[0].mxu0
    %393 = vmatprep.mubr.bf16.mxu0 0
    %394 = vmatmul.mubr.bf16.gmra.mrb[0].mxu0 %v181
    %v395 = vpop.f32.mrb[0].mxu0
    %v396 = vadd.f32 0.0, %v395
    %v397 = vpop.f32.mrb[0].mxu0
    %v398 = vpop.f32.mrb[0].mxu0
    %v399 = vadd.f32 0.0, %v398
    %v400 = vpop.f32.mrb[0].mxu0
    %401 = vmatprep.mubr.bf16.mxu0 0
    %402 = vmatmul.mubr.bf16.gmra.mrb[0].mxu0 %v182
    %v403 = vpop.f32.mrb[0].mxu0
    %v404 = vadd.f32 0.0, %v403
    %v405 = vpop.f32.mrb[0].mxu0
    %v406 = vpop.f32.mrb[0].mxu0
    %v407 = vadd.f32 0.0, %v406
    %v408 = vpop.f32.mrb[0].mxu0
    %409 = vmatprep.mubr.bf16.mxu0 0
    %410 = vmatmul.mubr.bf16.gmra.mrb[0].mxu0 %v183
    %v411 = vpop.f32.mrb[0].mxu0
    %v412 = vadd.f32 0.0, %v411
    %v413 = vpop.f32.mrb[0].mxu0
    %v414 = vpop.f32.mrb[0].mxu0
    %v415 = vadd.f32 0.0, %v414
    %v416 = vpop.f32.mrb[0].mxu0
    %417 = vmatprep.mubr.bf16.mxu0 0
    %418 = vmatmul.mubr.bf16.gmra.mrb[0].mxu0 %v184
    %v419 = vpop.f32.mrb[0].mxu0
    %v420 = vadd.f32 0.0, %v419
    %v421 = vpop.f32.mrb[0].mxu0
    %v422 = vpop.f32.mrb[0].mxu0
    %v423 = vadd.f32 0.0, %v422
    %v424 = vpop.f32.mrb[0].mxu0
    %425 = vmatprep.mubr.bf16.mxu0 0
    %426 = vmatmul.mubr.bf16.gmra.mrb[0].mxu0 %v185
    %v427 = vpop.f32.mrb[0].mxu0
    %v428 = vadd.f32 0.0, %v427
    %v429 = vpop.f32.mrb[0].mxu0
    %v430 = vpop.f32.mrb[0].mxu0
    %v431 = vadd.f32 0.0, %v430
    %v432 = vpop.f32.mrb[0].mxu0
    %433 = vmatprep.mubr.bf16.mxu0 0
    %434 = vmatmul.mubr.bf16.gmra.mrb[0].mxu0 %v186
    %v435 = vpop.f32.mrb[0].mxu0
    %v436 = vadd.f32 0.0, %v435
    %v437 = vpop.f32.mrb[0].mxu0
    %v438 = vpop.f32.mrb[0].mxu0
    %v439 = vadd.f32 0.0, %v438
    %v440 = vpop.f32.mrb[0].mxu0
    %441 = vmatprep.mubr.bf16.mxu0 0
    %442 = vmatmul.mubr.bf16.gmra.mrb[0].mxu0 %v187
    %v443 = vpop.f32.mrb[0].mxu0
    %v444 = vadd.f32 0.0, %v443
    %v445 = vpop.f32.mrb[0].mxu0
    %v446 = vpop.f32.mrb[0].mxu0
    %v447 = vadd.f32 0.0, %v446
    %v448 = vpop.f32.mrb[0].mxu0
    %449 = vmatprep.mubr.bf16.mxu0 0
    %450 = vmatmul.mubr.bf16.gmra.mrb[0].mxu0 %v188
    %v451 = vpop.f32.mrb[0].mxu0
    %v452 = vadd.f32 0.0, %v451
    %v453 = vpop.f32.mrb[0].mxu0
    %v454 = vpop.f32.mrb[0].mxu0
    %v455 = vadd.f32 0.0, %v454
    %v456 = vpop.f32.mrb[0].mxu0
    %457 = vmatprep.mubr.bf16.mxu0 0
    %458 = vmatmul.mubr.bf16.gmra.mrb[0].mxu0 %v189
    %v459 = vpop.f32.mrb[0].mxu0
    %v460 = vadd.f32 0.0, %v459
    %v461 = vpop.f32.mrb[0].mxu0
    %v462 = vpop.f32.mrb[0].mxu0
    %v463 = vadd.f32 0.0, %v462
    %v464 = vpop.f32.mrb[0].mxu0
    %465 = vmatprep.mubr.bf16.mxu0 0
    %466 = vmatmul.mubr.bf16.gmra.mrb[0].mxu0 %v190
    %v467 = vpop.f32.mrb[0].mxu0
    %v468 = vadd.f32 0.0, %v467
    %v469 = vpop.f32.mrb[0].mxu0
    %v470 = vpop.f32.mrb[0].mxu0
    %v471 = vadd.f32 0.0, %v470
    %v472 = vpop.f32.mrb[0].mxu0
    %473 = vmatprep.mubr.bf16.mxu0 0
    %474 = vmatmul.mubr.bf16.gmra.mrb[0].mxu0 %v191
    %v475 = vpop.f32.mrb[0].mxu0
    %v476 = vadd.f32 0.0, %v475
    %v477 = vpop.f32.mrb[0].mxu0
    %v478 = vpop.f32.mrb[0].mxu0
    %v479 = vadd.f32 0.0, %v478
    %v480 = vpop.f32.mrb[0].mxu0
    %481 = vmatprep.mubr.bf16.mxu0 0
    %482 = vmatmul.mubr.bf16.gmra.mrb[0].mxu0 %v192
    %v483 = vpop.f32.mrb[0].mxu0
    %v484 = vadd.f32 0.0, %v483
    %v485 = vpop.f32.mrb[0].mxu0
    %v486 = vpop.f32.mrb[0].mxu0
    %v487 = vadd.f32 0.0, %v486
    %v488 = vpop.f32.mrb[0].mxu0
    %489 = vmatprep.mubr.bf16.mxu0 0
    %490 = vmatmul.mubr.bf16.gmra.mrb[0].mxu0 %v193
    %v491 = vpop.f32.mrb[0].mxu0
    %v492 = vadd.f32 0.0, %v491
    %v493 = vpop.f32.mrb[0].mxu0
    %v494 = vpop.f32.mrb[0].mxu0
    %v495 = vadd.f32 0.0, %v494
    %v496 = vpop.f32.mrb[0].mxu0
    %497 = vmatprep.mubr.bf16.mxu0 0
    %498 = vmatmul.mubr.bf16.gmra.mrb[0].mxu0 %v194
    %v499 = vpop.f32.mrb[0].mxu0
    %v500 = vadd.f32 0.0, %v499
    %v501 = vpop.f32.mrb[0].mxu0
    %v502 = vpop.f32.mrb[0].mxu0
    %v503 = vadd.f32 0.0, %v502
    %v504 = vpop.f32.mrb[0].mxu0
    %505 = vmatprep.mubr.bf16.mxu0 0
    %506 = vmatmul.mubr.bf16.gmra.mrb[0].mxu0 %v195
    %v507 = vpop.f32.mrb[0].mxu0
    %v508 = vadd.f32 0.0, %v507
    %v509 = vpop.f32.mrb[0].mxu0
    %v510 = vpop.f32.mrb[0].mxu0
    %v511 = vadd.f32 0.0, %v510
    %v512 = vpop.f32.mrb[0].mxu0
    %513 = vmatprep.mubr.bf16.mxu0 0
    %514 = vmatmul.mubr.bf16.gmra.mrb[0].mxu0 %v196
    %v515 = vpop.f32.mrb[0].mxu0
    %v516 = vadd.f32 0.0, %v515
    %v517 = vpop.f32.mrb[0].mxu0
    %v518 = vpop.f32.mrb[0].mxu0
    %v519 = vadd.f32 0.0, %v518
    %v520 = vpop.f32.mrb[0].mxu0
    %521 = vmatprep.mubr.bf16.mxu0 0
    %522 = vmatmul.mubr.bf16.gmra.mrb[0].mxu0 %v197
    %v523 = vpop.f32.mrb[0].mxu0
    %v524 = vadd.f32 0.0, %v523
    %v525 = vpop.f32.mrb[0].mxu0
    %v526 = vpop.f32.mrb[0].mxu0
    %v527 = vadd.f32 0.0, %v526
    %v528 = vpop.f32.mrb[0].mxu0
    %529 = vmatprep.mubr.bf16.mxu0 0
    %530 = vmatmul.mubr.bf16.gmra.mrb[0].mxu0 %v198
    %v531 = vpop.f32.mrb[0].mxu0
    %v532 = vadd.f32 0.0, %v531
    %v533 = vpop.f32.mrb[0].mxu0
    %v534 = vpop.f32.mrb[0].mxu0
    %v535 = vadd.f32 0.0, %v534
    %v536 = vpop.f32.mrb[0].mxu0
    %537 = vmatprep.mubr.bf16.mxu0 0
    %538 = vmatmul.mubr.bf16.gmra.mrb[0].mxu0 %v199
    %v539 = vpop.f32.mrb[0].mxu0
    %v540 = vadd.f32 0.0, %v539
    %v541 = vpop.f32.mrb[0].mxu0
    %v542 = vpop.f32.mrb[0].mxu0
    %v543 = vadd.f32 0.0, %v542
    %v544 = vpop.f32.mrb[0].mxu0
    %545 = vmatprep.mubr.bf16.mxu0 0
    %546 = vmatmul.mubr.bf16.gmra.mrb[0].mxu0 %v200
    %v547 = vpop.f32.mrb[0].mxu0
    %v548 = vadd.f32 0.0, %v547
    %v549 = vpop.f32.mrb[0].mxu0
    %v550 = vpop.f32.mrb[0].mxu0
    %v551 = vadd.f32 0.0, %v550
    %v552 = vpop.f32.mrb[0].mxu0
    %553 = vdwg.mxu0
    %v554 = vld [vmem:[#allocation7] sm:$0xf]
    %v555 = vld [vmem:[#allocation7 + $0x4] sm:$0xf]
    %v556 = vld [vmem:[#allocation7 + $0x8] sm:$0xf]
    %v557 = vld [vmem:[#allocation7 + $0xc] sm:$0xf]
    %v558 = vld [vmem:[#allocation7 + $0x10] sm:$0xf]
    %v559 = vld [vmem:[#allocation7 + $0x14] sm:$0xf]
    %v560 = vld [vmem:[#allocation7 + $0x18] sm:$0xf]
    %v561 = vld [vmem:[#allocation7 + $0x1c] sm:$0xf]
    %v562 = vld [vmem:[#allocation7 + $0x20] sm:$0xf]
    %v563 = vld [vmem:[#allocation7 + $0x24] sm:$0xf]
    %v564 = vld [vmem:[#allocation7 + $0x28] sm:$0xf]
    %v565 = vld [vmem:[#allocation7 + $0x2c] sm:$0xf]
    %v566 = vld [vmem:[#allocation7 + $0x30] sm:$0xf]
    %v567 = vld [vmem:[#allocation7 + $0x34] sm:$0xf]
    %v568 = vld [vmem:[#allocation7 + $0x38] sm:$0xf]
    %v569 = vld [vmem:[#allocation7 + $0x3c] sm:$0xf]
    %v586 = vunpack.c.l.b16 %v554
    %v587 = vunpack.c.l.b16 %v555
    %v588 = vunpack.c.l.b16 %v556
    %v589 = vunpack.c.l.b16 %v557
    %v590 = vunpack.c.l.b16 %v558
    %v591 = vunpack.c.l.b16 %v559
    %v592 = vunpack.c.l.b16 %v560
    %v593 = vunpack.c.l.b16 %v561
    %v594 = vunpack.c.l.b16 %v562
    %v595 = vunpack.c.l.b16 %v563
    %v596 = vunpack.c.l.b16 %v564
    %v597 = vunpack.c.l.b16 %v565
    %v598 = vunpack.c.l.b16 %v566
    %v599 = vunpack.c.l.b16 %v567
    %v600 = vunpack.c.l.b16 %v568
    %v601 = vunpack.c.l.b16 %v569
    %v602 = vpack.c.b16 %v587, %v586
    %v603 = vpack.c.b16 %v589, %v588
    %v604 = vpack.c.b16 %v591, %v590
    %v605 = vpack.c.b16 %v593, %v592
    %v606 = vpack.c.b16 %v595, %v594
    %v607 = vpack.c.b16 %v597, %v596
    %v608 = vpack.c.b16 %v599, %v598
    %v609 = vpack.c.b16 %v601, %v600
    %618 = vmatprep.subr.bf16.mxu0 0
    %619 = vmatpush1.bf16.msra.mxu0 %v602
    %620 = vmatprep.subr.bf16.mxu0 0
    %621 = vmatpush1.bf16.msra.mxu0 %v603
    %622 = vmatprep.subr.bf16.mxu0 0
    %623 = vmatpush1.bf16.msra.mxu0 %v604
    %624 = vmatprep.subr.bf16.mxu0 0
    %625 = vmatpush1.bf16.msra.mxu0 %v605
    %626 = vmatprep.subr.bf16.mxu0 0
    %627 = vmatpush1.bf16.msra.mxu0 %v606
    %628 = vmatprep.subr.bf16.mxu0 0
    %629 = vmatpush1.bf16.msra.mxu0 %v607
    %630 = vmatprep.subr.bf16.mxu0 0
    %631 = vmatpush1.bf16.msra.mxu0 %v608
    %632 = vmatprep.subr.bf16.mxu0 0
    %633 = vmatpush1.bf16.msra.mxu0 %v609
    %634 = vmatprep.subr.bf16.mxu0 0
    %635 = vmatpush1.bf16.msra.mxu0 0
    %636 = vmatprep.subr.bf16.mxu0 0
    %637 = vmatpush1.bf16.msra.mxu0 0
    %638 = vmatprep.subr.bf16.mxu0 0
    %639 = vmatpush1.bf16.msra.mxu0 0
    %640 = vmatprep.subr.bf16.mxu0 0
    %641 = vmatpush1.bf16.msra.mxu0 0
    %642 = vmatprep.subr.bf16.mxu0 0
    %643 = vmatpush1.bf16.msra.mxu0 0
    %644 = vmatprep.subr.bf16.mxu0 0
    %645 = vmatpush1.bf16.msra.mxu0 0
    %646 = vmatprep.subr.bf16.mxu0 0
    %647 = vmatpush1.bf16.msra.mxu0 0
    %648 = vmatprep.subr.bf16.mxu0 0
    %649 = vmatpush1.bf16.msra.mxu0 0
    %650 = vmatprep.mubr.bf16.mxu0 0
    %651 = vmatmul.mubr.bf16.gmra.mrb[0].mxu0 %v169
    %v652 = vpop.f32.mrb[0].mxu0
    %v653 = vadd.f32 0.0, %v652
    %v654 = vpop.f32.mrb[0].mxu0
    %v655 = vpop.f32.mrb[0].mxu0
    %v656 = vadd.f32 0.0, %v655
    %v657 = vpop.f32.mrb[0].mxu0
    %658 = vmatprep.mubr.bf16.mxu0 0
    %659 = vmatmul.mubr.bf16.gmra.mrb[0].mxu0 %v170
    %v660 = vpop.f32.mrb[0].mxu0
    %v661 = vadd.f32 0.0, %v660
    %v662 = vpop.f32.mrb[0].mxu0
    %v663 = vpop.f32.mrb[0].mxu0
    %v664 = vadd.f32 0.0, %v663
    %v665 = vpop.f32.mrb[0].mxu0
    %666 = vmatprep.mubr.bf16.mxu0 0
    %667 = vmatmul.mubr.bf16.gmra.mrb[0].mxu0 %v171
    %v668 = vpop.f32.mrb[0].mxu0
    %v669 = vadd.f32 0.0, %v668
    %v670 = vpop.f32.mrb[0].mxu0
    %v671 = vpop.f32.mrb[0].mxu0
    %v672 = vadd.f32 0.0, %v671
    %v673 = vpop.f32.mrb[0].mxu0
    %674 = vmatprep.mubr.bf16.mxu0 0
    %675 = vmatmul.mubr.bf16.gmra.mrb[0].mxu0 %v172
    %v676 = vpop.f32.mrb[0].mxu0
    %v677 = vadd.f32 0.0, %v676
    %v678 = vpop.f32.mrb[0].mxu0
    %v679 = vpop.f32.mrb[0].mxu0
    %v680 = vadd.f32 0.0, %v679
    %v681 = vpop.f32.mrb[0].mxu0
    %682 = vmatprep.mubr.bf16.mxu0 0
    %683 = vmatmul.mubr.bf16.gmra.mrb[0].mxu0 %v173
    %v684 = vpop.f32.mrb[0].mxu0
    %v685 = vadd.f32 0.0, %v684
    %v686 = vpop.f32.mrb[0].mxu0
    %v687 = vpop.f32.mrb[0].mxu0
    %v688 = vadd.f32 0.0, %v687
    %v689 = vpop.f32.mrb[0].mxu0
    %690 = vmatprep.mubr.bf16.mxu0 0
    %691 = vmatmul.mubr.bf16.gmra.mrb[0].mxu0 %v174
    %v692 = vpop.f32.mrb[0].mxu0
    %v693 = vadd.f32 0.0, %v692
    %v694 = vpop.f32.mrb[0].mxu0
    %v695 = vpop.f32.mrb[0].mxu0
    %v696 = vadd.f32 0.0, %v695
    %v697 = vpop.f32.mrb[0].mxu0
    %698 = vmatprep.mubr.bf16.mxu0 0
    %699 = vmatmul.mubr.bf16.gmra.mrb[0].mxu0 %v175
    %v700 = vpop.f32.mrb[0].mxu0
    %v701 = vadd.f32 0.0, %v700
    %v702 = vpop.f32.mrb[0].mxu0
    %v703 = vpop.f32.mrb[0].mxu0
    %v704 = vadd.f32 0.0, %v703
    %v705 = vpop.f32.mrb[0].mxu0
    %706 = vmatprep.mubr.bf16.mxu0 0
    %707 = vmatmul.mubr.bf16.gmra.mrb[0].mxu0 %v176
    %v708 = vpop.f32.mrb[0].mxu0
    %v709 = vadd.f32 0.0, %v708
    %v710 = vpop.f32.mrb[0].mxu0
    %v711 = vpop.f32.mrb[0].mxu0
    %v712 = vadd.f32 0.0, %v711
    %v713 = vpop.f32.mrb[0].mxu0
    %714 = vmatprep.mubr.bf16.mxu0 0
    %715 = vmatmul.mubr.bf16.gmra.mrb[0].mxu0 %v177
    %v716 = vpop.f32.mrb[0].mxu0
    %v717 = vadd.f32 0.0, %v716
    %v718 = vpop.f32.mrb[0].mxu0
    %v719 = vpop.f32.mrb[0].mxu0
    %v720 = vadd.f32 0.0, %v719
    %v721 = vpop.f32.mrb[0].mxu0
    %722 = vmatprep.mubr.bf16.mxu0 0
    %723 = vmatmul.mubr.bf16.gmra.mrb[0].mxu0 %v178
    %v724 = vpop.f32.mrb[0].mxu0
    %v725 = vadd.f32 0.0, %v724
    %v726 = vpop.f32.mrb[0].mxu0
    %v727 = vpop.f32.mrb[0].mxu0
    %v728 = vadd.f32 0.0, %v727
    %v729 = vpop.f32.mrb[0].mxu0
    %730 = vmatprep.mubr.bf16.mxu0 0
    %731 = vmatmul.mubr.bf16.gmra.mrb[0].mxu0 %v179
    %v732 = vpop.f32.mrb[0].mxu0
    %v733 = vadd.f32 0.0, %v732
    %v734 = vpop.f32.mrb[0].mxu0
    %v735 = vpop.f32.mrb[0].mxu0
    %v736 = vadd.f32 0.0, %v735
    %v737 = vpop.f32.mrb[0].mxu0
    %738 = vmatprep.mubr.bf16.mxu0 0
    %739 = vmatmul.mubr.bf16.gmra.mrb[0].mxu0 %v180
    %v740 = vpop.f32.mrb[0].mxu0
    %v741 = vadd.f32 0.0, %v740
    %v742 = vpop.f32.mrb[0].mxu0
    %v743 = vpop.f32.mrb[0].mxu0
    %v744 = vadd.f32 0.0, %v743
    %v745 = vpop.f32.mrb[0].mxu0
    %746 = vmatprep.mubr.bf16.mxu0 0
    %747 = vmatmul.mubr.bf16.gmra.mrb[0].mxu0 %v181
    %v748 = vpop.f32.mrb[0].mxu0
    %v749 = vadd.f32 0.0, %v748
    %v750 = vpop.f32.mrb[0].mxu0
    %v751 = vpop.f32.mrb[0].mxu0
    %v752 = vadd.f32 0.0, %v751
    %v753 = vpop.f32.mrb[0].mxu0
    %754 = vmatprep.mubr.bf16.mxu0 0
    %755 = vmatmul.mubr.bf16.gmra.mrb[0].mxu0 %v182
    %v756 = vpop.f32.mrb[0].mxu0
    %v757 = vadd.f32 0.0, %v756
    %v758 = vpop.f32.mrb[0].mxu0
    %v759 = vpop.f32.mrb[0].mxu0
    %v760 = vadd.f32 0.0, %v759
    %v761 = vpop.f32.mrb[0].mxu0
    %762 = vmatprep.mubr.bf16.mxu0 0
    %763 = vmatmul.mubr.bf16.gmra.mrb[0].mxu0 %v183
    %v764 = vpop.f32.mrb[0].mxu0
    %v765 = vadd.f32 0.0, %v764
    %v766 = vpop.f32.mrb[0].mxu0
    %v767 = vpop.f32.mrb[0].mxu0
    %v768 = vadd.f32 0.0, %v767
    %v769 = vpop.f32.mrb[0].mxu0
    %770 = vmatprep.mubr.bf16.mxu0 0
    %771 = vmatmul.mubr.bf16.gmra.mrb[0].mxu0 %v184
    %v772 = vpop.f32.mrb[0].mxu0
    %v773 = vadd.f32 0.0, %v772
    %v774 = vpop.f32.mrb[0].mxu0
    %v775 = vpop.f32.mrb[0].mxu0
    %v776 = vadd.f32 0.0, %v775
    %v777 = vpop.f32.mrb[0].mxu0
    %778 = vmatprep.mubr.bf16.mxu0 0
    %779 = vmatmul.mubr.bf16.gmra.mrb[0].mxu0 %v185
    %v780 = vpop.f32.mrb[0].mxu0
    %v781 = vadd.f32 0.0, %v780
    %v782 = vpop.f32.mrb[0].mxu0
    %v783 = vpop.f32.mrb[0].mxu0
    %v784 = vadd.f32 0.0, %v783
    %v785 = vpop.f32.mrb[0].mxu0
    %786 = vmatprep.mubr.bf16.mxu0 0
    %787 = vmatmul.mubr.bf16.gmra.mrb[0].mxu0 %v186
    %v788 = vpop.f32.mrb[0].mxu0
    %v789 = vadd.f32 0.0, %v788
    %v790 = vpop.f32.mrb[0].mxu0
    %v791 = vpop.f32.mrb[0].mxu0
    %v792 = vadd.f32 0.0, %v791
    %v793 = vpop.f32.mrb[0].mxu0
    %794 = vmatprep.mubr.bf16.mxu0 0
    %795 = vmatmul.mubr.bf16.gmra.mrb[0].mxu0 %v187
    %v796 = vpop.f32.mrb[0].mxu0
    %v797 = vadd.f32 0.0, %v796
    %v798 = vpop.f32.mrb[0].mxu0
    %v799 = vpop.f32.mrb[0].mxu0
    %v800 = vadd.f32 0.0, %v799
    %v801 = vpop.f32.mrb[0].mxu0
    %802 = vmatprep.mubr.bf16.mxu0 0
    %803 = vmatmul.mubr.bf16.gmra.mrb[0].mxu0 %v188
    %v804 = vpop.f32.mrb[0].mxu0
    %v805 = vadd.f32 0.0, %v804
    %v806 = vpop.f32.mrb[0].mxu0
    %v807 = vpop.f32.mrb[0].mxu0
    %v808 = vadd.f32 0.0, %v807
    %v809 = vpop.f32.mrb[0].mxu0
    %810 = vmatprep.mubr.bf16.mxu0 0
    %811 = vmatmul.mubr.bf16.gmra.mrb[0].mxu0 %v189
    %v812 = vpop.f32.mrb[0].mxu0
    %v813 = vadd.f32 0.0, %v812
    %v814 = vpop.f32.mrb[0].mxu0
    %v815 = vpop.f32.mrb[0].mxu0
    %v816 = vadd.f32 0.0, %v815
    %v817 = vpop.f32.mrb[0].mxu0
    %818 = vmatprep.mubr.bf16.mxu0 0
    %819 = vmatmul.mubr.bf16.gmra.mrb[0].mxu0 %v190
    %v820 = vpop.f32.mrb[0].mxu0
    %v821 = vadd.f32 0.0, %v820
    %v822 = vpop.f32.mrb[0].mxu0
    %v823 = vpop.f32.mrb[0].mxu0
    %v824 = vadd.f32 0.0, %v823
    %v825 = vpop.f32.mrb[0].mxu0
    %826 = vmatprep.mubr.bf16.mxu0 0
    %827 = vmatmul.mubr.bf16.gmra.mrb[0].mxu0 %v191
    %v828 = vpop.f32.mrb[0].mxu0
    %v829 = vadd.f32 0.0, %v828
    %v830 = vpop.f32.mrb[0].mxu0
    %v831 = vpop.f32.mrb[0].mxu0
    %v832 = vadd.f32 0.0, %v831
    %v833 = vpop.f32.mrb[0].mxu0
    %834 = vmatprep.mubr.bf16.mxu0 0
    %835 = vmatmul.mubr.bf16.gmra.mrb[0].mxu0 %v192
    %v836 = vpop.f32.mrb[0].mxu0
    %v837 = vadd.f32 0.0, %v836
    %v838 = vpop.f32.mrb[0].mxu0
    %v839 = vpop.f32.mrb[0].mxu0
    %v840 = vadd.f32 0.0, %v839
    %v841 = vpop.f32.mrb[0].mxu0
    %842 = vmatprep.mubr.bf16.mxu0 0
    %843 = vmatmul.mubr.bf16.gmra.mrb[0].mxu0 %v193
    %v844 = vpop.f32.mrb[0].mxu0
    %v845 = vadd.f32 0.0, %v844
    %v846 = vpop.f32.mrb[0].mxu0
    %v847 = vpop.f32.mrb[0].mxu0
    %v848 = vadd.f32 0.0, %v847
    %v849 = vpop.f32.mrb[0].mxu0
    %850 = vmatprep.mubr.bf16.mxu0 0
    %851 = vmatmul.mubr.bf16.gmra.mrb[0].mxu0 %v194
    %v852 = vpop.f32.mrb[0].mxu0
    %v853 = vadd.f32 0.0, %v852
    %v854 = vpop.f32.mrb[0].mxu0
    %v855 = vpop.f32.mrb[0].mxu0
    %v856 = vadd.f32 0.0, %v855
    %v857 = vpop.f32.mrb[0].mxu0
    %858 = vmatprep.mubr.bf16.mxu0 0
    %859 = vmatmul.mubr.bf16.gmra.mrb[0].mxu0 %v195
    %v860 = vpop.f32.mrb[0].mxu0
    %v861 = vadd.f32 0.0, %v860
    %v862 = vpop.f32.mrb[0].mxu0
    %v863 = vpop.f32.mrb[0].mxu0
    %v864 = vadd.f32 0.0, %v863
    %v865 = vpop.f32.mrb[0].mxu0
    %866 = vmatprep.mubr.bf16.mxu0 0
    %867 = vmatmul.mubr.bf16.gmra.mrb[0].mxu0 %v196
    %v868 = vpop.f32.mrb[0].mxu0
    %v869 = vadd.f32 0.0, %v868
    %v870 = vpop.f32.mrb[0].mxu0
    %v871 = vpop.f32.mrb[0].mxu0
    %v872 = vadd.f32 0.0, %v871
    %v873 = vpop.f32.mrb[0].mxu0
    %874 = vmatprep.mubr.bf16.mxu0 0
    %875 = vmatmul.mubr.bf16.gmra.mrb[0].mxu0 %v197
    %v876 = vpop.f32.mrb[0].mxu0
    %v877 = vadd.f32 0.0, %v876
    %v878 = vpop.f32.mrb[0].mxu0
    %v879 = vpop.f32.mrb[0].mxu0
    %v880 = vadd.f32 0.0, %v879
    %v881 = vpop.f32.mrb[0].mxu0
    %882 = vmatprep.mubr.bf16.mxu0 0
    %883 = vmatmul.mubr.bf16.gmra.mrb[0].mxu0 %v198
    %v884 = vpop.f32.mrb[0].mxu0
    %v885 = vadd.f32 0.0, %v884
    %v886 = vpop.f32.mrb[0].mxu0
    %v887 = vpop.f32.mrb[0].mxu0
    %v888 = vadd.f32 0.0, %v887
    %v889 = vpop.f32.mrb[0].mxu0
    %890 = vmatprep.mubr.bf16.mxu0 0
    %891 = vmatmul.mubr.bf16.gmra.mrb[0].mxu0 %v199
    %v892 = vpop.f32.mrb[0].mxu0
    %v893 = vadd.f32 0.0, %v892
    %v894 = vpop.f32.mrb[0].mxu0
    %v895 = vpop.f32.mrb[0].mxu0
    %v896 = vadd.f32 0.0, %v895
    %v897 = vpop.f32.mrb[0].mxu0
    %898 = vmatprep.mubr.bf16.mxu0 0
    %899 = vmatmul.mubr.bf16.gmra.mrb[0].mxu0 %v200
    %v900 = vpop.f32.mrb[0].mxu0
    %v901 = vadd.f32 0.0, %v900
    %v902 = vpop.f32.mrb[0].mxu0
    %v903 = vpop.f32.mrb[0].mxu0
    %v904 = vadd.f32 0.0, %v903
    %v905 = vpop.f32.mrb[0].mxu0
    %906 = vdwg.mxu0
    %v907 = vld [vmem:[#allocation8] sm:$0xf]
    %v908 = vld [vmem:[#allocation8 + $0x4] sm:$0xf]
    %v909 = vld [vmem:[#allocation8 + $0x8] sm:$0xf]
    %v910 = vld [vmem:[#allocation8 + $0xc] sm:$0xf]
    %v911 = vld [vmem:[#allocation8 + $0x10] sm:$0xf]
    %v912 = vld [vmem:[#allocation8 + $0x14] sm:$0xf]
    %v913 = vld [vmem:[#allocation8 + $0x18] sm:$0xf]
    %v914 = vld [vmem:[#allocation8 + $0x1c] sm:$0xf]
    %v915 = vld [vmem:[#allocation8 + $0x20] sm:$0xf]
    %v916 = vld [vmem:[#allocation8 + $0x24] sm:$0xf]
    %v917 = vld [vmem:[#allocation8 + $0x28] sm:$0xf]
    %v918 = vld [vmem:[#allocation8 + $0x2c] sm:$0xf]
    %v919 = vld [vmem:[#allocation8 + $0x30] sm:$0xf]
    %v920 = vld [vmem:[#allocation8 + $0x34] sm:$0xf]
    %v921 = vld [vmem:[#allocation8 + $0x38] sm:$0xf]
    %v922 = vld [vmem:[#allocation8 + $0x3c] sm:$0xf]
    %v939 = vunpack.c.l.b16 %v907
    %v940 = vunpack.c.l.b16 %v908
    %v941 = vunpack.c.l.b16 %v909
    %v942 = vunpack.c.l.b16 %v910
    %v943 = vunpack.c.l.b16 %v911
    %v944 = vunpack.c.l.b16 %v912
    %v945 = vunpack.c.l.b16 %v913
    %v946 = vunpack.c.l.b16 %v914
    %v947 = vunpack.c.l.b16 %v915
    %v948 = vunpack.c.l.b16 %v916
    %v949 = vunpack.c.l.b16 %v917
    %v950 = vunpack.c.l.b16 %v918
    %v951 = vunpack.c.l.b16 %v919
    %v952 = vunpack.c.l.b16 %v920
    %v953 = vunpack.c.l.b16 %v921
    %v954 = vunpack.c.l.b16 %v922
    %v955 = vpack.c.b16 %v940, %v939
    %v956 = vpack.c.b16 %v942, %v941
    %v957 = vpack.c.b16 %v944, %v943
    %v958 = vpack.c.b16 %v946, %v945
    %v959 = vpack.c.b16 %v948, %v947
    %v960 = vpack.c.b16 %v950, %v949
    %v961 = vpack.c.b16 %v952, %v951
    %v962 = vpack.c.b16 %v954, %v953
    %971 = vmatprep.subr.bf16.mxu0 0
    %972 = vmatpush1.bf16.msra.mxu0 %v955
    %973 = vmatprep.subr.bf16.mxu0 0
    %974 = vmatpush1.bf16.msra.mxu0 %v956
    %975 = vmatprep.subr.bf16.mxu0 0
    %976 = vmatpush1.bf16.msra.mxu0 %v957
    %977 = vmatprep.subr.bf16.mxu0 0
    %978 = vmatpush1.bf16.msra.mxu0 %v958
    %979 = vmatprep.subr.bf16.mxu0 0
    %980 = vmatpush1.bf16.msra.mxu0 %v959
    %981 = vmatprep.subr.bf16.mxu0 0
    %982 = vmatpush1.bf16.msra.mxu0 %v960
    %983 = vmatprep.subr.bf16.mxu0 0
    %984 = vmatpush1.bf16.msra.mxu0 %v961
    %985 = vmatprep.subr.bf16.mxu0 0
    %986 = vmatpush1.bf16.msra.mxu0 %v962
    %987 = vmatprep.subr.bf16.mxu0 0
    %988 = vmatpush1.bf16.msra.mxu0 0
    %989 = vmatprep.subr.bf16.mxu0 0
    %990 = vmatpush1.bf16.msra.mxu0 0
    %991 = vmatprep.subr.bf16.mxu0 0
    %992 = vmatpush1.bf16.msra.mxu0 0
    %993 = vmatprep.subr.bf16.mxu0 0
    %994 = vmatpush1.bf16.msra.mxu0 0
    %995 = vmatprep.subr.bf16.mxu0 0
    %996 = vmatpush1.bf16.msra.mxu0 0
    %997 = vmatprep.subr.bf16.mxu0 0
    %998 = vmatpush1.bf16.msra.mxu0 0
    %999 = vmatprep.subr.bf16.mxu0 0
    %1000 = vmatpush1.bf16.msra.mxu0 0
    %1001 = vmatprep.subr.bf16.mxu0 0
    %1002 = vmatpush1.bf16.msra.mxu0 0
    %1003 = vmatprep.mubr.bf16.mxu0 0
    %1004 = vmatmul.mubr.bf16.gmra.mrb[0].mxu0 %v169
    %v1005 = vpop.f32.mrb[0].mxu0
    %v1006 = vadd.f32 0.0, %v1005
    %v1007 = vpop.f32.mrb[0].mxu0
    %v1008 = vpop.f32.mrb[0].mxu0
    %v1009 = vadd.f32 0.0, %v1008
    %v1010 = vpop.f32.mrb[0].mxu0
    %1011 = vmatprep.mubr.bf16.mxu0 0
    %1012 = vmatmul.mubr.bf16.gmra.mrb[0].mxu0 %v170
    %v1013 = vpop.f32.mrb[0].mxu0
    %v1014 = vadd.f32 0.0, %v1013
    %v1015 = vpop.f32.mrb[0].mxu0
    %v1016 = vpop.f32.mrb[0].mxu0
    %v1017 = vadd.f32 0.0, %v1016
    %v1018 = vpop.f32.mrb[0].mxu0
    %1019 = vmatprep.mubr.bf16.mxu0 0
    %1020 = vmatmul.mubr.bf16.gmra.mrb[0].mxu0 %v171
    %v1021 = vpop.f32.mrb[0].mxu0
    %v1022 = vadd.f32 0.0, %v1021
    %v1023 = vpop.f32.mrb[0].mxu0
    %v1024 = vpop.f32.mrb[0].mxu0
    %v1025 = vadd.f32 0.0, %v1024
    %v1026 = vpop.f32.mrb[0].mxu0
    %1027 = vmatprep.mubr.bf16.mxu0 0
    %1028 = vmatmul.mubr.bf16.gmra.mrb[0].mxu0 %v172
    %v1029 = vpop.f32.mrb[0].mxu0
    %v1030 = vadd.f32 0.0, %v1029
    %v1031 = vpop.f32.mrb[0].mxu0
    %v1032 = vpop.f32.mrb[0].mxu0
    %v1033 = vadd.f32 0.0, %v1032
    %v1034 = vpop.f32.mrb[0].mxu0
    %1035 = vmatprep.mubr.bf16.mxu0 0
    %1036 = vmatmul.mubr.bf16.gmra.mrb[0].mxu0 %v173
    %v1037 = vpop.f32.mrb[0].mxu0
    %v1038 = vadd.f32 0.0, %v1037
    %v1039 = vpop.f32.mrb[0].mxu0
    %v1040 = vpop.f32.mrb[0].mxu0
    %v1041 = vadd.f32 0.0, %v1040
    %v1042 = vpop.f32.mrb[0].mxu0
    %1043 = vmatprep.mubr.bf16.mxu0 0
    %1044 = vmatmul.mubr.bf16.gmra.mrb[0].mxu0 %v174
    %v1045 = vpop.f32.mrb[0].mxu0
    %v1046 = vadd.f32 0.0, %v1045
    %v1047 = vpop.f32.mrb[0].mxu0
    %v1048 = vpop.f32.mrb[0].mxu0
    %v1049 = vadd.f32 0.0, %v1048
    %v1050 = vpop.f32.mrb[0].mxu0
    %1051 = vmatprep.mubr.bf16.mxu0 0
    %1052 = vmatmul.mubr.bf16.gmra.mrb[0].mxu0 %v175
    %v1053 = vpop.f32.mrb[0].mxu0
    %v1054 = vadd.f32 0.0, %v1053
    %v1055 = vpop.f32.mrb[0].mxu0
    %v1056 = vpop.f32.mrb[0].mxu0
    %v1057 = vadd.f32 0.0, %v1056
    %v1058 = vpop.f32.mrb[0].mxu0
    %1059 = vmatprep.mubr.bf16.mxu0 0
    %1060 = vmatmul.mubr.bf16.gmra.mrb[0].mxu0 %v176
    %v1061 = vpop.f32.mrb[0].mxu0
    %v1062 = vadd.f32 0.0, %v1061
    %v1063 = vpop.f32.mrb[0].mxu0
    %v1064 = vpop.f32.mrb[0].mxu0
    %v1065 = vadd.f32 0.0, %v1064
    %v1066 = vpop.f32.mrb[0].mxu0
    %1067 = vmatprep.mubr.bf16.mxu0 0
    %1068 = vmatmul.mubr.bf16.gmra.mrb[0].mxu0 %v177
    %v1069 = vpop.f32.mrb[0].mxu0
    %v1070 = vadd.f32 0.0, %v1069
    %v1071 = vpop.f32.mrb[0].mxu0
    %v1072 = vpop.f32.mrb[0].mxu0
    %v1073 = vadd.f32 0.0, %v1072
    %v1074 = vpop.f32.mrb[0].mxu0
    %1075 = vmatprep.mubr.bf16.mxu0 0
    %1076 = vmatmul.mubr.bf16.gmra.mrb[0].mxu0 %v178
    %v1077 = vpop.f32.mrb[0].mxu0
    %v1078 = vadd.f32 0.0, %v1077
    %v1079 = vpop.f32.mrb[0].mxu0
    %v1080 = vpop.f32.mrb[0].mxu0
    %v1081 = vadd.f32 0.0, %v1080
    %v1082 = vpop.f32.mrb[0].mxu0
    %1083 = vmatprep.mubr.bf16.mxu0 0
    %1084 = vmatmul.mubr.bf16.gmra.mrb[0].mxu0 %v179
    %v1085 = vpop.f32.mrb[0].mxu0
    %v1086 = vadd.f32 0.0, %v1085
    %v1087 = vpop.f32.mrb[0].mxu0
    %v1088 = vpop.f32.mrb[0].mxu0
    %v1089 = vadd.f32 0.0, %v1088
    %v1090 = vpop.f32.mrb[0].mxu0
    %1091 = vmatprep.mubr.bf16.mxu0 0
    %1092 = vmatmul.mubr.bf16.gmra.mrb[0].mxu0 %v180
    %v1093 = vpop.f32.mrb[0].mxu0
    %v1094 = vadd.f32 0.0, %v1093
    %v1095 = vpop.f32.mrb[0].mxu0
    %v1096 = vpop.f32.mrb[0].mxu0
    %v1097 = vadd.f32 0.0, %v1096
    %v1098 = vpop.f32.mrb[0].mxu0
    %1099 = vmatprep.mubr.bf16.mxu0 0
    %1100 = vmatmul.mubr.bf16.gmra.mrb[0].mxu0 %v181
    %v1101 = vpop.f32.mrb[0].mxu0
    %v1102 = vadd.f32 0.0, %v1101
    %v1103 = vpop.f32.mrb[0].mxu0
    %v1104 = vpop.f32.mrb[0].mxu0
    %v1105 = vadd.f32 0.0, %v1104
    %v1106 = vpop.f32.mrb[0].mxu0
    %1107 = vmatprep.mubr.bf16.mxu0 0
    %1108 = vmatmul.mubr.bf16.gmra.mrb[0].mxu0 %v182
    %v1109 = vpop.f32.mrb[0].mxu0
    %v1110 = vadd.f32 0.0, %v1109
    %v1111 = vpop.f32.mrb[0].mxu0
    %v1112 = vpop.f32.mrb[0].mxu0
    %v1113 = vadd.f32 0.0, %v1112
    %v1114 = vpop.f32.mrb[0].mxu0
    %1115 = vmatprep.mubr.bf16.mxu0 0
    %1116 = vmatmul.mubr.bf16.gmra.mrb[0].mxu0 %v183
    %v1117 = vpop.f32.mrb[0].mxu0
    %v1118 = vadd.f32 0.0, %v1117
    %v1119 = vpop.f32.mrb[0].mxu0
    %v1120 = vpop.f32.mrb[0].mxu0
    %v1121 = vadd.f32 0.0, %v1120
    %v1122 = vpop.f32.mrb[0].mxu0
    %1123 = vmatprep.mubr.bf16.mxu0 0
    %1124 = vmatmul.mubr.bf16.gmra.mrb[0].mxu0 %v184
    %v1125 = vpop.f32.mrb[0].mxu0
    %v1126 = vadd.f32 0.0, %v1125
    %v1127 = vpop.f32.mrb[0].mxu0
    %v1128 = vpop.f32.mrb[0].mxu0
    %v1129 = vadd.f32 0.0, %v1128
    %v1130 = vpop.f32.mrb[0].mxu0
    %1131 = vmatprep.mubr.bf16.mxu0 0
    %1132 = vmatmul.mubr.bf16.gmra.mrb[0].mxu0 %v185
    %v1133 = vpop.f32.mrb[0].mxu0
    %v1134 = vadd.f32 0.0, %v1133
    %v1135 = vpop.f32.mrb[0].mxu0
    %v1136 = vpop.f32.mrb[0].mxu0
    %v1137 = vadd.f32 0.0, %v1136
    %v1138 = vpop.f32.mrb[0].mxu0
    %1139 = vmatprep.mubr.bf16.mxu0 0
    %1140 = vmatmul.mubr.bf16.gmra.mrb[0].mxu0 %v186
    %v1141 = vpop.f32.mrb[0].mxu0
    %v1142 = vadd.f32 0.0, %v1141
    %v1143 = vpop.f32.mrb[0].mxu0
    %v1144 = vpop.f32.mrb[0].mxu0
    %v1145 = vadd.f32 0.0, %v1144
    %v1146 = vpop.f32.mrb[0].mxu0
    %1147 = vmatprep.mubr.bf16.mxu0 0
    %1148 = vmatmul.mubr.bf16.gmra.mrb[0].mxu0 %v187
    %v1149 = vpop.f32.mrb[0].mxu0
    %v1150 = vadd.f32 0.0, %v1149
    %v1151 = vpop.f32.mrb[0].mxu0
    %v1152 = vpop.f32.mrb[0].mxu0
    %v1153 = vadd.f32 0.0, %v1152
    %v1154 = vpop.f32.mrb[0].mxu0
    %1155 = vmatprep.mubr.bf16.mxu0 0
    %1156 = vmatmul.mubr.bf16.gmra.mrb[0].mxu0 %v188
    %v1157 = vpop.f32.mrb[0].mxu0
    %v1158 = vadd.f32 0.0, %v1157
    %v1159 = vpop.f32.mrb[0].mxu0
    %v1160 = vpop.f32.mrb[0].mxu0
    %v1161 = vadd.f32 0.0, %v1160
    %v1162 = vpop.f32.mrb[0].mxu0
    %1163 = vmatprep.mubr.bf16.mxu0 0
    %1164 = vmatmul.mubr.bf16.gmra.mrb[0].mxu0 %v189
    %v1165 = vpop.f32.mrb[0].mxu0
    %v1166 = vadd.f32 0.0, %v1165
    %v1167 = vpop.f32.mrb[0].mxu0
    %v1168 = vpop.f32.mrb[0].mxu0
    %v1169 = vadd.f32 0.0, %v1168
    %v1170 = vpop.f32.mrb[0].mxu0
    %1171 = vmatprep.mubr.bf16.mxu0 0
    %1172 = vmatmul.mubr.bf16.gmra.mrb[0].mxu0 %v190
    %v1173 = vpop.f32.mrb[0].mxu0
    %v1174 = vadd.f32 0.0, %v1173
    %v1175 = vpop.f32.mrb[0].mxu0
    %v1176 = vpop.f32.mrb[0].mxu0
    %v1177 = vadd.f32 0.0, %v1176
    %v1178 = vpop.f32.mrb[0].mxu0
    %1179 = vmatprep.mubr.bf16.mxu0 0
    %1180 = vmatmul.mubr.bf16.gmra.mrb[0].mxu0 %v191
    %v1181 = vpop.f32.mrb[0].mxu0
    %v1182 = vadd.f32 0.0, %v1181
    %v1183 = vpop.f32.mrb[0].mxu0
    %v1184 = vpop.f32.mrb[0].mxu0
    %v1185 = vadd.f32 0.0, %v1184
    %v1186 = vpop.f32.mrb[0].mxu0
    %1187 = vmatprep.mubr.bf16.mxu0 0
    %1188 = vmatmul.mubr.bf16.gmra.mrb[0].mxu0 %v192
    %v1189 = vpop.f32.mrb[0].mxu0
    %v1190 = vadd.f32 0.0, %v1189
    %v1191 = vpop.f32.mrb[0].mxu0
    %v1192 = vpop.f32.mrb[0].mxu0
    %v1193 = vadd.f32 0.0, %v1192
    %v1194 = vpop.f32.mrb[0].mxu0
    %1195 = vmatprep.mubr.bf16.mxu0 0
    %1196 = vmatmul.mubr.bf16.gmra.mrb[0].mxu0 %v193
    %v1197 = vpop.f32.mrb[0].mxu0
    %v1198 = vadd.f32 0.0, %v1197
    %v1199 = vpop.f32.mrb[0].mxu0
    %v1200 = vpop.f32.mrb[0].mxu0
    %v1201 = vadd.f32 0.0, %v1200
    %v1202 = vpop.f32.mrb[0].mxu0
    %1203 = vmatprep.mubr.bf16.mxu0 0
    %1204 = vmatmul.mubr.bf16.gmra.mrb[0].mxu0 %v194
    %v1205 = vpop.f32.mrb[0].mxu0
    %v1206 = vadd.f32 0.0, %v1205
    %v1207 = vpop.f32.mrb[0].mxu0
    %v1208 = vpop.f32.mrb[0].mxu0
    %v1209 = vadd.f32 0.0, %v1208
    %v1210 = vpop.f32.mrb[0].mxu0
    %1211 = vmatprep.mubr.bf16.mxu0 0
    %1212 = vmatmul.mubr.bf16.gmra.mrb[0].mxu0 %v195
    %v1213 = vpop.f32.mrb[0].mxu0
    %v1214 = vadd.f32 0.0, %v1213
    %v1215 = vpop.f32.mrb[0].mxu0
    %v1216 = vpop.f32.mrb[0].mxu0
    %v1217 = vadd.f32 0.0, %v1216
    %v1218 = vpop.f32.mrb[0].mxu0
    %1219 = vmatprep.mubr.bf16.mxu0 0
    %1220 = vmatmul.mubr.bf16.gmra.mrb[0].mxu0 %v196
    %v1221 = vpop.f32.mrb[0].mxu0
    %v1222 = vadd.f32 0.0, %v1221
    %v1223 = vpop.f32.mrb[0].mxu0
    %v1224 = vpop.f32.mrb[0].mxu0
    %v1225 = vadd.f32 0.0, %v1224
    %v1226 = vpop.f32.mrb[0].mxu0
    %1227 = vmatprep.mubr.bf16.mxu0 0
    %1228 = vmatmul.mubr.bf16.gmra.mrb[0].mxu0 %v197
    %v1229 = vpop.f32.mrb[0].mxu0
    %v1230 = vadd.f32 0.0, %v1229
    %v1231 = vpop.f32.mrb[0].mxu0
    %v1232 = vpop.f32.mrb[0].mxu0
    %v1233 = vadd.f32 0.0, %v1232
    %v1234 = vpop.f32.mrb[0].mxu0
    %1235 = vmatprep.mubr.bf16.mxu0 0
    %1236 = vmatmul.mubr.bf16.gmra.mrb[0].mxu0 %v198
    %v1237 = vpop.f32.mrb[0].mxu0
    %v1238 = vadd.f32 0.0, %v1237
    %v1239 = vpop.f32.mrb[0].mxu0
    %v1240 = vpop.f32.mrb[0].mxu0
    %v1241 = vadd.f32 0.0, %v1240
    %v1242 = vpop.f32.mrb[0].mxu0
    %1243 = vmatprep.mubr.bf16.mxu0 0
    %1244 = vmatmul.mubr.bf16.gmra.mrb[0].mxu0 %v199
    %v1245 = vpop.f32.mrb[0].mxu0
    %v1246 = vadd.f32 0.0, %v1245
    %v1247 = vpop.f32.mrb[0].mxu0
    %v1248 = vpop.f32.mrb[0].mxu0
    %v1249 = vadd.f32 0.0, %v1248
    %v1250 = vpop.f32.mrb[0].mxu0
    %1251 = vmatprep.mubr.bf16.mxu0 0
    %1252 = vmatmul.mubr.bf16.gmra.mrb[0].mxu0 %v200
    %v1253 = vpop.f32.mrb[0].mxu0
    %v1254 = vadd.f32 0.0, %v1253
    %v1255 = vpop.f32.mrb[0].mxu0
    %v1256 = vpop.f32.mrb[0].mxu0
    %v1257 = vadd.f32 0.0, %v1256
    %v1258 = vpop.f32.mrb[0].mxu0
    %1259 = vdwg.mxu0
    %v1260 = vpack.c.bf16 %v303, %v300
    %v1261 = vpack.c.bf16 %v311, %v308
    %v1262 = vpack.c.bf16 %v319, %v316
    %v1263 = vpack.c.bf16 %v327, %v324
    %v1264 = vpack.c.bf16 %v335, %v332
    %v1265 = vpack.c.bf16 %v343, %v340
    %v1266 = vpack.c.bf16 %v351, %v348
    %v1267 = vpack.c.bf16 %v359, %v356
    %v1268 = vpack.c.bf16 %v367, %v364
    %v1269 = vpack.c.bf16 %v375, %v372
    %v1270 = vpack.c.bf16 %v383, %v380
    %v1271 = vpack.c.bf16 %v391, %v388
    %v1272 = vpack.c.bf16 %v399, %v396
    %v1273 = vpack.c.bf16 %v407, %v404
    %v1274 = vpack.c.bf16 %v415, %v412
    %v1275 = vpack.c.bf16 %v423, %v420
    %v1276 = vpack.c.bf16 %v431, %v428
    %v1277 = vpack.c.bf16 %v439, %v436
    %v1278 = vpack.c.bf16 %v447, %v444
    %v1279 = vpack.c.bf16 %v455, %v452
    %v1280 = vpack.c.bf16 %v463, %v460
    %v1281 = vpack.c.bf16 %v471, %v468
    %v1282 = vpack.c.bf16 %v479, %v476
    %v1283 = vpack.c.bf16 %v487, %v484
    %v1284 = vpack.c.bf16 %v495, %v492
    %v1285 = vpack.c.bf16 %v503, %v500
    %v1286 = vpack.c.bf16 %v511, %v508
    %v1287 = vpack.c.bf16 %v519, %v516
    %v1288 = vpack.c.bf16 %v527, %v524
    %v1289 = vpack.c.bf16 %v535, %v532
    %v1290 = vpack.c.bf16 %v543, %v540
    %v1291 = vpack.c.bf16 %v551, %v548
    %v1292 = vpack.c.bf16 %v656, %v653
    %v1293 = vpack.c.bf16 %v664, %v661
    %v1294 = vpack.c.bf16 %v672, %v669
    %v1295 = vpack.c.bf16 %v680, %v677
    %v1296 = vpack.c.bf16 %v688, %v685
    %v1297 = vpack.c.bf16 %v696, %v693
    %v1298 = vpack.c.bf16 %v704, %v701
    %v1299 = vpack.c.bf16 %v712, %v709
    %v1300 = vpack.c.bf16 %v720, %v717
    %v1301 = vpack.c.bf16 %v728, %v725
    %v1302 = vpack.c.bf16 %v736, %v733
    %v1303 = vpack.c.bf16 %v744, %v741
    %v1304 = vpack.c.bf16 %v752, %v749
    %v1305 = vpack.c.bf16 %v760, %v757
    %v1306 = vpack.c.bf16 %v768, %v765
    %v1307 = vpack.c.bf16 %v776, %v773
    %v1308 = vpack.c.bf16 %v784, %v781
    %v1309 = vpack.c.bf16 %v792, %v789
    %v1310 = vpack.c.bf16 %v800, %v797
    %v1311 = vpack.c.bf16 %v808, %v805
    %v1312 = vpack.c.bf16 %v816, %v813
    %v1313 = vpack.c.bf16 %v824, %v821
    %v1314 = vpack.c.bf16 %v832, %v829
    %v1315 = vpack.c.bf16 %v840, %v837
    %v1316 = vpack.c.bf16 %v848, %v845
    %v1317 = vpack.c.bf16 %v856, %v853
    %v1318 = vpack.c.bf16 %v864, %v861
    %v1319 = vpack.c.bf16 %v872, %v869
    %v1320 = vpack.c.bf16 %v880, %v877
    %v1321 = vpack.c.bf16 %v888, %v885
    %v1322 = vpack.c.bf16 %v896, %v893
    %v1323 = vpack.c.bf16 %v904, %v901
    %v1324 = vpack.c.bf16 %v1009, %v1006
    %v1325 = vpack.c.bf16 %v1017, %v1014
    %v1326 = vpack.c.bf16 %v1025, %v1022
    %v1327 = vpack.c.bf16 %v1033, %v1030
    %v1328 = vpack.c.bf16 %v1041, %v1038
    %v1329 = vpack.c.bf16 %v1049, %v1046
    %v1330 = vpack.c.bf16 %v1057, %v1054
    %v1331 = vpack.c.bf16 %v1065, %v1062
    %v1332 = vpack.c.bf16 %v1073, %v1070
    %v1333 = vpack.c.bf16 %v1081, %v1078
    %v1334 = vpack.c.bf16 %v1089, %v1086
    %v1335 = vpack.c.bf16 %v1097, %v1094
    %v1336 = vpack.c.bf16 %v1105, %v1102
    %v1337 = vpack.c.bf16 %v1113, %v1110
    %v1338 = vpack.c.bf16 %v1121, %v1118
    %v1339 = vpack.c.bf16 %v1129, %v1126
    %v1340 = vpack.c.bf16 %v1137, %v1134
    %v1341 = vpack.c.bf16 %v1145, %v1142
    %v1342 = vpack.c.bf16 %v1153, %v1150
    %v1343 = vpack.c.bf16 %v1161, %v1158
    %v1344 = vpack.c.bf16 %v1169, %v1166
    %v1345 = vpack.c.bf16 %v1177, %v1174
    %v1346 = vpack.c.bf16 %v1185, %v1182
    %v1347 = vpack.c.bf16 %v1193, %v1190
    %v1348 = vpack.c.bf16 %v1201, %v1198
    %v1349 = vpack.c.bf16 %v1209, %v1206
    %v1350 = vpack.c.bf16 %v1217, %v1214
    %v1351 = vpack.c.bf16 %v1225, %v1222
    %v1352 = vpack.c.bf16 %v1233, %v1230
    %v1353 = vpack.c.bf16 %v1241, %v1238
    %v1354 = vpack.c.bf16 %v1249, %v1246
    %v1355 = vpack.c.bf16 %v1257, %v1254
    %vm1356 = vcmask 261120
    %v1358 = vsel %vm1356, %v1260, 0
    %v1361 = vsel %vm1356, %v1261, 0
    %v1364 = vsel %vm1356, %v1262, 0
    %v1367 = vsel %vm1356, %v1263, 0
    %v1370 = vsel %vm1356, %v1292, 0
    %v1373 = vsel %vm1356, %v1293, 0
    %v1376 = vsel %vm1356, %v1294, 0
    %v1379 = vsel %vm1356, %v1295, 0
    %1381 = vmatprep.subr.bf16.mxu0 0
    %1382 = vmatpush1.bf16.xpose.msra.mxu0 %v1370
    %1383 = vmatprep.subr.bf16.mxu0 0
    %1384 = vmatpush1.bf16.xpose.msra.mxu0 %v1373
    %1385 = vmatprep.subr.bf16.mxu0 0
    %1386 = vmatpush1.bf16.xpose.msra.mxu0 %v1376
    %1387 = vmatprep.subr.bf16.mxu0 0
    %1388 = vmatpush1.bf16.xpose.msra.mxu0 %v1379
    %1389 = vmatprep.subr.bf16.mxu0 0
    %1390 = vmatpush1.bf16.xpose.msra.mxu0 0
    %1391 = vmatprep.subr.bf16.mxu0 0
    %1392 = vmatpush1.bf16.xpose.msra.mxu0 0
    %1393 = vmatprep.subr.bf16.mxu0 0
    %1394 = vmatpush1.bf16.xpose.msra.mxu0 0
    %1395 = vmatprep.subr.bf16.mxu0 0
    %1396 = vmatpush1.bf16.xpose.msra.mxu0 0
    %1397 = vmatprep.subr.bf16.mxu0 0
    %1398 = vmatpush1.bf16.xpose.msra.mxu0 0
    %1399 = vmatprep.subr.bf16.mxu0 0
    %1400 = vmatpush1.bf16.xpose.msra.mxu0 0
    %1401 = vmatprep.subr.bf16.mxu0 0
    %1402 = vmatpush1.bf16.xpose.msra.mxu0 0
    %1403 = vmatprep.subr.bf16.mxu0 0
    %1404 = vmatpush1.bf16.xpose.msra.mxu0 0
    %1405 = vmatprep.subr.bf16.mxu0 0
    %1406 = vmatpush1.bf16.xpose.msra.mxu0 0
    %1407 = vmatprep.subr.bf16.mxu0 0
    %1408 = vmatpush1.bf16.xpose.msra.mxu0 0
    %1409 = vmatprep.subr.bf16.mxu0 0
    %1410 = vmatpush1.bf16.xpose.msra.mxu0 0
    %1411 = vmatprep.subr.bf16.mxu0 0
    %1412 = vmatpush1.bf16.xpose.msra.mxu0 0
    %1413 = vmatprep.mubr.bf16.mxu0 0
    %1414 = vmatmul.mubr.bf16.gmra.mrb[0].mxu0 %v1358
    %v1415 = vpop.f32.mrb[0].mxu0
    %v1416 = vadd.f32 0.0, %v1415
    %v1417 = vpop.f32.mrb[0].mxu0
    %v1418 = vpop.f32.mrb[0].mxu0
    %v1419 = vadd.f32 0.0, %v1418
    %v1420 = vpop.f32.mrb[0].mxu0
    %1421 = vmatprep.mubr.bf16.mxu0 0
    %1422 = vmatmul.mubr.bf16.gmra.mrb[0].mxu0 %v1361
    %v1423 = vpop.f32.mrb[0].mxu0
    %v1424 = vadd.f32 0.0, %v1423
    %v1425 = vpop.f32.mrb[0].mxu0
    %v1426 = vpop.f32.mrb[0].mxu0
    %v1427 = vadd.f32 0.0, %v1426
    %v1428 = vpop.f32.mrb[0].mxu0
    %1429 = vmatprep.mubr.bf16.mxu0 0
    %1430 = vmatmul.mubr.bf16.gmra.mrb[0].mxu0 %v1364
    %v1431 = vpop.f32.mrb[0].mxu0
    %v1432 = vadd.f32 0.0, %v1431
    %v1433 = vpop.f32.mrb[0].mxu0
    %v1434 = vpop.f32.mrb[0].mxu0
    %v1435 = vadd.f32 0.0, %v1434
    %v1436 = vpop.f32.mrb[0].mxu0
    %1437 = vmatprep.mubr.bf16.mxu0 0
    %1438 = vmatmul.mubr.bf16.gmra.mrb[0].mxu0 %v1367
    %v1439 = vpop.f32.mrb[0].mxu0
    %v1440 = vadd.f32 0.0, %v1439
    %v1441 = vpop.f32.mrb[0].mxu0
    %v1442 = vpop.f32.mrb[0].mxu0
    %v1443 = vadd.f32 0.0, %v1442
    %v1444 = vpop.f32.mrb[0].mxu0
    %1445 = vdwg.mxu0
    %v1447 = vsel %vm1356, %v1264, 0
    %v1450 = vsel %vm1356, %v1265, 0
    %v1453 = vsel %vm1356, %v1266, 0
    %v1456 = vsel %vm1356, %v1267, 0
    %v1459 = vsel %vm1356, %v1296, 0
    %v1462 = vsel %vm1356, %v1297, 0
    %v1465 = vsel %vm1356, %v1298, 0
    %v1468 = vsel %vm1356, %v1299, 0
    %1470 = vmatprep.subr.bf16.mxu0 0
    %1471 = vmatpush1.bf16.xpose.msra.mxu0 %v1459
    %1472 = vmatprep.subr.bf16.mxu0 0
    %1473 = vmatpush1.bf16.xpose.msra.mxu0 %v1462
    %1474 = vmatprep.subr.bf16.mxu0 0
    %1475 = vmatpush1.bf16.xpose.msra.mxu0 %v1465
    %1476 = vmatprep.subr.bf16.mxu0 0
    %1477 = vmatpush1.bf16.xpose.msra.mxu0 %v1468
    %1478 = vmatprep.subr.bf16.mxu0 0
    %1479 = vmatpush1.bf16.xpose.msra.mxu0 0
    %1480 = vmatprep.subr.bf16.mxu0 0
    %1481 = vmatpush1.bf16.xpose.msra.mxu0 0
    %1482 = vmatprep.subr.bf16.mxu0 0
    %1483 = vmatpush1.bf16.xpose.msra.mxu0 0
    %1484 = vmatprep.subr.bf16.mxu0 0
    %1485 = vmatpush1.bf16.xpose.msra.mxu0 0
    %1486 = vmatprep.subr.bf16.mxu0 0
    %1487 = vmatpush1.bf16.xpose.msra.mxu0 0
    %1488 = vmatprep.subr.bf16.mxu0 0
    %1489 = vmatpush1.bf16.xpose.msra.mxu0 0
    %1490 = vmatprep.subr.bf16.mxu0 0
    %1491 = vmatpush1.bf16.xpose.msra.mxu0 0
    %1492 = vmatprep.subr.bf16.mxu0 0
    %1493 = vmatpush1.bf16.xpose.msra.mxu0 0
    %1494 = vmatprep.subr.bf16.mxu0 0
    %1495 = vmatpush1.bf16.xpose.msra.mxu0 0
    %1496 = vmatprep.subr.bf16.mxu0 0
    %1497 = vmatpush1.bf16.xpose.msra.mxu0 0
    %1498 = vmatprep.subr.bf16.mxu0 0
    %1499 = vmatpush1.bf16.xpose.msra.mxu0 0
    %1500 = vmatprep.subr.bf16.mxu0 0
    %1501 = vmatpush1.bf16.xpose.msra.mxu0 0
    %1502 = vmatprep.mubr.bf16.mxu0 0
    %1503 = vmatmul.mubr.bf16.gmra.mrb[0].mxu0 %v1447
    %v1504 = vpop.f32.mrb[0].mxu0
    %v1505 = vadd.f32 0.0, %v1504
    %v1506 = vpop.f32.mrb[0].mxu0
    %v1507 = vpop.f32.mrb[0].mxu0
    %v1508 = vadd.f32 0.0, %v1507
    %v1509 = vpop.f32.mrb[0].mxu0
    %1510 = vmatprep.mubr.bf16.mxu0 0
    %1511 = vmatmul.mubr.bf16.gmra.mrb[0].mxu0 %v1450
    %v1512 = vpop.f32.mrb[0].mxu0
    %v1513 = vadd.f32 0.0, %v1512
    %v1514 = vpop.f32.mrb[0].mxu0
    %v1515 = vpop.f32.mrb[0].mxu0
    %v1516 = vadd.f32 0.0, %v1515
    %v1517 = vpop.f32.mrb[0].mxu0
    %1518 = vmatprep.mubr.bf16.mxu0 0
    %1519 = vmatmul.mubr.bf16.gmra.mrb[0].mxu0 %v1453
    %v1520 = vpop.f32.mrb[0].mxu0
    %v1521 = vadd.f32 0.0, %v1520
    %v1522 = vpop.f32.mrb[0].mxu0
    %v1523 = vpop.f32.mrb[0].mxu0
    %v1524 = vadd.f32 0.0, %v1523
    %v1525 = vpop.f32.mrb[0].mxu0
    %1526 = vmatprep.mubr.bf16.mxu0 0
    %1527 = vmatmul.mubr.bf16.gmra.mrb[0].mxu0 %v1456
    %v1528 = vpop.f32.mrb[0].mxu0
    %v1529 = vadd.f32 0.0, %v1528
    %v1530 = vpop.f32.mrb[0].mxu0
    %v1531 = vpop.f32.mrb[0].mxu0
    %v1532 = vadd.f32 0.0, %v1531
    %v1533 = vpop.f32.mrb[0].mxu0
    %1534 = vdwg.mxu0
    %v1536 = vsel %vm1356, %v1268, 0
    %v1539 = vsel %vm1356, %v1269, 0
    %v1542 = vsel %vm1356, %v1270, 0
    %v1545 = vsel %vm1356, %v1271, 0
    %v1548 = vsel %vm1356, %v1300, 0
    %v1551 = vsel %vm1356, %v1301, 0
    %v1554 = vsel %vm1356, %v1302, 0
    %v1557 = vsel %vm1356, %v1303, 0
    %1559 = vmatprep.subr.bf16.mxu0 0
    %1560 = vmatpush1.bf16.xpose.msra.mxu0 %v1548
    %1561 = vmatprep.subr.bf16.mxu0 0
    %1562 = vmatpush1.bf16.xpose.msra.mxu0 %v1551
    %1563 = vmatprep.subr.bf16.mxu0 0
    %1564 = vmatpush1.bf16.xpose.msra.mxu0 %v1554
    %1565 = vmatprep.subr.bf16.mxu0 0
    %1566 = vmatpush1.bf16.xpose.msra.mxu0 %v1557
    %1567 = vmatprep.subr.bf16.mxu0 0
    %1568 = vmatpush1.bf16.xpose.msra.mxu0 0
    %1569 = vmatprep.subr.bf16.mxu0 0
    %1570 = vmatpush1.bf16.xpose.msra.mxu0 0
    %1571 = vmatprep.subr.bf16.mxu0 0
    %1572 = vmatpush1.bf16.xpose.msra.mxu0 0
    %1573 = vmatprep.subr.bf16.mxu0 0
    %1574 = vmatpush1.bf16.xpose.msra.mxu0 0
    %1575 = vmatprep.subr.bf16.mxu0 0
    %1576 = vmatpush1.bf16.xpose.msra.mxu0 0
    %1577 = vmatprep.subr.bf16.mxu0 0
    %1578 = vmatpush1.bf16.xpose.msra.mxu0 0
    %1579 = vmatprep.subr.bf16.mxu0 0
    %1580 = vmatpush1.bf16.xpose.msra.mxu0 0
    %1581 = vmatprep.subr.bf16.mxu0 0
    %1582 = vmatpush1.bf16.xpose.msra.mxu0 0
    %1583 = vmatprep.subr.bf16.mxu0 0
    %1584 = vmatpush1.bf16.xpose.msra.mxu0 0
    %1585 = vmatprep.subr.bf16.mxu0 0
    %1586 = vmatpush1.bf16.xpose.msra.mxu0 0
    %1587 = vmatprep.subr.bf16.mxu0 0
    %1588 = vmatpush1.bf16.xpose.msra.mxu0 0
    %1589 = vmatprep.subr.bf16.mxu0 0
    %1590 = vmatpush1.bf16.xpose.msra.mxu0 0
    %1591 = vmatprep.mubr.bf16.mxu0 0
    %1592 = vmatmul.mubr.bf16.gmra.mrb[0].mxu0 %v1536
    %v1593 = vpop.f32.mrb[0].mxu0
    %v1594 = vadd.f32 0.0, %v1593
    %v1595 = vpop.f32.mrb[0].mxu0
    %v1596 = vpop.f32.mrb[0].mxu0
    %v1597 = vadd.f32 0.0, %v1596
    %v1598 = vpop.f32.mrb[0].mxu0
    %1599 = vmatprep.mubr.bf16.mxu0 0
    %1600 = vmatmul.mubr.bf16.gmra.mrb[0].mxu0 %v1539
    %v1601 = vpop.f32.mrb[0].mxu0
    %v1602 = vadd.f32 0.0, %v1601
    %v1603 = vpop.f32.mrb[0].mxu0
    %v1604 = vpop.f32.mrb[0].mxu0
    %v1605 = vadd.f32 0.0, %v1604
    %v1606 = vpop.f32.mrb[0].mxu0
    %1607 = vmatprep.mubr.bf16.mxu0 0
    %1608 = vmatmul.mubr.bf16.gmra.mrb[0].mxu0 %v1542
    %v1609 = vpop.f32.mrb[0].mxu0
    %v1610 = vadd.f32 0.0, %v1609
    %v1611 = vpop.f32.mrb[0].mxu0
    %v1612 = vpop.f32.mrb[0].mxu0
    %v1613 = vadd.f32 0.0, %v1612
    %v1614 = vpop.f32.mrb[0].mxu0
    %1615 = vmatprep.mubr.bf16.mxu0 0
    %1616 = vmatmul.mubr.bf16.gmra.mrb[0].mxu0 %v1545
    %v1617 = vpop.f32.mrb[0].mxu0
    %v1618 = vadd.f32 0.0, %v1617
    %v1619 = vpop.f32.mrb[0].mxu0
    %v1620 = vpop.f32.mrb[0].mxu0
    %v1621 = vadd.f32 0.0, %v1620
    %v1622 = vpop.f32.mrb[0].mxu0
    %1623 = vdwg.mxu0
    %v1625 = vsel %vm1356, %v1272, 0
    %v1628 = vsel %vm1356, %v1273, 0
    %v1631 = vsel %vm1356, %v1274, 0
    %v1634 = vsel %vm1356, %v1275, 0
    %v1637 = vsel %vm1356, %v1304, 0
    %v1640 = vsel %vm1356, %v1305, 0
    %v1643 = vsel %vm1356, %v1306, 0
    %v1646 = vsel %vm1356, %v1307, 0
    %1648 = vmatprep.subr.bf16.mxu0 0
    %1649 = vmatpush1.bf16.xpose.msra.mxu0 %v1637
    %1650 = vmatprep.subr.bf16.mxu0 0
    %1651 = vmatpush1.bf16.xpose.msra.mxu0 %v1640
    %1652 = vmatprep.subr.bf16.mxu0 0
    %1653 = vmatpush1.bf16.xpose.msra.mxu0 %v1643
    %1654 = vmatprep.subr.bf16.mxu0 0
    %1655 = vmatpush1.bf16.xpose.msra.mxu0 %v1646
    %1656 = vmatprep.subr.bf16.mxu0 0
    %1657 = vmatpush1.bf16.xpose.msra.mxu0 0
    %1658 = vmatprep.subr.bf16.mxu0 0
    %1659 = vmatpush1.bf16.xpose.msra.mxu0 0
    %1660 = vmatprep.subr.bf16.mxu0 0
    %1661 = vmatpush1.bf16.xpose.msra.mxu0 0
    %1662 = vmatprep.subr.bf16.mxu0 0
    %1663 = vmatpush1.bf16.xpose.msra.mxu0 0
    %1664 = vmatprep.subr.bf16.mxu0 0
    %1665 = vmatpush1.bf16.xpose.msra.mxu0 0
    %1666 = vmatprep.subr.bf16.mxu0 0
    %1667 = vmatpush1.bf16.xpose.msra.mxu0 0
    %1668 = vmatprep.subr.bf16.mxu0 0
    %1669 = vmatpush1.bf16.xpose.msra.mxu0 0
    %1670 = vmatprep.subr.bf16.mxu0 0
    %1671 = vmatpush1.bf16.xpose.msra.mxu0 0
    %1672 = vmatprep.subr.bf16.mxu0 0
    %1673 = vmatpush1.bf16.xpose.msra.mxu0 0
    %1674 = vmatprep.subr.bf16.mxu0 0
    %1675 = vmatpush1.bf16.xpose.msra.mxu0 0
    %1676 = vmatprep.subr.bf16.mxu0 0
    %1677 = vmatpush1.bf16.xpose.msra.mxu0 0
    %1678 = vmatprep.subr.bf16.mxu0 0
    %1679 = vmatpush1.bf16.xpose.msra.mxu0 0
    %1680 = vmatprep.mubr.bf16.mxu0 0
    %1681 = vmatmul.mubr.bf16.gmra.mrb[0].mxu0 %v1625
    %v1682 = vpop.f32.mrb[0].mxu0
    %v1683 = vadd.f32 0.0, %v1682
    %v1684 = vpop.f32.mrb[0].mxu0
    %v1685 = vpop.f32.mrb[0].mxu0
    %v1686 = vadd.f32 0.0, %v1685
    %v1687 = vpop.f32.mrb[0].mxu0
    %1688 = vmatprep.mubr.bf16.mxu0 0
    %1689 = vmatmul.mubr.bf16.gmra.mrb[0].mxu0 %v1628
    %v1690 = vpop.f32.mrb[0].mxu0
    %v1691 = vadd.f32 0.0, %v1690
    %v1692 = vpop.f32.mrb[0].mxu0
    %v1693 = vpop.f32.mrb[0].mxu0
    %v1694 = vadd.f32 0.0, %v1693
    %v1695 = vpop.f32.mrb[0].mxu0
    %1696 = vmatprep.mubr.bf16.mxu0 0
    %1697 = vmatmul.mubr.bf16.gmra.mrb[0].mxu0 %v1631
    %v1698 = vpop.f32.mrb[0].mxu0
    %v1699 = vadd.f32 0.0, %v1698
    %v1700 = vpop.f32.mrb[0].mxu0
    %v1701 = vpop.f32.mrb[0].mxu0
    %v1702 = vadd.f32 0.0, %v1701
    %v1703 = vpop.f32.mrb[0].mxu0
    %1704 = vmatprep.mubr.bf16.mxu0 0
    %1705 = vmatmul.mubr.bf16.gmra.mrb[0].mxu0 %v1634
    %v1706 = vpop.f32.mrb[0].mxu0
    %v1707 = vadd.f32 0.0, %v1706
    %v1708 = vpop.f32.mrb[0].mxu0
    %v1709 = vpop.f32.mrb[0].mxu0
    %v1710 = vadd.f32 0.0, %v1709
    %v1711 = vpop.f32.mrb[0].mxu0
    %1712 = vdwg.mxu0
    %v1714 = vsel %vm1356, %v1276, 0
    %v1717 = vsel %vm1356, %v1277, 0
    %v1720 = vsel %vm1356, %v1278, 0
    %v1723 = vsel %vm1356, %v1279, 0
    %v1726 = vsel %vm1356, %v1308, 0
    %v1729 = vsel %vm1356, %v1309, 0
    %v1732 = vsel %vm1356, %v1310, 0
    %v1735 = vsel %vm1356, %v1311, 0
    %1737 = vmatprep.subr.bf16.mxu0 0
    %1738 = vmatpush1.bf16.xpose.msra.mxu0 %v1726
    %1739 = vmatprep.subr.bf16.mxu0 0
    %1740 = vmatpush1.bf16.xpose.msra.mxu0 %v1729
    %1741 = vmatprep.subr.bf16.mxu0 0
    %1742 = vmatpush1.bf16.xpose.msra.mxu0 %v1732
    %1743 = vmatprep.subr.bf16.mxu0 0
    %1744 = vmatpush1.bf16.xpose.msra.mxu0 %v1735
    %1745 = vmatprep.subr.bf16.mxu0 0
    %1746 = vmatpush1.bf16.xpose.msra.mxu0 0
    %1747 = vmatprep.subr.bf16.mxu0 0
    %1748 = vmatpush1.bf16.xpose.msra.mxu0 0
    %1749 = vmatprep.subr.bf16.mxu0 0
    %1750 = vmatpush1.bf16.xpose.msra.mxu0 0
    %1751 = vmatprep.subr.bf16.mxu0 0
    %1752 = vmatpush1.bf16.xpose.msra.mxu0 0
    %1753 = vmatprep.subr.bf16.mxu0 0
    %1754 = vmatpush1.bf16.xpose.msra.mxu0 0
    %1755 = vmatprep.subr.bf16.mxu0 0
    %1756 = vmatpush1.bf16.xpose.msra.mxu0 0
    %1757 = vmatprep.subr.bf16.mxu0 0
    %1758 = vmatpush1.bf16.xpose.msra.mxu0 0
    %1759 = vmatprep.subr.bf16.mxu0 0
    %1760 = vmatpush1.bf16.xpose.msra.mxu0 0
    %1761 = vmatprep.subr.bf16.mxu0 0
    %1762 = vmatpush1.bf16.xpose.msra.mxu0 0
    %1763 = vmatprep.subr.bf16.mxu0 0
    %1764 = vmatpush1.bf16.xpose.msra.mxu0 0
    %1765 = vmatprep.subr.bf16.mxu0 0
    %1766 = vmatpush1.bf16.xpose.msra.mxu0 0
    %1767 = vmatprep.subr.bf16.mxu0 0
    %1768 = vmatpush1.bf16.xpose.msra.mxu0 0
    %1769 = vmatprep.mubr.bf16.mxu0 0
    %1770 = vmatmul.mubr.bf16.gmra.mrb[0].mxu0 %v1714
    %v1771 = vpop.f32.mrb[0].mxu0
    %v1772 = vadd.f32 0.0, %v1771
    %v1773 = vpop.f32.mrb[0].mxu0
    %v1774 = vpop.f32.mrb[0].mxu0
    %v1775 = vadd.f32 0.0, %v1774
    %v1776 = vpop.f32.mrb[0].mxu0
    %1777 = vmatprep.mubr.bf16.mxu0 0
    %1778 = vmatmul.mubr.bf16.gmra.mrb[0].mxu0 %v1717
    %v1779 = vpop.f32.mrb[0].mxu0
    %v1780 = vadd.f32 0.0, %v1779
    %v1781 = vpop.f32.mrb[0].mxu0
    %v1782 = vpop.f32.mrb[0].mxu0
    %v1783 = vadd.f32 0.0, %v1782
    %v1784 = vpop.f32.mrb[0].mxu0
    %1785 = vmatprep.mubr.bf16.mxu0 0
    %1786 = vmatmul.mubr.bf16.gmra.mrb[0].mxu0 %v1720
    %v1787 = vpop.f32.mrb[0].mxu0
    %v1788 = vadd.f32 0.0, %v1787
    %v1789 = vpop.f32.mrb[0].mxu0
    %v1790 = vpop.f32.mrb[0].mxu0
    %v1791 = vadd.f32 0.0, %v1790
    %v1792 = vpop.f32.mrb[0].mxu0
    %1793 = vmatprep.mubr.bf16.mxu0 0
    %1794 = vmatmul.mubr.bf16.gmra.mrb[0].mxu0 %v1723
    %v1795 = vpop.f32.mrb[0].mxu0
    %v1796 = vadd.f32 0.0, %v1795
    %v1797 = vpop.f32.mrb[0].mxu0
    %v1798 = vpop.f32.mrb[0].mxu0
    %v1799 = vadd.f32 0.0, %v1798
    %v1800 = vpop.f32.mrb[0].mxu0
    %1801 = vdwg.mxu0
    %v1803 = vsel %vm1356, %v1280, 0
    %v1806 = vsel %vm1356, %v1281, 0
    %v1809 = vsel %vm1356, %v1282, 0
    %v1812 = vsel %vm1356, %v1283, 0
    %v1815 = vsel %vm1356, %v1312, 0
    %v1818 = vsel %vm1356, %v1313, 0
    %v1821 = vsel %vm1356, %v1314, 0
    %v1824 = vsel %vm1356, %v1315, 0
    %1826 = vmatprep.subr.bf16.mxu0 0
    %1827 = vmatpush1.bf16.xpose.msra.mxu0 %v1815
    %1828 = vmatprep.subr.bf16.mxu0 0
    %1829 = vmatpush1.bf16.xpose.msra.mxu0 %v1818
    %1830 = vmatprep.subr.bf16.mxu0 0
    %1831 = vmatpush1.bf16.xpose.msra.mxu0 %v1821
    %1832 = vmatprep.subr.bf16.mxu0 0
    %1833 = vmatpush1.bf16.xpose.msra.mxu0 %v1824
    %1834 = vmatprep.subr.bf16.mxu0 0
    %1835 = vmatpush1.bf16.xpose.msra.mxu0 0
    %1836 = vmatprep.subr.bf16.mxu0 0
    %1837 = vmatpush1.bf16.xpose.msra.mxu0 0
    %1838 = vmatprep.subr.bf16.mxu0 0
    %1839 = vmatpush1.bf16.xpose.msra.mxu0 0
    %1840 = vmatprep.subr.bf16.mxu0 0
    %1841 = vmatpush1.bf16.xpose.msra.mxu0 0
    %1842 = vmatprep.subr.bf16.mxu0 0
    %1843 = vmatpush1.bf16.xpose.msra.mxu0 0
    %1844 = vmatprep.subr.bf16.mxu0 0
    %1845 = vmatpush1.bf16.xpose.msra.mxu0 0
    %1846 = vmatprep.subr.bf16.mxu0 0
    %1847 = vmatpush1.bf16.xpose.msra.mxu0 0
    %1848 = vmatprep.subr.bf16.mxu0 0
    %1849 = vmatpush1.bf16.xpose.msra.mxu0 0
    %1850 = vmatprep.subr.bf16.mxu0 0
    %1851 = vmatpush1.bf16.xpose.msra.mxu0 0
    %1852 = vmatprep.subr.bf16.mxu0 0
    %1853 = vmatpush1.bf16.xpose.msra.mxu0 0
    %1854 = vmatprep.subr.bf16.mxu0 0
    %1855 = vmatpush1.bf16.xpose.msra.mxu0 0
    %1856 = vmatprep.subr.bf16.mxu0 0
    %1857 = vmatpush1.bf16.xpose.msra.mxu0 0
    %1858 = vmatprep.mubr.bf16.mxu0 0
    %1859 = vmatmul.mubr.bf16.gmra.mrb[0].mxu0 %v1803
    %v1860 = vpop.f32.mrb[0].mxu0
    %v1861 = vadd.f32 0.0, %v1860
    %v1862 = vpop.f32.mrb[0].mxu0
    %v1863 = vpop.f32.mrb[0].mxu0
    %v1864 = vadd.f32 0.0, %v1863
    %v1865 = vpop.f32.mrb[0].mxu0
    %1866 = vmatprep.mubr.bf16.mxu0 0
    %1867 = vmatmul.mubr.bf16.gmra.mrb[0].mxu0 %v1806
    %v1868 = vpop.f32.mrb[0].mxu0
    %v1869 = vadd.f32 0.0, %v1868
    %v1870 = vpop.f32.mrb[0].mxu0
    %v1871 = vpop.f32.mrb[0].mxu0
    %v1872 = vadd.f32 0.0, %v1871
    %v1873 = vpop.f32.mrb[0].mxu0
    %1874 = vmatprep.mubr.bf16.mxu0 0
    %1875 = vmatmul.mubr.bf16.gmra.mrb[0].mxu0 %v1809
    %v1876 = vpop.f32.mrb[0].mxu0
    %v1877 = vadd.f32 0.0, %v1876
    %v1878 = vpop.f32.mrb[0].mxu0
    %v1879 = vpop.f32.mrb[0].mxu0
    %v1880 = vadd.f32 0.0, %v1879
    %v1881 = vpop.f32.mrb[0].mxu0
    %1882 = vmatprep.mubr.bf16.mxu0 0
    %1883 = vmatmul.mubr.bf16.gmra.mrb[0].mxu0 %v1812
    %v1884 = vpop.f32.mrb[0].mxu0
    %v1885 = vadd.f32 0.0, %v1884
    %v1886 = vpop.f32.mrb[0].mxu0
    %v1887 = vpop.f32.mrb[0].mxu0
    %v1888 = vadd.f32 0.0, %v1887
    %v1889 = vpop.f32.mrb[0].mxu0
    %1890 = vdwg.mxu0
    %v1892 = vsel %vm1356, %v1284, 0
    %v1895 = vsel %vm1356, %v1285, 0
    %v1898 = vsel %vm1356, %v1286, 0
    %v1901 = vsel %vm1356, %v1287, 0
    %v1904 = vsel %vm1356, %v1316, 0
    %v1907 = vsel %vm1356, %v1317, 0
    %v1910 = vsel %vm1356, %v1318, 0
    %v1913 = vsel %vm1356, %v1319, 0
    %1915 = vmatprep.subr.bf16.mxu0 0
    %1916 = vmatpush1.bf16.xpose.msra.mxu0 %v1904
    %1917 = vmatprep.subr.bf16.mxu0 0
    %1918 = vmatpush1.bf16.xpose.msra.mxu0 %v1907
    %1919 = vmatprep.subr.bf16.mxu0 0
    %1920 = vmatpush1.bf16.xpose.msra.mxu0 %v1910
    %1921 = vmatprep.subr.bf16.mxu0 0
    %1922 = vmatpush1.bf16.xpose.msra.mxu0 %v1913
    %1923 = vmatprep.subr.bf16.mxu0 0
    %1924 = vmatpush1.bf16.xpose.msra.mxu0 0
    %1925 = vmatprep.subr.bf16.mxu0 0
    %1926 = vmatpush1.bf16.xpose.msra.mxu0 0
    %1927 = vmatprep.subr.bf16.mxu0 0
    %1928 = vmatpush1.bf16.xpose.msra.mxu0 0
    %1929 = vmatprep.subr.bf16.mxu0 0
    %1930 = vmatpush1.bf16.xpose.msra.mxu0 0
    %1931 = vmatprep.subr.bf16.mxu0 0
    %1932 = vmatpush1.bf16.xpose.msra.mxu0 0
    %1933 = vmatprep.subr.bf16.mxu0 0
    %1934 = vmatpush1.bf16.xpose.msra.mxu0 0
    %1935 = vmatprep.subr.bf16.mxu0 0
    %1936 = vmatpush1.bf16.xpose.msra.mxu0 0
    %1937 = vmatprep.subr.bf16.mxu0 0
    %1938 = vmatpush1.bf16.xpose.msra.mxu0 0
    %1939 = vmatprep.subr.bf16.mxu0 0
    %1940 = vmatpush1.bf16.xpose.msra.mxu0 0
    %1941 = vmatprep.subr.bf16.mxu0 0
    %1942 = vmatpush1.bf16.xpose.msra.mxu0 0
    %1943 = vmatprep.subr.bf16.mxu0 0
    %1944 = vmatpush1.bf16.xpose.msra.mxu0 0
    %1945 = vmatprep.subr.bf16.mxu0 0
    %1946 = vmatpush1.bf16.xpose.msra.mxu0 0
    %1947 = vmatprep.mubr.bf16.mxu0 0
    %1948 = vmatmul.mubr.bf16.gmra.mrb[0].mxu0 %v1892
    %v1949 = vpop.f32.mrb[0].mxu0
    %v1950 = vadd.f32 0.0, %v1949
    %v1951 = vpop.f32.mrb[0].mxu0
    %v1952 = vpop.f32.mrb[0].mxu0
    %v1953 = vadd.f32 0.0, %v1952
    %v1954 = vpop.f32.mrb[0].mxu0
    %1955 = vmatprep.mubr.bf16.mxu0 0
    %1956 = vmatmul.mubr.bf16.gmra.mrb[0].mxu0 %v1895
    %v1957 = vpop.f32.mrb[0].mxu0
    %v1958 = vadd.f32 0.0, %v1957
    %v1959 = vpop.f32.mrb[0].mxu0
    %v1960 = vpop.f32.mrb[0].mxu0
    %v1961 = vadd.f32 0.0, %v1960
    %v1962 = vpop.f32.mrb[0].mxu0
    %1963 = vmatprep.mubr.bf16.mxu0 0
    %1964 = vmatmul.mubr.bf16.gmra.mrb[0].mxu0 %v1898
    %v1965 = vpop.f32.mrb[0].mxu0
    %v1966 = vadd.f32 0.0, %v1965
    %v1967 = vpop.f32.mrb[0].mxu0
    %v1968 = vpop.f32.mrb[0].mxu0
    %v1969 = vadd.f32 0.0, %v1968
    %v1970 = vpop.f32.mrb[0].mxu0
    %1971 = vmatprep.mubr.bf16.mxu0 0
    %1972 = vmatmul.mubr.bf16.gmra.mrb[0].mxu0 %v1901
    %v1973 = vpop.f32.mrb[0].mxu0
    %v1974 = vadd.f32 0.0, %v1973
    %v1975 = vpop.f32.mrb[0].mxu0
    %v1976 = vpop.f32.mrb[0].mxu0
    %v1977 = vadd.f32 0.0, %v1976
    %v1978 = vpop.f32.mrb[0].mxu0
    %1979 = vdwg.mxu0
    %v1981 = vsel %vm1356, %v1288, 0
    %v1984 = vsel %vm1356, %v1289, 0
    %v1987 = vsel %vm1356, %v1290, 0
    %v1990 = vsel %vm1356, %v1291, 0
    %v1993 = vsel %vm1356, %v1320, 0
    %v1996 = vsel %vm1356, %v1321, 0
    %v1999 = vsel %vm1356, %v1322, 0
    %v2002 = vsel %vm1356, %v1323, 0
    %2004 = vmatprep.subr.bf16.mxu0 0
    %2005 = vmatpush1.bf16.xpose.msra.mxu0 %v1993
    %2006 = vmatprep.subr.bf16.mxu0 0
    %2007 = vmatpush1.bf16.xpose.msra.mxu0 %v1996
    %2008 = vmatprep.subr.bf16.mxu0 0
    %2009 = vmatpush1.bf16.xpose.msra.mxu0 %v1999
    %2010 = vmatprep.subr.bf16.mxu0 0
    %2011 = vmatpush1.bf16.xpose.msra.mxu0 %v2002
    %2012 = vmatprep.subr.bf16.mxu0 0
    %2013 = vmatpush1.bf16.xpose.msra.mxu0 0
    %2014 = vmatprep.subr.bf16.mxu0 0
    %2015 = vmatpush1.bf16.xpose.msra.mxu0 0
    %2016 = vmatprep.subr.bf16.mxu0 0
    %2017 = vmatpush1.bf16.xpose.msra.mxu0 0
    %2018 = vmatprep.subr.bf16.mxu0 0
    %2019 = vmatpush1.bf16.xpose.msra.mxu0 0
    %2020 = vmatprep.subr.bf16.mxu0 0
    %2021 = vmatpush1.bf16.xpose.msra.mxu0 0
    %2022 = vmatprep.subr.bf16.mxu0 0
    %2023 = vmatpush1.bf16.xpose.msra.mxu0 0
    %2024 = vmatprep.subr.bf16.mxu0 0
    %2025 = vmatpush1.bf16.xpose.msra.mxu0 0
    %2026 = vmatprep.subr.bf16.mxu0 0
    %2027 = vmatpush1.bf16.xpose.msra.mxu0 0
    %2028 = vmatprep.subr.bf16.mxu0 0
    %2029 = vmatpush1.bf16.xpose.msra.mxu0 0
    %2030 = vmatprep.subr.bf16.mxu0 0
    %2031 = vmatpush1.bf16.xpose.msra.mxu0 0
    %2032 = vmatprep.subr.bf16.mxu0 0
    %2033 = vmatpush1.bf16.xpose.msra.mxu0 0
    %2034 = vmatprep.subr.bf16.mxu0 0
    %2035 = vmatpush1.bf16.xpose.msra.mxu0 0
    %2036 = vmatprep.mubr.bf16.mxu0 0
    %2037 = vmatmul.mubr.bf16.gmra.mrb[0].mxu0 %v1981
    %v2038 = vpop.f32.mrb[0].mxu0
    %v2039 = vadd.f32 0.0, %v2038
    %v2040 = vpop.f32.mrb[0].mxu0
    %v2041 = vpop.f32.mrb[0].mxu0
    %v2042 = vadd.f32 0.0, %v2041
    %v2043 = vpop.f32.mrb[0].mxu0
    %2044 = vmatprep.mubr.bf16.mxu0 0
    %2045 = vmatmul.mubr.bf16.gmra.mrb[0].mxu0 %v1984
    %v2046 = vpop.f32.mrb[0].mxu0
    %v2047 = vadd.f32 0.0, %v2046
    %v2048 = vpop.f32.mrb[0].mxu0
    %v2049 = vpop.f32.mrb[0].mxu0
    %v2050 = vadd.f32 0.0, %v2049
    %v2051 = vpop.f32.mrb[0].mxu0
    %2052 = vmatprep.mubr.bf16.mxu0 0
    %2053 = vmatmul.mubr.bf16.gmra.mrb[0].mxu0 %v1987
    %v2054 = vpop.f32.mrb[0].mxu0
    %v2055 = vadd.f32 0.0, %v2054
    %v2056 = vpop.f32.mrb[0].mxu0
    %v2057 = vpop.f32.mrb[0].mxu0
    %v2058 = vadd.f32 0.0, %v2057
    %v2059 = vpop.f32.mrb[0].mxu0
    %2060 = vmatprep.mubr.bf16.mxu0 0
    %2061 = vmatmul.mubr.bf16.gmra.mrb[0].mxu0 %v1990
    %v2062 = vpop.f32.mrb[0].mxu0
    %v2063 = vadd.f32 0.0, %v2062
    %v2064 = vpop.f32.mrb[0].mxu0
    %v2065 = vpop.f32.mrb[0].mxu0
    %v2066 = vadd.f32 0.0, %v2065
    %v2067 = vpop.f32.mrb[0].mxu0
    %2068 = vdwg.mxu0
    %vm2069 = vcmask 523264
    %v2070 = vsel %vm2069, %v1416, -inf
    %2071 = vmax.xlane.f32.xlu0 %v2070
    %v2072 = vpop.xlane.xlu0 %2071
    %v2073 = vsel %vm2069, %v1419, -inf
    %2074 = vmax.xlane.f32.xlu0 %v2073
    %v2075 = vpop.xlane.xlu0 %2074
    %v2076 = vsel %vm2069, %v1424, -inf
    %2077 = vmax.xlane.f32.xlu0 %v2076
    %v2078 = vpop.xlane.xlu0 %2077
    %v2079 = vsel %vm2069, %v1427, -inf
    %2080 = vmax.xlane.f32.xlu0 %v2079
    %v2081 = vpop.xlane.xlu0 %2080
    %v2082 = vsel %vm2069, %v1432, -inf
    %2083 = vmax.xlane.f32.xlu0 %v2082
    %v2084 = vpop.xlane.xlu0 %2083
    %v2085 = vsel %vm2069, %v1435, -inf
    %2086 = vmax.xlane.f32.xlu0 %v2085
    %v2087 = vpop.xlane.xlu0 %2086
    %v2088 = vsel %vm2069, %v1440, -inf
    %2089 = vmax.xlane.f32.xlu0 %v2088
    %v2090 = vpop.xlane.xlu0 %2089
    %v2091 = vsel %vm2069, %v1443, -inf
    %2092 = vmax.xlane.f32.xlu0 %v2091
    %v2093 = vpop.xlane.xlu0 %2092
    %v2094 = vsel %vm2069, %v1505, -inf
    %2095 = vmax.xlane.f32.xlu0 %v2094
    %v2096 = vpop.xlane.xlu0 %2095
    %v2097 = vsel %vm2069, %v1508, -inf
    %2098 = vmax.xlane.f32.xlu0 %v2097
    %v2099 = vpop.xlane.xlu0 %2098
    %v2100 = vsel %vm2069, %v1513, -inf
    %2101 = vmax.xlane.f32.xlu0 %v2100
    %v2102 = vpop.xlane.xlu0 %2101
    %v2103 = vsel %vm2069, %v1516, -inf
    %2104 = vmax.xlane.f32.xlu0 %v2103
    %v2105 = vpop.xlane.xlu0 %2104
    %v2106 = vsel %vm2069, %v1521, -inf
    %2107 = vmax.xlane.f32.xlu0 %v2106
    %v2108 = vpop.xlane.xlu0 %2107
    %v2109 = vsel %vm2069, %v1524, -inf
    %2110 = vmax.xlane.f32.xlu0 %v2109
    %v2111 = vpop.xlane.xlu0 %2110
    %v2112 = vsel %vm2069, %v1529, -inf
    %2113 = vmax.xlane.f32.xlu0 %v2112
    %v2114 = vpop.xlane.xlu0 %2113
    %v2115 = vsel %vm2069, %v1532, -inf
    %2116 = vmax.xlane.f32.xlu0 %v2115
    %v2117 = vpop.xlane.xlu0 %2116
    %v2118 = vsel %vm2069, %v1594, -inf
    %2119 = vmax.xlane.f32.xlu0 %v2118
    %v2120 = vpop.xlane.xlu0 %2119
    %v2121 = vsel %vm2069, %v1597, -inf
    %2122 = vmax.xlane.f32.xlu0 %v2121
    %v2123 = vpop.xlane.xlu0 %2122
    %v2124 = vsel %vm2069, %v1602, -inf
    %2125 = vmax.xlane.f32.xlu0 %v2124
    %v2126 = vpop.xlane.xlu0 %2125
    %v2127 = vsel %vm2069, %v1605, -inf
    %2128 = vmax.xlane.f32.xlu0 %v2127
    %v2129 = vpop.xlane.xlu0 %2128
    %v2130 = vsel %vm2069, %v1610, -inf
    %2131 = vmax.xlane.f32.xlu0 %v2130
    %v2132 = vpop.xlane.xlu0 %2131
    %v2133 = vsel %vm2069, %v1613, -inf
    %2134 = vmax.xlane.f32.xlu0 %v2133
    %v2135 = vpop.xlane.xlu0 %2134
    %v2136 = vsel %vm2069, %v1618, -inf
    %2137 = vmax.xlane.f32.xlu0 %v2136
    %v2138 = vpop.xlane.xlu0 %2137
    %v2139 = vsel %vm2069, %v1621, -inf
    %2140 = vmax.xlane.f32.xlu0 %v2139
    %v2141 = vpop.xlane.xlu0 %2140
    %v2142 = vsel %vm2069, %v1683, -inf
    %2143 = vmax.xlane.f32.xlu0 %v2142
    %v2144 = vpop.xlane.xlu0 %2143
    %v2145 = vsel %vm2069, %v1686, -inf
    %2146 = vmax.xlane.f32.xlu0 %v2145
    %v2147 = vpop.xlane.xlu0 %2146
    %v2148 = vsel %vm2069, %v1691, -inf
    %2149 = vmax.xlane.f32.xlu0 %v2148
    %v2150 = vpop.xlane.xlu0 %2149
    %v2151 = vsel %vm2069, %v1694, -inf
    %2152 = vmax.xlane.f32.xlu0 %v2151
    %v2153 = vpop.xlane.xlu0 %2152
    %v2154 = vsel %vm2069, %v1699, -inf
    %2155 = vmax.xlane.f32.xlu0 %v2154
    %v2156 = vpop.xlane.xlu0 %2155
    %v2157 = vsel %vm2069, %v1702, -inf
    %2158 = vmax.xlane.f32.xlu0 %v2157
    %v2159 = vpop.xlane.xlu0 %2158
    %v2160 = vsel %vm2069, %v1707, -inf
    %2161 = vmax.xlane.f32.xlu0 %v2160
    %v2162 = vpop.xlane.xlu0 %2161
    %v2163 = vsel %vm2069, %v1710, -inf
    %2164 = vmax.xlane.f32.xlu0 %v2163
    %v2165 = vpop.xlane.xlu0 %2164
    %v2166 = vsel %vm2069, %v1772, -inf
    %2167 = vmax.xlane.f32.xlu0 %v2166
    %v2168 = vpop.xlane.xlu0 %2167
    %v2169 = vsel %vm2069, %v1775, -inf
    %2170 = vmax.xlane.f32.xlu0 %v2169
    %v2171 = vpop.xlane.xlu0 %2170
    %v2172 = vsel %vm2069, %v1780, -inf
    %2173 = vmax.xlane.f32.xlu0 %v2172
    %v2174 = vpop.xlane.xlu0 %2173
    %v2175 = vsel %vm2069, %v1783, -inf
    %2176 = vmax.xlane.f32.xlu0 %v2175
    %v2177 = vpop.xlane.xlu0 %2176
    %v2178 = vsel %vm2069, %v1788, -inf
    %2179 = vmax.xlane.f32.xlu0 %v2178
    %v2180 = vpop.xlane.xlu0 %2179
    %v2181 = vsel %vm2069, %v1791, -inf
    %2182 = vmax.xlane.f32.xlu0 %v2181
    %v2183 = vpop.xlane.xlu0 %2182
    %v2184 = vsel %vm2069, %v1796, -inf
    %2185 = vmax.xlane.f32.xlu0 %v2184
    %v2186 = vpop.xlane.xlu0 %2185
    %v2187 = vsel %vm2069, %v1799, -inf
    %2188 = vmax.xlane.f32.xlu0 %v2187
    %v2189 = vpop.xlane.xlu0 %2188
    %v2190 = vsel %vm2069, %v1861, -inf
    %2191 = vmax.xlane.f32.xlu0 %v2190
    %v2192 = vpop.xlane.xlu0 %2191
    %v2193 = vsel %vm2069, %v1864, -inf
    %2194 = vmax.xlane.f32.xlu0 %v2193
    %v2195 = vpop.xlane.xlu0 %2194
    %v2196 = vsel %vm2069, %v1869, -inf
    %2197 = vmax.xlane.f32.xlu0 %v2196
    %v2198 = vpop.xlane.xlu0 %2197
    %v2199 = vsel %vm2069, %v1872, -inf
    %2200 = vmax.xlane.f32.xlu0 %v2199
    %v2201 = vpop.xlane.xlu0 %2200
    %v2202 = vsel %vm2069, %v1877, -inf
    %2203 = vmax.xlane.f32.xlu0 %v2202
    %v2204 = vpop.xlane.xlu0 %2203
    %v2205 = vsel %vm2069, %v1880, -inf
    %2206 = vmax.xlane.f32.xlu0 %v2205
    %v2207 = vpop.xlane.xlu0 %2206
    %v2208 = vsel %vm2069, %v1885, -inf
    %2209 = vmax.xlane.f32.xlu0 %v2208
    %v2210 = vpop.xlane.xlu0 %2209
    %v2211 = vsel %vm2069, %v1888, -inf
    %2212 = vmax.xlane.f32.xlu0 %v2211
    %v2213 = vpop.xlane.xlu0 %2212
    %v2214 = vsel %vm2069, %v1950, -inf
    %2215 = vmax.xlane.f32.xlu0 %v2214
    %v2216 = vpop.xlane.xlu0 %2215
    %v2217 = vsel %vm2069, %v1953, -inf
    %2218 = vmax.xlane.f32.xlu0 %v2217
    %v2219 = vpop.xlane.xlu0 %2218
    %v2220 = vsel %vm2069, %v1958, -inf
    %2221 = vmax.xlane.f32.xlu0 %v2220
    %v2222 = vpop.xlane.xlu0 %2221
    %v2223 = vsel %vm2069, %v1961, -inf
    %2224 = vmax.xlane.f32.xlu0 %v2223
    %v2225 = vpop.xlane.xlu0 %2224
    %v2226 = vsel %vm2069, %v1966, -inf
    %2227 = vmax.xlane.f32.xlu0 %v2226
    %v2228 = vpop.xlane.xlu0 %2227
    %v2229 = vsel %vm2069, %v1969, -inf
    %2230 = vmax.xlane.f32.xlu0 %v2229
    %v2231 = vpop.xlane.xlu0 %2230
    %v2232 = vsel %vm2069, %v1974, -inf
    %2233 = vmax.xlane.f32.xlu0 %v2232
    %v2234 = vpop.xlane.xlu0 %2233
    %v2235 = vsel %vm2069, %v1977, -inf
    %2236 = vmax.xlane.f32.xlu0 %v2235
    %v2237 = vpop.xlane.xlu0 %2236
    %v2238 = vsel %vm2069, %v2039, -inf
    %2239 = vmax.xlane.f32.xlu0 %v2238
    %v2240 = vpop.xlane.xlu0 %2239
    %v2241 = vsel %vm2069, %v2042, -inf
    %2242 = vmax.xlane.f32.xlu0 %v2241
    %v2243 = vpop.xlane.xlu0 %2242
    %v2244 = vsel %vm2069, %v2047, -inf
    %2245 = vmax.xlane.f32.xlu0 %v2244
    %v2246 = vpop.xlane.xlu0 %2245
    %v2247 = vsel %vm2069, %v2050, -inf
    %2248 = vmax.xlane.f32.xlu0 %v2247
    %v2249 = vpop.xlane.xlu0 %2248
    %v2250 = vsel %vm2069, %v2055, -inf
    %2251 = vmax.xlane.f32.xlu0 %v2250
    %v2252 = vpop.xlane.xlu0 %2251
    %v2253 = vsel %vm2069, %v2058, -inf
    %2254 = vmax.xlane.f32.xlu0 %v2253
    %v2255 = vpop.xlane.xlu0 %2254
    %v2256 = vsel %vm2069, %v2063, -inf
    %2257 = vmax.xlane.f32.xlu0 %v2256
    %v2258 = vpop.xlane.xlu0 %2257
    %v2259 = vsel %vm2069, %v2066, -inf
    %2260 = vmax.xlane.f32.xlu0 %v2259
    %v2261 = vpop.xlane.xlu0 %2260
    %v2262 = vsub.f32 %v1416, %v2072
    %v2263 = vsub.f32 %v1419, %v2075
    %v2264 = vsub.f32 %v1424, %v2078
    %v2265 = vsub.f32 %v1427, %v2081
    %v2266 = vsub.f32 %v1432, %v2084
    %v2267 = vsub.f32 %v1435, %v2087
    %v2268 = vsub.f32 %v1440, %v2090
    %v2269 = vsub.f32 %v1443, %v2093
    %v2270 = vsub.f32 %v1505, %v2096
    %v2271 = vsub.f32 %v1508, %v2099
    %v2272 = vsub.f32 %v1513, %v2102
    %v2273 = vsub.f32 %v1516, %v2105
    %v2274 = vsub.f32 %v1521, %v2108
    %v2275 = vsub.f32 %v1524, %v2111
    %v2276 = vsub.f32 %v1529, %v2114
    %v2277 = vsub.f32 %v1532, %v2117
    %v2278 = vsub.f32 %v1594, %v2120
    %v2279 = vsub.f32 %v1597, %v2123
    %v2280 = vsub.f32 %v1602, %v2126
    %v2281 = vsub.f32 %v1605, %v2129
    %v2282 = vsub.f32 %v1610, %v2132
    %v2283 = vsub.f32 %v1613, %v2135
    %v2284 = vsub.f32 %v1618, %v2138
    %v2285 = vsub.f32 %v1621, %v2141
    %v2286 = vsub.f32 %v1683, %v2144
    %v2287 = vsub.f32 %v1686, %v2147
    %v2288 = vsub.f32 %v1691, %v2150
    %v2289 = vsub.f32 %v1694, %v2153
    %v2290 = vsub.f32 %v1699, %v2156
    %v2291 = vsub.f32 %v1702, %v2159
    %v2292 = vsub.f32 %v1707, %v2162
    %v2293 = vsub.f32 %v1710, %v2165
    %v2294 = vsub.f32 %v1772, %v2168
    %v2295 = vsub.f32 %v1775, %v2171
    %v2296 = vsub.f32 %v1780, %v2174
    %v2297 = vsub.f32 %v1783, %v2177
    %v2298 = vsub.f32 %v1788, %v2180
    %v2299 = vsub.f32 %v1791, %v2183
    %v2300 = vsub.f32 %v1796, %v2186
    %v2301 = vsub.f32 %v1799, %v2189
    %v2302 = vsub.f32 %v1861, %v2192
    %v2303 = vsub.f32 %v1864, %v2195
    %v2304 = vsub.f32 %v1869, %v2198
    %v2305 = vsub.f32 %v1872, %v2201
    %v2306 = vsub.f32 %v1877, %v2204
    %v2307 = vsub.f32 %v1880, %v2207
    %v2308 = vsub.f32 %v1885, %v2210
    %v2309 = vsub.f32 %v1888, %v2213
    %v2310 = vsub.f32 %v1950, %v2216
    %v2311 = vsub.f32 %v1953, %v2219
    %v2312 = vsub.f32 %v1958, %v2222
    %v2313 = vsub.f32 %v1961, %v2225
    %v2314 = vsub.f32 %v1966, %v2228
    %v2315 = vsub.f32 %v1969, %v2231
    %v2316 = vsub.f32 %v1974, %v2234
    %v2317 = vsub.f32 %v1977, %v2237
    %v2318 = vsub.f32 %v2039, %v2240
    %v2319 = vsub.f32 %v2042, %v2243
    %v2320 = vsub.f32 %v2047, %v2246
    %v2321 = vsub.f32 %v2050, %v2249
    %v2322 = vsub.f32 %v2055, %v2252
    %v2323 = vsub.f32 %v2058, %v2255
    %v2324 = vsub.f32 %v2063, %v2258
    %v2325 = vsub.f32 %v2066, %v2261
    %v2326 = vmul.f32 %v2262, 1.442695
    %v2327 = vpow.pop %v2326
    %v2328 = vmul.f32 %v2263, 1.442695
    %v2329 = vpow.pop %v2328
    %v2330 = vmul.f32 %v2264, 1.442695
    %v2331 = vpow.pop %v2330
    %v2332 = vmul.f32 %v2265, 1.442695
    %v2333 = vpow.pop %v2332
    %v2334 = vmul.f32 %v2266, 1.442695
    %v2335 = vpow.pop %v2334
    %v2336 = vmul.f32 %v2267, 1.442695
    %v2337 = vpow.pop %v2336
    %v2338 = vmul.f32 %v2268, 1.442695
    %v2339 = vpow.pop %v2338
    %v2340 = vmul.f32 %v2269, 1.442695
    %v2341 = vpow.pop %v2340
    %v2342 = vmul.f32 %v2270, 1.442695
    %v2343 = vpow.pop %v2342
    %v2344 = vmul.f32 %v2271, 1.442695
    %v2345 = vpow.pop %v2344
    %v2346 = vmul.f32 %v2272, 1.442695
    %v2347 = vpow.pop %v2346
    %v2348 = vmul.f32 %v2273, 1.442695
    %v2349 = vpow.pop %v2348
    %v2350 = vmul.f32 %v2274, 1.442695
    %v2351 = vpow.pop %v2350
    %v2352 = vmul.f32 %v2275, 1.442695
    %v2353 = vpow.pop %v2352
    %v2354 = vmul.f32 %v2276, 1.442695
    %v2355 = vpow.pop %v2354
    %v2356 = vmul.f32 %v2277, 1.442695
    %v2357 = vpow.pop %v2356
    %v2358 = vmul.f32 %v2278, 1.442695
    %v2359 = vpow.pop %v2358
    %v2360 = vmul.f32 %v2279, 1.442695
    %v2361 = vpow.pop %v2360
    %v2362 = vmul.f32 %v2280, 1.442695
    %v2363 = vpow.pop %v2362
    %v2364 = vmul.f32 %v2281, 1.442695
    %v2365 = vpow.pop %v2364
    %v2366 = vmul.f32 %v2282, 1.442695
    %v2367 = vpow.pop %v2366
    %v2368 = vmul.f32 %v2283, 1.442695
    %v2369 = vpow.pop %v2368
    %v2370 = vmul.f32 %v2284, 1.442695
    %v2371 = vpow.pop %v2370
    %v2372 = vmul.f32 %v2285, 1.442695
    %v2373 = vpow.pop %v2372
    %v2374 = vmul.f32 %v2286, 1.442695
    %v2375 = vpow.pop %v2374
    %v2376 = vmul.f32 %v2287, 1.442695
    %v2377 = vpow.pop %v2376
    %v2378 = vmul.f32 %v2288, 1.442695
    %v2379 = vpow.pop %v2378
    %v2380 = vmul.f32 %v2289, 1.442695
    %v2381 = vpow.pop %v2380
    %v2382 = vmul.f32 %v2290, 1.442695
    %v2383 = vpow.pop %v2382
    %v2384 = vmul.f32 %v2291, 1.442695
    %v2385 = vpow.pop %v2384
    %v2386 = vmul.f32 %v2292, 1.442695
    %v2387 = vpow.pop %v2386
    %v2388 = vmul.f32 %v2293, 1.442695
    %v2389 = vpow.pop %v2388
    %v2390 = vmul.f32 %v2294, 1.442695
    %v2391 = vpow.pop %v2390
    %v2392 = vmul.f32 %v2295, 1.442695
    %v2393 = vpow.pop %v2392
    %v2394 = vmul.f32 %v2296, 1.442695
    %v2395 = vpow.pop %v2394
    %v2396 = vmul.f32 %v2297, 1.442695
    %v2397 = vpow.pop %v2396
    %v2398 = vmul.f32 %v2298, 1.442695
    %v2399 = vpow.pop %v2398
    %v2400 = vmul.f32 %v2299, 1.442695
    %v2401 = vpow.pop %v2400
    %v2402 = vmul.f32 %v2300, 1.442695
    %v2403 = vpow.pop %v2402
    %v2404 = vmul.f32 %v2301, 1.442695
    %v2405 = vpow.pop %v2404
    %v2406 = vmul.f32 %v2302, 1.442695
    %v2407 = vpow.pop %v2406
    %v2408 = vmul.f32 %v2303, 1.442695
    %v2409 = vpow.pop %v2408
    %v2410 = vmul.f32 %v2304, 1.442695
    %v2411 = vpow.pop %v2410
    %v2412 = vmul.f32 %v2305, 1.442695
    %v2413 = vpow.pop %v2412
    %v2414 = vmul.f32 %v2306, 1.442695
    %v2415 = vpow.pop %v2414
    %v2416 = vmul.f32 %v2307, 1.442695
    %v2417 = vpow.pop %v2416
    %v2418 = vmul.f32 %v2308, 1.442695
    %v2419 = vpow.pop %v2418
    %v2420 = vmul.f32 %v2309, 1.442695
    %v2421 = vpow.pop %v2420
    %v2422 = vmul.f32 %v2310, 1.442695
    %v2423 = vpow.pop %v2422
    %v2424 = vmul.f32 %v2311, 1.442695
    %v2425 = vpow.pop %v2424
    %v2426 = vmul.f32 %v2312, 1.442695
    %v2427 = vpow.pop %v2426
    %v2428 = vmul.f32 %v2313, 1.442695
    %v2429 = vpow.pop %v2428
    %v2430 = vmul.f32 %v2314, 1.442695
    %v2431 = vpow.pop %v2430
    %v2432 = vmul.f32 %v2315, 1.442695
    %v2433 = vpow.pop %v2432
    %v2434 = vmul.f32 %v2316, 1.442695
    %v2435 = vpow.pop %v2434
    %v2436 = vmul.f32 %v2317, 1.442695
    %v2437 = vpow.pop %v2436
    %v2438 = vmul.f32 %v2318, 1.442695
    %v2439 = vpow.pop %v2438
    %v2440 = vmul.f32 %v2319, 1.442695
    %v2441 = vpow.pop %v2440
    %v2442 = vmul.f32 %v2320, 1.442695
    %v2443 = vpow.pop %v2442
    %v2444 = vmul.f32 %v2321, 1.442695
    %v2445 = vpow.pop %v2444
    %v2446 = vmul.f32 %v2322, 1.442695
    %v2447 = vpow.pop %v2446
    %v2448 = vmul.f32 %v2323, 1.442695
    %v2449 = vpow.pop %v2448
    %v2450 = vmul.f32 %v2324, 1.442695
    %v2451 = vpow.pop %v2450
    %v2452 = vmul.f32 %v2325, 1.442695
    %v2453 = vpow.pop %v2452
    %v2454 = vsel %vm2069, %v2327, 0.0
    %2455 = vadd.xlane.f32.xlu0 %v2454
    %v2456 = vpop.xlane.xlu0 %2455
    %v2457 = vsel %vm2069, %v2329, 0.0
    %2458 = vadd.xlane.f32.xlu0 %v2457
    %v2459 = vpop.xlane.xlu0 %2458
    %v2460 = vsel %vm2069, %v2331, 0.0
    %2461 = vadd.xlane.f32.xlu0 %v2460
    %v2462 = vpop.xlane.xlu0 %2461
    %v2463 = vsel %vm2069, %v2333, 0.0
    %2464 = vadd.xlane.f32.xlu0 %v2463
    %v2465 = vpop.xlane.xlu0 %2464
    %v2466 = vsel %vm2069, %v2335, 0.0
    %2467 = vadd.xlane.f32.xlu0 %v2466
    %v2468 = vpop.xlane.xlu0 %2467
    %v2469 = vsel %vm2069, %v2337, 0.0
    %2470 = vadd.xlane.f32.xlu0 %v2469
    %v2471 = vpop.xlane.xlu0 %2470
    %v2472 = vsel %vm2069, %v2339, 0.0
    %2473 = vadd.xlane.f32.xlu0 %v2472
    %v2474 = vpop.xlane.xlu0 %2473
    %v2475 = vsel %vm2069, %v2341, 0.0
    %2476 = vadd.xlane.f32.xlu0 %v2475
    %v2477 = vpop.xlane.xlu0 %2476
    %v2478 = vsel %vm2069, %v2343, 0.0
    %2479 = vadd.xlane.f32.xlu0 %v2478
    %v2480 = vpop.xlane.xlu0 %2479
    %v2481 = vsel %vm2069, %v2345, 0.0
    %2482 = vadd.xlane.f32.xlu0 %v2481
    %v2483 = vpop.xlane.xlu0 %2482
    %v2484 = vsel %vm2069, %v2347, 0.0
    %2485 = vadd.xlane.f32.xlu0 %v2484
    %v2486 = vpop.xlane.xlu0 %2485
    %v2487 = vsel %vm2069, %v2349, 0.0
    %2488 = vadd.xlane.f32.xlu0 %v2487
    %v2489 = vpop.xlane.xlu0 %2488
    %v2490 = vsel %vm2069, %v2351, 0.0
    %2491 = vadd.xlane.f32.xlu0 %v2490
    %v2492 = vpop.xlane.xlu0 %2491
    %v2493 = vsel %vm2069, %v2353, 0.0
    %2494 = vadd.xlane.f32.xlu0 %v2493
    %v2495 = vpop.xlane.xlu0 %2494
    %v2496 = vsel %vm2069, %v2355, 0.0
    %2497 = vadd.xlane.f32.xlu0 %v2496
    %v2498 = vpop.xlane.xlu0 %2497
    %v2499 = vsel %vm2069, %v2357, 0.0
    %2500 = vadd.xlane.f32.xlu0 %v2499
    %v2501 = vpop.xlane.xlu0 %2500
    %v2502 = vsel %vm2069, %v2359, 0.0
    %2503 = vadd.xlane.f32.xlu0 %v2502
    %v2504 = vpop.xlane.xlu0 %2503
    %v2505 = vsel %vm2069, %v2361, 0.0
    %2506 = vadd.xlane.f32.xlu0 %v2505
    %v2507 = vpop.xlane.xlu0 %2506
    %v2508 = vsel %vm2069, %v2363, 0.0
    %2509 = vadd.xlane.f32.xlu0 %v2508
    %v2510 = vpop.xlane.xlu0 %2509
    %v2511 = vsel %vm2069, %v2365, 0.0
    %2512 = vadd.xlane.f32.xlu0 %v2511
    %v2513 = vpop.xlane.xlu0 %2512
    %v2514 = vsel %vm2069, %v2367, 0.0
    %2515 = vadd.xlane.f32.xlu0 %v2514
    %v2516 = vpop.xlane.xlu0 %2515
    %v2517 = vsel %vm2069, %v2369, 0.0
    %2518 = vadd.xlane.f32.xlu0 %v2517
    %v2519 = vpop.xlane.xlu0 %2518
    %v2520 = vsel %vm2069, %v2371, 0.0
    %2521 = vadd.xlane.f32.xlu0 %v2520
    %v2522 = vpop.xlane.xlu0 %2521
    %v2523 = vsel %vm2069, %v2373, 0.0
    %2524 = vadd.xlane.f32.xlu0 %v2523
    %v2525 = vpop.xlane.xlu0 %2524
    %v2526 = vsel %vm2069, %v2375, 0.0
    %2527 = vadd.xlane.f32.xlu0 %v2526
    %v2528 = vpop.xlane.xlu0 %2527
    %v2529 = vsel %vm2069, %v2377, 0.0
    %2530 = vadd.xlane.f32.xlu0 %v2529
    %v2531 = vpop.xlane.xlu0 %2530
    %v2532 = vsel %vm2069, %v2379, 0.0
    %2533 = vadd.xlane.f32.xlu0 %v2532
    %v2534 = vpop.xlane.xlu0 %2533
    %v2535 = vsel %vm2069, %v2381, 0.0
    %2536 = vadd.xlane.f32.xlu0 %v2535
    %v2537 = vpop.xlane.xlu0 %2536
    %v2538 = vsel %vm2069, %v2383, 0.0
    %2539 = vadd.xlane.f32.xlu0 %v2538
    %v2540 = vpop.xlane.xlu0 %2539
    %v2541 = vsel %vm2069, %v2385, 0.0
    %2542 = vadd.xlane.f32.xlu0 %v2541
    %v2543 = vpop.xlane.xlu0 %2542
    %v2544 = vsel %vm2069, %v2387, 0.0
    %2545 = vadd.xlane.f32.xlu0 %v2544
    %v2546 = vpop.xlane.xlu0 %2545
    %v2547 = vsel %vm2069, %v2389, 0.0
    %2548 = vadd.xlane.f32.xlu0 %v2547
    %v2549 = vpop.xlane.xlu0 %2548
    %v2550 = vsel %vm2069, %v2391, 0.0
    %2551 = vadd.xlane.f32.xlu0 %v2550
    %v2552 = vpop.xlane.xlu0 %2551
    %v2553 = vsel %vm2069, %v2393, 0.0
    %2554 = vadd.xlane.f32.xlu0 %v2553
    %v2555 = vpop.xlane.xlu0 %2554
    %v2556 = vsel %vm2069, %v2395, 0.0
    %2557 = vadd.xlane.f32.xlu0 %v2556
    %v2558 = vpop.xlane.xlu0 %2557
    %v2559 = vsel %vm2069, %v2397, 0.0
    %2560 = vadd.xlane.f32.xlu0 %v2559
    %v2561 = vpop.xlane.xlu0 %2560
    %v2562 = vsel %vm2069, %v2399, 0.0
    %2563 = vadd.xlane.f32.xlu0 %v2562
    %v2564 = vpop.xlane.xlu0 %2563
    %v2565 = vsel %vm2069, %v2401, 0.0
    %2566 = vadd.xlane.f32.xlu0 %v2565
    %v2567 = vpop.xlane.xlu0 %2566
    %v2568 = vsel %vm2069, %v2403, 0.0
    %2569 = vadd.xlane.f32.xlu0 %v2568
    %v2570 = vpop.xlane.xlu0 %2569
    %v2571 = vsel %vm2069, %v2405, 0.0
    %2572 = vadd.xlane.f32.xlu0 %v2571
    %v2573 = vpop.xlane.xlu0 %2572
    %v2574 = vsel %vm2069, %v2407, 0.0
    %2575 = vadd.xlane.f32.xlu0 %v2574
    %v2576 = vpop.xlane.xlu0 %2575
    %v2577 = vsel %vm2069, %v2409, 0.0
    %2578 = vadd.xlane.f32.xlu0 %v2577
    %v2579 = vpop.xlane.xlu0 %2578
    %v2580 = vsel %vm2069, %v2411, 0.0
    %2581 = vadd.xlane.f32.xlu0 %v2580
    %v2582 = vpop.xlane.xlu0 %2581
    %v2583 = vsel %vm2069, %v2413, 0.0
    %2584 = vadd.xlane.f32.xlu0 %v2583
    %v2585 = vpop.xlane.xlu0 %2584
    %v2586 = vsel %vm2069, %v2415, 0.0
    %2587 = vadd.xlane.f32.xlu0 %v2586
    %v2588 = vpop.xlane.xlu0 %2587
    %v2589 = vsel %vm2069, %v2417, 0.0
    %2590 = vadd.xlane.f32.xlu0 %v2589
    %v2591 = vpop.xlane.xlu0 %2590
    %v2592 = vsel %vm2069, %v2419, 0.0
    %2593 = vadd.xlane.f32.xlu0 %v2592
    %v2594 = vpop.xlane.xlu0 %2593
    %v2595 = vsel %vm2069, %v2421, 0.0
    %2596 = vadd.xlane.f32.xlu0 %v2595
    %v2597 = vpop.xlane.xlu0 %2596
    %v2598 = vsel %vm2069, %v2423, 0.0
    %2599 = vadd.xlane.f32.xlu0 %v2598
    %v2600 = vpop.xlane.xlu0 %2599
    %v2601 = vsel %vm2069, %v2425, 0.0
    %2602 = vadd.xlane.f32.xlu0 %v2601
    %v2603 = vpop.xlane.xlu0 %2602
    %v2604 = vsel %vm2069, %v2427, 0.0
    %2605 = vadd.xlane.f32.xlu0 %v2604
    %v2606 = vpop.xlane.xlu0 %2605
    %v2607 = vsel %vm2069, %v2429, 0.0
    %2608 = vadd.xlane.f32.xlu0 %v2607
    %v2609 = vpop.xlane.xlu0 %2608
    %v2610 = vsel %vm2069, %v2431, 0.0
    %2611 = vadd.xlane.f32.xlu0 %v2610
    %v2612 = vpop.xlane.xlu0 %2611
    %v2613 = vsel %vm2069, %v2433, 0.0
    %2614 = vadd.xlane.f32.xlu0 %v2613
    %v2615 = vpop.xlane.xlu0 %2614
    %v2616 = vsel %vm2069, %v2435, 0.0
    %2617 = vadd.xlane.f32.xlu0 %v2616
    %v2618 = vpop.xlane.xlu0 %2617
    %v2619 = vsel %vm2069, %v2437, 0.0
    %2620 = vadd.xlane.f32.xlu0 %v2619
    %v2621 = vpop.xlane.xlu0 %2620
    %v2622 = vsel %vm2069, %v2439, 0.0
    %2623 = vadd.xlane.f32.xlu0 %v2622
    %v2624 = vpop.xlane.xlu0 %2623
    %v2625 = vsel %vm2069, %v2441, 0.0
    %2626 = vadd.xlane.f32.xlu0 %v2625
    %v2627 = vpop.xlane.xlu0 %2626
    %v2628 = vsel %vm2069, %v2443, 0.0
    %2629 = vadd.xlane.f32.xlu0 %v2628
    %v2630 = vpop.xlane.xlu0 %2629
    %v2631 = vsel %vm2069, %v2445, 0.0
    %2632 = vadd.xlane.f32.xlu0 %v2631
    %v2633 = vpop.xlane.xlu0 %2632
    %v2634 = vsel %vm2069, %v2447, 0.0
    %2635 = vadd.xlane.f32.xlu0 %v2634
    %v2636 = vpop.xlane.xlu0 %2635
    %v2637 = vsel %vm2069, %v2449, 0.0
    %2638 = vadd.xlane.f32.xlu0 %v2637
    %v2639 = vpop.xlane.xlu0 %2638
    %v2640 = vsel %vm2069, %v2451, 0.0
    %2641 = vadd.xlane.f32.xlu0 %v2640
    %v2642 = vpop.xlane.xlu0 %2641
    %v2643 = vsel %vm2069, %v2453, 0.0
    %2644 = vadd.xlane.f32.xlu0 %v2643
    %v2645 = vpop.xlane.xlu0 %2644
    %v2646 = vpack.c.bf16 %v2329, %v2327
    %v2647 = vpack.c.bf16 %v2333, %v2331
    %v2648 = vpack.c.bf16 %v2337, %v2335
    %v2649 = vpack.c.bf16 %v2341, %v2339
    %v2650 = vpack.c.bf16 %v2345, %v2343
    %v2651 = vpack.c.bf16 %v2349, %v2347
    %v2652 = vpack.c.bf16 %v2353, %v2351
    %v2653 = vpack.c.bf16 %v2357, %v2355
    %v2654 = vpack.c.bf16 %v2361, %v2359
    %v2655 = vpack.c.bf16 %v2365, %v2363
    %v2656 = vpack.c.bf16 %v2369, %v2367
    %v2657 = vpack.c.bf16 %v2373, %v2371
    %v2658 = vpack.c.bf16 %v2377, %v2375
    %v2659 = vpack.c.bf16 %v2381, %v2379
    %v2660 = vpack.c.bf16 %v2385, %v2383
    %v2661 = vpack.c.bf16 %v2389, %v2387
    %v2662 = vpack.c.bf16 %v2393, %v2391
    %v2663 = vpack.c.bf16 %v2397, %v2395
    %v2664 = vpack.c.bf16 %v2401, %v2399
    %v2665 = vpack.c.bf16 %v2405, %v2403
    %v2666 = vpack.c.bf16 %v2409, %v2407
    %v2667 = vpack.c.bf16 %v2413, %v2411
    %v2668 = vpack.c.bf16 %v2417, %v2415
    %v2669 = vpack.c.bf16 %v2421, %v2419
    %v2670 = vpack.c.bf16 %v2425, %v2423
    %v2671 = vpack.c.bf16 %v2429, %v2427
    %v2672 = vpack.c.bf16 %v2433, %v2431
    %v2673 = vpack.c.bf16 %v2437, %v2435
    %v2674 = vpack.c.bf16 %v2441, %v2439
    %v2675 = vpack.c.bf16 %v2445, %v2443
    %v2676 = vpack.c.bf16 %v2449, %v2447
    %v2677 = vpack.c.bf16 %v2453, %v2451
    %v2679 = vsel %vm2069, %v2646, 0
    %v2682 = vsel %vm2069, %v2647, 0
    %v2685 = vsel %vm2069, %v2648, 0
    %v2688 = vsel %vm2069, %v2649, 0
    %2690 = vmatprep.subr.bf16.mxu0 0
    %2691 = vmatpush1.bf16.msra.mxu0 %v1324
    %2692 = vmatprep.subr.bf16.mxu0 0
    %2693 = vmatpush1.bf16.msra.mxu0 %v1325
    %2694 = vmatprep.subr.bf16.mxu0 0
    %2695 = vmatpush1.bf16.msra.mxu0 %v1326
    %2696 = vmatprep.subr.bf16.mxu0 0
    %2697 = vmatpush1.bf16.msra.mxu0 %v1327
    %2698 = vmatprep.subr.bf16.mxu0 0
    %2699 = vmatpush1.bf16.msra.mxu0 0
    %2700 = vmatprep.subr.bf16.mxu0 0
    %2701 = vmatpush1.bf16.msra.mxu0 0
    %2702 = vmatprep.subr.bf16.mxu0 0
    %2703 = vmatpush1.bf16.msra.mxu0 0
    %2704 = vmatprep.subr.bf16.mxu0 0
    %2705 = vmatpush1.bf16.msra.mxu0 0
    %2706 = vmatprep.subr.bf16.mxu0 0
    %2707 = vmatpush1.bf16.msra.mxu0 0
    %2708 = vmatprep.subr.bf16.mxu0 0
    %2709 = vmatpush1.bf16.msra.mxu0 0
    %2710 = vmatprep.subr.bf16.mxu0 0
    %2711 = vmatpush1.bf16.msra.mxu0 0
    %2712 = vmatprep.subr.bf16.mxu0 0
    %2713 = vmatpush1.bf16.msra.mxu0 0
    %2714 = vmatprep.subr.bf16.mxu0 0
    %2715 = vmatpush1.bf16.msra.mxu0 0
    %2716 = vmatprep.subr.bf16.mxu0 0
    %2717 = vmatpush1.bf16.msra.mxu0 0
    %2718 = vmatprep.subr.bf16.mxu0 0
    %2719 = vmatpush1.bf16.msra.mxu0 0
    %2720 = vmatprep.subr.bf16.mxu0 0
    %2721 = vmatpush1.bf16.msra.mxu0 0
    %2722 = vmatprep.mubr.bf16.mxu0 0
    %2723 = vmatmul.mubr.bf16.gmra.mrb[0].mxu0 %v2679
    %v2724 = vpop.f32.mrb[0].mxu0
    %v2725 = vadd.f32 0.0, %v2724
    %v2726 = vpop.f32.mrb[0].mxu0
    %v2727 = vpop.f32.mrb[0].mxu0
    %v2728 = vadd.f32 0.0, %v2727
    %v2729 = vpop.f32.mrb[0].mxu0
    %2730 = vmatprep.mubr.bf16.mxu0 0
    %2731 = vmatmul.mubr.bf16.gmra.mrb[0].mxu0 %v2682
    %v2732 = vpop.f32.mrb[0].mxu0
    %v2733 = vadd.f32 0.0, %v2732
    %v2734 = vpop.f32.mrb[0].mxu0
    %v2735 = vpop.f32.mrb[0].mxu0
    %v2736 = vadd.f32 0.0, %v2735
    %v2737 = vpop.f32.mrb[0].mxu0
    %2738 = vmatprep.mubr.bf16.mxu0 0
    %2739 = vmatmul.mubr.bf16.gmra.mrb[0].mxu0 %v2685
    %v2740 = vpop.f32.mrb[0].mxu0
    %v2741 = vadd.f32 0.0, %v2740
    %v2742 = vpop.f32.mrb[0].mxu0
    %v2743 = vpop.f32.mrb[0].mxu0
    %v2744 = vadd.f32 0.0, %v2743
    %v2745 = vpop.f32.mrb[0].mxu0
    %2746 = vmatprep.mubr.bf16.mxu0 0
    %2747 = vmatmul.mubr.bf16.gmra.mrb[0].mxu0 %v2688
    %v2748 = vpop.f32.mrb[0].mxu0
    %v2749 = vadd.f32 0.0, %v2748
    %v2750 = vpop.f32.mrb[0].mxu0
    %v2751 = vpop.f32.mrb[0].mxu0
    %v2752 = vadd.f32 0.0, %v2751
    %v2753 = vpop.f32.mrb[0].mxu0
    %2754 = vdwg.mxu0
    %v2756 = vsel %vm2069, %v2650, 0
    %v2759 = vsel %vm2069, %v2651, 0
    %v2762 = vsel %vm2069, %v2652, 0
    %v2765 = vsel %vm2069, %v2653, 0
    %2767 = vmatprep.subr.bf16.mxu0 0
    %2768 = vmatpush1.bf16.msra.mxu0 %v1328
    %2769 = vmatprep.subr.bf16.mxu0 0
    %2770 = vmatpush1.bf16.msra.mxu0 %v1329
    %2771 = vmatprep.subr.bf16.mxu0 0
    %2772 = vmatpush1.bf16.msra.mxu0 %v1330
    %2773 = vmatprep.subr.bf16.mxu0 0
    %2774 = vmatpush1.bf16.msra.mxu0 %v1331
    %2775 = vmatprep.subr.bf16.mxu0 0
    %2776 = vmatpush1.bf16.msra.mxu0 0
    %2777 = vmatprep.subr.bf16.mxu0 0
    %2778 = vmatpush1.bf16.msra.mxu0 0
    %2779 = vmatprep.subr.bf16.mxu0 0
    %2780 = vmatpush1.bf16.msra.mxu0 0
    %2781 = vmatprep.subr.bf16.mxu0 0
    %2782 = vmatpush1.bf16.msra.mxu0 0
    %2783 = vmatprep.subr.bf16.mxu0 0
    %2784 = vmatpush1.bf16.msra.mxu0 0
    %2785 = vmatprep.subr.bf16.mxu0 0
    %2786 = vmatpush1.bf16.msra.mxu0 0
    %2787 = vmatprep.subr.bf16.mxu0 0
    %2788 = vmatpush1.bf16.msra.mxu0 0
    %2789 = vmatprep.subr.bf16.mxu0 0
    %2790 = vmatpush1.bf16.msra.mxu0 0
    %2791 = vmatprep.subr.bf16.mxu0 0
    %2792 = vmatpush1.bf16.msra.mxu0 0
    %2793 = vmatprep.subr.bf16.mxu0 0
    %2794 = vmatpush1.bf16.msra.mxu0 0
    %2795 = vmatprep.subr.bf16.mxu0 0
    %2796 = vmatpush1.bf16.msra.mxu0 0
    %2797 = vmatprep.subr.bf16.mxu0 0
    %2798 = vmatpush1.bf16.msra.mxu0 0
    %2799 = vmatprep.mubr.bf16.mxu0 0
    %2800 = vmatmul.mubr.bf16.gmra.mrb[0].mxu0 %v2756
    %v2801 = vpop.f32.mrb[0].mxu0
    %v2802 = vadd.f32 0.0, %v2801
    %v2803 = vpop.f32.mrb[0].mxu0
    %v2804 = vpop.f32.mrb[0].mxu0
    %v2805 = vadd.f32 0.0, %v2804
    %v2806 = vpop.f32.mrb[0].mxu0
    %2807 = vmatprep.mubr.bf16.mxu0 0
    %2808 = vmatmul.mubr.bf16.gmra.mrb[0].mxu0 %v2759
    %v2809 = vpop.f32.mrb[0].mxu0
    %v2810 = vadd.f32 0.0, %v2809
    %v2811 = vpop.f32.mrb[0].mxu0
    %v2812 = vpop.f32.mrb[0].mxu0
    %v2813 = vadd.f32 0.0, %v2812
    %v2814 = vpop.f32.mrb[0].mxu0
    %2815 = vmatprep.mubr.bf16.mxu0 0
    %2816 = vmatmul.mubr.bf16.gmra.mrb[0].mxu0 %v2762
    %v2817 = vpop.f32.mrb[0].mxu0
    %v2818 = vadd.f32 0.0, %v2817
    %v2819 = vpop.f32.mrb[0].mxu0
    %v2820 = vpop.f32.mrb[0].mxu0
    %v2821 = vadd.f32 0.0, %v2820
    %v2822 = vpop.f32.mrb[0].mxu0
    %2823 = vmatprep.mubr.bf16.mxu0 0
    %2824 = vmatmul.mubr.bf16.gmra.mrb[0].mxu0 %v2765
    %v2825 = vpop.f32.mrb[0].mxu0
    %v2826 = vadd.f32 0.0, %v2825
    %v2827 = vpop.f32.mrb[0].mxu0
    %v2828 = vpop.f32.mrb[0].mxu0
    %v2829 = vadd.f32 0.0, %v2828
    %v2830 = vpop.f32.mrb[0].mxu0
    %2831 = vdwg.mxu0
    %v2833 = vsel %vm2069, %v2654, 0
    %v2836 = vsel %vm2069, %v2655, 0
    %v2839 = vsel %vm2069, %v2656, 0
    %v2842 = vsel %vm2069, %v2657, 0
    %2844 = vmatprep.subr.bf16.mxu0 0
    %2845 = vmatpush1.bf16.msra.mxu0 %v1332
    %2846 = vmatprep.subr.bf16.mxu0 0
    %2847 = vmatpush1.bf16.msra.mxu0 %v1333
    %2848 = vmatprep.subr.bf16.mxu0 0
    %2849 = vmatpush1.bf16.msra.mxu0 %v1334
    %2850 = vmatprep.subr.bf16.mxu0 0
    %2851 = vmatpush1.bf16.msra.mxu0 %v1335
    %2852 = vmatprep.subr.bf16.mxu0 0
    %2853 = vmatpush1.bf16.msra.mxu0 0
    %2854 = vmatprep.subr.bf16.mxu0 0
    %2855 = vmatpush1.bf16.msra.mxu0 0
    %2856 = vmatprep.subr.bf16.mxu0 0
    %2857 = vmatpush1.bf16.msra.mxu0 0
    %2858 = vmatprep.subr.bf16.mxu0 0
    %2859 = vmatpush1.bf16.msra.mxu0 0
    %2860 = vmatprep.subr.bf16.mxu0 0
    %2861 = vmatpush1.bf16.msra.mxu0 0
    %2862 = vmatprep.subr.bf16.mxu0 0
    %2863 = vmatpush1.bf16.msra.mxu0 0
    %2864 = vmatprep.subr.bf16.mxu0 0
    %2865 = vmatpush1.bf16.msra.mxu0 0
    %2866 = vmatprep.subr.bf16.mxu0 0
    %2867 = vmatpush1.bf16.msra.mxu0 0
    %2868 = vmatprep.subr.bf16.mxu0 0
    %2869 = vmatpush1.bf16.msra.mxu0 0
    %2870 = vmatprep.subr.bf16.mxu0 0
    %2871 = vmatpush1.bf16.msra.mxu0 0
    %2872 = vmatprep.subr.bf16.mxu0 0
    %2873 = vmatpush1.bf16.msra.mxu0 0
    %2874 = vmatprep.subr.bf16.mxu0 0
    %2875 = vmatpush1.bf16.msra.mxu0 0
    %2876 = vmatprep.mubr.bf16.mxu0 0
    %2877 = vmatmul.mubr.bf16.gmra.mrb[0].mxu0 %v2833
    %v2878 = vpop.f32.mrb[0].mxu0
    %v2879 = vadd.f32 0.0, %v2878
    %v2880 = vpop.f32.mrb[0].mxu0
    %v2881 = vpop.f32.mrb[0].mxu0
    %v2882 = vadd.f32 0.0, %v2881
    %v2883 = vpop.f32.mrb[0].mxu0
    %2884 = vmatprep.mubr.bf16.mxu0 0
    %2885 = vmatmul.mubr.bf16.gmra.mrb[0].mxu0 %v2836
    %v2886 = vpop.f32.mrb[0].mxu0
    %v2887 = vadd.f32 0.0, %v2886
    %v2888 = vpop.f32.mrb[0].mxu0
    %v2889 = vpop.f32.mrb[0].mxu0
    %v2890 = vadd.f32 0.0, %v2889
    %v2891 = vpop.f32.mrb[0].mxu0
    %2892 = vmatprep.mubr.bf16.mxu0 0
    %2893 = vmatmul.mubr.bf16.gmra.mrb[0].mxu0 %v2839
    %v2894 = vpop.f32.mrb[0].mxu0
    %v2895 = vadd.f32 0.0, %v2894
    %v2896 = vpop.f32.mrb[0].mxu0
    %v2897 = vpop.f32.mrb[0].mxu0
    %v2898 = vadd.f32 0.0, %v2897
    %v2899 = vpop.f32.mrb[0].mxu0
    %2900 = vmatprep.mubr.bf16.mxu0 0
    %2901 = vmatmul.mubr.bf16.gmra.mrb[0].mxu0 %v2842
    %v2902 = vpop.f32.mrb[0].mxu0
    %v2903 = vadd.f32 0.0, %v2902
    %v2904 = vpop.f32.mrb[0].mxu0
    %v2905 = vpop.f32.mrb[0].mxu0
    %v2906 = vadd.f32 0.0, %v2905
    %v2907 = vpop.f32.mrb[0].mxu0
    %2908 = vdwg.mxu0
    %v2910 = vsel %vm2069, %v2658, 0
    %v2913 = vsel %vm2069, %v2659, 0
    %v2916 = vsel %vm2069, %v2660, 0
    %v2919 = vsel %vm2069, %v2661, 0
    %2921 = vmatprep.subr.bf16.mxu0 0
    %2922 = vmatpush1.bf16.msra.mxu0 %v1336
    %2923 = vmatprep.subr.bf16.mxu0 0
    %2924 = vmatpush1.bf16.msra.mxu0 %v1337
    %2925 = vmatprep.subr.bf16.mxu0 0
    %2926 = vmatpush1.bf16.msra.mxu0 %v1338
    %2927 = vmatprep.subr.bf16.mxu0 0
    %2928 = vmatpush1.bf16.msra.mxu0 %v1339
    %2929 = vmatprep.subr.bf16.mxu0 0
    %2930 = vmatpush1.bf16.msra.mxu0 0
    %2931 = vmatprep.subr.bf16.mxu0 0
    %2932 = vmatpush1.bf16.msra.mxu0 0
    %2933 = vmatprep.subr.bf16.mxu0 0
    %2934 = vmatpush1.bf16.msra.mxu0 0
    %2935 = vmatprep.subr.bf16.mxu0 0
    %2936 = vmatpush1.bf16.msra.mxu0 0
    %2937 = vmatprep.subr.bf16.mxu0 0
    %2938 = vmatpush1.bf16.msra.mxu0 0
    %2939 = vmatprep.subr.bf16.mxu0 0
    %2940 = vmatpush1.bf16.msra.mxu0 0
    %2941 = vmatprep.subr.bf16.mxu0 0
    %2942 = vmatpush1.bf16.msra.mxu0 0
    %2943 = vmatprep.subr.bf16.mxu0 0
    %2944 = vmatpush1.bf16.msra.mxu0 0
    %2945 = vmatprep.subr.bf16.mxu0 0
    %2946 = vmatpush1.bf16.msra.mxu0 0
    %2947 = vmatprep.subr.bf16.mxu0 0
    %2948 = vmatpush1.bf16.msra.mxu0 0
    %2949 = vmatprep.subr.bf16.mxu0 0
    %2950 = vmatpush1.bf16.msra.mxu0 0
    %2951 = vmatprep.subr.bf16.mxu0 0
    %2952 = vmatpush1.bf16.msra.mxu0 0
    %2953 = vmatprep.mubr.bf16.mxu0 0
    %2954 = vmatmul.mubr.bf16.gmra.mrb[0].mxu0 %v2910
    %v2955 = vpop.f32.mrb[0].mxu0
    %v2956 = vadd.f32 0.0, %v2955
    %v2957 = vpop.f32.mrb[0].mxu0
    %v2958 = vpop.f32.mrb[0].mxu0
    %v2959 = vadd.f32 0.0, %v2958
    %v2960 = vpop.f32.mrb[0].mxu0
    %2961 = vmatprep.mubr.bf16.mxu0 0
    %2962 = vmatmul.mubr.bf16.gmra.mrb[0].mxu0 %v2913
    %v2963 = vpop.f32.mrb[0].mxu0
    %v2964 = vadd.f32 0.0, %v2963
    %v2965 = vpop.f32.mrb[0].mxu0
    %v2966 = vpop.f32.mrb[0].mxu0
    %v2967 = vadd.f32 0.0, %v2966
    %v2968 = vpop.f32.mrb[0].mxu0
    %2969 = vmatprep.mubr.bf16.mxu0 0
    %2970 = vmatmul.mubr.bf16.gmra.mrb[0].mxu0 %v2916
    %v2971 = vpop.f32.mrb[0].mxu0
    %v2972 = vadd.f32 0.0, %v2971
    %v2973 = vpop.f32.mrb[0].mxu0
    %v2974 = vpop.f32.mrb[0].mxu0
    %v2975 = vadd.f32 0.0, %v2974
    %v2976 = vpop.f32.mrb[0].mxu0
    %2977 = vmatprep.mubr.bf16.mxu0 0
    %2978 = vmatmul.mubr.bf16.gmra.mrb[0].mxu0 %v2919
    %v2979 = vpop.f32.mrb[0].mxu0
    %v2980 = vadd.f32 0.0, %v2979
    %v2981 = vpop.f32.mrb[0].mxu0
    %v2982 = vpop.f32.mrb[0].mxu0
    %v2983 = vadd.f32 0.0, %v2982
    %v2984 = vpop.f32.mrb[0].mxu0
    %2985 = vdwg.mxu0
    %v2987 = vsel %vm2069, %v2662, 0
    %v2990 = vsel %vm2069, %v2663, 0
    %v2993 = vsel %vm2069, %v2664, 0
    %v2996 = vsel %vm2069, %v2665, 0
    %2998 = vmatprep.subr.bf16.mxu0 0
    %2999 = vmatpush1.bf16.msra.mxu0 %v1340
    %3000 = vmatprep.subr.bf16.mxu0 0
    %3001 = vmatpush1.bf16.msra.mxu0 %v1341
    %3002 = vmatprep.subr.bf16.mxu0 0
    %3003 = vmatpush1.bf16.msra.mxu0 %v1342
    %3004 = vmatprep.subr.bf16.mxu0 0
    %3005 = vmatpush1.bf16.msra.mxu0 %v1343
    %3006 = vmatprep.subr.bf16.mxu0 0
    %3007 = vmatpush1.bf16.msra.mxu0 0
    %3008 = vmatprep.subr.bf16.mxu0 0
    %3009 = vmatpush1.bf16.msra.mxu0 0
    %3010 = vmatprep.subr.bf16.mxu0 0
    %3011 = vmatpush1.bf16.msra.mxu0 0
    %3012 = vmatprep.subr.bf16.mxu0 0
    %3013 = vmatpush1.bf16.msra.mxu0 0
    %3014 = vmatprep.subr.bf16.mxu0 0
    %3015 = vmatpush1.bf16.msra.mxu0 0
    %3016 = vmatprep.subr.bf16.mxu0 0
    %3017 = vmatpush1.bf16.msra.mxu0 0
    %3018 = vmatprep.subr.bf16.mxu0 0
    %3019 = vmatpush1.bf16.msra.mxu0 0
    %3020 = vmatprep.subr.bf16.mxu0 0
    %3021 = vmatpush1.bf16.msra.mxu0 0
    %3022 = vmatprep.subr.bf16.mxu0 0
    %3023 = vmatpush1.bf16.msra.mxu0 0
    %3024 = vmatprep.subr.bf16.mxu0 0
    %3025 = vmatpush1.bf16.msra.mxu0 0
    %3026 = vmatprep.subr.bf16.mxu0 0
    %3027 = vmatpush1.bf16.msra.mxu0 0
    %3028 = vmatprep.subr.bf16.mxu0 0
    %3029 = vmatpush1.bf16.msra.mxu0 0
    %3030 = vmatprep.mubr.bf16.mxu0 0
    %3031 = vmatmul.mubr.bf16.gmra.mrb[0].mxu0 %v2987
    %v3032 = vpop.f32.mrb[0].mxu0
    %v3033 = vadd.f32 0.0, %v3032
    %v3034 = vpop.f32.mrb[0].mxu0
    %v3035 = vpop.f32.mrb[0].mxu0
    %v3036 = vadd.f32 0.0, %v3035
    %v3037 = vpop.f32.mrb[0].mxu0
    %3038 = vmatprep.mubr.bf16.mxu0 0
    %3039 = vmatmul.mubr.bf16.gmra.mrb[0].mxu0 %v2990
    %v3040 = vpop.f32.mrb[0].mxu0
    %v3041 = vadd.f32 0.0, %v3040
    %v3042 = vpop.f32.mrb[0].mxu0
    %v3043 = vpop.f32.mrb[0].mxu0
    %v3044 = vadd.f32 0.0, %v3043
    %v3045 = vpop.f32.mrb[0].mxu0
    %3046 = vmatprep.mubr.bf16.mxu0 0
    %3047 = vmatmul.mubr.bf16.gmra.mrb[0].mxu0 %v2993
    %v3048 = vpop.f32.mrb[0].mxu0
    %v3049 = vadd.f32 0.0, %v3048
    %v3050 = vpop.f32.mrb[0].mxu0
    %v3051 = vpop.f32.mrb[0].mxu0
    %v3052 = vadd.f32 0.0, %v3051
    %v3053 = vpop.f32.mrb[0].mxu0
    %3054 = vmatprep.mubr.bf16.mxu0 0
    %3055 = vmatmul.mubr.bf16.gmra.mrb[0].mxu0 %v2996
    %v3056 = vpop.f32.mrb[0].mxu0
    %v3057 = vadd.f32 0.0, %v3056
    %v3058 = vpop.f32.mrb[0].mxu0
    %v3059 = vpop.f32.mrb[0].mxu0
    %v3060 = vadd.f32 0.0, %v3059
    %v3061 = vpop.f32.mrb[0].mxu0
    %3062 = vdwg.mxu0
    %v3064 = vsel %vm2069, %v2666, 0
    %v3067 = vsel %vm2069, %v2667, 0
    %v3070 = vsel %vm2069, %v2668, 0
    %v3073 = vsel %vm2069, %v2669, 0
    %3075 = vmatprep.subr.bf16.mxu0 0
    %3076 = vmatpush1.bf16.msra.mxu0 %v1344
    %3077 = vmatprep.subr.bf16.mxu0 0
    %3078 = vmatpush1.bf16.msra.mxu0 %v1345
    %3079 = vmatprep.subr.bf16.mxu0 0
    %3080 = vmatpush1.bf16.msra.mxu0 %v1346
    %3081 = vmatprep.subr.bf16.mxu0 0
    %3082 = vmatpush1.bf16.msra.mxu0 %v1347
    %3083 = vmatprep.subr.bf16.mxu0 0
    %3084 = vmatpush1.bf16.msra.mxu0 0
    %3085 = vmatprep.subr.bf16.mxu0 0
    %3086 = vmatpush1.bf16.msra.mxu0 0
    %3087 = vmatprep.subr.bf16.mxu0 0
    %3088 = vmatpush1.bf16.msra.mxu0 0
    %3089 = vmatprep.subr.bf16.mxu0 0
    %3090 = vmatpush1.bf16.msra.mxu0 0
    %3091 = vmatprep.subr.bf16.mxu0 0
    %3092 = vmatpush1.bf16.msra.mxu0 0
    %3093 = vmatprep.subr.bf16.mxu0 0
    %3094 = vmatpush1.bf16.msra.mxu0 0
    %3095 = vmatprep.subr.bf16.mxu0 0
    %3096 = vmatpush1.bf16.msra.mxu0 0
    %3097 = vmatprep.subr.bf16.mxu0 0
    %3098 = vmatpush1.bf16.msra.mxu0 0
    %3099 = vmatprep.subr.bf16.mxu0 0
    %3100 = vmatpush1.bf16.msra.mxu0 0
    %3101 = vmatprep.subr.bf16.mxu0 0
    %3102 = vmatpush1.bf16.msra.mxu0 0
    %3103 = vmatprep.subr.bf16.mxu0 0
    %3104 = vmatpush1.bf16.msra.mxu0 0
    %3105 = vmatprep.subr.bf16.mxu0 0
    %3106 = vmatpush1.bf16.msra.mxu0 0
    %3107 = vmatprep.mubr.bf16.mxu0 0
    %3108 = vmatmul.mubr.bf16.gmra.mrb[0].mxu0 %v3064
    %v3109 = vpop.f32.mrb[0].mxu0
    %v3110 = vadd.f32 0.0, %v3109
    %v3111 = vpop.f32.mrb[0].mxu0
    %v3112 = vpop.f32.mrb[0].mxu0
    %v3113 = vadd.f32 0.0, %v3112
    %v3114 = vpop.f32.mrb[0].mxu0
    %3115 = vmatprep.mubr.bf16.mxu0 0
    %3116 = vmatmul.mubr.bf16.gmra.mrb[0].mxu0 %v3067
    %v3117 = vpop.f32.mrb[0].mxu0
    %v3118 = vadd.f32 0.0, %v3117
    %v3119 = vpop.f32.mrb[0].mxu0
    %v3120 = vpop.f32.mrb[0].mxu0
    %v3121 = vadd.f32 0.0, %v3120
    %v3122 = vpop.f32.mrb[0].mxu0
    %3123 = vmatprep.mubr.bf16.mxu0 0
    %3124 = vmatmul.mubr.bf16.gmra.mrb[0].mxu0 %v3070
    %v3125 = vpop.f32.mrb[0].mxu0
    %v3126 = vadd.f32 0.0, %v3125
    %v3127 = vpop.f32.mrb[0].mxu0
    %v3128 = vpop.f32.mrb[0].mxu0
    %v3129 = vadd.f32 0.0, %v3128
    %v3130 = vpop.f32.mrb[0].mxu0
    %3131 = vmatprep.mubr.bf16.mxu0 0
    %3132 = vmatmul.mubr.bf16.gmra.mrb[0].mxu0 %v3073
    %v3133 = vpop.f32.mrb[0].mxu0
    %v3134 = vadd.f32 0.0, %v3133
    %v3135 = vpop.f32.mrb[0].mxu0
    %v3136 = vpop.f32.mrb[0].mxu0
    %v3137 = vadd.f32 0.0, %v3136
    %v3138 = vpop.f32.mrb[0].mxu0
    %3139 = vdwg.mxu0
    %v3141 = vsel %vm2069, %v2670, 0
    %v3144 = vsel %vm2069, %v2671, 0
    %v3147 = vsel %vm2069, %v2672, 0
    %v3150 = vsel %vm2069, %v2673, 0
    %3152 = vmatprep.subr.bf16.mxu0 0
    %3153 = vmatpush1.bf16.msra.mxu0 %v1348
    %3154 = vmatprep.subr.bf16.mxu0 0
    %3155 = vmatpush1.bf16.msra.mxu0 %v1349
    %3156 = vmatprep.subr.bf16.mxu0 0
    %3157 = vmatpush1.bf16.msra.mxu0 %v1350
    %3158 = vmatprep.subr.bf16.mxu0 0
    %3159 = vmatpush1.bf16.msra.mxu0 %v1351
    %3160 = vmatprep.subr.bf16.mxu0 0
    %3161 = vmatpush1.bf16.msra.mxu0 0
    %3162 = vmatprep.subr.bf16.mxu0 0
    %3163 = vmatpush1.bf16.msra.mxu0 0
    %3164 = vmatprep.subr.bf16.mxu0 0
    %3165 = vmatpush1.bf16.msra.mxu0 0
    %3166 = vmatprep.subr.bf16.mxu0 0
    %3167 = vmatpush1.bf16.msra.mxu0 0
    %3168 = vmatprep.subr.bf16.mxu0 0
    %3169 = vmatpush1.bf16.msra.mxu0 0
    %3170 = vmatprep.subr.bf16.mxu0 0
    %3171 = vmatpush1.bf16.msra.mxu0 0
    %3172 = vmatprep.subr.bf16.mxu0 0
    %3173 = vmatpush1.bf16.msra.mxu0 0
    %3174 = vmatprep.subr.bf16.mxu0 0
    %3175 = vmatpush1.bf16.msra.mxu0 0
    %3176 = vmatprep.subr.bf16.mxu0 0
    %3177 = vmatpush1.bf16.msra.mxu0 0
    %3178 = vmatprep.subr.bf16.mxu0 0
    %3179 = vmatpush1.bf16.msra.mxu0 0
    %3180 = vmatprep.subr.bf16.mxu0 0
    %3181 = vmatpush1.bf16.msra.mxu0 0
    %3182 = vmatprep.subr.bf16.mxu0 0
    %3183 = vmatpush1.bf16.msra.mxu0 0
    %3184 = vmatprep.mubr.bf16.mxu0 0
    %3185 = vmatmul.mubr.bf16.gmra.mrb[0].mxu0 %v3141
    %v3186 = vpop.f32.mrb[0].mxu0
    %v3187 = vadd.f32 0.0, %v3186
    %v3188 = vpop.f32.mrb[0].mxu0
    %v3189 = vpop.f32.mrb[0].mxu0
    %v3190 = vadd.f32 0.0, %v3189
    %v3191 = vpop.f32.mrb[0].mxu0
    %3192 = vmatprep.mubr.bf16.mxu0 0
    %3193 = vmatmul.mubr.bf16.gmra.mrb[0].mxu0 %v3144
    %v3194 = vpop.f32.mrb[0].mxu0
    %v3195 = vadd.f32 0.0, %v3194
    %v3196 = vpop.f32.mrb[0].mxu0
    %v3197 = vpop.f32.mrb[0].mxu0
    %v3198 = vadd.f32 0.0, %v3197
    %v3199 = vpop.f32.mrb[0].mxu0
    %3200 = vmatprep.mubr.bf16.mxu0 0
    %3201 = vmatmul.mubr.bf16.gmra.mrb[0].mxu0 %v3147
    %v3202 = vpop.f32.mrb[0].mxu0
    %v3203 = vadd.f32 0.0, %v3202
    %v3204 = vpop.f32.mrb[0].mxu0
    %v3205 = vpop.f32.mrb[0].mxu0
    %v3206 = vadd.f32 0.0, %v3205
    %v3207 = vpop.f32.mrb[0].mxu0
    %3208 = vmatprep.mubr.bf16.mxu0 0
    %3209 = vmatmul.mubr.bf16.gmra.mrb[0].mxu0 %v3150
    %v3210 = vpop.f32.mrb[0].mxu0
    %v3211 = vadd.f32 0.0, %v3210
    %v3212 = vpop.f32.mrb[0].mxu0
    %v3213 = vpop.f32.mrb[0].mxu0
    %v3214 = vadd.f32 0.0, %v3213
    %v3215 = vpop.f32.mrb[0].mxu0
    %3216 = vdwg.mxu0
    %v3218 = vsel %vm2069, %v2674, 0
    %v3221 = vsel %vm2069, %v2675, 0
    %v3224 = vsel %vm2069, %v2676, 0
    %v3227 = vsel %vm2069, %v2677, 0
    %3229 = vmatprep.subr.bf16.mxu0 0
    %3230 = vmatpush1.bf16.msra.mxu0 %v1352
    %3231 = vmatprep.subr.bf16.mxu0 0
    %3232 = vmatpush1.bf16.msra.mxu0 %v1353
    %3233 = vmatprep.subr.bf16.mxu0 0
    %3234 = vmatpush1.bf16.msra.mxu0 %v1354
    %3235 = vmatprep.subr.bf16.mxu0 0
    %3236 = vmatpush1.bf16.msra.mxu0 %v1355
    %3237 = vmatprep.subr.bf16.mxu0 0
    %3238 = vmatpush1.bf16.msra.mxu0 0
    %3239 = vmatprep.subr.bf16.mxu0 0
    %3240 = vmatpush1.bf16.msra.mxu0 0
    %3241 = vmatprep.subr.bf16.mxu0 0
    %3242 = vmatpush1.bf16.msra.mxu0 0
    %3243 = vmatprep.subr.bf16.mxu0 0
    %3244 = vmatpush1.bf16.msra.mxu0 0
    %3245 = vmatprep.subr.bf16.mxu0 0
    %3246 = vmatpush1.bf16.msra.mxu0 0
    %3247 = vmatprep.subr.bf16.mxu0 0
    %3248 = vmatpush1.bf16.msra.mxu0 0
    %3249 = vmatprep.subr.bf16.mxu0 0
    %3250 = vmatpush1.bf16.msra.mxu0 0
    %3251 = vmatprep.subr.bf16.mxu0 0
    %3252 = vmatpush1.bf16.msra.mxu0 0
    %3253 = vmatprep.subr.bf16.mxu0 0
    %3254 = vmatpush1.bf16.msra.mxu0 0
    %3255 = vmatprep.subr.bf16.mxu0 0
    %3256 = vmatpush1.bf16.msra.mxu0 0
    %3257 = vmatprep.subr.bf16.mxu0 0
    %3258 = vmatpush1.bf16.msra.mxu0 0
    %3259 = vmatprep.subr.bf16.mxu0 0
    %3260 = vmatpush1.bf16.msra.mxu0 0
    %3261 = vmatprep.mubr.bf16.mxu0 0
    %3262 = vmatmul.mubr.bf16.gmra.mrb[0].mxu0 %v3218
    %v3263 = vpop.f32.mrb[0].mxu0
    %v3264 = vadd.f32 0.0, %v3263
    %v3265 = vpop.f32.mrb[0].mxu0
    %v3266 = vpop.f32.mrb[0].mxu0
    %v3267 = vadd.f32 0.0, %v3266
    %v3268 = vpop.f32.mrb[0].mxu0
    %3269 = vmatprep.mubr.bf16.mxu0 0
    %3270 = vmatmul.mubr.bf16.gmra.mrb[0].mxu0 %v3221
    %v3271 = vpop.f32.mrb[0].mxu0
    %v3272 = vadd.f32 0.0, %v3271
    %v3273 = vpop.f32.mrb[0].mxu0
    %v3274 = vpop.f32.mrb[0].mxu0
    %v3275 = vadd.f32 0.0, %v3274
    %v3276 = vpop.f32.mrb[0].mxu0
    %3277 = vmatprep.mubr.bf16.mxu0 0
    %3278 = vmatmul.mubr.bf16.gmra.mrb[0].mxu0 %v3224
    %v3279 = vpop.f32.mrb[0].mxu0
    %v3280 = vadd.f32 0.0, %v3279
    %v3281 = vpop.f32.mrb[0].mxu0
    %v3282 = vpop.f32.mrb[0].mxu0
    %v3283 = vadd.f32 0.0, %v3282
    %v3284 = vpop.f32.mrb[0].mxu0
    %3285 = vmatprep.mubr.bf16.mxu0 0
    %3286 = vmatmul.mubr.bf16.gmra.mrb[0].mxu0 %v3227
    %v3287 = vpop.f32.mrb[0].mxu0
    %v3288 = vadd.f32 0.0, %v3287
    %v3289 = vpop.f32.mrb[0].mxu0
    %v3290 = vpop.f32.mrb[0].mxu0
    %v3291 = vadd.f32 0.0, %v3290
    %v3292 = vpop.f32.mrb[0].mxu0
    %3293 = vdwg.mxu0
    %v3294 = vrcp.pop %v2456
    %v3295 = vrcp.pop %v2459
    %v3296 = vrcp.pop %v2462
    %v3297 = vrcp.pop %v2465
    %v3298 = vrcp.pop %v2468
    %v3299 = vrcp.pop %v2471
    %v3300 = vrcp.pop %v2474
    %v3301 = vrcp.pop %v2477
    %v3302 = vrcp.pop %v2480
    %v3303 = vrcp.pop %v2483
    %v3304 = vrcp.pop %v2486
    %v3305 = vrcp.pop %v2489
    %v3306 = vrcp.pop %v2492
    %v3307 = vrcp.pop %v2495
    %v3308 = vrcp.pop %v2498
    %v3309 = vrcp.pop %v2501
    %v3310 = vrcp.pop %v2504
    %v3311 = vrcp.pop %v2507
    %v3312 = vrcp.pop %v2510
    %v3313 = vrcp.pop %v2513
    %v3314 = vrcp.pop %v2516
    %v3315 = vrcp.pop %v2519
    %v3316 = vrcp.pop %v2522
    %v3317 = vrcp.pop %v2525
    %v3318 = vrcp.pop %v2528
    %v3319 = vrcp.pop %v2531
    %v3320 = vrcp.pop %v2534
    %v3321 = vrcp.pop %v2537
    %v3322 = vrcp.pop %v2540
    %v3323 = vrcp.pop %v2543
    %v3324 = vrcp.pop %v2546
    %v3325 = vrcp.pop %v2549
    %v3326 = vrcp.pop %v2552
    %v3327 = vrcp.pop %v2555
    %v3328 = vrcp.pop %v2558
    %v3329 = vrcp.pop %v2561
    %v3330 = vrcp.pop %v2564
    %v3331 = vrcp.pop %v2567
    %v3332 = vrcp.pop %v2570
    %v3333 = vrcp.pop %v2573
    %v3334 = vrcp.pop %v2576
    %v3335 = vrcp.pop %v2579
    %v3336 = vrcp.pop %v2582
    %v3337 = vrcp.pop %v2585
    %v3338 = vrcp.pop %v2588
    %v3339 = vrcp.pop %v2591
    %v3340 = vrcp.pop %v2594
    %v3341 = vrcp.pop %v2597
    %v3342 = vrcp.pop %v2600
    %v3343 = vrcp.pop %v2603
    %v3344 = vrcp.pop %v2606
    %v3345 = vrcp.pop %v2609
    %v3346 = vrcp.pop %v2612
    %v3347 = vrcp.pop %v2615
    %v3348 = vrcp.pop %v2618
    %v3349 = vrcp.pop %v2621
    %v3350 = vrcp.pop %v2624
    %v3351 = vrcp.pop %v2627
    %v3352 = vrcp.pop %v2630
    %v3353 = vrcp.pop %v2633
    %v3354 = vrcp.pop %v2636
    %v3355 = vrcp.pop %v2639
    %v3356 = vrcp.pop %v2642
    %v3357 = vrcp.pop %v2645
    %v3358 = vmul.f32 %v2725, %v3294
    %v3359 = vmul.f32 %v2728, %v3295
    %v3360 = vmul.f32 %v2733, %v3296
    %v3361 = vmul.f32 %v2736, %v3297
    %v3362 = vmul.f32 %v2741, %v3298
    %v3363 = vmul.f32 %v2744, %v3299
    %v3364 = vmul.f32 %v2749, %v3300
    %v3365 = vmul.f32 %v2752, %v3301
    %v3366 = vmul.f32 %v2802, %v3302
    %v3367 = vmul.f32 %v2805, %v3303
    %v3368 = vmul.f32 %v2810, %v3304
    %v3369 = vmul.f32 %v2813, %v3305
    %v3370 = vmul.f32 %v2818, %v3306
    %v3371 = vmul.f32 %v2821, %v3307
    %v3372 = vmul.f32 %v2826, %v3308
    %v3373 = vmul.f32 %v2829, %v3309
    %v3374 = vmul.f32 %v2879, %v3310
    %v3375 = vmul.f32 %v2882, %v3311
    %v3376 = vmul.f32 %v2887, %v3312
    %v3377 = vmul.f32 %v2890, %v3313
    %v3378 = vmul.f32 %v2895, %v3314
    %v3379 = vmul.f32 %v2898, %v3315
    %v3380 = vmul.f32 %v2903, %v3316
    %v3381 = vmul.f32 %v2906, %v3317
    %v3382 = vmul.f32 %v2956, %v3318
    %v3383 = vmul.f32 %v2959, %v3319
    %v3384 = vmul.f32 %v2964, %v3320
    %v3385 = vmul.f32 %v2967, %v3321
    %v3386 = vmul.f32 %v2972, %v3322
    %v3387 = vmul.f32 %v2975, %v3323
    %v3388 = vmul.f32 %v2980, %v3324
    %v3389 = vmul.f32 %v2983, %v3325
    %v3390 = vmul.f32 %v3033, %v3326
    %v3391 = vmul.f32 %v3036, %v3327
    %v3392 = vmul.f32 %v3041, %v3328
    %v3393 = vmul.f32 %v3044, %v3329
    %v3394 = vmul.f32 %v3049, %v3330
    %v3395 = vmul.f32 %v3052, %v3331
    %v3396 = vmul.f32 %v3057, %v3332
    %v3397 = vmul.f32 %v3060, %v3333
    %v3398 = vmul.f32 %v3110, %v3334
    %v3399 = vmul.f32 %v3113, %v3335
    %v3400 = vmul.f32 %v3118, %v3336
    %v3401 = vmul.f32 %v3121, %v3337
    %v3402 = vmul.f32 %v3126, %v3338
    %v3403 = vmul.f32 %v3129, %v3339
    %v3404 = vmul.f32 %v3134, %v3340
    %v3405 = vmul.f32 %v3137, %v3341
    %v3406 = vmul.f32 %v3187, %v3342
    %v3407 = vmul.f32 %v3190, %v3343
    %v3408 = vmul.f32 %v3195, %v3344
    %v3409 = vmul.f32 %v3198, %v3345
    %v3410 = vmul.f32 %v3203, %v3346
    %v3411 = vmul.f32 %v3206, %v3347
    %v3412 = vmul.f32 %v3211, %v3348
    %v3413 = vmul.f32 %v3214, %v3349
    %v3414 = vmul.f32 %v3264, %v3350
    %v3415 = vmul.f32 %v3267, %v3351
    %v3416 = vmul.f32 %v3272, %v3352
    %v3417 = vmul.f32 %v3275, %v3353
    %v3418 = vmul.f32 %v3280, %v3354
    %v3419 = vmul.f32 %v3283, %v3355
    %v3420 = vmul.f32 %v3288, %v3356
    %v3421 = vmul.f32 %v3291, %v3357
    %v3422 = vpack.c.bf16 %v3359, %v3358
    %v3423 = vpack.c.bf16 %v3361, %v3360
    %v3424 = vpack.c.bf16 %v3363, %v3362
    %v3425 = vpack.c.bf16 %v3365, %v3364
    %v3426 = vpack.c.bf16 %v3367, %v3366
    %v3427 = vpack.c.bf16 %v3369, %v3368
    %v3428 = vpack.c.bf16 %v3371, %v3370
    %v3429 = vpack.c.bf16 %v3373, %v3372
    %v3430 = vpack.c.bf16 %v3375, %v3374
    %v3431 = vpack.c.bf16 %v3377, %v3376
    %v3432 = vpack.c.bf16 %v3379, %v3378
    %v3433 = vpack.c.bf16 %v3381, %v3380
    %v3434 = vpack.c.bf16 %v3383, %v3382
    %v3435 = vpack.c.bf16 %v3385, %v3384
    %v3436 = vpack.c.bf16 %v3387, %v3386
    %v3437 = vpack.c.bf16 %v3389, %v3388
    %v3438 = vpack.c.bf16 %v3391, %v3390
    %v3439 = vpack.c.bf16 %v3393, %v3392
    %v3440 = vpack.c.bf16 %v3395, %v3394
    %v3441 = vpack.c.bf16 %v3397, %v3396
    %v3442 = vpack.c.bf16 %v3399, %v3398
    %v3443 = vpack.c.bf16 %v3401, %v3400
    %v3444 = vpack.c.bf16 %v3403, %v3402
    %v3445 = vpack.c.bf16 %v3405, %v3404
    %v3446 = vpack.c.bf16 %v3407, %v3406
    %v3447 = vpack.c.bf16 %v3409, %v3408
    %v3448 = vpack.c.bf16 %v3411, %v3410
    %v3449 = vpack.c.bf16 %v3413, %v3412
    %v3450 = vpack.c.bf16 %v3415, %v3414
    %v3451 = vpack.c.bf16 %v3417, %v3416
    %v3452 = vpack.c.bf16 %v3419, %v3418
    %v3453 = vpack.c.bf16 %v3421, %v3420
    %v3454 = vld [vmem:[#allocation10] sm:$0xf]
    %v3455 = vld [vmem:[#allocation10 + $0x4] sm:$0xf]
    %v3456 = vld [vmem:[#allocation10 + $0x8] sm:$0xf]
    %v3457 = vld [vmem:[#allocation10 + $0xc] sm:$0xf]
    %3462 = vrot.lane.b32.xlu0 %v1260, 96
    %v3463 = vpop.permute.xlu0 %3462
    %3464 = vrot.lane.b32.xlu0 %v1261, 96
    %v3465 = vpop.permute.xlu0 %3464
    %3466 = vrot.lane.b32.xlu0 %v1262, 96
    %v3467 = vpop.permute.xlu0 %3466
    %3468 = vrot.lane.b32.xlu0 %v1263, 96
    %v3469 = vpop.permute.xlu0 %3468
    %3474 = vrot.lane.b32.xlu0 %v1292, 96
    %v3475 = vpop.permute.xlu0 %3474
    %3476 = vrot.lane.b32.xlu0 %v1293, 96
    %v3477 = vpop.permute.xlu0 %3476
    %3478 = vrot.lane.b32.xlu0 %v1294, 96
    %v3479 = vpop.permute.xlu0 %3478
    %3480 = vrot.lane.b32.xlu0 %v1295, 96
    %v3481 = vpop.permute.xlu0 %3480
    %v3483 = vsel %vm1356, %v3463, 0
    %v3486 = vsel %vm1356, %v3465, 0
    %v3489 = vsel %vm1356, %v3467, 0
    %v3492 = vsel %vm1356, %v3469, 0
    %v3495 = vsel %vm1356, %v3475, 0
    %v3498 = vsel %vm1356, %v3477, 0
    %v3501 = vsel %vm1356, %v3479, 0
    %v3504 = vsel %vm1356, %v3481, 0
    %3506 = vmatprep.subr.bf16.mxu0 0
    %3507 = vmatpush1.bf16.xpose.msra.mxu0 %v3495
    %3508 = vmatprep.subr.bf16.mxu0 0
    %3509 = vmatpush1.bf16.xpose.msra.mxu0 %v3498
    %3510 = vmatprep.subr.bf16.mxu0 0
    %3511 = vmatpush1.bf16.xpose.msra.mxu0 %v3501
    %3512 = vmatprep.subr.bf16.mxu0 0
    %3513 = vmatpush1.bf16.xpose.msra.mxu0 %v3504
    %3514 = vmatprep.subr.bf16.mxu0 0
    %3515 = vmatpush1.bf16.xpose.msra.mxu0 0
    %3516 = vmatprep.subr.bf16.mxu0 0
    %3517 = vmatpush1.bf16.xpose.msra.mxu0 0
    %3518 = vmatprep.subr.bf16.mxu0 0
    %3519 = vmatpush1.bf16.xpose.msra.mxu0 0
    %3520 = vmatprep.subr.bf16.mxu0 0
    %3521 = vmatpush1.bf16.xpose.msra.mxu0 0
    %3522 = vmatprep.subr.bf16.mxu0 0
    %3523 = vmatpush1.bf16.xpose.msra.mxu0 0
    %3524 = vmatprep.subr.bf16.mxu0 0
    %3525 = vmatpush1.bf16.xpose.msra.mxu0 0
    %3526 = vmatprep.subr.bf16.mxu0 0
    %3527 = vmatpush1.bf16.xpose.msra.mxu0 0
    %3528 = vmatprep.subr.bf16.mxu0 0
    %3529 = vmatpush1.bf16.xpose.msra.mxu0 0
    %3530 = vmatprep.subr.bf16.mxu0 0
    %3531 = vmatpush1.bf16.xpose.msra.mxu0 0
    %3532 = vmatprep.subr.bf16.mxu0 0
    %3533 = vmatpush1.bf16.xpose.msra.mxu0 0
    %3534 = vmatprep.subr.bf16.mxu0 0
    %3535 = vmatpush1.bf16.xpose.msra.mxu0 0
    %3536 = vmatprep.subr.bf16.mxu0 0
    %3537 = vmatpush1.bf16.xpose.msra.mxu0 0
    %3538 = vmatprep.mubr.bf16.mxu0 0
    %3539 = vmatmul.mubr.bf16.gmra.mrb[0].mxu0 %v3483
    %v3540 = vpop.f32.mrb[0].mxu0
    %v3541 = vadd.f32 0.0, %v3540
    %v3542 = vpop.f32.mrb[0].mxu0
    %v3543 = vpop.f32.mrb[0].mxu0
    %v3544 = vadd.f32 0.0, %v3543
    %v3545 = vpop.f32.mrb[0].mxu0
    %3546 = vmatprep.mubr.bf16.mxu0 0
    %3547 = vmatmul.mubr.bf16.gmra.mrb[0].mxu0 %v3486
    %v3548 = vpop.f32.mrb[0].mxu0
    %v3549 = vadd.f32 0.0, %v3548
    %v3550 = vpop.f32.mrb[0].mxu0
    %v3551 = vpop.f32.mrb[0].mxu0
    %v3552 = vadd.f32 0.0, %v3551
    %v3553 = vpop.f32.mrb[0].mxu0
    %3554 = vmatprep.mubr.bf16.mxu0 0
    %3555 = vmatmul.mubr.bf16.gmra.mrb[0].mxu0 %v3489
    %v3556 = vpop.f32.mrb[0].mxu0
    %v3557 = vadd.f32 0.0, %v3556
    %v3558 = vpop.f32.mrb[0].mxu0
    %v3559 = vpop.f32.mrb[0].mxu0
    %v3560 = vadd.f32 0.0, %v3559
    %v3561 = vpop.f32.mrb[0].mxu0
    %3562 = vmatprep.mubr.bf16.mxu0 0
    %3563 = vmatmul.mubr.bf16.gmra.mrb[0].mxu0 %v3492
    %v3564 = vpop.f32.mrb[0].mxu0
    %v3565 = vadd.f32 0.0, %v3564
    %v3566 = vpop.f32.mrb[0].mxu0
    %v3567 = vpop.f32.mrb[0].mxu0
    %v3568 = vadd.f32 0.0, %v3567
    %v3569 = vpop.f32.mrb[0].mxu0
    %3570 = vdwg.mxu0
    %3575 = vrot.lane.b32.xlu0 %v1264, 96
    %v3576 = vpop.permute.xlu0 %3575
    %3577 = vrot.lane.b32.xlu0 %v1265, 96
    %v3578 = vpop.permute.xlu0 %3577
    %3579 = vrot.lane.b32.xlu0 %v1266, 96
    %v3580 = vpop.permute.xlu0 %3579
    %3581 = vrot.lane.b32.xlu0 %v1267, 96
    %v3582 = vpop.permute.xlu0 %3581
    %3587 = vrot.lane.b32.xlu0 %v1296, 96
    %v3588 = vpop.permute.xlu0 %3587
    %3589 = vrot.lane.b32.xlu0 %v1297, 96
    %v3590 = vpop.permute.xlu0 %3589
    %3591 = vrot.lane.b32.xlu0 %v1298, 96
    %v3592 = vpop.permute.xlu0 %3591
    %3593 = vrot.lane.b32.xlu0 %v1299, 96
    %v3594 = vpop.permute.xlu0 %3593
    %v3596 = vsel %vm1356, %v3576, 0
    %v3599 = vsel %vm1356, %v3578, 0
    %v3602 = vsel %vm1356, %v3580, 0
    %v3605 = vsel %vm1356, %v3582, 0
    %v3608 = vsel %vm1356, %v3588, 0
    %v3611 = vsel %vm1356, %v3590, 0
    %v3614 = vsel %vm1356, %v3592, 0
    %v3617 = vsel %vm1356, %v3594, 0
    %3619 = vmatprep.subr.bf16.mxu0 0
    %3620 = vmatpush1.bf16.xpose.msra.mxu0 %v3608
    %3621 = vmatprep.subr.bf16.mxu0 0
    %3622 = vmatpush1.bf16.xpose.msra.mxu0 %v3611
    %3623 = vmatprep.subr.bf16.mxu0 0
    %3624 = vmatpush1.bf16.xpose.msra.mxu0 %v3614
    %3625 = vmatprep.subr.bf16.mxu0 0
    %3626 = vmatpush1.bf16.xpose.msra.mxu0 %v3617
    %3627 = vmatprep.subr.bf16.mxu0 0
    %3628 = vmatpush1.bf16.xpose.msra.mxu0 0
    %3629 = vmatprep.subr.bf16.mxu0 0
    %3630 = vmatpush1.bf16.xpose.msra.mxu0 0
    %3631 = vmatprep.subr.bf16.mxu0 0
    %3632 = vmatpush1.bf16.xpose.msra.mxu0 0
    %3633 = vmatprep.subr.bf16.mxu0 0
    %3634 = vmatpush1.bf16.xpose.msra.mxu0 0
    %3635 = vmatprep.subr.bf16.mxu0 0
    %3636 = vmatpush1.bf16.xpose.msra.mxu0 0
    %3637 = vmatprep.subr.bf16.mxu0 0
    %3638 = vmatpush1.bf16.xpose.msra.mxu0 0
    %3639 = vmatprep.subr.bf16.mxu0 0
    %3640 = vmatpush1.bf16.xpose.msra.mxu0 0
    %3641 = vmatprep.subr.bf16.mxu0 0
    %3642 = vmatpush1.bf16.xpose.msra.mxu0 0
    %3643 = vmatprep.subr.bf16.mxu0 0
    %3644 = vmatpush1.bf16.xpose.msra.mxu0 0
    %3645 = vmatprep.subr.bf16.mxu0 0
    %3646 = vmatpush1.bf16.xpose.msra.mxu0 0
    %3647 = vmatprep.subr.bf16.mxu0 0
    %3648 = vmatpush1.bf16.xpose.msra.mxu0 0
    %3649 = vmatprep.subr.bf16.mxu0 0
    %3650 = vmatpush1.bf16.xpose.msra.mxu0 0
    %3651 = vmatprep.mubr.bf16.mxu0 0
    %3652 = vmatmul.mubr.bf16.gmra.mrb[0].mxu0 %v3596
    %v3653 = vpop.f32.mrb[0].mxu0
    %v3654 = vadd.f32 0.0, %v3653
    %v3655 = vpop.f32.mrb[0].mxu0
    %v3656 = vpop.f32.mrb[0].mxu0
    %v3657 = vadd.f32 0.0, %v3656
    %v3658 = vpop.f32.mrb[0].mxu0
    %3659 = vmatprep.mubr.bf16.mxu0 0
    %3660 = vmatmul.mubr.bf16.gmra.mrb[0].mxu0 %v3599
    %v3661 = vpop.f32.mrb[0].mxu0
    %v3662 = vadd.f32 0.0, %v3661
    %v3663 = vpop.f32.mrb[0].mxu0
    %v3664 = vpop.f32.mrb[0].mxu0
    %v3665 = vadd.f32 0.0, %v3664
    %v3666 = vpop.f32.mrb[0].mxu0
    %3667 = vmatprep.mubr.bf16.mxu0 0
    %3668 = vmatmul.mubr.bf16.gmra.mrb[0].mxu0 %v3602
    %v3669 = vpop.f32.mrb[0].mxu0
    %v3670 = vadd.f32 0.0, %v3669
    %v3671 = vpop.f32.mrb[0].mxu0
    %v3672 = vpop.f32.mrb[0].mxu0
    %v3673 = vadd.f32 0.0, %v3672
    %v3674 = vpop.f32.mrb[0].mxu0
    %3675 = vmatprep.mubr.bf16.mxu0 0
    %3676 = vmatmul.mubr.bf16.gmra.mrb[0].mxu0 %v3605
    %v3677 = vpop.f32.mrb[0].mxu0
    %v3678 = vadd.f32 0.0, %v3677
    %v3679 = vpop.f32.mrb[0].mxu0
    %v3680 = vpop.f32.mrb[0].mxu0
    %v3681 = vadd.f32 0.0, %v3680
    %v3682 = vpop.f32.mrb[0].mxu0
    %3683 = vdwg.mxu0
    %3688 = vrot.lane.b32.xlu0 %v1268, 96
    %v3689 = vpop.permute.xlu0 %3688
    %3690 = vrot.lane.b32.xlu0 %v1269, 96
    %v3691 = vpop.permute.xlu0 %3690
    %3692 = vrot.lane.b32.xlu0 %v1270, 96
    %v3693 = vpop.permute.xlu0 %3692
    %3694 = vrot.lane.b32.xlu0 %v1271, 96
    %v3695 = vpop.permute.xlu0 %3694
    %3700 = vrot.lane.b32.xlu0 %v1300, 96
    %v3701 = vpop.permute.xlu0 %3700
    %3702 = vrot.lane.b32.xlu0 %v1301, 96
    %v3703 = vpop.permute.xlu0 %3702
    %3704 = vrot.lane.b32.xlu0 %v1302, 96
    %v3705 = vpop.permute.xlu0 %3704
    %3706 = vrot.lane.b32.xlu0 %v1303, 96
    %v3707 = vpop.permute.xlu0 %3706
    %v3709 = vsel %vm1356, %v3689, 0
    %v3712 = vsel %vm1356, %v3691, 0
    %v3715 = vsel %vm1356, %v3693, 0
    %v3718 = vsel %vm1356, %v3695, 0
    %v3721 = vsel %vm1356, %v3701, 0
    %v3724 = vsel %vm1356, %v3703, 0
    %v3727 = vsel %vm1356, %v3705, 0
    %v3730 = vsel %vm1356, %v3707, 0
    %3732 = vmatprep.subr.bf16.mxu0 0
    %3733 = vmatpush1.bf16.xpose.msra.mxu0 %v3721
    %3734 = vmatprep.subr.bf16.mxu0 0
    %3735 = vmatpush1.bf16.xpose.msra.mxu0 %v3724
    %3736 = vmatprep.subr.bf16.mxu0 0
    %3737 = vmatpush1.bf16.xpose.msra.mxu0 %v3727
    %3738 = vmatprep.subr.bf16.mxu0 0
    %3739 = vmatpush1.bf16.xpose.msra.mxu0 %v3730
    %3740 = vmatprep.subr.bf16.mxu0 0
    %3741 = vmatpush1.bf16.xpose.msra.mxu0 0
    %3742 = vmatprep.subr.bf16.mxu0 0
    %3743 = vmatpush1.bf16.xpose.msra.mxu0 0
    %3744 = vmatprep.subr.bf16.mxu0 0
    %3745 = vmatpush1.bf16.xpose.msra.mxu0 0
    %3746 = vmatprep.subr.bf16.mxu0 0
    %3747 = vmatpush1.bf16.xpose.msra.mxu0 0
    %3748 = vmatprep.subr.bf16.mxu0 0
    %3749 = vmatpush1.bf16.xpose.msra.mxu0 0
    %3750 = vmatprep.subr.bf16.mxu0 0
    %3751 = vmatpush1.bf16.xpose.msra.mxu0 0
    %3752 = vmatprep.subr.bf16.mxu0 0
    %3753 = vmatpush1.bf16.xpose.msra.mxu0 0
    %3754 = vmatprep.subr.bf16.mxu0 0
    %3755 = vmatpush1.bf16.xpose.msra.mxu0 0
    %3756 = vmatprep.subr.bf16.mxu0 0
    %3757 = vmatpush1.bf16.xpose.msra.mxu0 0
    %3758 = vmatprep.subr.bf16.mxu0 0
    %3759 = vmatpush1.bf16.xpose.msra.mxu0 0
    %3760 = vmatprep.subr.bf16.mxu0 0
    %3761 = vmatpush1.bf16.xpose.msra.mxu0 0
    %3762 = vmatprep.subr.bf16.mxu0 0
    %3763 = vmatpush1.bf16.xpose.msra.mxu0 0
    %3764 = vmatprep.mubr.bf16.mxu0 0
    %3765 = vmatmul.mubr.bf16.gmra.mrb[0].mxu0 %v3709
    %v3766 = vpop.f32.mrb[0].mxu0
    %v3767 = vadd.f32 0.0, %v3766
    %v3768 = vpop.f32.mrb[0].mxu0
    %v3769 = vpop.f32.mrb[0].mxu0
    %v3770 = vadd.f32 0.0, %v3769
    %v3771 = vpop.f32.mrb[0].mxu0
    %3772 = vmatprep.mubr.bf16.mxu0 0
    %3773 = vmatmul.mubr.bf16.gmra.mrb[0].mxu0 %v3712
    %v3774 = vpop.f32.mrb[0].mxu0
    %v3775 = vadd.f32 0.0, %v3774
    %v3776 = vpop.f32.mrb[0].mxu0
    %v3777 = vpop.f32.mrb[0].mxu0
    %v3778 = vadd.f32 0.0, %v3777
    %v3779 = vpop.f32.mrb[0].mxu0
    %3780 = vmatprep.mubr.bf16.mxu0 0
    %3781 = vmatmul.mubr.bf16.gmra.mrb[0].mxu0 %v3715
    %v3782 = vpop.f32.mrb[0].mxu0
    %v3783 = vadd.f32 0.0, %v3782
    %v3784 = vpop.f32.mrb[0].mxu0
    %v3785 = vpop.f32.mrb[0].mxu0
    %v3786 = vadd.f32 0.0, %v3785
    %v3787 = vpop.f32.mrb[0].mxu0
    %3788 = vmatprep.mubr.bf16.mxu0 0
    %3789 = vmatmul.mubr.bf16.gmra.mrb[0].mxu0 %v3718
    %v3790 = vpop.f32.mrb[0].mxu0
    %v3791 = vadd.f32 0.0, %v3790
    %v3792 = vpop.f32.mrb[0].mxu0
    %v3793 = vpop.f32.mrb[0].mxu0
    %v3794 = vadd.f32 0.0, %v3793
    %v3795 = vpop.f32.mrb[0].mxu0
    %3796 = vdwg.mxu0
    %3801 = vrot.lane.b32.xlu0 %v1272, 96
    %v3802 = vpop.permute.xlu0 %3801
    %3803 = vrot.lane.b32.xlu0 %v1273, 96
    %v3804 = vpop.permute.xlu0 %3803
    %3805 = vrot.lane.b32.xlu0 %v1274, 96
    %v3806 = vpop.permute.xlu0 %3805
    %3807 = vrot.lane.b32.xlu0 %v1275, 96
    %v3808 = vpop.permute.xlu0 %3807
    %3813 = vrot.lane.b32.xlu0 %v1304, 96
    %v3814 = vpop.permute.xlu0 %3813
    %3815 = vrot.lane.b32.xlu0 %v1305, 96
    %v3816 = vpop.permute.xlu0 %3815
    %3817 = vrot.lane.b32.xlu0 %v1306, 96
    %v3818 = vpop.permute.xlu0 %3817
    %3819 = vrot.lane.b32.xlu0 %v1307, 96
    %v3820 = vpop.permute.xlu0 %3819
    %v3822 = vsel %vm1356, %v3802, 0
    %v3825 = vsel %vm1356, %v3804, 0
    %v3828 = vsel %vm1356, %v3806, 0
    %v3831 = vsel %vm1356, %v3808, 0
    %v3834 = vsel %vm1356, %v3814, 0
    %v3837 = vsel %vm1356, %v3816, 0
    %v3840 = vsel %vm1356, %v3818, 0
    %v3843 = vsel %vm1356, %v3820, 0
    %3845 = vmatprep.subr.bf16.mxu0 0
    %3846 = vmatpush1.bf16.xpose.msra.mxu0 %v3834
    %3847 = vmatprep.subr.bf16.mxu0 0
    %3848 = vmatpush1.bf16.xpose.msra.mxu0 %v3837
    %3849 = vmatprep.subr.bf16.mxu0 0
    %3850 = vmatpush1.bf16.xpose.msra.mxu0 %v3840
    %3851 = vmatprep.subr.bf16.mxu0 0
    %3852 = vmatpush1.bf16.xpose.msra.mxu0 %v3843
    %3853 = vmatprep.subr.bf16.mxu0 0
    %3854 = vmatpush1.bf16.xpose.msra.mxu0 0
    %3855 = vmatprep.subr.bf16.mxu0 0
    %3856 = vmatpush1.bf16.xpose.msra.mxu0 0
    %3857 = vmatprep.subr.bf16.mxu0 0
    %3858 = vmatpush1.bf16.xpose.msra.mxu0 0
    %3859 = vmatprep.subr.bf16.mxu0 0
    %3860 = vmatpush1.bf16.xpose.msra.mxu0 0
    %3861 = vmatprep.subr.bf16.mxu0 0
    %3862 = vmatpush1.bf16.xpose.msra.mxu0 0
    %3863 = vmatprep.subr.bf16.mxu0 0
    %3864 = vmatpush1.bf16.xpose.msra.mxu0 0
    %3865 = vmatprep.subr.bf16.mxu0 0
    %3866 = vmatpush1.bf16.xpose.msra.mxu0 0
    %3867 = vmatprep.subr.bf16.mxu0 0
    %3868 = vmatpush1.bf16.xpose.msra.mxu0 0
    %3869 = vmatprep.subr.bf16.mxu0 0
    %3870 = vmatpush1.bf16.xpose.msra.mxu0 0
    %3871 = vmatprep.subr.bf16.mxu0 0
    %3872 = vmatpush1.bf16.xpose.msra.mxu0 0
    %3873 = vmatprep.subr.bf16.mxu0 0
    %3874 = vmatpush1.bf16.xpose.msra.mxu0 0
    %3875 = vmatprep.subr.bf16.mxu0 0
    %3876 = vmatpush1.bf16.xpose.msra.mxu0 0
    %3877 = vmatprep.mubr.bf16.mxu0 0
    %3878 = vmatmul.mubr.bf16.gmra.mrb[0].mxu0 %v3822
    %v3879 = vpop.f32.mrb[0].mxu0
    %v3880 = vadd.f32 0.0, %v3879
    %v3881 = vpop.f32.mrb[0].mxu0
    %v3882 = vpop.f32.mrb[0].mxu0
    %v3883 = vadd.f32 0.0, %v3882
    %v3884 = vpop.f32.mrb[0].mxu0
    %3885 = vmatprep.mubr.bf16.mxu0 0
    %3886 = vmatmul.mubr.bf16.gmra.mrb[0].mxu0 %v3825
    %v3887 = vpop.f32.mrb[0].mxu0
    %v3888 = vadd.f32 0.0, %v3887
    %v3889 = vpop.f32.mrb[0].mxu0
    %v3890 = vpop.f32.mrb[0].mxu0
    %v3891 = vadd.f32 0.0, %v3890
    %v3892 = vpop.f32.mrb[0].mxu0
    %3893 = vmatprep.mubr.bf16.mxu0 0
    %3894 = vmatmul.mubr.bf16.gmra.mrb[0].mxu0 %v3828
    %v3895 = vpop.f32.mrb[0].mxu0
    %v3896 = vadd.f32 0.0, %v3895
    %v3897 = vpop.f32.mrb[0].mxu0
    %v3898 = vpop.f32.mrb[0].mxu0
    %v3899 = vadd.f32 0.0, %v3898
    %v3900 = vpop.f32.mrb[0].mxu0
    %3901 = vmatprep.mubr.bf16.mxu0 0
    %3902 = vmatmul.mubr.bf16.gmra.mrb[0].mxu0 %v3831
    %v3903 = vpop.f32.mrb[0].mxu0
    %v3904 = vadd.f32 0.0, %v3903
    %v3905 = vpop.f32.mrb[0].mxu0
    %v3906 = vpop.f32.mrb[0].mxu0
    %v3907 = vadd.f32 0.0, %v3906
    %v3908 = vpop.f32.mrb[0].mxu0
    %3909 = vdwg.mxu0
    %3914 = vrot.lane.b32.xlu0 %v1276, 96
    %v3915 = vpop.permute.xlu0 %3914
    %3916 = vrot.lane.b32.xlu0 %v1277, 96
    %v3917 = vpop.permute.xlu0 %3916
    %3918 = vrot.lane.b32.xlu0 %v1278, 96
    %v3919 = vpop.permute.xlu0 %3918
    %3920 = vrot.lane.b32.xlu0 %v1279, 96
    %v3921 = vpop.permute.xlu0 %3920
    %3926 = vrot.lane.b32.xlu0 %v1308, 96
    %v3927 = vpop.permute.xlu0 %3926
    %3928 = vrot.lane.b32.xlu0 %v1309, 96
    %v3929 = vpop.permute.xlu0 %3928
    %3930 = vrot.lane.b32.xlu0 %v1310, 96
    %v3931 = vpop.permute.xlu0 %3930
    %3932 = vrot.lane.b32.xlu0 %v1311, 96
    %v3933 = vpop.permute.xlu0 %3932
    %v3935 = vsel %vm1356, %v3915, 0
    %v3938 = vsel %vm1356, %v3917, 0
    %v3941 = vsel %vm1356, %v3919, 0
    %v3944 = vsel %vm1356, %v3921, 0
    %v3947 = vsel %vm1356, %v3927, 0
    %v3950 = vsel %vm1356, %v3929, 0
    %v3953 = vsel %vm1356, %v3931, 0
    %v3956 = vsel %vm1356, %v3933, 0
    %3958 = vmatprep.subr.bf16.mxu0 0
    %3959 = vmatpush1.bf16.xpose.msra.mxu0 %v3947
    %3960 = vmatprep.subr.bf16.mxu0 0
    %3961 = vmatpush1.bf16.xpose.msra.mxu0 %v3950
    %3962 = vmatprep.subr.bf16.mxu0 0
    %3963 = vmatpush1.bf16.xpose.msra.mxu0 %v3953
    %3964 = vmatprep.subr.bf16.mxu0 0
    %3965 = vmatpush1.bf16.xpose.msra.mxu0 %v3956
    %3966 = vmatprep.subr.bf16.mxu0 0
    %3967 = vmatpush1.bf16.xpose.msra.mxu0 0
    %3968 = vmatprep.subr.bf16.mxu0 0
    %3969 = vmatpush1.bf16.xpose.msra.mxu0 0
    %3970 = vmatprep.subr.bf16.mxu0 0
    %3971 = vmatpush1.bf16.xpose.msra.mxu0 0
    %3972 = vmatprep.subr.bf16.mxu0 0
    %3973 = vmatpush1.bf16.xpose.msra.mxu0 0
    %3974 = vmatprep.subr.bf16.mxu0 0
    %3975 = vmatpush1.bf16.xpose.msra.mxu0 0
    %3976 = vmatprep.subr.bf16.mxu0 0
    %3977 = vmatpush1.bf16.xpose.msra.mxu0 0
    %3978 = vmatprep.subr.bf16.mxu0 0
    %3979 = vmatpush1.bf16.xpose.msra.mxu0 0
    %3980 = vmatprep.subr.bf16.mxu0 0
    %3981 = vmatpush1.bf16.xpose.msra.mxu0 0
    %3982 = vmatprep.subr.bf16.mxu0 0
    %3983 = vmatpush1.bf16.xpose.msra.mxu0 0
    %3984 = vmatprep.subr.bf16.mxu0 0
    %3985 = vmatpush1.bf16.xpose.msra.mxu0 0
    %3986 = vmatprep.subr.bf16.mxu0 0
    %3987 = vmatpush1.bf16.xpose.msra.mxu0 0
    %3988 = vmatprep.subr.bf16.mxu0 0
    %3989 = vmatpush1.bf16.xpose.msra.mxu0 0
    %3990 = vmatprep.mubr.bf16.mxu0 0
    %3991 = vmatmul.mubr.bf16.gmra.mrb[0].mxu0 %v3935
    %v3992 = vpop.f32.mrb[0].mxu0
    %v3993 = vadd.f32 0.0, %v3992
    %v3994 = vpop.f32.mrb[0].mxu0
    %v3995 = vpop.f32.mrb[0].mxu0
    %v3996 = vadd.f32 0.0, %v3995
    %v3997 = vpop.f32.mrb[0].mxu0
    %3998 = vmatprep.mubr.bf16.mxu0 0
    %3999 = vmatmul.mubr.bf16.gmra.mrb[0].mxu0 %v3938
    %v4000 = vpop.f32.mrb[0].mxu0
    %v4001 = vadd.f32 0.0, %v4000
    %v4002 = vpop.f32.mrb[0].mxu0
    %v4003 = vpop.f32.mrb[0].mxu0
    %v4004 = vadd.f32 0.0, %v4003
    %v4005 = vpop.f32.mrb[0].mxu0
    %4006 = vmatprep.mubr.bf16.mxu0 0
    %4007 = vmatmul.mubr.bf16.gmra.mrb[0].mxu0 %v3941
    %v4008 = vpop.f32.mrb[0].mxu0
    %v4009 = vadd.f32 0.0, %v4008
    %v4010 = vpop.f32.mrb[0].mxu0
    %v4011 = vpop.f32.mrb[0].mxu0
    %v4012 = vadd.f32 0.0, %v4011
    %v4013 = vpop.f32.mrb[0].mxu0
    %4014 = vmatprep.mubr.bf16.mxu0 0
    %4015 = vmatmul.mubr.bf16.gmra.mrb[0].mxu0 %v3944
    %v4016 = vpop.f32.mrb[0].mxu0
    %v4017 = vadd.f32 0.0, %v4016
    %v4018 = vpop.f32.mrb[0].mxu0
    %v4019 = vpop.f32.mrb[0].mxu0
    %v4020 = vadd.f32 0.0, %v4019
    %v4021 = vpop.f32.mrb[0].mxu0
    %4022 = vdwg.mxu0
    %4027 = vrot.lane.b32.xlu0 %v1280, 96
    %v4028 = vpop.permute.xlu0 %4027
    %4029 = vrot.lane.b32.xlu0 %v1281, 96
    %v4030 = vpop.permute.xlu0 %4029
    %4031 = vrot.lane.b32.xlu0 %v1282, 96
    %v4032 = vpop.permute.xlu0 %4031
    %4033 = vrot.lane.b32.xlu0 %v1283, 96
    %v4034 = vpop.permute.xlu0 %4033
    %4039 = vrot.lane.b32.xlu0 %v1312, 96
    %v4040 = vpop.permute.xlu0 %4039
    %4041 = vrot.lane.b32.xlu0 %v1313, 96
    %v4042 = vpop.permute.xlu0 %4041
    %4043 = vrot.lane.b32.xlu0 %v1314, 96
    %v4044 = vpop.permute.xlu0 %4043
    %4045 = vrot.lane.b32.xlu0 %v1315, 96
    %v4046 = vpop.permute.xlu0 %4045
    %v4048 = vsel %vm1356, %v4028, 0
    %v4051 = vsel %vm1356, %v4030, 0
    %v4054 = vsel %vm1356, %v4032, 0
    %v4057 = vsel %vm1356, %v4034, 0
    %v4060 = vsel %vm1356, %v4040, 0
    %v4063 = vsel %vm1356, %v4042, 0
    %v4066 = vsel %vm1356, %v4044, 0
    %v4069 = vsel %vm1356, %v4046, 0
    %4071 = vmatprep.subr.bf16.mxu0 0
    %4072 = vmatpush1.bf16.xpose.msra.mxu0 %v4060
    %4073 = vmatprep.subr.bf16.mxu0 0
    %4074 = vmatpush1.bf16.xpose.msra.mxu0 %v4063
    %4075 = vmatprep.subr.bf16.mxu0 0
    %4076 = vmatpush1.bf16.xpose.msra.mxu0 %v4066
    %4077 = vmatprep.subr.bf16.mxu0 0
    %4078 = vmatpush1.bf16.xpose.msra.mxu0 %v4069
    %4079 = vmatprep.subr.bf16.mxu0 0
    %4080 = vmatpush1.bf16.xpose.msra.mxu0 0
    %4081 = vmatprep.subr.bf16.mxu0 0
    %4082 = vmatpush1.bf16.xpose.msra.mxu0 0
    %4083 = vmatprep.subr.bf16.mxu0 0
    %4084 = vmatpush1.bf16.xpose.msra.mxu0 0
    %4085 = vmatprep.subr.bf16.mxu0 0
    %4086 = vmatpush1.bf16.xpose.msra.mxu0 0
    %4087 = vmatprep.subr.bf16.mxu0 0
    %4088 = vmatpush1.bf16.xpose.msra.mxu0 0
    %4089 = vmatprep.subr.bf16.mxu0 0
    %4090 = vmatpush1.bf16.xpose.msra.mxu0 0
    %4091 = vmatprep.subr.bf16.mxu0 0
    %4092 = vmatpush1.bf16.xpose.msra.mxu0 0
    %4093 = vmatprep.subr.bf16.mxu0 0
    %4094 = vmatpush1.bf16.xpose.msra.mxu0 0
    %4095 = vmatprep.subr.bf16.mxu0 0
    %4096 = vmatpush1.bf16.xpose.msra.mxu0 0
    %4097 = vmatprep.subr.bf16.mxu0 0
    %4098 = vmatpush1.bf16.xpose.msra.mxu0 0
    %4099 = vmatprep.subr.bf16.mxu0 0
    %4100 = vmatpush1.bf16.xpose.msra.mxu0 0
    %4101 = vmatprep.subr.bf16.mxu0 0
    %4102 = vmatpush1.bf16.xpose.msra.mxu0 0
    %4103 = vmatprep.mubr.bf16.mxu0 0
    %4104 = vmatmul.mubr.bf16.gmra.mrb[0].mxu0 %v4048
    %v4105 = vpop.f32.mrb[0].mxu0
    %v4106 = vadd.f32 0.0, %v4105
    %v4107 = vpop.f32.mrb[0].mxu0
    %v4108 = vpop.f32.mrb[0].mxu0
    %v4109 = vadd.f32 0.0, %v4108
    %v4110 = vpop.f32.mrb[0].mxu0
    %4111 = vmatprep.mubr.bf16.mxu0 0
    %4112 = vmatmul.mubr.bf16.gmra.mrb[0].mxu0 %v4051
    %v4113 = vpop.f32.mrb[0].mxu0
    %v4114 = vadd.f32 0.0, %v4113
    %v4115 = vpop.f32.mrb[0].mxu0
    %v4116 = vpop.f32.mrb[0].mxu0
    %v4117 = vadd.f32 0.0, %v4116
    %v4118 = vpop.f32.mrb[0].mxu0
    %4119 = vmatprep.mubr.bf16.mxu0 0
    %4120 = vmatmul.mubr.bf16.gmra.mrb[0].mxu0 %v4054
    %v4121 = vpop.f32.mrb[0].mxu0
    %v4122 = vadd.f32 0.0, %v4121
    %v4123 = vpop.f32.mrb[0].mxu0
    %v4124 = vpop.f32.mrb[0].mxu0
    %v4125 = vadd.f32 0.0, %v4124
    %v4126 = vpop.f32.mrb[0].mxu0
    %4127 = vmatprep.mubr.bf16.mxu0 0
    %4128 = vmatmul.mubr.bf16.gmra.mrb[0].mxu0 %v4057
    %v4129 = vpop.f32.mrb[0].mxu0
    %v4130 = vadd.f32 0.0, %v4129
    %v4131 = vpop.f32.mrb[0].mxu0
    %v4132 = vpop.f32.mrb[0].mxu0
    %v4133 = vadd.f32 0.0, %v4132
    %v4134 = vpop.f32.mrb[0].mxu0
    %4135 = vdwg.mxu0
    %4140 = vrot.lane.b32.xlu0 %v1284, 96
    %v4141 = vpop.permute.xlu0 %4140
    %4142 = vrot.lane.b32.xlu0 %v1285, 96
    %v4143 = vpop.permute.xlu0 %4142
    %4144 = vrot.lane.b32.xlu0 %v1286, 96
    %v4145 = vpop.permute.xlu0 %4144
    %4146 = vrot.lane.b32.xlu0 %v1287, 96
    %v4147 = vpop.permute.xlu0 %4146
    %4152 = vrot.lane.b32.xlu0 %v1316, 96
    %v4153 = vpop.permute.xlu0 %4152
    %4154 = vrot.lane.b32.xlu0 %v1317, 96
    %v4155 = vpop.permute.xlu0 %4154
    %4156 = vrot.lane.b32.xlu0 %v1318, 96
    %v4157 = vpop.permute.xlu0 %4156
    %4158 = vrot.lane.b32.xlu0 %v1319, 96
    %v4159 = vpop.permute.xlu0 %4158
    %v4161 = vsel %vm1356, %v4141, 0
    %v4164 = vsel %vm1356, %v4143, 0
    %v4167 = vsel %vm1356, %v4145, 0
    %v4170 = vsel %vm1356, %v4147, 0
    %v4173 = vsel %vm1356, %v4153, 0
    %v4176 = vsel %vm1356, %v4155, 0
    %v4179 = vsel %vm1356, %v4157, 0
    %v4182 = vsel %vm1356, %v4159, 0
    %4184 = vmatprep.subr.bf16.mxu0 0
    %4185 = vmatpush1.bf16.xpose.msra.mxu0 %v4173
    %4186 = vmatprep.subr.bf16.mxu0 0
    %4187 = vmatpush1.bf16.xpose.msra.mxu0 %v4176
    %4188 = vmatprep.subr.bf16.mxu0 0
    %4189 = vmatpush1.bf16.xpose.msra.mxu0 %v4179
    %4190 = vmatprep.subr.bf16.mxu0 0
    %4191 = vmatpush1.bf16.xpose.msra.mxu0 %v4182
    %4192 = vmatprep.subr.bf16.mxu0 0
    %4193 = vmatpush1.bf16.xpose.msra.mxu0 0
    %4194 = vmatprep.subr.bf16.mxu0 0
    %4195 = vmatpush1.bf16.xpose.msra.mxu0 0
    %4196 = vmatprep.subr.bf16.mxu0 0
    %4197 = vmatpush1.bf16.xpose.msra.mxu0 0
    %4198 = vmatprep.subr.bf16.mxu0 0
    %4199 = vmatpush1.bf16.xpose.msra.mxu0 0
    %4200 = vmatprep.subr.bf16.mxu0 0
    %4201 = vmatpush1.bf16.xpose.msra.mxu0 0
    %4202 = vmatprep.subr.bf16.mxu0 0
    %4203 = vmatpush1.bf16.xpose.msra.mxu0 0
    %4204 = vmatprep.subr.bf16.mxu0 0
    %4205 = vmatpush1.bf16.xpose.msra.mxu0 0
    %4206 = vmatprep.subr.bf16.mxu0 0
    %4207 = vmatpush1.bf16.xpose.msra.mxu0 0
    %4208 = vmatprep.subr.bf16.mxu0 0
    %4209 = vmatpush1.bf16.xpose.msra.mxu0 0
    %4210 = vmatprep.subr.bf16.mxu0 0
    %4211 = vmatpush1.bf16.xpose.msra.mxu0 0
    %4212 = vmatprep.subr.bf16.mxu0 0
    %4213 = vmatpush1.bf16.xpose.msra.mxu0 0
    %4214 = vmatprep.subr.bf16.mxu0 0
    %4215 = vmatpush1.bf16.xpose.msra.mxu0 0
    %4216 = vmatprep.mubr.bf16.mxu0 0
    %4217 = vmatmul.mubr.bf16.gmra.mrb[0].mxu0 %v4161
    %v4218 = vpop.f32.mrb[0].mxu0
    %v4219 = vadd.f32 0.0, %v4218
    %v4220 = vpop.f32.mrb[0].mxu0
    %v4221 = vpop.f32.mrb[0].mxu0
    %v4222 = vadd.f32 0.0, %v4221
    %v4223 = vpop.f32.mrb[0].mxu0
    %4224 = vmatprep.mubr.bf16.mxu0 0
    %4225 = vmatmul.mubr.bf16.gmra.mrb[0].mxu0 %v4164
    %v4226 = vpop.f32.mrb[0].mxu0
    %v4227 = vadd.f32 0.0, %v4226
    %v4228 = vpop.f32.mrb[0].mxu0
    %v4229 = vpop.f32.mrb[0].mxu0
    %v4230 = vadd.f32 0.0, %v4229
    %v4231 = vpop.f32.mrb[0].mxu0
    %4232 = vmatprep.mubr.bf16.mxu0 0
    %4233 = vmatmul.mubr.bf16.gmra.mrb[0].mxu0 %v4167
    %v4234 = vpop.f32.mrb[0].mxu0
    %v4235 = vadd.f32 0.0, %v4234
    %v4236 = vpop.f32.mrb[0].mxu0
    %v4237 = vpop.f32.mrb[0].mxu0
    %v4238 = vadd.f32 0.0, %v4237
    %v4239 = vpop.f32.mrb[0].mxu0
    %4240 = vmatprep.mubr.bf16.mxu0 0
    %4241 = vmatmul.mubr.bf16.gmra.mrb[0].mxu0 %v4170
    %v4242 = vpop.f32.mrb[0].mxu0
    %v4243 = vadd.f32 0.0, %v4242
    %v4244 = vpop.f32.mrb[0].mxu0
    %v4245 = vpop.f32.mrb[0].mxu0
    %v4246 = vadd.f32 0.0, %v4245
    %v4247 = vpop.f32.mrb[0].mxu0
    %4248 = vdwg.mxu0
    %4253 = vrot.lane.b32.xlu0 %v1288, 96
    %v4254 = vpop.permute.xlu0 %4253
    %4255 = vrot.lane.b32.xlu0 %v1289, 96
    %v4256 = vpop.permute.xlu0 %4255
    %4257 = vrot.lane.b32.xlu0 %v1290, 96
    %v4258 = vpop.permute.xlu0 %4257
    %4259 = vrot.lane.b32.xlu0 %v1291, 96
    %v4260 = vpop.permute.xlu0 %4259
    %4265 = vrot.lane.b32.xlu0 %v1320, 96
    %v4266 = vpop.permute.xlu0 %4265
    %4267 = vrot.lane.b32.xlu0 %v1321, 96
    %v4268 = vpop.permute.xlu0 %4267
    %4269 = vrot.lane.b32.xlu0 %v1322, 96
    %v4270 = vpop.permute.xlu0 %4269
    %4271 = vrot.lane.b32.xlu0 %v1323, 96
    %v4272 = vpop.permute.xlu0 %4271
    %v4274 = vsel %vm1356, %v4254, 0
    %v4277 = vsel %vm1356, %v4256, 0
    %v4280 = vsel %vm1356, %v4258, 0
    %v4283 = vsel %vm1356, %v4260, 0
    %v4286 = vsel %vm1356, %v4266, 0
    %v4289 = vsel %vm1356, %v4268, 0
    %v4292 = vsel %vm1356, %v4270, 0
    %v4295 = vsel %vm1356, %v4272, 0
    %4297 = vmatprep.subr.bf16.mxu0 0
    %4298 = vmatpush1.bf16.xpose.msra.mxu0 %v4286
    %4299 = vmatprep.subr.bf16.mxu0 0
    %4300 = vmatpush1.bf16.xpose.msra.mxu0 %v4289
    %4301 = vmatprep.subr.bf16.mxu0 0
    %4302 = vmatpush1.bf16.xpose.msra.mxu0 %v4292
    %4303 = vmatprep.subr.bf16.mxu0 0
    %4304 = vmatpush1.bf16.xpose.msra.mxu0 %v4295
    %4305 = vmatprep.subr.bf16.mxu0 0
    %4306 = vmatpush1.bf16.xpose.msra.mxu0 0
    %4307 = vmatprep.subr.bf16.mxu0 0
    %4308 = vmatpush1.bf16.xpose.msra.mxu0 0
    %4309 = vmatprep.subr.bf16.mxu0 0
    %4310 = vmatpush1.bf16.xpose.msra.mxu0 0
    %4311 = vmatprep.subr.bf16.mxu0 0
    %4312 = vmatpush1.bf16.xpose.msra.mxu0 0
    %4313 = vmatprep.subr.bf16.mxu0 0
    %4314 = vmatpush1.bf16.xpose.msra.mxu0 0
    %4315 = vmatprep.subr.bf16.mxu0 0
    %4316 = vmatpush1.bf16.xpose.msra.mxu0 0
    %4317 = vmatprep.subr.bf16.mxu0 0
    %4318 = vmatpush1.bf16.xpose.msra.mxu0 0
    %4319 = vmatprep.subr.bf16.mxu0 0
    %4320 = vmatpush1.bf16.xpose.msra.mxu0 0
    %4321 = vmatprep.subr.bf16.mxu0 0
    %4322 = vmatpush1.bf16.xpose.msra.mxu0 0
    %4323 = vmatprep.subr.bf16.mxu0 0
    %4324 = vmatpush1.bf16.xpose.msra.mxu0 0
    %4325 = vmatprep.subr.bf16.mxu0 0
    %4326 = vmatpush1.bf16.xpose.msra.mxu0 0
    %4327 = vmatprep.subr.bf16.mxu0 0
    %4328 = vmatpush1.bf16.xpose.msra.mxu0 0
    %4329 = vmatprep.mubr.bf16.mxu0 0
    %4330 = vmatmul.mubr.bf16.gmra.mrb[0].mxu0 %v4274
    %v4331 = vpop.f32.mrb[0].mxu0
    %v4332 = vadd.f32 0.0, %v4331
    %v4333 = vpop.f32.mrb[0].mxu0
    %v4334 = vpop.f32.mrb[0].mxu0
    %v4335 = vadd.f32 0.0, %v4334
    %v4336 = vpop.f32.mrb[0].mxu0
    %4337 = vmatprep.mubr.bf16.mxu0 0
    %4338 = vmatmul.mubr.bf16.gmra.mrb[0].mxu0 %v4277
    %v4339 = vpop.f32.mrb[0].mxu0
    %v4340 = vadd.f32 0.0, %v4339
    %v4341 = vpop.f32.mrb[0].mxu0
    %v4342 = vpop.f32.mrb[0].mxu0
    %v4343 = vadd.f32 0.0, %v4342
    %v4344 = vpop.f32.mrb[0].mxu0
    %4345 = vmatprep.mubr.bf16.mxu0 0
    %4346 = vmatmul.mubr.bf16.gmra.mrb[0].mxu0 %v4280
    %v4347 = vpop.f32.mrb[0].mxu0
    %v4348 = vadd.f32 0.0, %v4347
    %v4349 = vpop.f32.mrb[0].mxu0
    %v4350 = vpop.f32.mrb[0].mxu0
    %v4351 = vadd.f32 0.0, %v4350
    %v4352 = vpop.f32.mrb[0].mxu0
    %4353 = vmatprep.mubr.bf16.mxu0 0
    %4354 = vmatmul.mubr.bf16.gmra.mrb[0].mxu0 %v4283
    %v4355 = vpop.f32.mrb[0].mxu0
    %v4356 = vadd.f32 0.0, %v4355
    %v4357 = vpop.f32.mrb[0].mxu0
    %v4358 = vpop.f32.mrb[0].mxu0
    %v4359 = vadd.f32 0.0, %v4358
    %v4360 = vpop.f32.mrb[0].mxu0
    %4361 = vdwg.mxu0
    %v4362 = vsel %vm2069, %v3541, -inf
    %4363 = vmax.xlane.f32.xlu0 %v4362
    %v4364 = vpop.xlane.xlu0 %4363
    %v4365 = vsel %vm2069, %v3544, -inf
    %4366 = vmax.xlane.f32.xlu0 %v4365
    %v4367 = vpop.xlane.xlu0 %4366
    %v4368 = vsel %vm2069, %v3549, -inf
    %4369 = vmax.xlane.f32.xlu0 %v4368
    %v4370 = vpop.xlane.xlu0 %4369
    %v4371 = vsel %vm2069, %v3552, -inf
    %4372 = vmax.xlane.f32.xlu0 %v4371
    %v4373 = vpop.xlane.xlu0 %4372
    %v4374 = vsel %vm2069, %v3557, -inf
    %4375 = vmax.xlane.f32.xlu0 %v4374
    %v4376 = vpop.xlane.xlu0 %4375
    %v4377 = vsel %vm2069, %v3560, -inf
    %4378 = vmax.xlane.f32.xlu0 %v4377
    %v4379 = vpop.xlane.xlu0 %4378
    %v4380 = vsel %vm2069, %v3565, -inf
    %4381 = vmax.xlane.f32.xlu0 %v4380
    %v4382 = vpop.xlane.xlu0 %4381
    %v4383 = vsel %vm2069, %v3568, -inf
    %4384 = vmax.xlane.f32.xlu0 %v4383
    %v4385 = vpop.xlane.xlu0 %4384
    %v4386 = vsel %vm2069, %v3654, -inf
    %4387 = vmax.xlane.f32.xlu0 %v4386
    %v4388 = vpop.xlane.xlu0 %4387
    %v4389 = vsel %vm2069, %v3657, -inf
    %4390 = vmax.xlane.f32.xlu0 %v4389
    %v4391 = vpop.xlane.xlu0 %4390
    %v4392 = vsel %vm2069, %v3662, -inf
    %4393 = vmax.xlane.f32.xlu0 %v4392
    %v4394 = vpop.xlane.xlu0 %4393
    %v4395 = vsel %vm2069, %v3665, -inf
    %4396 = vmax.xlane.f32.xlu0 %v4395
    %v4397 = vpop.xlane.xlu0 %4396
    %v4398 = vsel %vm2069, %v3670, -inf
    %4399 = vmax.xlane.f32.xlu0 %v4398
    %v4400 = vpop.xlane.xlu0 %4399
    %v4401 = vsel %vm2069, %v3673, -inf
    %4402 = vmax.xlane.f32.xlu0 %v4401
    %v4403 = vpop.xlane.xlu0 %4402
    %v4404 = vsel %vm2069, %v3678, -inf
    %4405 = vmax.xlane.f32.xlu0 %v4404
    %v4406 = vpop.xlane.xlu0 %4405
    %v4407 = vsel %vm2069, %v3681, -inf
    %4408 = vmax.xlane.f32.xlu0 %v4407
    %v4409 = vpop.xlane.xlu0 %4408
    %v4410 = vsel %vm2069, %v3767, -inf
    %4411 = vmax.xlane.f32.xlu0 %v4410
    %v4412 = vpop.xlane.xlu0 %4411
    %v4413 = vsel %vm2069, %v3770, -inf
    %4414 = vmax.xlane.f32.xlu0 %v4413
    %v4415 = vpop.xlane.xlu0 %4414
    %v4416 = vsel %vm2069, %v3775, -inf
    %4417 = vmax.xlane.f32.xlu0 %v4416
    %v4418 = vpop.xlane.xlu0 %4417
    %v4419 = vsel %vm2069, %v3778, -inf
    %4420 = vmax.xlane.f32.xlu0 %v4419
    %v4421 = vpop.xlane.xlu0 %4420
    %v4422 = vsel %vm2069, %v3783, -inf
    %4423 = vmax.xlane.f32.xlu0 %v4422
    %v4424 = vpop.xlane.xlu0 %4423
    %v4425 = vsel %vm2069, %v3786, -inf
    %4426 = vmax.xlane.f32.xlu0 %v4425
    %v4427 = vpop.xlane.xlu0 %4426
    %v4428 = vsel %vm2069, %v3791, -inf
    %4429 = vmax.xlane.f32.xlu0 %v4428
    %v4430 = vpop.xlane.xlu0 %4429
    %v4431 = vsel %vm2069, %v3794, -inf
    %4432 = vmax.xlane.f32.xlu0 %v4431
    %v4433 = vpop.xlane.xlu0 %4432
    %v4434 = vsel %vm2069, %v3880, -inf
    %4435 = vmax.xlane.f32.xlu0 %v4434
    %v4436 = vpop.xlane.xlu0 %4435
    %v4437 = vsel %vm2069, %v3883, -inf
    %4438 = vmax.xlane.f32.xlu0 %v4437
    %v4439 = vpop.xlane.xlu0 %4438
    %v4440 = vsel %vm2069, %v3888, -inf
    %4441 = vmax.xlane.f32.xlu0 %v4440
    %v4442 = vpop.xlane.xlu0 %4441
    %v4443 = vsel %vm2069, %v3891, -inf
    %4444 = vmax.xlane.f32.xlu0 %v4443
    %v4445 = vpop.xlane.xlu0 %4444
    %v4446 = vsel %vm2069, %v3896, -inf
    %4447 = vmax.xlane.f32.xlu0 %v4446
    %v4448 = vpop.xlane.xlu0 %4447
    %v4449 = vsel %vm2069, %v3899, -inf
    %4450 = vmax.xlane.f32.xlu0 %v4449
    %v4451 = vpop.xlane.xlu0 %4450
    %v4452 = vsel %vm2069, %v3904, -inf
    %4453 = vmax.xlane.f32.xlu0 %v4452
    %v4454 = vpop.xlane.xlu0 %4453
    %v4455 = vsel %vm2069, %v3907, -inf
    %4456 = vmax.xlane.f32.xlu0 %v4455
    %v4457 = vpop.xlane.xlu0 %4456
    %v4458 = vsel %vm2069, %v3993, -inf
    %4459 = vmax.xlane.f32.xlu0 %v4458
    %v4460 = vpop.xlane.xlu0 %4459
    %v4461 = vsel %vm2069, %v3996, -inf
    %4462 = vmax.xlane.f32.xlu0 %v4461
    %v4463 = vpop.xlane.xlu0 %4462
    %v4464 = vsel %vm2069, %v4001, -inf
    %4465 = vmax.xlane.f32.xlu0 %v4464
    %v4466 = vpop.xlane.xlu0 %4465
    %v4467 = vsel %vm2069, %v4004, -inf
    %4468 = vmax.xlane.f32.xlu0 %v4467
    %v4469 = vpop.xlane.xlu0 %4468
    %v4470 = vsel %vm2069, %v4009, -inf
    %4471 = vmax.xlane.f32.xlu0 %v4470
    %v4472 = vpop.xlane.xlu0 %4471
    %v4473 = vsel %vm2069, %v4012, -inf
    %4474 = vmax.xlane.f32.xlu0 %v4473
    %v4475 = vpop.xlane.xlu0 %4474
    %v4476 = vsel %vm2069, %v4017, -inf
    %4477 = vmax.xlane.f32.xlu0 %v4476
    %v4478 = vpop.xlane.xlu0 %4477
    %v4479 = vsel %vm2069, %v4020, -inf
    %4480 = vmax.xlane.f32.xlu0 %v4479
    %v4481 = vpop.xlane.xlu0 %4480
    %v4482 = vsel %vm2069, %v4106, -inf
    %4483 = vmax.xlane.f32.xlu0 %v4482
    %v4484 = vpop.xlane.xlu0 %4483
    %v4485 = vsel %vm2069, %v4109, -inf
    %4486 = vmax.xlane.f32.xlu0 %v4485
    %v4487 = vpop.xlane.xlu0 %4486
    %v4488 = vsel %vm2069, %v4114, -inf
    %4489 = vmax.xlane.f32.xlu0 %v4488
    %v4490 = vpop.xlane.xlu0 %4489
    %v4491 = vsel %vm2069, %v4117, -inf
    %4492 = vmax.xlane.f32.xlu0 %v4491
    %v4493 = vpop.xlane.xlu0 %4492
    %v4494 = vsel %vm2069, %v4122, -inf
    %4495 = vmax.xlane.f32.xlu0 %v4494
    %v4496 = vpop.xlane.xlu0 %4495
    %v4497 = vsel %vm2069, %v4125, -inf
    %4498 = vmax.xlane.f32.xlu0 %v4497
    %v4499 = vpop.xlane.xlu0 %4498
    %v4500 = vsel %vm2069, %v4130, -inf
    %4501 = vmax.xlane.f32.xlu0 %v4500
    %v4502 = vpop.xlane.xlu0 %4501
    %v4503 = vsel %vm2069, %v4133, -inf
    %4504 = vmax.xlane.f32.xlu0 %v4503
    %v4505 = vpop.xlane.xlu0 %4504
    %v4506 = vsel %vm2069, %v4219, -inf
    %4507 = vmax.xlane.f32.xlu0 %v4506
    %v4508 = vpop.xlane.xlu0 %4507
    %v4509 = vsel %vm2069, %v4222, -inf
    %4510 = vmax.xlane.f32.xlu0 %v4509
    %v4511 = vpop.xlane.xlu0 %4510
    %v4512 = vsel %vm2069, %v4227, -inf
    %4513 = vmax.xlane.f32.xlu0 %v4512
    %v4514 = vpop.xlane.xlu0 %4513
    %v4515 = vsel %vm2069, %v4230, -inf
    %4516 = vmax.xlane.f32.xlu0 %v4515
    %v4517 = vpop.xlane.xlu0 %4516
    %v4518 = vsel %vm2069, %v4235, -inf
    %4519 = vmax.xlane.f32.xlu0 %v4518
    %v4520 = vpop.xlane.xlu0 %4519
    %v4521 = vsel %vm2069, %v4238, -inf
    %4522 = vmax.xlane.f32.xlu0 %v4521
    %v4523 = vpop.xlane.xlu0 %4522
    %v4524 = vsel %vm2069, %v4243, -inf
    %4525 = vmax.xlane.f32.xlu0 %v4524
    %v4526 = vpop.xlane.xlu0 %4525
    %v4527 = vsel %vm2069, %v4246, -inf
    %4528 = vmax.xlane.f32.xlu0 %v4527
    %v4529 = vpop.xlane.xlu0 %4528
    %v4530 = vsel %vm2069, %v4332, -inf
    %4531 = vmax.xlane.f32.xlu0 %v4530
    %v4532 = vpop.xlane.xlu0 %4531
    %v4533 = vsel %vm2069, %v4335, -inf
    %4534 = vmax.xlane.f32.xlu0 %v4533
    %v4535 = vpop.xlane.xlu0 %4534
    %v4536 = vsel %vm2069, %v4340, -inf
    %4537 = vmax.xlane.f32.xlu0 %v4536
    %v4538 = vpop.xlane.xlu0 %4537
    %v4539 = vsel %vm2069, %v4343, -inf
    %4540 = vmax.xlane.f32.xlu0 %v4539
    %v4541 = vpop.xlane.xlu0 %4540
    %v4542 = vsel %vm2069, %v4348, -inf
    %4543 = vmax.xlane.f32.xlu0 %v4542
    %v4544 = vpop.xlane.xlu0 %4543
    %v4545 = vsel %vm2069, %v4351, -inf
    %4546 = vmax.xlane.f32.xlu0 %v4545
    %v4547 = vpop.xlane.xlu0 %4546
    %v4548 = vsel %vm2069, %v4356, -inf
    %4549 = vmax.xlane.f32.xlu0 %v4548
    %v4550 = vpop.xlane.xlu0 %4549
    %v4551 = vsel %vm2069, %v4359, -inf
    %4552 = vmax.xlane.f32.xlu0 %v4551
    %v4553 = vpop.xlane.xlu0 %4552
    %v4554 = vsub.f32 %v3541, %v4364
    %v4555 = vsub.f32 %v3544, %v4367
    %v4556 = vsub.f32 %v3549, %v4370
    %v4557 = vsub.f32 %v3552, %v4373
    %v4558 = vsub.f32 %v3557, %v4376
    %v4559 = vsub.f32 %v3560, %v4379
    %v4560 = vsub.f32 %v3565, %v4382
    %v4561 = vsub.f32 %v3568, %v4385
    %v4562 = vsub.f32 %v3654, %v4388
    %v4563 = vsub.f32 %v3657, %v4391
    %v4564 = vsub.f32 %v3662, %v4394
    %v4565 = vsub.f32 %v3665, %v4397
    %v4566 = vsub.f32 %v3670, %v4400
    %v4567 = vsub.f32 %v3673, %v4403
    %v4568 = vsub.f32 %v3678, %v4406
    %v4569 = vsub.f32 %v3681, %v4409
    %v4570 = vsub.f32 %v3767, %v4412
    %v4571 = vsub.f32 %v3770, %v4415
    %v4572 = vsub.f32 %v3775, %v4418
    %v4573 = vsub.f32 %v3778, %v4421
    %v4574 = vsub.f32 %v3783, %v4424
    %v4575 = vsub.f32 %v3786, %v4427
    %v4576 = vsub.f32 %v3791, %v4430
    %v4577 = vsub.f32 %v3794, %v4433
    %v4578 = vsub.f32 %v3880, %v4436
    %v4579 = vsub.f32 %v3883, %v4439
    %v4580 = vsub.f32 %v3888, %v4442
    %v4581 = vsub.f32 %v3891, %v4445
    %v4582 = vsub.f32 %v3896, %v4448
    %v4583 = vsub.f32 %v3899, %v4451
    %v4584 = vsub.f32 %v3904, %v4454
    %v4585 = vsub.f32 %v3907, %v4457
    %v4586 = vsub.f32 %v3993, %v4460
    %v4587 = vsub.f32 %v3996, %v4463
    %v4588 = vsub.f32 %v4001, %v4466
    %v4589 = vsub.f32 %v4004, %v4469
    %v4590 = vsub.f32 %v4009, %v4472
    %v4591 = vsub.f32 %v4012, %v4475
    %v4592 = vsub.f32 %v4017, %v4478
    %v4593 = vsub.f32 %v4020, %v4481
    %v4594 = vsub.f32 %v4106, %v4484
    %v4595 = vsub.f32 %v4109, %v4487
    %v4596 = vsub.f32 %v4114, %v4490
    %v4597 = vsub.f32 %v4117, %v4493
    %v4598 = vsub.f32 %v4122, %v4496
    %v4599 = vsub.f32 %v4125, %v4499
    %v4600 = vsub.f32 %v4130, %v4502
    %v4601 = vsub.f32 %v4133, %v4505
    %v4602 = vsub.f32 %v4219, %v4508
    %v4603 = vsub.f32 %v4222, %v4511
    %v4604 = vsub.f32 %v4227, %v4514
    %v4605 = vsub.f32 %v4230, %v4517
    %v4606 = vsub.f32 %v4235, %v4520
    %v4607 = vsub.f32 %v4238, %v4523
    %v4608 = vsub.f32 %v4243, %v4526
    %v4609 = vsub.f32 %v4246, %v4529
    %v4610 = vsub.f32 %v4332, %v4532
    %v4611 = vsub.f32 %v4335, %v4535
    %v4612 = vsub.f32 %v4340, %v4538
    %v4613 = vsub.f32 %v4343, %v4541
    %v4614 = vsub.f32 %v4348, %v4544
    %v4615 = vsub.f32 %v4351, %v4547
    %v4616 = vsub.f32 %v4356, %v4550
    %v4617 = vsub.f32 %v4359, %v4553
    %v4618 = vmul.f32 %v4554, 1.442695
    %v4619 = vpow.pop %v4618
    %v4620 = vmul.f32 %v4555, 1.442695
    %v4621 = vpow.pop %v4620
    %v4622 = vmul.f32 %v4556, 1.442695
    %v4623 = vpow.pop %v4622
    %v4624 = vmul.f32 %v4557, 1.442695
    %v4625 = vpow.pop %v4624
    %v4626 = vmul.f32 %v4558, 1.442695
    %v4627 = vpow.pop %v4626
    %v4628 = vmul.f32 %v4559, 1.442695
    %v4629 = vpow.pop %v4628
    %v4630 = vmul.f32 %v4560, 1.442695
    %v4631 = vpow.pop %v4630
    %v4632 = vmul.f32 %v4561, 1.442695
    %v4633 = vpow.pop %v4632
    %v4634 = vmul.f32 %v4562, 1.442695
    %v4635 = vpow.pop %v4634
    %v4636 = vmul.f32 %v4563, 1.442695
    %v4637 = vpow.pop %v4636
    %v4638 = vmul.f32 %v4564, 1.442695
    %v4639 = vpow.pop %v4638
    %v4640 = vmul.f32 %v4565, 1.442695
    %v4641 = vpow.pop %v4640
    %v4642 = vmul.f32 %v4566, 1.442695
    %v4643 = vpow.pop %v4642
    %v4644 = vmul.f32 %v4567, 1.442695
    %v4645 = vpow.pop %v4644
    %v4646 = vmul.f32 %v4568, 1.442695
    %v4647 = vpow.pop %v4646
    %v4648 = vmul.f32 %v4569, 1.442695
    %v4649 = vpow.pop %v4648
    %v4650 = vmul.f32 %v4570, 1.442695
    %v4651 = vpow.pop %v4650
    %v4652 = vmul.f32 %v4571, 1.442695
    %v4653 = vpow.pop %v4652
    %v4654 = vmul.f32 %v4572, 1.442695
    %v4655 = vpow.pop %v4654
    %v4656 = vmul.f32 %v4573, 1.442695
    %v4657 = vpow.pop %v4656
    %v4658 = vmul.f32 %v4574, 1.442695
    %v4659 = vpow.pop %v4658
    %v4660 = vmul.f32 %v4575, 1.442695
    %v4661 = vpow.pop %v4660
    %v4662 = vmul.f32 %v4576, 1.442695
    %v4663 = vpow.pop %v4662
    %v4664 = vmul.f32 %v4577, 1.442695
    %v4665 = vpow.pop %v4664
    %v4666 = vmul.f32 %v4578, 1.442695
    %v4667 = vpow.pop %v4666
    %v4668 = vmul.f32 %v4579, 1.442695
    %v4669 = vpow.pop %v4668
    %v4670 = vmul.f32 %v4580, 1.442695
    %v4671 = vpow.pop %v4670
    %v4672 = vmul.f32 %v4581, 1.442695
    %v4673 = vpow.pop %v4672
    %v4674 = vmul.f32 %v4582, 1.442695
    %v4675 = vpow.pop %v4674
    %v4676 = vmul.f32 %v4583, 1.442695
    %v4677 = vpow.pop %v4676
    %v4678 = vmul.f32 %v4584, 1.442695
    %v4679 = vpow.pop %v4678
    %v4680 = vmul.f32 %v4585, 1.442695
    %v4681 = vpow.pop %v4680
    %v4682 = vmul.f32 %v4586, 1.442695
    %v4683 = vpow.pop %v4682
    %v4684 = vmul.f32 %v4587, 1.442695
    %v4685 = vpow.pop %v4684
    %v4686 = vmul.f32 %v4588, 1.442695
    %v4687 = vpow.pop %v4686
    %v4688 = vmul.f32 %v4589, 1.442695
    %v4689 = vpow.pop %v4688
    %v4690 = vmul.f32 %v4590, 1.442695
    %v4691 = vpow.pop %v4690
    %v4692 = vmul.f32 %v4591, 1.442695
    %v4693 = vpow.pop %v4692
    %v4694 = vmul.f32 %v4592, 1.442695
    %v4695 = vpow.pop %v4694
    %v4696 = vmul.f32 %v4593, 1.442695
    %v4697 = vpow.pop %v4696
    %v4698 = vmul.f32 %v4594, 1.442695
    %v4699 = vpow.pop %v4698
    %v4700 = vmul.f32 %v4595, 1.442695
    %v4701 = vpow.pop %v4700
    %v4702 = vmul.f32 %v4596, 1.442695
    %v4703 = vpow.pop %v4702
    %v4704 = vmul.f32 %v4597, 1.442695
    %v4705 = vpow.pop %v4704
    %v4706 = vmul.f32 %v4598, 1.442695
    %v4707 = vpow.pop %v4706
    %v4708 = vmul.f32 %v4599, 1.442695
    %v4709 = vpow.pop %v4708
    %v4710 = vmul.f32 %v4600, 1.442695
    %v4711 = vpow.pop %v4710
    %v4712 = vmul.f32 %v4601, 1.442695
    %v4713 = vpow.pop %v4712
    %v4714 = vmul.f32 %v4602, 1.442695
    %v4715 = vpow.pop %v4714
    %v4716 = vmul.f32 %v4603, 1.442695
    %v4717 = vpow.pop %v4716
    %v4718 = vmul.f32 %v4604, 1.442695
    %v4719 = vpow.pop %v4718
    %v4720 = vmul.f32 %v4605, 1.442695
    %v4721 = vpow.pop %v4720
    %v4722 = vmul.f32 %v4606, 1.442695
    %v4723 = vpow.pop %v4722
    %v4724 = vmul.f32 %v4607, 1.442695
    %v4725 = vpow.pop %v4724
    %v4726 = vmul.f32 %v4608, 1.442695
    %v4727 = vpow.pop %v4726
    %v4728 = vmul.f32 %v4609, 1.442695
    %v4729 = vpow.pop %v4728
    %v4730 = vmul.f32 %v4610, 1.442695
    %v4731 = vpow.pop %v4730
    %v4732 = vmul.f32 %v4611, 1.442695
    %v4733 = vpow.pop %v4732
    %v4734 = vmul.f32 %v4612, 1.442695
    %v4735 = vpow.pop %v4734
    %v4736 = vmul.f32 %v4613, 1.442695
    %v4737 = vpow.pop %v4736
    %v4738 = vmul.f32 %v4614, 1.442695
    %v4739 = vpow.pop %v4738
    %v4740 = vmul.f32 %v4615, 1.442695
    %v4741 = vpow.pop %v4740
    %v4742 = vmul.f32 %v4616, 1.442695
    %v4743 = vpow.pop %v4742
    %v4744 = vmul.f32 %v4617, 1.442695
    %v4745 = vpow.pop %v4744
    %v4746 = vsel %vm2069, %v4619, 0.0
    %4747 = vadd.xlane.f32.xlu0 %v4746
    %v4748 = vpop.xlane.xlu0 %4747
    %v4749 = vsel %vm2069, %v4621, 0.0
    %4750 = vadd.xlane.f32.xlu0 %v4749
    %v4751 = vpop.xlane.xlu0 %4750
    %v4752 = vsel %vm2069, %v4623, 0.0
    %4753 = vadd.xlane.f32.xlu0 %v4752
    %v4754 = vpop.xlane.xlu0 %4753
    %v4755 = vsel %vm2069, %v4625, 0.0
    %4756 = vadd.xlane.f32.xlu0 %v4755
    %v4757 = vpop.xlane.xlu0 %4756
    %v4758 = vsel %vm2069, %v4627, 0.0
    %4759 = vadd.xlane.f32.xlu0 %v4758
    %v4760 = vpop.xlane.xlu0 %4759
    %v4761 = vsel %vm2069, %v4629, 0.0
    %4762 = vadd.xlane.f32.xlu0 %v4761
    %v4763 = vpop.xlane.xlu0 %4762
    %v4764 = vsel %vm2069, %v4631, 0.0
    %4765 = vadd.xlane.f32.xlu0 %v4764
    %v4766 = vpop.xlane.xlu0 %4765
    %v4767 = vsel %vm2069, %v4633, 0.0
    %4768 = vadd.xlane.f32.xlu0 %v4767
    %v4769 = vpop.xlane.xlu0 %4768
    %v4770 = vsel %vm2069, %v4635, 0.0
    %4771 = vadd.xlane.f32.xlu0 %v4770
    %v4772 = vpop.xlane.xlu0 %4771
    %v4773 = vsel %vm2069, %v4637, 0.0
    %4774 = vadd.xlane.f32.xlu0 %v4773
    %v4775 = vpop.xlane.xlu0 %4774
    %v4776 = vsel %vm2069, %v4639, 0.0
    %4777 = vadd.xlane.f32.xlu0 %v4776
    %v4778 = vpop.xlane.xlu0 %4777
    %v4779 = vsel %vm2069, %v4641, 0.0
    %4780 = vadd.xlane.f32.xlu0 %v4779
    %v4781 = vpop.xlane.xlu0 %4780
    %v4782 = vsel %vm2069, %v4643, 0.0
    %4783 = vadd.xlane.f32.xlu0 %v4782
    %v4784 = vpop.xlane.xlu0 %4783
    %v4785 = vsel %vm2069, %v4645, 0.0
    %4786 = vadd.xlane.f32.xlu0 %v4785
    %v4787 = vpop.xlane.xlu0 %4786
    %v4788 = vsel %vm2069, %v4647, 0.0
    %4789 = vadd.xlane.f32.xlu0 %v4788
    %v4790 = vpop.xlane.xlu0 %4789
    %v4791 = vsel %vm2069, %v4649, 0.0
    %4792 = vadd.xlane.f32.xlu0 %v4791
    %v4793 = vpop.xlane.xlu0 %4792
    %v4794 = vsel %vm2069, %v4651, 0.0
    %4795 = vadd.xlane.f32.xlu0 %v4794
    %v4796 = vpop.xlane.xlu0 %4795
    %v4797 = vsel %vm2069, %v4653, 0.0
    %4798 = vadd.xlane.f32.xlu0 %v4797
    %v4799 = vpop.xlane.xlu0 %4798
    %v4800 = vsel %vm2069, %v4655, 0.0
    %4801 = vadd.xlane.f32.xlu0 %v4800
    %v4802 = vpop.xlane.xlu0 %4801
    %v4803 = vsel %vm2069, %v4657, 0.0
    %4804 = vadd.xlane.f32.xlu0 %v4803
    %v4805 = vpop.xlane.xlu0 %4804
    %v4806 = vsel %vm2069, %v4659, 0.0
    %4807 = vadd.xlane.f32.xlu0 %v4806
    %v4808 = vpop.xlane.xlu0 %4807
    %v4809 = vsel %vm2069, %v4661, 0.0
    %4810 = vadd.xlane.f32.xlu0 %v4809
    %v4811 = vpop.xlane.xlu0 %4810
    %v4812 = vsel %vm2069, %v4663, 0.0
    %4813 = vadd.xlane.f32.xlu0 %v4812
    %v4814 = vpop.xlane.xlu0 %4813
    %v4815 = vsel %vm2069, %v4665, 0.0
    %4816 = vadd.xlane.f32.xlu0 %v4815
    %v4817 = vpop.xlane.xlu0 %4816
    %v4818 = vsel %vm2069, %v4667, 0.0
    %4819 = vadd.xlane.f32.xlu0 %v4818
    %v4820 = vpop.xlane.xlu0 %4819
    %v4821 = vsel %vm2069, %v4669, 0.0
    %4822 = vadd.xlane.f32.xlu0 %v4821
    %v4823 = vpop.xlane.xlu0 %4822
    %v4824 = vsel %vm2069, %v4671, 0.0
    %4825 = vadd.xlane.f32.xlu0 %v4824
    %v4826 = vpop.xlane.xlu0 %4825
    %v4827 = vsel %vm2069, %v4673, 0.0
    %4828 = vadd.xlane.f32.xlu0 %v4827
    %v4829 = vpop.xlane.xlu0 %4828
    %v4830 = vsel %vm2069, %v4675, 0.0
    %4831 = vadd.xlane.f32.xlu0 %v4830
    %v4832 = vpop.xlane.xlu0 %4831
    %v4833 = vsel %vm2069, %v4677, 0.0
    %4834 = vadd.xlane.f32.xlu0 %v4833
    %v4835 = vpop.xlane.xlu0 %4834
    %v4836 = vsel %vm2069, %v4679, 0.0
    %4837 = vadd.xlane.f32.xlu0 %v4836
    %v4838 = vpop.xlane.xlu0 %4837
    %v4839 = vsel %vm2069, %v4681, 0.0
    %4840 = vadd.xlane.f32.xlu0 %v4839
    %v4841 = vpop.xlane.xlu0 %4840
    %v4842 = vsel %vm2069, %v4683, 0.0
    %4843 = vadd.xlane.f32.xlu0 %v4842
    %v4844 = vpop.xlane.xlu0 %4843
    %v4845 = vsel %vm2069, %v4685, 0.0
    %4846 = vadd.xlane.f32.xlu0 %v4845
    %v4847 = vpop.xlane.xlu0 %4846
    %v4848 = vsel %vm2069, %v4687, 0.0
    %4849 = vadd.xlane.f32.xlu0 %v4848
    %v4850 = vpop.xlane.xlu0 %4849
    %v4851 = vsel %vm2069, %v4689, 0.0
    %4852 = vadd.xlane.f32.xlu0 %v4851
    %v4853 = vpop.xlane.xlu0 %4852
    %v4854 = vsel %vm2069, %v4691, 0.0
    %4855 = vadd.xlane.f32.xlu0 %v4854
    %v4856 = vpop.xlane.xlu0 %4855
    %v4857 = vsel %vm2069, %v4693, 0.0
    %4858 = vadd.xlane.f32.xlu0 %v4857
    %v4859 = vpop.xlane.xlu0 %4858
    %v4860 = vsel %vm2069, %v4695, 0.0
    %4861 = vadd.xlane.f32.xlu0 %v4860
    %v4862 = vpop.xlane.xlu0 %4861
    %v4863 = vsel %vm2069, %v4697, 0.0
    %4864 = vadd.xlane.f32.xlu0 %v4863
    %v4865 = vpop.xlane.xlu0 %4864
    %v4866 = vsel %vm2069, %v4699, 0.0
    %4867 = vadd.xlane.f32.xlu0 %v4866
    %v4868 = vpop.xlane.xlu0 %4867
    %v4869 = vsel %vm2069, %v4701, 0.0
    %4870 = vadd.xlane.f32.xlu0 %v4869
    %v4871 = vpop.xlane.xlu0 %4870
    %v4872 = vsel %vm2069, %v4703, 0.0
    %4873 = vadd.xlane.f32.xlu0 %v4872
    %v4874 = vpop.xlane.xlu0 %4873
    %v4875 = vsel %vm2069, %v4705, 0.0
    %4876 = vadd.xlane.f32.xlu0 %v4875
    %v4877 = vpop.xlane.xlu0 %4876
    %v4878 = vsel %vm2069, %v4707, 0.0
    %4879 = vadd.xlane.f32.xlu0 %v4878
    %v4880 = vpop.xlane.xlu0 %4879
    %v4881 = vsel %vm2069, %v4709, 0.0
    %4882 = vadd.xlane.f32.xlu0 %v4881
    %v4883 = vpop.xlane.xlu0 %4882
    %v4884 = vsel %vm2069, %v4711, 0.0
    %4885 = vadd.xlane.f32.xlu0 %v4884
    %v4886 = vpop.xlane.xlu0 %4885
    %v4887 = vsel %vm2069, %v4713, 0.0
    %4888 = vadd.xlane.f32.xlu0 %v4887
    %v4889 = vpop.xlane.xlu0 %4888
    %v4890 = vsel %vm2069, %v4715, 0.0
    %4891 = vadd.xlane.f32.xlu0 %v4890
    %v4892 = vpop.xlane.xlu0 %4891
    %v4893 = vsel %vm2069, %v4717, 0.0
    %4894 = vadd.xlane.f32.xlu0 %v4893
    %v4895 = vpop.xlane.xlu0 %4894
    %v4896 = vsel %vm2069, %v4719, 0.0
    %4897 = vadd.xlane.f32.xlu0 %v4896
    %v4898 = vpop.xlane.xlu0 %4897
    %v4899 = vsel %vm2069, %v4721, 0.0
    %4900 = vadd.xlane.f32.xlu0 %v4899
    %v4901 = vpop.xlane.xlu0 %4900
    %v4902 = vsel %vm2069, %v4723, 0.0
    %4903 = vadd.xlane.f32.xlu0 %v4902
    %v4904 = vpop.xlane.xlu0 %4903
    %v4905 = vsel %vm2069, %v4725, 0.0
    %4906 = vadd.xlane.f32.xlu0 %v4905
    %v4907 = vpop.xlane.xlu0 %4906
    %v4908 = vsel %vm2069, %v4727, 0.0
    %4909 = vadd.xlane.f32.xlu0 %v4908
    %v4910 = vpop.xlane.xlu0 %4909
    %v4911 = vsel %vm2069, %v4729, 0.0
    %4912 = vadd.xlane.f32.xlu0 %v4911
    %v4913 = vpop.xlane.xlu0 %4912
    %v4914 = vsel %vm2069, %v4731, 0.0
    %4915 = vadd.xlane.f32.xlu0 %v4914
    %v4916 = vpop.xlane.xlu0 %4915
    %v4917 = vsel %vm2069, %v4733, 0.0
    %4918 = vadd.xlane.f32.xlu0 %v4917
    %v4919 = vpop.xlane.xlu0 %4918
    %v4920 = vsel %vm2069, %v4735, 0.0
    %4921 = vadd.xlane.f32.xlu0 %v4920
    %v4922 = vpop.xlane.xlu0 %4921
    %v4923 = vsel %vm2069, %v4737, 0.0
    %4924 = vadd.xlane.f32.xlu0 %v4923
    %v4925 = vpop.xlane.xlu0 %4924
    %v4926 = vsel %vm2069, %v4739, 0.0
    %4927 = vadd.xlane.f32.xlu0 %v4926
    %v4928 = vpop.xlane.xlu0 %4927
    %v4929 = vsel %vm2069, %v4741, 0.0
    %4930 = vadd.xlane.f32.xlu0 %v4929
    %v4931 = vpop.xlane.xlu0 %4930
    %v4932 = vsel %vm2069, %v4743, 0.0
    %4933 = vadd.xlane.f32.xlu0 %v4932
    %v4934 = vpop.xlane.xlu0 %4933
    %v4935 = vsel %vm2069, %v4745, 0.0
    %4936 = vadd.xlane.f32.xlu0 %v4935
    %v4937 = vpop.xlane.xlu0 %4936
    %v4938 = vpack.c.bf16 %v4621, %v4619
    %v4939 = vpack.c.bf16 %v4625, %v4623
    %v4940 = vpack.c.bf16 %v4629, %v4627
    %v4941 = vpack.c.bf16 %v4633, %v4631
    %v4942 = vpack.c.bf16 %v4637, %v4635
    %v4943 = vpack.c.bf16 %v4641, %v4639
    %v4944 = vpack.c.bf16 %v4645, %v4643
    %v4945 = vpack.c.bf16 %v4649, %v4647
    %v4946 = vpack.c.bf16 %v4653, %v4651
    %v4947 = vpack.c.bf16 %v4657, %v4655
    %v4948 = vpack.c.bf16 %v4661, %v4659
    %v4949 = vpack.c.bf16 %v4665, %v4663
    %v4950 = vpack.c.bf16 %v4669, %v4667
    %v4951 = vpack.c.bf16 %v4673, %v4671
    %v4952 = vpack.c.bf16 %v4677, %v4675
    %v4953 = vpack.c.bf16 %v4681, %v4679
    %v4954 = vpack.c.bf16 %v4685, %v4683
    %v4955 = vpack.c.bf16 %v4689, %v4687
    %v4956 = vpack.c.bf16 %v4693, %v4691
    %v4957 = vpack.c.bf16 %v4697, %v4695
    %v4958 = vpack.c.bf16 %v4701, %v4699
    %v4959 = vpack.c.bf16 %v4705, %v4703
    %v4960 = vpack.c.bf16 %v4709, %v4707
    %v4961 = vpack.c.bf16 %v4713, %v4711
    %v4962 = vpack.c.bf16 %v4717, %v4715
    %v4963 = vpack.c.bf16 %v4721, %v4719
    %v4964 = vpack.c.bf16 %v4725, %v4723
    %v4965 = vpack.c.bf16 %v4729, %v4727
    %v4966 = vpack.c.bf16 %v4733, %v4731
    %v4967 = vpack.c.bf16 %v4737, %v4735
    %v4968 = vpack.c.bf16 %v4741, %v4739
    %v4969 = vpack.c.bf16 %v4745, %v4743
    %4974 = vrot.lane.b32.xlu0 %v1324, 96
    %v4975 = vpop.permute.xlu0 %4974
    %4976 = vrot.lane.b32.xlu0 %v1325, 96
    %v4977 = vpop.permute.xlu0 %4976
    %4978 = vrot.lane.b32.xlu0 %v1326, 96
    %v4979 = vpop.permute.xlu0 %4978
    %4980 = vrot.lane.b32.xlu0 %v1327, 96
    %v4981 = vpop.permute.xlu0 %4980
    %v4987 = vsel %vm2069, %v4938, 0
    %v4990 = vsel %vm2069, %v4939, 0
    %v4993 = vsel %vm2069, %v4940, 0
    %v4996 = vsel %vm2069, %v4941, 0
    %4998 = vmatprep.subr.bf16.mxu0 0
    %4999 = vmatpush1.bf16.msra.mxu0 %v4975
    %5000 = vmatprep.subr.bf16.mxu0 0
    %5001 = vmatpush1.bf16.msra.mxu0 %v4977
    %5002 = vmatprep.subr.bf16.mxu0 0
    %5003 = vmatpush1.bf16.msra.mxu0 %v4979
    %5004 = vmatprep.subr.bf16.mxu0 0
    %5005 = vmatpush1.bf16.msra.mxu0 %v4981
    %5006 = vmatprep.subr.bf16.mxu0 0
    %5007 = vmatpush1.bf16.msra.mxu0 0
    %5008 = vmatprep.subr.bf16.mxu0 0
    %5009 = vmatpush1.bf16.msra.mxu0 0
    %5010 = vmatprep.subr.bf16.mxu0 0
    %5011 = vmatpush1.bf16.msra.mxu0 0
    %5012 = vmatprep.subr.bf16.mxu0 0
    %5013 = vmatpush1.bf16.msra.mxu0 0
    %5014 = vmatprep.subr.bf16.mxu0 0
    %5015 = vmatpush1.bf16.msra.mxu0 0
    %5016 = vmatprep.subr.bf16.mxu0 0
    %5017 = vmatpush1.bf16.msra.mxu0 0
    %5018 = vmatprep.subr.bf16.mxu0 0
    %5019 = vmatpush1.bf16.msra.mxu0 0
    %5020 = vmatprep.subr.bf16.mxu0 0
    %5021 = vmatpush1.bf16.msra.mxu0 0
    %5022 = vmatprep.subr.bf16.mxu0 0
    %5023 = vmatpush1.bf16.msra.mxu0 0
    %5024 = vmatprep.subr.bf16.mxu0 0
    %5025 = vmatpush1.bf16.msra.mxu0 0
    %5026 = vmatprep.subr.bf16.mxu0 0
    %5027 = vmatpush1.bf16.msra.mxu0 0
    %5028 = vmatprep.subr.bf16.mxu0 0
    %5029 = vmatpush1.bf16.msra.mxu0 0
    %5030 = vmatprep.mubr.bf16.mxu0 0
    %5031 = vmatmul.mubr.bf16.gmra.mrb[0].mxu0 %v4987
    %v5032 = vpop.f32.mrb[0].mxu0
    %v5033 = vadd.f32 0.0, %v5032
    %v5034 = vpop.f32.mrb[0].mxu0
    %v5035 = vpop.f32.mrb[0].mxu0
    %v5036 = vadd.f32 0.0, %v5035
    %v5037 = vpop.f32.mrb[0].mxu0
    %5038 = vmatprep.mubr.bf16.mxu0 0
    %5039 = vmatmul.mubr.bf16.gmra.mrb[0].mxu0 %v4990
    %v5040 = vpop.f32.mrb[0].mxu0
    %v5041 = vadd.f32 0.0, %v5040
    %v5042 = vpop.f32.mrb[0].mxu0
    %v5043 = vpop.f32.mrb[0].mxu0
    %v5044 = vadd.f32 0.0, %v5043
    %v5045 = vpop.f32.mrb[0].mxu0
    %5046 = vmatprep.mubr.bf16.mxu0 0
    %5047 = vmatmul.mubr.bf16.gmra.mrb[0].mxu0 %v4993
    %v5048 = vpop.f32.mrb[0].mxu0
    %v5049 = vadd.f32 0.0, %v5048
    %v5050 = vpop.f32.mrb[0].mxu0
    %v5051 = vpop.f32.mrb[0].mxu0
    %v5052 = vadd.f32 0.0, %v5051
    %v5053 = vpop.f32.mrb[0].mxu0
    %5054 = vmatprep.mubr.bf16.mxu0 0
    %5055 = vmatmul.mubr.bf16.gmra.mrb[0].mxu0 %v4996
    %v5056 = vpop.f32.mrb[0].mxu0
    %v5057 = vadd.f32 0.0, %v5056
    %v5058 = vpop.f32.mrb[0].mxu0
    %v5059 = vpop.f32.mrb[0].mxu0
    %v5060 = vadd.f32 0.0, %v5059
    %v5061 = vpop.f32.mrb[0].mxu0
    %5062 = vdwg.mxu0
    %5067 = vrot.lane.b32.xlu0 %v1328, 96
    %v5068 = vpop.permute.xlu0 %5067
    %5069 = vrot.lane.b32.xlu0 %v1329, 96
    %v5070 = vpop.permute.xlu0 %5069
    %5071 = vrot.lane.b32.xlu0 %v1330, 96
    %v5072 = vpop.permute.xlu0 %5071
    %5073 = vrot.lane.b32.xlu0 %v1331, 96
    %v5074 = vpop.permute.xlu0 %5073
    %v5080 = vsel %vm2069, %v4942, 0
    %v5083 = vsel %vm2069, %v4943, 0
    %v5086 = vsel %vm2069, %v4944, 0
    %v5089 = vsel %vm2069, %v4945, 0
    %5091 = vmatprep.subr.bf16.mxu0 0
    %5092 = vmatpush1.bf16.msra.mxu0 %v5068
    %5093 = vmatprep.subr.bf16.mxu0 0
    %5094 = vmatpush1.bf16.msra.mxu0 %v5070
    %5095 = vmatprep.subr.bf16.mxu0 0
    %5096 = vmatpush1.bf16.msra.mxu0 %v5072
    %5097 = vmatprep.subr.bf16.mxu0 0
    %5098 = vmatpush1.bf16.msra.mxu0 %v5074
    %5099 = vmatprep.subr.bf16.mxu0 0
    %5100 = vmatpush1.bf16.msra.mxu0 0
    %5101 = vmatprep.subr.bf16.mxu0 0
    %5102 = vmatpush1.bf16.msra.mxu0 0
    %5103 = vmatprep.subr.bf16.mxu0 0
    %5104 = vmatpush1.bf16.msra.mxu0 0
    %5105 = vmatprep.subr.bf16.mxu0 0
    %5106 = vmatpush1.bf16.msra.mxu0 0
    %5107 = vmatprep.subr.bf16.mxu0 0
    %5108 = vmatpush1.bf16.msra.mxu0 0
    %5109 = vmatprep.subr.bf16.mxu0 0
    %5110 = vmatpush1.bf16.msra.mxu0 0
    %5111 = vmatprep.subr.bf16.mxu0 0
    %5112 = vmatpush1.bf16.msra.mxu0 0
    %5113 = vmatprep.subr.bf16.mxu0 0
    %5114 = vmatpush1.bf16.msra.mxu0 0
    %5115 = vmatprep.subr.bf16.mxu0 0
    %5116 = vmatpush1.bf16.msra.mxu0 0
    %5117 = vmatprep.subr.bf16.mxu0 0
    %5118 = vmatpush1.bf16.msra.mxu0 0
    %5119 = vmatprep.subr.bf16.mxu0 0
    %5120 = vmatpush1.bf16.msra.mxu0 0
    %5121 = vmatprep.subr.bf16.mxu0 0
    %5122 = vmatpush1.bf16.msra.mxu0 0
    %5123 = vmatprep.mubr.bf16.mxu0 0
    %5124 = vmatmul.mubr.bf16.gmra.mrb[0].mxu0 %v5080
    %v5125 = vpop.f32.mrb[0].mxu0
    %v5126 = vadd.f32 0.0, %v5125
    %v5127 = vpop.f32.mrb[0].mxu0
    %v5128 = vpop.f32.mrb[0].mxu0
    %v5129 = vadd.f32 0.0, %v5128
    %v5130 = vpop.f32.mrb[0].mxu0
    %5131 = vmatprep.mubr.bf16.mxu0 0
    %5132 = vmatmul.mubr.bf16.gmra.mrb[0].mxu0 %v5083
    %v5133 = vpop.f32.mrb[0].mxu0
    %v5134 = vadd.f32 0.0, %v5133
    %v5135 = vpop.f32.mrb[0].mxu0
    %v5136 = vpop.f32.mrb[0].mxu0
    %v5137 = vadd.f32 0.0, %v5136
    %v5138 = vpop.f32.mrb[0].mxu0
    %5139 = vmatprep.mubr.bf16.mxu0 0
    %5140 = vmatmul.mubr.bf16.gmra.mrb[0].mxu0 %v5086
    %v5141 = vpop.f32.mrb[0].mxu0
    %v5142 = vadd.f32 0.0, %v5141
    %v5143 = vpop.f32.mrb[0].mxu0
    %v5144 = vpop.f32.mrb[0].mxu0
    %v5145 = vadd.f32 0.0, %v5144
    %v5146 = vpop.f32.mrb[0].mxu0
    %5147 = vmatprep.mubr.bf16.mxu0 0
    %5148 = vmatmul.mubr.bf16.gmra.mrb[0].mxu0 %v5089
    %v5149 = vpop.f32.mrb[0].mxu0
    %v5150 = vadd.f32 0.0, %v5149
    %v5151 = vpop.f32.mrb[0].mxu0
    %v5152 = vpop.f32.mrb[0].mxu0
    %v5153 = vadd.f32 0.0, %v5152
    %v5154 = vpop.f32.mrb[0].mxu0
    %5155 = vdwg.mxu0
    %5160 = vrot.lane.b32.xlu0 %v1332, 96
    %v5161 = vpop.permute.xlu0 %5160
    %5162 = vrot.lane.b32.xlu0 %v1333, 96
    %v5163 = vpop.permute.xlu0 %5162
    %5164 = vrot.lane.b32.xlu0 %v1334, 96
    %v5165 = vpop.permute.xlu0 %5164
    %5166 = vrot.lane.b32.xlu0 %v1335, 96
    %v5167 = vpop.permute.xlu0 %5166
    %v5173 = vsel %vm2069, %v4946, 0
    %v5176 = vsel %vm2069, %v4947, 0
    %v5179 = vsel %vm2069, %v4948, 0
    %v5182 = vsel %vm2069, %v4949, 0
    %5184 = vmatprep.subr.bf16.mxu0 0
    %5185 = vmatpush1.bf16.msra.mxu0 %v5161
    %5186 = vmatprep.subr.bf16.mxu0 0
    %5187 = vmatpush1.bf16.msra.mxu0 %v5163
    %5188 = vmatprep.subr.bf16.mxu0 0
    %5189 = vmatpush1.bf16.msra.mxu0 %v5165
    %5190 = vmatprep.subr.bf16.mxu0 0
    %5191 = vmatpush1.bf16.msra.mxu0 %v5167
    %5192 = vmatprep.subr.bf16.mxu0 0
    %5193 = vmatpush1.bf16.msra.mxu0 0
    %5194 = vmatprep.subr.bf16.mxu0 0
    %5195 = vmatpush1.bf16.msra.mxu0 0
    %5196 = vmatprep.subr.bf16.mxu0 0
    %5197 = vmatpush1.bf16.msra.mxu0 0
    %5198 = vmatprep.subr.bf16.mxu0 0
    %5199 = vmatpush1.bf16.msra.mxu0 0
    %5200 = vmatprep.subr.bf16.mxu0 0
    %5201 = vmatpush1.bf16.msra.mxu0 0
    %5202 = vmatprep.subr.bf16.mxu0 0
    %5203 = vmatpush1.bf16.msra.mxu0 0
    %5204 = vmatprep.subr.bf16.mxu0 0
    %5205 = vmatpush1.bf16.msra.mxu0 0
    %5206 = vmatprep.subr.bf16.mxu0 0
    %5207 = vmatpush1.bf16.msra.mxu0 0
    %5208 = vmatprep.subr.bf16.mxu0 0
    %5209 = vmatpush1.bf16.msra.mxu0 0
    %5210 = vmatprep.subr.bf16.mxu0 0
    %5211 = vmatpush1.bf16.msra.mxu0 0
    %5212 = vmatprep.subr.bf16.mxu0 0
    %5213 = vmatpush1.bf16.msra.mxu0 0
    %5214 = vmatprep.subr.bf16.mxu0 0
    %5215 = vmatpush1.bf16.msra.mxu0 0
    %5216 = vmatprep.mubr.bf16.mxu0 0
    %5217 = vmatmul.mubr.bf16.gmra.mrb[0].mxu0 %v5173
    %v5218 = vpop.f32.mrb[0].mxu0
    %v5219 = vadd.f32 0.0, %v5218
    %v5220 = vpop.f32.mrb[0].mxu0
    %v5221 = vpop.f32.mrb[0].mxu0
    %v5222 = vadd.f32 0.0, %v5221
    %v5223 = vpop.f32.mrb[0].mxu0
    %5224 = vmatprep.mubr.bf16.mxu0 0
    %5225 = vmatmul.mubr.bf16.gmra.mrb[0].mxu0 %v5176
    %v5226 = vpop.f32.mrb[0].mxu0
    %v5227 = vadd.f32 0.0, %v5226
    %v5228 = vpop.f32.mrb[0].mxu0
    %v5229 = vpop.f32.mrb[0].mxu0
    %v5230 = vadd.f32 0.0, %v5229
    %v5231 = vpop.f32.mrb[0].mxu0
    %5232 = vmatprep.mubr.bf16.mxu0 0
    %5233 = vmatmul.mubr.bf16.gmra.mrb[0].mxu0 %v5179
    %v5234 = vpop.f32.mrb[0].mxu0
    %v5235 = vadd.f32 0.0, %v5234
    %v5236 = vpop.f32.mrb[0].mxu0
    %v5237 = vpop.f32.mrb[0].mxu0
    %v5238 = vadd.f32 0.0, %v5237
    %v5239 = vpop.f32.mrb[0].mxu0
    %5240 = vmatprep.mubr.bf16.mxu0 0
    %5241 = vmatmul.mubr.bf16.gmra.mrb[0].mxu0 %v5182
    %v5242 = vpop.f32.mrb[0].mxu0
    %v5243 = vadd.f32 0.0, %v5242
    %v5244 = vpop.f32.mrb[0].mxu0
    %v5245 = vpop.f32.mrb[0].mxu0
    %v5246 = vadd.f32 0.0, %v5245
    %v5247 = vpop.f32.mrb[0].mxu0
    %5248 = vdwg.mxu0
    %5253 = vrot.lane.b32.xlu0 %v1336, 96
    %v5254 = vpop.permute.xlu0 %5253
    %5255 = vrot.lane.b32.xlu0 %v1337, 96
    %v5256 = vpop.permute.xlu0 %5255
    %5257 = vrot.lane.b32.xlu0 %v1338, 96
    %v5258 = vpop.permute.xlu0 %5257
    %5259 = vrot.lane.b32.xlu0 %v1339, 96
    %v5260 = vpop.permute.xlu0 %5259
    %v5266 = vsel %vm2069, %v4950, 0
    %v5269 = vsel %vm2069, %v4951, 0
    %v5272 = vsel %vm2069, %v4952, 0
    %v5275 = vsel %vm2069, %v4953, 0
    %5277 = vmatprep.subr.bf16.mxu0 0
    %5278 = vmatpush1.bf16.msra.mxu0 %v5254
    %5279 = vmatprep.subr.bf16.mxu0 0
    %5280 = vmatpush1.bf16.msra.mxu0 %v5256
    %5281 = vmatprep.subr.bf16.mxu0 0
    %5282 = vmatpush1.bf16.msra.mxu0 %v5258
    %5283 = vmatprep.subr.bf16.mxu0 0
    %5284 = vmatpush1.bf16.msra.mxu0 %v5260
    %5285 = vmatprep.subr.bf16.mxu0 0
    %5286 = vmatpush1.bf16.msra.mxu0 0
    %5287 = vmatprep.subr.bf16.mxu0 0
    %5288 = vmatpush1.bf16.msra.mxu0 0
    %5289 = vmatprep.subr.bf16.mxu0 0
    %5290 = vmatpush1.bf16.msra.mxu0 0
    %5291 = vmatprep.subr.bf16.mxu0 0
    %5292 = vmatpush1.bf16.msra.mxu0 0
    %5293 = vmatprep.subr.bf16.mxu0 0
    %5294 = vmatpush1.bf16.msra.mxu0 0
    %5295 = vmatprep.subr.bf16.mxu0 0
    %5296 = vmatpush1.bf16.msra.mxu0 0
    %5297 = vmatprep.subr.bf16.mxu0 0
    %5298 = vmatpush1.bf16.msra.mxu0 0
    %5299 = vmatprep.subr.bf16.mxu0 0
    %5300 = vmatpush1.bf16.msra.mxu0 0
    %5301 = vmatprep.subr.bf16.mxu0 0
    %5302 = vmatpush1.bf16.msra.mxu0 0
    %5303 = vmatprep.subr.bf16.mxu0 0
    %5304 = vmatpush1.bf16.msra.mxu0 0
    %5305 = vmatprep.subr.bf16.mxu0 0
    %5306 = vmatpush1.bf16.msra.mxu0 0
    %5307 = vmatprep.subr.bf16.mxu0 0
    %5308 = vmatpush1.bf16.msra.mxu0 0
    %5309 = vmatprep.mubr.bf16.mxu0 0
    %5310 = vmatmul.mubr.bf16.gmra.mrb[0].mxu0 %v5266
    %v5311 = vpop.f32.mrb[0].mxu0
    %v5312 = vadd.f32 0.0, %v5311
    %v5313 = vpop.f32.mrb[0].mxu0
    %v5314 = vpop.f32.mrb[0].mxu0
    %v5315 = vadd.f32 0.0, %v5314
    %v5316 = vpop.f32.mrb[0].mxu0
    %5317 = vmatprep.mubr.bf16.mxu0 0
    %5318 = vmatmul.mubr.bf16.gmra.mrb[0].mxu0 %v5269
    %v5319 = vpop.f32.mrb[0].mxu0
    %v5320 = vadd.f32 0.0, %v5319
    %v5321 = vpop.f32.mrb[0].mxu0
    %v5322 = vpop.f32.mrb[0].mxu0
    %v5323 = vadd.f32 0.0, %v5322
    %v5324 = vpop.f32.mrb[0].mxu0
    %5325 = vmatprep.mubr.bf16.mxu0 0
    %5326 = vmatmul.mubr.bf16.gmra.mrb[0].mxu0 %v5272
    %v5327 = vpop.f32.mrb[0].mxu0
    %v5328 = vadd.f32 0.0, %v5327
    %v5329 = vpop.f32.mrb[0].mxu0
    %v5330 = vpop.f32.mrb[0].mxu0
    %v5331 = vadd.f32 0.0, %v5330
    %v5332 = vpop.f32.mrb[0].mxu0
    %5333 = vmatprep.mubr.bf16.mxu0 0
    %5334 = vmatmul.mubr.bf16.gmra.mrb[0].mxu0 %v5275
    %v5335 = vpop.f32.mrb[0].mxu0
    %v5336 = vadd.f32 0.0, %v5335
    %v5337 = vpop.f32.mrb[0].mxu0
    %v5338 = vpop.f32.mrb[0].mxu0
    %v5339 = vadd.f32 0.0, %v5338
    %v5340 = vpop.f32.mrb[0].mxu0
    %5341 = vdwg.mxu0
    %5346 = vrot.lane.b32.xlu0 %v1340, 96
    %v5347 = vpop.permute.xlu0 %5346
    %5348 = vrot.lane.b32.xlu0 %v1341, 96
    %v5349 = vpop.permute.xlu0 %5348
    %5350 = vrot.lane.b32.xlu0 %v1342, 96
    %v5351 = vpop.permute.xlu0 %5350
    %5352 = vrot.lane.b32.xlu0 %v1343, 96
    %v5353 = vpop.permute.xlu0 %5352
    %v5359 = vsel %vm2069, %v4954, 0
    %v5362 = vsel %vm2069, %v4955, 0
    %v5365 = vsel %vm2069, %v4956, 0
    %v5368 = vsel %vm2069, %v4957, 0
    %5370 = vmatprep.subr.bf16.mxu0 0
    %5371 = vmatpush1.bf16.msra.mxu0 %v5347
    %5372 = vmatprep.subr.bf16.mxu0 0
    %5373 = vmatpush1.bf16.msra.mxu0 %v5349
    %5374 = vmatprep.subr.bf16.mxu0 0
    %5375 = vmatpush1.bf16.msra.mxu0 %v5351
    %5376 = vmatprep.subr.bf16.mxu0 0
    %5377 = vmatpush1.bf16.msra.mxu0 %v5353
    %5378 = vmatprep.subr.bf16.mxu0 0
    %5379 = vmatpush1.bf16.msra.mxu0 0
    %5380 = vmatprep.subr.bf16.mxu0 0
    %5381 = vmatpush1.bf16.msra.mxu0 0
    %5382 = vmatprep.subr.bf16.mxu0 0
    %5383 = vmatpush1.bf16.msra.mxu0 0
    %5384 = vmatprep.subr.bf16.mxu0 0
    %5385 = vmatpush1.bf16.msra.mxu0 0
    %5386 = vmatprep.subr.bf16.mxu0 0
    %5387 = vmatpush1.bf16.msra.mxu0 0
    %5388 = vmatprep.subr.bf16.mxu0 0
    %5389 = vmatpush1.bf16.msra.mxu0 0
    %5390 = vmatprep.subr.bf16.mxu0 0
    %5391 = vmatpush1.bf16.msra.mxu0 0
    %5392 = vmatprep.subr.bf16.mxu0 0
    %5393 = vmatpush1.bf16.msra.mxu0 0
    %5394 = vmatprep.subr.bf16.mxu0 0
    %5395 = vmatpush1.bf16.msra.mxu0 0
    %5396 = vmatprep.subr.bf16.mxu0 0
    %5397 = vmatpush1.bf16.msra.mxu0 0
    %5398 = vmatprep.subr.bf16.mxu0 0
    %5399 = vmatpush1.bf16.msra.mxu0 0
    %5400 = vmatprep.subr.bf16.mxu0 0
    %5401 = vmatpush1.bf16.msra.mxu0 0
    %5402 = vmatprep.mubr.bf16.mxu0 0
    %5403 = vmatmul.mubr.bf16.gmra.mrb[0].mxu0 %v5359
    %v5404 = vpop.f32.mrb[0].mxu0
    %v5405 = vadd.f32 0.0, %v5404
    %v5406 = vpop.f32.mrb[0].mxu0
    %v5407 = vpop.f32.mrb[0].mxu0
    %v5408 = vadd.f32 0.0, %v5407
    %v5409 = vpop.f32.mrb[0].mxu0
    %5410 = vmatprep.mubr.bf16.mxu0 0
    %5411 = vmatmul.mubr.bf16.gmra.mrb[0].mxu0 %v5362
    %v5412 = vpop.f32.mrb[0].mxu0
    %v5413 = vadd.f32 0.0, %v5412
    %v5414 = vpop.f32.mrb[0].mxu0
    %v5415 = vpop.f32.mrb[0].mxu0
    %v5416 = vadd.f32 0.0, %v5415
    %v5417 = vpop.f32.mrb[0].mxu0
    %5418 = vmatprep.mubr.bf16.mxu0 0
    %5419 = vmatmul.mubr.bf16.gmra.mrb[0].mxu0 %v5365
    %v5420 = vpop.f32.mrb[0].mxu0
    %v5421 = vadd.f32 0.0, %v5420
    %v5422 = vpop.f32.mrb[0].mxu0
    %v5423 = vpop.f32.mrb[0].mxu0
    %v5424 = vadd.f32 0.0, %v5423
    %v5425 = vpop.f32.mrb[0].mxu0
    %5426 = vmatprep.mubr.bf16.mxu0 0
    %5427 = vmatmul.mubr.bf16.gmra.mrb[0].mxu0 %v5368
    %v5428 = vpop.f32.mrb[0].mxu0
    %v5429 = vadd.f32 0.0, %v5428
    %v5430 = vpop.f32.mrb[0].mxu0
    %v5431 = vpop.f32.mrb[0].mxu0
    %v5432 = vadd.f32 0.0, %v5431
    %v5433 = vpop.f32.mrb[0].mxu0
    %5434 = vdwg.mxu0
    %5439 = vrot.lane.b32.xlu0 %v1344, 96
    %v5440 = vpop.permute.xlu0 %5439
    %5441 = vrot.lane.b32.xlu0 %v1345, 96
    %v5442 = vpop.permute.xlu0 %5441
    %5443 = vrot.lane.b32.xlu0 %v1346, 96
    %v5444 = vpop.permute.xlu0 %5443
    %5445 = vrot.lane.b32.xlu0 %v1347, 96
    %v5446 = vpop.permute.xlu0 %5445
    %v5452 = vsel %vm2069, %v4958, 0
    %v5455 = vsel %vm2069, %v4959, 0
    %v5458 = vsel %vm2069, %v4960, 0
    %v5461 = vsel %vm2069, %v4961, 0
    %5463 = vmatprep.subr.bf16.mxu0 0
    %5464 = vmatpush1.bf16.msra.mxu0 %v5440
    %5465 = vmatprep.subr.bf16.mxu0 0
    %5466 = vmatpush1.bf16.msra.mxu0 %v5442
    %5467 = vmatprep.subr.bf16.mxu0 0
    %5468 = vmatpush1.bf16.msra.mxu0 %v5444
    %5469 = vmatprep.subr.bf16.mxu0 0
    %5470 = vmatpush1.bf16.msra.mxu0 %v5446
    %5471 = vmatprep.subr.bf16.mxu0 0
    %5472 = vmatpush1.bf16.msra.mxu0 0
    %5473 = vmatprep.subr.bf16.mxu0 0
    %5474 = vmatpush1.bf16.msra.mxu0 0
    %5475 = vmatprep.subr.bf16.mxu0 0
    %5476 = vmatpush1.bf16.msra.mxu0 0
    %5477 = vmatprep.subr.bf16.mxu0 0
    %5478 = vmatpush1.bf16.msra.mxu0 0
    %5479 = vmatprep.subr.bf16.mxu0 0
    %5480 = vmatpush1.bf16.msra.mxu0 0
    %5481 = vmatprep.subr.bf16.mxu0 0
    %5482 = vmatpush1.bf16.msra.mxu0 0
    %5483 = vmatprep.subr.bf16.mxu0 0
    %5484 = vmatpush1.bf16.msra.mxu0 0
    %5485 = vmatprep.subr.bf16.mxu0 0
    %5486 = vmatpush1.bf16.msra.mxu0 0
    %5487 = vmatprep.subr.bf16.mxu0 0
    %5488 = vmatpush1.bf16.msra.mxu0 0
    %5489 = vmatprep.subr.bf16.mxu0 0
    %5490 = vmatpush1.bf16.msra.mxu0 0
    %5491 = vmatprep.subr.bf16.mxu0 0
    %5492 = vmatpush1.bf16.msra.mxu0 0
    %5493 = vmatprep.subr.bf16.mxu0 0
    %5494 = vmatpush1.bf16.msra.mxu0 0
    %5495 = vmatprep.mubr.bf16.mxu0 0
    %5496 = vmatmul.mubr.bf16.gmra.mrb[0].mxu0 %v5452
    %v5497 = vpop.f32.mrb[0].mxu0
    %v5498 = vadd.f32 0.0, %v5497
    %v5499 = vpop.f32.mrb[0].mxu0
    %v5500 = vpop.f32.mrb[0].mxu0
    %v5501 = vadd.f32 0.0, %v5500
    %v5502 = vpop.f32.mrb[0].mxu0
    %5503 = vmatprep.mubr.bf16.mxu0 0
    %5504 = vmatmul.mubr.bf16.gmra.mrb[0].mxu0 %v5455
    %v5505 = vpop.f32.mrb[0].mxu0
    %v5506 = vadd.f32 0.0, %v5505
    %v5507 = vpop.f32.mrb[0].mxu0
    %v5508 = vpop.f32.mrb[0].mxu0
    %v5509 = vadd.f32 0.0, %v5508
    %v5510 = vpop.f32.mrb[0].mxu0
    %5511 = vmatprep.mubr.bf16.mxu0 0
    %5512 = vmatmul.mubr.bf16.gmra.mrb[0].mxu0 %v5458
    %v5513 = vpop.f32.mrb[0].mxu0
    %v5514 = vadd.f32 0.0, %v5513
    %v5515 = vpop.f32.mrb[0].mxu0
    %v5516 = vpop.f32.mrb[0].mxu0
    %v5517 = vadd.f32 0.0, %v5516
    %v5518 = vpop.f32.mrb[0].mxu0
    %5519 = vmatprep.mubr.bf16.mxu0 0
    %5520 = vmatmul.mubr.bf16.gmra.mrb[0].mxu0 %v5461
    %v5521 = vpop.f32.mrb[0].mxu0
    %v5522 = vadd.f32 0.0, %v5521
    %v5523 = vpop.f32.mrb[0].mxu0
    %v5524 = vpop.f32.mrb[0].mxu0
    %v5525 = vadd.f32 0.0, %v5524
    %v5526 = vpop.f32.mrb[0].mxu0
    %5527 = vdwg.mxu0
    %5532 = vrot.lane.b32.xlu0 %v1348, 96
    %v5533 = vpop.permute.xlu0 %5532
    %5534 = vrot.lane.b32.xlu0 %v1349, 96
    %v5535 = vpop.permute.xlu0 %5534
    %5536 = vrot.lane.b32.xlu0 %v1350, 96
    %v5537 = vpop.permute.xlu0 %5536
    %5538 = vrot.lane.b32.xlu0 %v1351, 96
    %v5539 = vpop.permute.xlu0 %5538
    %v5545 = vsel %vm2069, %v4962, 0
    %v5548 = vsel %vm2069, %v4963, 0
    %v5551 = vsel %vm2069, %v4964, 0
    %v5554 = vsel %vm2069, %v4965, 0
    %5556 = vmatprep.subr.bf16.mxu0 0
    %5557 = vmatpush1.bf16.msra.mxu0 %v5533
    %5558 = vmatprep.subr.bf16.mxu0 0
    %5559 = vmatpush1.bf16.msra.mxu0 %v5535
    %5560 = vmatprep.subr.bf16.mxu0 0
    %5561 = vmatpush1.bf16.msra.mxu0 %v5537
    %5562 = vmatprep.subr.bf16.mxu0 0
    %5563 = vmatpush1.bf16.msra.mxu0 %v5539
    %5564 = vmatprep.subr.bf16.mxu0 0
    %5565 = vmatpush1.bf16.msra.mxu0 0
    %5566 = vmatprep.subr.bf16.mxu0 0
    %5567 = vmatpush1.bf16.msra.mxu0 0
    %5568 = vmatprep.subr.bf16.mxu0 0
    %5569 = vmatpush1.bf16.msra.mxu0 0
    %5570 = vmatprep.subr.bf16.mxu0 0
    %5571 = vmatpush1.bf16.msra.mxu0 0
    %5572 = vmatprep.subr.bf16.mxu0 0
    %5573 = vmatpush1.bf16.msra.mxu0 0
    %5574 = vmatprep.subr.bf16.mxu0 0
    %5575 = vmatpush1.bf16.msra.mxu0 0
    %5576 = vmatprep.subr.bf16.mxu0 0
    %5577 = vmatpush1.bf16.msra.mxu0 0
    %5578 = vmatprep.subr.bf16.mxu0 0
    %5579 = vmatpush1.bf16.msra.mxu0 0
    %5580 = vmatprep.subr.bf16.mxu0 0
    %5581 = vmatpush1.bf16.msra.mxu0 0
    %5582 = vmatprep.subr.bf16.mxu0 0
    %5583 = vmatpush1.bf16.msra.mxu0 0
    %5584 = vmatprep.subr.bf16.mxu0 0
    %5585 = vmatpush1.bf16.msra.mxu0 0
    %5586 = vmatprep.subr.bf16.mxu0 0
    %5587 = vmatpush1.bf16.msra.mxu0 0
    %5588 = vmatprep.mubr.bf16.mxu0 0
    %5589 = vmatmul.mubr.bf16.gmra.mrb[0].mxu0 %v5545
    %v5590 = vpop.f32.mrb[0].mxu0
    %v5591 = vadd.f32 0.0, %v5590
    %v5592 = vpop.f32.mrb[0].mxu0
    %v5593 = vpop.f32.mrb[0].mxu0
    %v5594 = vadd.f32 0.0, %v5593
    %v5595 = vpop.f32.mrb[0].mxu0
    %5596 = vmatprep.mubr.bf16.mxu0 0
    %5597 = vmatmul.mubr.bf16.gmra.mrb[0].mxu0 %v5548
    %v5598 = vpop.f32.mrb[0].mxu0
    %v5599 = vadd.f32 0.0, %v5598
    %v5600 = vpop.f32.mrb[0].mxu0
    %v5601 = vpop.f32.mrb[0].mxu0
    %v5602 = vadd.f32 0.0, %v5601
    %v5603 = vpop.f32.mrb[0].mxu0
    %5604 = vmatprep.mubr.bf16.mxu0 0
    %5605 = vmatmul.mubr.bf16.gmra.mrb[0].mxu0 %v5551
    %v5606 = vpop.f32.mrb[0].mxu0
    %v5607 = vadd.f32 0.0, %v5606
    %v5608 = vpop.f32.mrb[0].mxu0
    %v5609 = vpop.f32.mrb[0].mxu0
    %v5610 = vadd.f32 0.0, %v5609
    %v5611 = vpop.f32.mrb[0].mxu0
    %5612 = vmatprep.mubr.bf16.mxu0 0
    %5613 = vmatmul.mubr.bf16.gmra.mrb[0].mxu0 %v5554
    %v5614 = vpop.f32.mrb[0].mxu0
    %v5615 = vadd.f32 0.0, %v5614
    %v5616 = vpop.f32.mrb[0].mxu0
    %v5617 = vpop.f32.mrb[0].mxu0
    %v5618 = vadd.f32 0.0, %v5617
    %v5619 = vpop.f32.mrb[0].mxu0
    %5620 = vdwg.mxu0
    %5625 = vrot.lane.b32.xlu0 %v1352, 96
    %v5626 = vpop.permute.xlu0 %5625
    %5627 = vrot.lane.b32.xlu0 %v1353, 96
    %v5628 = vpop.permute.xlu0 %5627
    %5629 = vrot.lane.b32.xlu0 %v1354, 96
    %v5630 = vpop.permute.xlu0 %5629
    %5631 = vrot.lane.b32.xlu0 %v1355, 96
    %v5632 = vpop.permute.xlu0 %5631
    %v5638 = vsel %vm2069, %v4966, 0
    %v5641 = vsel %vm2069, %v4967, 0
    %v5644 = vsel %vm2069, %v4968, 0
    %v5647 = vsel %vm2069, %v4969, 0
    %5649 = vmatprep.subr.bf16.mxu0 0
    %5650 = vmatpush1.bf16.msra.mxu0 %v5626
    %5651 = vmatprep.subr.bf16.mxu0 0
    %5652 = vmatpush1.bf16.msra.mxu0 %v5628
    %5653 = vmatprep.subr.bf16.mxu0 0
    %5654 = vmatpush1.bf16.msra.mxu0 %v5630
    %5655 = vmatprep.subr.bf16.mxu0 0
    %5656 = vmatpush1.bf16.msra.mxu0 %v5632
    %5657 = vmatprep.subr.bf16.mxu0 0
    %5658 = vmatpush1.bf16.msra.mxu0 0
    %5659 = vmatprep.subr.bf16.mxu0 0
    %5660 = vmatpush1.bf16.msra.mxu0 0
    %5661 = vmatprep.subr.bf16.mxu0 0
    %5662 = vmatpush1.bf16.msra.mxu0 0
    %5663 = vmatprep.subr.bf16.mxu0 0
    %5664 = vmatpush1.bf16.msra.mxu0 0
    %5665 = vmatprep.subr.bf16.mxu0 0
    %5666 = vmatpush1.bf16.msra.mxu0 0
    %5667 = vmatprep.subr.bf16.mxu0 0
    %5668 = vmatpush1.bf16.msra.mxu0 0
    %5669 = vmatprep.subr.bf16.mxu0 0
    %5670 = vmatpush1.bf16.msra.mxu0 0
    %5671 = vmatprep.subr.bf16.mxu0 0
    %5672 = vmatpush1.bf16.msra.mxu0 0
    %5673 = vmatprep.subr.bf16.mxu0 0
    %5674 = vmatpush1.bf16.msra.mxu0 0
    %5675 = vmatprep.subr.bf16.mxu0 0
    %5676 = vmatpush1.bf16.msra.mxu0 0
    %5677 = vmatprep.subr.bf16.mxu0 0
    %5678 = vmatpush1.bf16.msra.mxu0 0
    %5679 = vmatprep.subr.bf16.mxu0 0
    %5680 = vmatpush1.bf16.msra.mxu0 0
    %5681 = vmatprep.mubr.bf16.mxu0 0
    %5682 = vmatmul.mubr.bf16.gmra.mrb[0].mxu0 %v5638
    %v5683 = vpop.f32.mrb[0].mxu0
    %v5684 = vadd.f32 0.0, %v5683
    %v5685 = vpop.f32.mrb[0].mxu0
    %v5686 = vpop.f32.mrb[0].mxu0
    %v5687 = vadd.f32 0.0, %v5686
    %v5688 = vpop.f32.mrb[0].mxu0
    %5689 = vmatprep.mubr.bf16.mxu0 0
    %5690 = vmatmul.mubr.bf16.gmra.mrb[0].mxu0 %v5641
    %v5691 = vpop.f32.mrb[0].mxu0
    %v5692 = vadd.f32 0.0, %v5691
    %v5693 = vpop.f32.mrb[0].mxu0
    %v5694 = vpop.f32.mrb[0].mxu0
    %v5695 = vadd.f32 0.0, %v5694
    %v5696 = vpop.f32.mrb[0].mxu0
    %5697 = vmatprep.mubr.bf16.mxu0 0
    %5698 = vmatmul.mubr.bf16.gmra.mrb[0].mxu0 %v5644
    %v5699 = vpop.f32.mrb[0].mxu0
    %v5700 = vadd.f32 0.0, %v5699
    %v5701 = vpop.f32.mrb[0].mxu0
    %v5702 = vpop.f32.mrb[0].mxu0
    %v5703 = vadd.f32 0.0, %v5702
    %v5704 = vpop.f32.mrb[0].mxu0
    %5705 = vmatprep.mubr.bf16.mxu0 0
    %5706 = vmatmul.mubr.bf16.gmra.mrb[0].mxu0 %v5647
    %v5707 = vpop.f32.mrb[0].mxu0
    %v5708 = vadd.f32 0.0, %v5707
    %v5709 = vpop.f32.mrb[0].mxu0
    %v5710 = vpop.f32.mrb[0].mxu0
    %v5711 = vadd.f32 0.0, %v5710
    %v5712 = vpop.f32.mrb[0].mxu0
    %5713 = vdwg.mxu0
    %v5714 = vrcp.pop %v4748
    %v5715 = vrcp.pop %v4751
    %v5716 = vrcp.pop %v4754
    %v5717 = vrcp.pop %v4757
    %v5718 = vrcp.pop %v4760
    %v5719 = vrcp.pop %v4763
    %v5720 = vrcp.pop %v4766
    %v5721 = vrcp.pop %v4769
    %v5722 = vrcp.pop %v4772
    %v5723 = vrcp.pop %v4775
    %v5724 = vrcp.pop %v4778
    %v5725 = vrcp.pop %v4781
    %v5726 = vrcp.pop %v4784
    %v5727 = vrcp.pop %v4787
    %v5728 = vrcp.pop %v4790
    %v5729 = vrcp.pop %v4793
    %v5730 = vrcp.pop %v4796
    %v5731 = vrcp.pop %v4799
    %v5732 = vrcp.pop %v4802
    %v5733 = vrcp.pop %v4805
    %v5734 = vrcp.pop %v4808
    %v5735 = vrcp.pop %v4811
    %v5736 = vrcp.pop %v4814
    %v5737 = vrcp.pop %v4817
    %v5738 = vrcp.pop %v4820
    %v5739 = vrcp.pop %v4823
    %v5740 = vrcp.pop %v4826
    %v5741 = vrcp.pop %v4829
    %v5742 = vrcp.pop %v4832
    %v5743 = vrcp.pop %v4835
    %v5744 = vrcp.pop %v4838
    %v5745 = vrcp.pop %v4841
    %v5746 = vrcp.pop %v4844
    %v5747 = vrcp.pop %v4847
    %v5748 = vrcp.pop %v4850
    %v5749 = vrcp.pop %v4853
    %v5750 = vrcp.pop %v4856
    %v5751 = vrcp.pop %v4859
    %v5752 = vrcp.pop %v4862
    %v5753 = vrcp.pop %v4865
    %v5754 = vrcp.pop %v4868
    %v5755 = vrcp.pop %v4871
    %v5756 = vrcp.pop %v4874
    %v5757 = vrcp.pop %v4877
    %v5758 = vrcp.pop %v4880
    %v5759 = vrcp.pop %v4883
    %v5760 = vrcp.pop %v4886
    %v5761 = vrcp.pop %v4889
    %v5762 = vrcp.pop %v4892
    %v5763 = vrcp.pop %v4895
    %v5764 = vrcp.pop %v4898
    %v5765 = vrcp.pop %v4901
    %v5766 = vrcp.pop %v4904
    %v5767 = vrcp.pop %v4907
    %v5768 = vrcp.pop %v4910
    %v5769 = vrcp.pop %v4913
    %v5770 = vrcp.pop %v4916
    %v5771 = vrcp.pop %v4919
    %v5772 = vrcp.pop %v4922
    %v5773 = vrcp.pop %v4925
    %v5774 = vrcp.pop %v4928
    %v5775 = vrcp.pop %v4931
    %v5776 = vrcp.pop %v4934
    %v5777 = vrcp.pop %v4937
    %v5778 = vmul.f32 %v5033, %v5714
    %v5779 = vmul.f32 %v5036, %v5715
    %v5780 = vmul.f32 %v5041, %v5716
    %v5781 = vmul.f32 %v5044, %v5717
    %v5782 = vmul.f32 %v5049, %v5718
    %v5783 = vmul.f32 %v5052, %v5719
    %v5784 = vmul.f32 %v5057, %v5720
    %v5785 = vmul.f32 %v5060, %v5721
    %v5786 = vmul.f32 %v5126, %v5722
    %v5787 = vmul.f32 %v5129, %v5723
    %v5788 = vmul.f32 %v5134, %v5724
    %v5789 = vmul.f32 %v5137, %v5725
    %v5790 = vmul.f32 %v5142, %v5726
    %v5791 = vmul.f32 %v5145, %v5727
    %v5792 = vmul.f32 %v5150, %v5728
    %v5793 = vmul.f32 %v5153, %v5729
    %v5794 = vmul.f32 %v5219, %v5730
    %v5795 = vmul.f32 %v5222, %v5731
    %v5796 = vmul.f32 %v5227, %v5732
    %v5797 = vmul.f32 %v5230, %v5733
    %v5798 = vmul.f32 %v5235, %v5734
    %v5799 = vmul.f32 %v5238, %v5735
    %v5800 = vmul.f32 %v5243, %v5736
    %v5801 = vmul.f32 %v5246, %v5737
    %v5802 = vmul.f32 %v5312, %v5738
    %v5803 = vmul.f32 %v5315, %v5739
    %v5804 = vmul.f32 %v5320, %v5740
    %v5805 = vmul.f32 %v5323, %v5741
    %v5806 = vmul.f32 %v5328, %v5742
    %v5807 = vmul.f32 %v5331, %v5743
    %v5808 = vmul.f32 %v5336, %v5744
    %v5809 = vmul.f32 %v5339, %v5745
    %v5810 = vmul.f32 %v5405, %v5746
    %v5811 = vmul.f32 %v5408, %v5747
    %v5812 = vmul.f32 %v5413, %v5748
    %v5813 = vmul.f32 %v5416, %v5749
    %v5814 = vmul.f32 %v5421, %v5750
    %v5815 = vmul.f32 %v5424, %v5751
    %v5816 = vmul.f32 %v5429, %v5752
    %v5817 = vmul.f32 %v5432, %v5753
    %v5818 = vmul.f32 %v5498, %v5754
    %v5819 = vmul.f32 %v5501, %v5755
    %v5820 = vmul.f32 %v5506, %v5756
    %v5821 = vmul.f32 %v5509, %v5757
    %v5822 = vmul.f32 %v5514, %v5758
    %v5823 = vmul.f32 %v5517, %v5759
    %v5824 = vmul.f32 %v5522, %v5760
    %v5825 = vmul.f32 %v5525, %v5761
    %v5826 = vmul.f32 %v5591, %v5762
    %v5827 = vmul.f32 %v5594, %v5763
    %v5828 = vmul.f32 %v5599, %v5764
    %v5829 = vmul.f32 %v5602, %v5765
    %v5830 = vmul.f32 %v5607, %v5766
    %v5831 = vmul.f32 %v5610, %v5767
    %v5832 = vmul.f32 %v5615, %v5768
    %v5833 = vmul.f32 %v5618, %v5769
    %v5834 = vmul.f32 %v5684, %v5770
    %v5835 = vmul.f32 %v5687, %v5771
    %v5836 = vmul.f32 %v5692, %v5772
    %v5837 = vmul.f32 %v5695, %v5773
    %v5838 = vmul.f32 %v5700, %v5774
    %v5839 = vmul.f32 %v5703, %v5775
    %v5840 = vmul.f32 %v5708, %v5776
    %v5841 = vmul.f32 %v5711, %v5777
    %v5842 = vpack.c.bf16 %v5779, %v5778
    %v5843 = vpack.c.bf16 %v5781, %v5780
    %v5844 = vpack.c.bf16 %v5783, %v5782
    %v5845 = vpack.c.bf16 %v5785, %v5784
    %v5846 = vpack.c.bf16 %v5787, %v5786
    %v5847 = vpack.c.bf16 %v5789, %v5788
    %v5848 = vpack.c.bf16 %v5791, %v5790
    %v5849 = vpack.c.bf16 %v5793, %v5792
    %v5850 = vpack.c.bf16 %v5795, %v5794
    %v5851 = vpack.c.bf16 %v5797, %v5796
    %v5852 = vpack.c.bf16 %v5799, %v5798
    %v5853 = vpack.c.bf16 %v5801, %v5800
    %v5854 = vpack.c.bf16 %v5803, %v5802
    %v5855 = vpack.c.bf16 %v5805, %v5804
    %v5856 = vpack.c.bf16 %v5807, %v5806
    %v5857 = vpack.c.bf16 %v5809, %v5808
    %v5858 = vpack.c.bf16 %v5811, %v5810
    %v5859 = vpack.c.bf16 %v5813, %v5812
    %v5860 = vpack.c.bf16 %v5815, %v5814
    %v5861 = vpack.c.bf16 %v5817, %v5816
    %v5862 = vpack.c.bf16 %v5819, %v5818
    %v5863 = vpack.c.bf16 %v5821, %v5820
    %v5864 = vpack.c.bf16 %v5823, %v5822
    %v5865 = vpack.c.bf16 %v5825, %v5824
    %v5866 = vpack.c.bf16 %v5827, %v5826
    %v5867 = vpack.c.bf16 %v5829, %v5828
    %v5868 = vpack.c.bf16 %v5831, %v5830
    %v5869 = vpack.c.bf16 %v5833, %v5832
    %v5870 = vpack.c.bf16 %v5835, %v5834
    %v5871 = vpack.c.bf16 %v5837, %v5836
    %v5872 = vpack.c.bf16 %v5839, %v5838
    %v5873 = vpack.c.bf16 %v5841, %v5840
    %v5874 = vld [vmem:[#allocation10 + $0x10] sm:$0xf]
    %v5875 = vld [vmem:[#allocation10 + $0x14] sm:$0xf]
    %v5876 = vld [vmem:[#allocation10 + $0x18] sm:$0xf]
    %v5877 = vld [vmem:[#allocation10 + $0x1c] sm:$0xf]
    %v5882 = vunpack.c.l.b16 %v5874
    %v5883 = vunpack.c.l.b16 %v5875
    %v5884 = vunpack.c.l.b16 %v5876
    %v5885 = vunpack.c.l.b16 %v5877
    %v5886 = vpack.c.b16 %v5883, %v5882
    %v5887 = vpack.c.b16 %v5885, %v5884
    %v5891 = vsel %vm1356, %v5842, 0
    %v5894 = vsel %vm1356, %v5843, 0
    %v5897 = vsel %vm1356, %v5844, 0
    %v5900 = vsel %vm1356, %v5845, 0
    %v5903 = vsel %vm1356, %v5846, 0
    %v5906 = vsel %vm1356, %v5847, 0
    %v5909 = vsel %vm1356, %v5848, 0
    %v5912 = vsel %vm1356, %v5849, 0
    %v5915 = vsel %vm1356, %v5850, 0
    %v5918 = vsel %vm1356, %v5851, 0
    %v5921 = vsel %vm1356, %v5852, 0
    %v5924 = vsel %vm1356, %v5853, 0
    %v5927 = vsel %vm1356, %v5854, 0
    %v5930 = vsel %vm1356, %v5855, 0
    %v5933 = vsel %vm1356, %v5856, 0
    %v5936 = vsel %vm1356, %v5857, 0
    %v5939 = vsel %vm1356, %v5858, 0
    %v5942 = vsel %vm1356, %v5859, 0
    %v5945 = vsel %vm1356, %v5860, 0
    %v5948 = vsel %vm1356, %v5861, 0
    %v5951 = vsel %vm1356, %v5862, 0
    %v5954 = vsel %vm1356, %v5863, 0
    %v5957 = vsel %vm1356, %v5864, 0
    %v5960 = vsel %vm1356, %v5865, 0
    %v5963 = vsel %vm1356, %v5866, 0
    %v5966 = vsel %vm1356, %v5867, 0
    %v5969 = vsel %vm1356, %v5868, 0
    %v5972 = vsel %vm1356, %v5869, 0
    %v5975 = vsel %vm1356, %v5870, 0
    %v5978 = vsel %vm1356, %v5871, 0
    %v5981 = vsel %vm1356, %v5872, 0
    %v5984 = vsel %vm1356, %v5873, 0
    %5986 = vmatprep.subr.bf16.mxu0 0
    %5987 = vmatpush1.bf16.msra.mxu0 %v5886
    %5988 = vmatprep.subr.bf16.mxu0 0
    %5989 = vmatpush1.bf16.msra.mxu0 %v5887
    %5990 = vmatprep.subr.bf16.mxu0 0
    %5991 = vmatpush1.bf16.msra.mxu0 0
    %5992 = vmatprep.subr.bf16.mxu0 0
    %5993 = vmatpush1.bf16.msra.mxu0 0
    %5994 = vmatprep.subr.bf16.mxu0 0
    %5995 = vmatpush1.bf16.msra.mxu0 0
    %5996 = vmatprep.subr.bf16.mxu0 0
    %5997 = vmatpush1.bf16.msra.mxu0 0
    %5998 = vmatprep.subr.bf16.mxu0 0
    %5999 = vmatpush1.bf16.msra.mxu0 0
    %6000 = vmatprep.subr.bf16.mxu0 0
    %6001 = vmatpush1.bf16.msra.mxu0 0
    %6002 = vmatprep.subr.bf16.mxu0 0
    %6003 = vmatpush1.bf16.msra.mxu0 0
    %6004 = vmatprep.subr.bf16.mxu0 0
    %6005 = vmatpush1.bf16.msra.mxu0 0
    %6006 = vmatprep.subr.bf16.mxu0 0
    %6007 = vmatpush1.bf16.msra.mxu0 0
    %6008 = vmatprep.subr.bf16.mxu0 0
    %6009 = vmatpush1.bf16.msra.mxu0 0
    %6010 = vmatprep.subr.bf16.mxu0 0
    %6011 = vmatpush1.bf16.msra.mxu0 0
    %6012 = vmatprep.subr.bf16.mxu0 0
    %6013 = vmatpush1.bf16.msra.mxu0 0
    %6014 = vmatprep.subr.bf16.mxu0 0
    %6015 = vmatpush1.bf16.msra.mxu0 0
    %6016 = vmatprep.subr.bf16.mxu0 0
    %6017 = vmatpush1.bf16.msra.mxu0 0
    %6018 = vmatprep.mubr.bf16.mxu0 0
    %6019 = vmatmul.mubr.bf16.gmra.mrb[0].mxu0 %v5891
    %v6020 = vpop.f32.mrb[0].mxu0
    %v6021 = vadd.f32 0.0, %v6020
    %v6022 = vpop.f32.mrb[0].mxu0
    %v6023 = vpop.f32.mrb[0].mxu0
    %v6024 = vadd.f32 0.0, %v6023
    %v6025 = vpop.f32.mrb[0].mxu0
    %6026 = vmatprep.mubr.bf16.mxu0 0
    %6027 = vmatmul.mubr.bf16.gmra.mrb[0].mxu0 %v5894
    %v6028 = vpop.f32.mrb[0].mxu0
    %v6029 = vadd.f32 0.0, %v6028
    %v6030 = vpop.f32.mrb[0].mxu0
    %v6031 = vpop.f32.mrb[0].mxu0
    %v6032 = vadd.f32 0.0, %v6031
    %v6033 = vpop.f32.mrb[0].mxu0
    %6034 = vmatprep.mubr.bf16.mxu0 0
    %6035 = vmatmul.mubr.bf16.gmra.mrb[0].mxu0 %v5897
    %v6036 = vpop.f32.mrb[0].mxu0
    %v6037 = vadd.f32 0.0, %v6036
    %v6038 = vpop.f32.mrb[0].mxu0
    %v6039 = vpop.f32.mrb[0].mxu0
    %v6040 = vadd.f32 0.0, %v6039
    %v6041 = vpop.f32.mrb[0].mxu0
    %6042 = vmatprep.mubr.bf16.mxu0 0
    %6043 = vmatmul.mubr.bf16.gmra.mrb[0].mxu0 %v5900
    %v6044 = vpop.f32.mrb[0].mxu0
    %v6045 = vadd.f32 0.0, %v6044
    %v6046 = vpop.f32.mrb[0].mxu0
    %v6047 = vpop.f32.mrb[0].mxu0
    %v6048 = vadd.f32 0.0, %v6047
    %v6049 = vpop.f32.mrb[0].mxu0
    %6050 = vmatprep.mubr.bf16.mxu0 0
    %6051 = vmatmul.mubr.bf16.gmra.mrb[0].mxu0 %v5903
    %v6052 = vpop.f32.mrb[0].mxu0
    %v6053 = vadd.f32 0.0, %v6052
    %v6054 = vpop.f32.mrb[0].mxu0
    %v6055 = vpop.f32.mrb[0].mxu0
    %v6056 = vadd.f32 0.0, %v6055
    %v6057 = vpop.f32.mrb[0].mxu0
    %6058 = vmatprep.mubr.bf16.mxu0 0
    %6059 = vmatmul.mubr.bf16.gmra.mrb[0].mxu0 %v5906
    %v6060 = vpop.f32.mrb[0].mxu0
    %v6061 = vadd.f32 0.0, %v6060
    %v6062 = vpop.f32.mrb[0].mxu0
    %v6063 = vpop.f32.mrb[0].mxu0
    %v6064 = vadd.f32 0.0, %v6063
    %v6065 = vpop.f32.mrb[0].mxu0
    %6066 = vmatprep.mubr.bf16.mxu0 0
    %6067 = vmatmul.mubr.bf16.gmra.mrb[0].mxu0 %v5909
    %v6068 = vpop.f32.mrb[0].mxu0
    %v6069 = vadd.f32 0.0, %v6068
    %v6070 = vpop.f32.mrb[0].mxu0
    %v6071 = vpop.f32.mrb[0].mxu0
    %v6072 = vadd.f32 0.0, %v6071
    %v6073 = vpop.f32.mrb[0].mxu0
    %6074 = vmatprep.mubr.bf16.mxu0 0
    %6075 = vmatmul.mubr.bf16.gmra.mrb[0].mxu0 %v5912
    %v6076 = vpop.f32.mrb[0].mxu0
    %v6077 = vadd.f32 0.0, %v6076
    %v6078 = vpop.f32.mrb[0].mxu0
    %v6079 = vpop.f32.mrb[0].mxu0
    %v6080 = vadd.f32 0.0, %v6079
    %v6081 = vpop.f32.mrb[0].mxu0
    %6082 = vmatprep.mubr.bf16.mxu0 0
    %6083 = vmatmul.mubr.bf16.gmra.mrb[0].mxu0 %v5915
    %v6084 = vpop.f32.mrb[0].mxu0
    %v6085 = vadd.f32 0.0, %v6084
    %v6086 = vpop.f32.mrb[0].mxu0
    %v6087 = vpop.f32.mrb[0].mxu0
    %v6088 = vadd.f32 0.0, %v6087
    %v6089 = vpop.f32.mrb[0].mxu0
    %6090 = vmatprep.mubr.bf16.mxu0 0
    %6091 = vmatmul.mubr.bf16.gmra.mrb[0].mxu0 %v5918
    %v6092 = vpop.f32.mrb[0].mxu0
    %v6093 = vadd.f32 0.0, %v6092
    %v6094 = vpop.f32.mrb[0].mxu0
    %v6095 = vpop.f32.mrb[0].mxu0
    %v6096 = vadd.f32 0.0, %v6095
    %v6097 = vpop.f32.mrb[0].mxu0
    %6098 = vmatprep.mubr.bf16.mxu0 0
    %6099 = vmatmul.mubr.bf16.gmra.mrb[0].mxu0 %v5921
    %v6100 = vpop.f32.mrb[0].mxu0
    %v6101 = vadd.f32 0.0, %v6100
    %v6102 = vpop.f32.mrb[0].mxu0
    %v6103 = vpop.f32.mrb[0].mxu0
    %v6104 = vadd.f32 0.0, %v6103
    %v6105 = vpop.f32.mrb[0].mxu0
    %6106 = vmatprep.mubr.bf16.mxu0 0
    %6107 = vmatmul.mubr.bf16.gmra.mrb[0].mxu0 %v5924
    %v6108 = vpop.f32.mrb[0].mxu0
    %v6109 = vadd.f32 0.0, %v6108
    %v6110 = vpop.f32.mrb[0].mxu0
    %v6111 = vpop.f32.mrb[0].mxu0
    %v6112 = vadd.f32 0.0, %v6111
    %v6113 = vpop.f32.mrb[0].mxu0
    %6114 = vmatprep.mubr.bf16.mxu0 0
    %6115 = vmatmul.mubr.bf16.gmra.mrb[0].mxu0 %v5927
    %v6116 = vpop.f32.mrb[0].mxu0
    %v6117 = vadd.f32 0.0, %v6116
    %v6118 = vpop.f32.mrb[0].mxu0
    %v6119 = vpop.f32.mrb[0].mxu0
    %v6120 = vadd.f32 0.0, %v6119
    %v6121 = vpop.f32.mrb[0].mxu0
    %6122 = vmatprep.mubr.bf16.mxu0 0
    %6123 = vmatmul.mubr.bf16.gmra.mrb[0].mxu0 %v5930
    %v6124 = vpop.f32.mrb[0].mxu0
    %v6125 = vadd.f32 0.0, %v6124
    %v6126 = vpop.f32.mrb[0].mxu0
    %v6127 = vpop.f32.mrb[0].mxu0
    %v6128 = vadd.f32 0.0, %v6127
    %v6129 = vpop.f32.mrb[0].mxu0
    %6130 = vmatprep.mubr.bf16.mxu0 0
    %6131 = vmatmul.mubr.bf16.gmra.mrb[0].mxu0 %v5933
    %v6132 = vpop.f32.mrb[0].mxu0
    %v6133 = vadd.f32 0.0, %v6132
    %v6134 = vpop.f32.mrb[0].mxu0
    %v6135 = vpop.f32.mrb[0].mxu0
    %v6136 = vadd.f32 0.0, %v6135
    %v6137 = vpop.f32.mrb[0].mxu0
    %6138 = vmatprep.mubr.bf16.mxu0 0
    %6139 = vmatmul.mubr.bf16.gmra.mrb[0].mxu0 %v5936
    %v6140 = vpop.f32.mrb[0].mxu0
    %v6141 = vadd.f32 0.0, %v6140
    %v6142 = vpop.f32.mrb[0].mxu0
    %v6143 = vpop.f32.mrb[0].mxu0
    %v6144 = vadd.f32 0.0, %v6143
    %v6145 = vpop.f32.mrb[0].mxu0
    %6146 = vmatprep.mubr.bf16.mxu0 0
    %6147 = vmatmul.mubr.bf16.gmra.mrb[0].mxu0 %v5939
    %v6148 = vpop.f32.mrb[0].mxu0
    %v6149 = vadd.f32 0.0, %v6148
    %v6150 = vpop.f32.mrb[0].mxu0
    %v6151 = vpop.f32.mrb[0].mxu0
    %v6152 = vadd.f32 0.0, %v6151
    %v6153 = vpop.f32.mrb[0].mxu0
    %6154 = vmatprep.mubr.bf16.mxu0 0
    %6155 = vmatmul.mubr.bf16.gmra.mrb[0].mxu0 %v5942
    %v6156 = vpop.f32.mrb[0].mxu0
    %v6157 = vadd.f32 0.0, %v6156
    %v6158 = vpop.f32.mrb[0].mxu0
    %v6159 = vpop.f32.mrb[0].mxu0
    %v6160 = vadd.f32 0.0, %v6159
    %v6161 = vpop.f32.mrb[0].mxu0
    %6162 = vmatprep.mubr.bf16.mxu0 0
    %6163 = vmatmul.mubr.bf16.gmra.mrb[0].mxu0 %v5945
    %v6164 = vpop.f32.mrb[0].mxu0
    %v6165 = vadd.f32 0.0, %v6164
    %v6166 = vpop.f32.mrb[0].mxu0
    %v6167 = vpop.f32.mrb[0].mxu0
    %v6168 = vadd.f32 0.0, %v6167
    %v6169 = vpop.f32.mrb[0].mxu0
    %6170 = vmatprep.mubr.bf16.mxu0 0
    %6171 = vmatmul.mubr.bf16.gmra.mrb[0].mxu0 %v5948
    %v6172 = vpop.f32.mrb[0].mxu0
    %v6173 = vadd.f32 0.0, %v6172
    %v6174 = vpop.f32.mrb[0].mxu0
    %v6175 = vpop.f32.mrb[0].mxu0
    %v6176 = vadd.f32 0.0, %v6175
    %v6177 = vpop.f32.mrb[0].mxu0
    %6178 = vmatprep.mubr.bf16.mxu0 0
    %6179 = vmatmul.mubr.bf16.gmra.mrb[0].mxu0 %v5951
    %v6180 = vpop.f32.mrb[0].mxu0
    %v6181 = vadd.f32 0.0, %v6180
    %v6182 = vpop.f32.mrb[0].mxu0
    %v6183 = vpop.f32.mrb[0].mxu0
    %v6184 = vadd.f32 0.0, %v6183
    %v6185 = vpop.f32.mrb[0].mxu0
    %6186 = vmatprep.mubr.bf16.mxu0 0
    %6187 = vmatmul.mubr.bf16.gmra.mrb[0].mxu0 %v5954
    %v6188 = vpop.f32.mrb[0].mxu0
    %v6189 = vadd.f32 0.0, %v6188
    %v6190 = vpop.f32.mrb[0].mxu0
    %v6191 = vpop.f32.mrb[0].mxu0
    %v6192 = vadd.f32 0.0, %v6191
    %v6193 = vpop.f32.mrb[0].mxu0
    %6194 = vmatprep.mubr.bf16.mxu0 0
    %6195 = vmatmul.mubr.bf16.gmra.mrb[0].mxu0 %v5957
    %v6196 = vpop.f32.mrb[0].mxu0
    %v6197 = vadd.f32 0.0, %v6196
    %v6198 = vpop.f32.mrb[0].mxu0
    %v6199 = vpop.f32.mrb[0].mxu0
    %v6200 = vadd.f32 0.0, %v6199
    %v6201 = vpop.f32.mrb[0].mxu0
    %6202 = vmatprep.mubr.bf16.mxu0 0
    %6203 = vmatmul.mubr.bf16.gmra.mrb[0].mxu0 %v5960
    %v6204 = vpop.f32.mrb[0].mxu0
    %v6205 = vadd.f32 0.0, %v6204
    %v6206 = vpop.f32.mrb[0].mxu0
    %v6207 = vpop.f32.mrb[0].mxu0
    %v6208 = vadd.f32 0.0, %v6207
    %v6209 = vpop.f32.mrb[0].mxu0
    %6210 = vmatprep.mubr.bf16.mxu0 0
    %6211 = vmatmul.mubr.bf16.gmra.mrb[0].mxu0 %v5963
    %v6212 = vpop.f32.mrb[0].mxu0
    %v6213 = vadd.f32 0.0, %v6212
    %v6214 = vpop.f32.mrb[0].mxu0
    %v6215 = vpop.f32.mrb[0].mxu0
    %v6216 = vadd.f32 0.0, %v6215
    %v6217 = vpop.f32.mrb[0].mxu0
    %6218 = vmatprep.mubr.bf16.mxu0 0
    %6219 = vmatmul.mubr.bf16.gmra.mrb[0].mxu0 %v5966
    %v6220 = vpop.f32.mrb[0].mxu0
    %v6221 = vadd.f32 0.0, %v6220
    %v6222 = vpop.f32.mrb[0].mxu0
    %v6223 = vpop.f32.mrb[0].mxu0
    %v6224 = vadd.f32 0.0, %v6223
    %v6225 = vpop.f32.mrb[0].mxu0
    %6226 = vmatprep.mubr.bf16.mxu0 0
    %6227 = vmatmul.mubr.bf16.gmra.mrb[0].mxu0 %v5969
    %v6228 = vpop.f32.mrb[0].mxu0
    %v6229 = vadd.f32 0.0, %v6228
    %v6230 = vpop.f32.mrb[0].mxu0
    %v6231 = vpop.f32.mrb[0].mxu0
    %v6232 = vadd.f32 0.0, %v6231
    %v6233 = vpop.f32.mrb[0].mxu0
    %6234 = vmatprep.mubr.bf16.mxu0 0
    %6235 = vmatmul.mubr.bf16.gmra.mrb[0].mxu0 %v5972
    %v6236 = vpop.f32.mrb[0].mxu0
    %v6237 = vadd.f32 0.0, %v6236
    %v6238 = vpop.f32.mrb[0].mxu0
    %v6239 = vpop.f32.mrb[0].mxu0
    %v6240 = vadd.f32 0.0, %v6239
    %v6241 = vpop.f32.mrb[0].mxu0
    %6242 = vmatprep.mubr.bf16.mxu0 0
    %6243 = vmatmul.mubr.bf16.gmra.mrb[0].mxu0 %v5975
    %v6244 = vpop.f32.mrb[0].mxu0
    %v6245 = vadd.f32 0.0, %v6244
    %v6246 = vpop.f32.mrb[0].mxu0
    %v6247 = vpop.f32.mrb[0].mxu0
    %v6248 = vadd.f32 0.0, %v6247
    %v6249 = vpop.f32.mrb[0].mxu0
    %6250 = vmatprep.mubr.bf16.mxu0 0
    %6251 = vmatmul.mubr.bf16.gmra.mrb[0].mxu0 %v5978
    %v6252 = vpop.f32.mrb[0].mxu0
    %v6253 = vadd.f32 0.0, %v6252
    %v6254 = vpop.f32.mrb[0].mxu0
    %v6255 = vpop.f32.mrb[0].mxu0
    %v6256 = vadd.f32 0.0, %v6255
    %v6257 = vpop.f32.mrb[0].mxu0
    %6258 = vmatprep.mubr.bf16.mxu0 0
    %6259 = vmatmul.mubr.bf16.gmra.mrb[0].mxu0 %v5981
    %v6260 = vpop.f32.mrb[0].mxu0
    %v6261 = vadd.f32 0.0, %v6260
    %v6262 = vpop.f32.mrb[0].mxu0
    %v6263 = vpop.f32.mrb[0].mxu0
    %v6264 = vadd.f32 0.0, %v6263
    %v6265 = vpop.f32.mrb[0].mxu0
    %6266 = vmatprep.mubr.bf16.mxu0 0
    %6267 = vmatmul.mubr.bf16.gmra.mrb[0].mxu0 %v5984
    %v6268 = vpop.f32.mrb[0].mxu0
    %v6269 = vadd.f32 0.0, %v6268
    %v6270 = vpop.f32.mrb[0].mxu0
    %v6271 = vpop.f32.mrb[0].mxu0
    %v6272 = vadd.f32 0.0, %v6271
    %v6273 = vpop.f32.mrb[0].mxu0
    %6274 = vdwg.mxu0
    %v6279 = vunpack.c.l.b16 %v3454
    %v6280 = vunpack.c.l.b16 %v3455
    %v6281 = vunpack.c.l.b16 %v3456
    %v6282 = vunpack.c.l.b16 %v3457
    %v6283 = vpack.c.b16 %v6280, %v6279
    %v6284 = vpack.c.b16 %v6282, %v6281
    %v6288 = vsel %vm1356, %v3422, 0
    %v6291 = vsel %vm1356, %v3423, 0
    %v6294 = vsel %vm1356, %v3424, 0
    %v6297 = vsel %vm1356, %v3425, 0
    %v6300 = vsel %vm1356, %v3426, 0
    %v6303 = vsel %vm1356, %v3427, 0
    %v6306 = vsel %vm1356, %v3428, 0
    %v6309 = vsel %vm1356, %v3429, 0
    %v6312 = vsel %vm1356, %v3430, 0
    %v6315 = vsel %vm1356, %v3431, 0
    %v6318 = vsel %vm1356, %v3432, 0
    %v6321 = vsel %vm1356, %v3433, 0
    %v6324 = vsel %vm1356, %v3434, 0
    %v6327 = vsel %vm1356, %v3435, 0
    %v6330 = vsel %vm1356, %v3436, 0
    %v6333 = vsel %vm1356, %v3437, 0
    %v6336 = vsel %vm1356, %v3438, 0
    %v6339 = vsel %vm1356, %v3439, 0
    %v6342 = vsel %vm1356, %v3440, 0
    %v6345 = vsel %vm1356, %v3441, 0
    %v6348 = vsel %vm1356, %v3442, 0
    %v6351 = vsel %vm1356, %v3443, 0
    %v6354 = vsel %vm1356, %v3444, 0
    %v6357 = vsel %vm1356, %v3445, 0
    %v6360 = vsel %vm1356, %v3446, 0
    %v6363 = vsel %vm1356, %v3447, 0
    %v6366 = vsel %vm1356, %v3448, 0
    %v6369 = vsel %vm1356, %v3449, 0
    %v6372 = vsel %vm1356, %v3450, 0
    %v6375 = vsel %vm1356, %v3451, 0
    %v6378 = vsel %vm1356, %v3452, 0
    %v6381 = vsel %vm1356, %v3453, 0
    %6383 = vmatprep.subr.bf16.mxu0 0
    %6384 = vmatpush1.bf16.msra.mxu0 %v6283
    %6385 = vmatprep.subr.bf16.mxu0 0
    %6386 = vmatpush1.bf16.msra.mxu0 %v6284
    %6387 = vmatprep.subr.bf16.mxu0 0
    %6388 = vmatpush1.bf16.msra.mxu0 0
    %6389 = vmatprep.subr.bf16.mxu0 0
    %6390 = vmatpush1.bf16.msra.mxu0 0
    %6391 = vmatprep.subr.bf16.mxu0 0
    %6392 = vmatpush1.bf16.msra.mxu0 0
    %6393 = vmatprep.subr.bf16.mxu0 0
    %6394 = vmatpush1.bf16.msra.mxu0 0
    %6395 = vmatprep.subr.bf16.mxu0 0
    %6396 = vmatpush1.bf16.msra.mxu0 0
    %6397 = vmatprep.subr.bf16.mxu0 0
    %6398 = vmatpush1.bf16.msra.mxu0 0
    %6399 = vmatprep.subr.bf16.mxu0 0
    %6400 = vmatpush1.bf16.msra.mxu0 0
    %6401 = vmatprep.subr.bf16.mxu0 0
    %6402 = vmatpush1.bf16.msra.mxu0 0
    %6403 = vmatprep.subr.bf16.mxu0 0
    %6404 = vmatpush1.bf16.msra.mxu0 0
    %6405 = vmatprep.subr.bf16.mxu0 0
    %6406 = vmatpush1.bf16.msra.mxu0 0
    %6407 = vmatprep.subr.bf16.mxu0 0
    %6408 = vmatpush1.bf16.msra.mxu0 0
    %6409 = vmatprep.subr.bf16.mxu0 0
    %6410 = vmatpush1.bf16.msra.mxu0 0
    %6411 = vmatprep.subr.bf16.mxu0 0
    %6412 = vmatpush1.bf16.msra.mxu0 0
    %6413 = vmatprep.subr.bf16.mxu0 0
    %6414 = vmatpush1.bf16.msra.mxu0 0
    %6415 = vmatprep.mubr.bf16.mxu0 0
    %6416 = vmatmul.mubr.bf16.gmra.mrb[0].mxu0 %v6288
    %v6417 = vpop.f32.mrb[0].mxu0
    %v6418 = vadd.f32 %v6021, %v6417
    %v6419 = vpop.f32.mrb[0].mxu0
    %v6420 = vpop.f32.mrb[0].mxu0
    %v6421 = vadd.f32 %v6024, %v6420
    %v6422 = vpop.f32.mrb[0].mxu0
    %6423 = vmatprep.mubr.bf16.mxu0 0
    %6424 = vmatmul.mubr.bf16.gmra.mrb[0].mxu0 %v6291
    %v6425 = vpop.f32.mrb[0].mxu0
    %v6426 = vadd.f32 %v6029, %v6425
    %v6427 = vpop.f32.mrb[0].mxu0
    %v6428 = vpop.f32.mrb[0].mxu0
    %v6429 = vadd.f32 %v6032, %v6428
    %v6430 = vpop.f32.mrb[0].mxu0
    %6431 = vmatprep.mubr.bf16.mxu0 0
    %6432 = vmatmul.mubr.bf16.gmra.mrb[0].mxu0 %v6294
    %v6433 = vpop.f32.mrb[0].mxu0
    %v6434 = vadd.f32 %v6037, %v6433
    %v6435 = vpop.f32.mrb[0].mxu0
    %v6436 = vpop.f32.mrb[0].mxu0
    %v6437 = vadd.f32 %v6040, %v6436
    %v6438 = vpop.f32.mrb[0].mxu0
    %6439 = vmatprep.mubr.bf16.mxu0 0
    %6440 = vmatmul.mubr.bf16.gmra.mrb[0].mxu0 %v6297
    %v6441 = vpop.f32.mrb[0].mxu0
    %v6442 = vadd.f32 %v6045, %v6441
    %v6443 = vpop.f32.mrb[0].mxu0
    %v6444 = vpop.f32.mrb[0].mxu0
    %v6445 = vadd.f32 %v6048, %v6444
    %v6446 = vpop.f32.mrb[0].mxu0
    %6447 = vmatprep.mubr.bf16.mxu0 0
    %6448 = vmatmul.mubr.bf16.gmra.mrb[0].mxu0 %v6300
    %v6449 = vpop.f32.mrb[0].mxu0
    %v6450 = vadd.f32 %v6053, %v6449
    %v6451 = vpop.f32.mrb[0].mxu0
    %v6452 = vpop.f32.mrb[0].mxu0
    %v6453 = vadd.f32 %v6056, %v6452
    %v6454 = vpop.f32.mrb[0].mxu0
    %6455 = vmatprep.mubr.bf16.mxu0 0
    %6456 = vmatmul.mubr.bf16.gmra.mrb[0].mxu0 %v6303
    %v6457 = vpop.f32.mrb[0].mxu0
    %v6458 = vadd.f32 %v6061, %v6457
    %v6459 = vpop.f32.mrb[0].mxu0
    %v6460 = vpop.f32.mrb[0].mxu0
    %v6461 = vadd.f32 %v6064, %v6460
    %v6462 = vpop.f32.mrb[0].mxu0
    %6463 = vmatprep.mubr.bf16.mxu0 0
    %6464 = vmatmul.mubr.bf16.gmra.mrb[0].mxu0 %v6306
    %v6465 = vpop.f32.mrb[0].mxu0
    %v6466 = vadd.f32 %v6069, %v6465
    %v6467 = vpop.f32.mrb[0].mxu0
    %v6468 = vpop.f32.mrb[0].mxu0
    %v6469 = vadd.f32 %v6072, %v6468
    %v6470 = vpop.f32.mrb[0].mxu0
    %6471 = vmatprep.mubr.bf16.mxu0 0
    %6472 = vmatmul.mubr.bf16.gmra.mrb[0].mxu0 %v6309
    %v6473 = vpop.f32.mrb[0].mxu0
    %v6474 = vadd.f32 %v6077, %v6473
    %v6475 = vpop.f32.mrb[0].mxu0
    %v6476 = vpop.f32.mrb[0].mxu0
    %v6477 = vadd.f32 %v6080, %v6476
    %v6478 = vpop.f32.mrb[0].mxu0
    %6479 = vmatprep.mubr.bf16.mxu0 0
    %6480 = vmatmul.mubr.bf16.gmra.mrb[0].mxu0 %v6312
    %v6481 = vpop.f32.mrb[0].mxu0
    %v6482 = vadd.f32 %v6085, %v6481
    %v6483 = vpop.f32.mrb[0].mxu0
    %v6484 = vpop.f32.mrb[0].mxu0
    %v6485 = vadd.f32 %v6088, %v6484
    %v6486 = vpop.f32.mrb[0].mxu0
    %6487 = vmatprep.mubr.bf16.mxu0 0
    %6488 = vmatmul.mubr.bf16.gmra.mrb[0].mxu0 %v6315
    %v6489 = vpop.f32.mrb[0].mxu0
    %v6490 = vadd.f32 %v6093, %v6489
    %v6491 = vpop.f32.mrb[0].mxu0
    %v6492 = vpop.f32.mrb[0].mxu0
    %v6493 = vadd.f32 %v6096, %v6492
    %v6494 = vpop.f32.mrb[0].mxu0
    %6495 = vmatprep.mubr.bf16.mxu0 0
    %6496 = vmatmul.mubr.bf16.gmra.mrb[0].mxu0 %v6318
    %v6497 = vpop.f32.mrb[0].mxu0
    %v6498 = vadd.f32 %v6101, %v6497
    %v6499 = vpop.f32.mrb[0].mxu0
    %v6500 = vpop.f32.mrb[0].mxu0
    %v6501 = vadd.f32 %v6104, %v6500
    %v6502 = vpop.f32.mrb[0].mxu0
    %6503 = vmatprep.mubr.bf16.mxu0 0
    %6504 = vmatmul.mubr.bf16.gmra.mrb[0].mxu0 %v6321
    %v6505 = vpop.f32.mrb[0].mxu0
    %v6506 = vadd.f32 %v6109, %v6505
    %v6507 = vpop.f32.mrb[0].mxu0
    %v6508 = vpop.f32.mrb[0].mxu0
    %v6509 = vadd.f32 %v6112, %v6508
    %v6510 = vpop.f32.mrb[0].mxu0
    %6511 = vmatprep.mubr.bf16.mxu0 0
    %6512 = vmatmul.mubr.bf16.gmra.mrb[0].mxu0 %v6324
    %v6513 = vpop.f32.mrb[0].mxu0
    %v6514 = vadd.f32 %v6117, %v6513
    %v6515 = vpop.f32.mrb[0].mxu0
    %v6516 = vpop.f32.mrb[0].mxu0
    %v6517 = vadd.f32 %v6120, %v6516
    %v6518 = vpop.f32.mrb[0].mxu0
    %6519 = vmatprep.mubr.bf16.mxu0 0
    %6520 = vmatmul.mubr.bf16.gmra.mrb[0].mxu0 %v6327
    %v6521 = vpop.f32.mrb[0].mxu0
    %v6522 = vadd.f32 %v6125, %v6521
    %v6523 = vpop.f32.mrb[0].mxu0
    %v6524 = vpop.f32.mrb[0].mxu0
    %v6525 = vadd.f32 %v6128, %v6524
    %v6526 = vpop.f32.mrb[0].mxu0
    %6527 = vmatprep.mubr.bf16.mxu0 0
    %6528 = vmatmul.mubr.bf16.gmra.mrb[0].mxu0 %v6330
    %v6529 = vpop.f32.mrb[0].mxu0
    %v6530 = vadd.f32 %v6133, %v6529
    %v6531 = vpop.f32.mrb[0].mxu0
    %v6532 = vpop.f32.mrb[0].mxu0
    %v6533 = vadd.f32 %v6136, %v6532
    %v6534 = vpop.f32.mrb[0].mxu0
    %6535 = vmatprep.mubr.bf16.mxu0 0
    %6536 = vmatmul.mubr.bf16.gmra.mrb[0].mxu0 %v6333
    %v6537 = vpop.f32.mrb[0].mxu0
    %v6538 = vadd.f32 %v6141, %v6537
    %v6539 = vpop.f32.mrb[0].mxu0
    %v6540 = vpop.f32.mrb[0].mxu0
    %v6541 = vadd.f32 %v6144, %v6540
    %v6542 = vpop.f32.mrb[0].mxu0
    %6543 = vmatprep.mubr.bf16.mxu0 0
    %6544 = vmatmul.mubr.bf16.gmra.mrb[0].mxu0 %v6336
    %v6545 = vpop.f32.mrb[0].mxu0
    %v6546 = vadd.f32 %v6149, %v6545
    %v6547 = vpop.f32.mrb[0].mxu0
    %v6548 = vpop.f32.mrb[0].mxu0
    %v6549 = vadd.f32 %v6152, %v6548
    %v6550 = vpop.f32.mrb[0].mxu0
    %6551 = vmatprep.mubr.bf16.mxu0 0
    %6552 = vmatmul.mubr.bf16.gmra.mrb[0].mxu0 %v6339
    %v6553 = vpop.f32.mrb[0].mxu0
    %v6554 = vadd.f32 %v6157, %v6553
    %v6555 = vpop.f32.mrb[0].mxu0
    %v6556 = vpop.f32.mrb[0].mxu0
    %v6557 = vadd.f32 %v6160, %v6556
    %v6558 = vpop.f32.mrb[0].mxu0
    %6559 = vmatprep.mubr.bf16.mxu0 0
    %6560 = vmatmul.mubr.bf16.gmra.mrb[0].mxu0 %v6342
    %v6561 = vpop.f32.mrb[0].mxu0
    %v6562 = vadd.f32 %v6165, %v6561
    %v6563 = vpop.f32.mrb[0].mxu0
    %v6564 = vpop.f32.mrb[0].mxu0
    %v6565 = vadd.f32 %v6168, %v6564
    %v6566 = vpop.f32.mrb[0].mxu0
    %6567 = vmatprep.mubr.bf16.mxu0 0
    %6568 = vmatmul.mubr.bf16.gmra.mrb[0].mxu0 %v6345
    %v6569 = vpop.f32.mrb[0].mxu0
    %v6570 = vadd.f32 %v6173, %v6569
    %v6571 = vpop.f32.mrb[0].mxu0
    %v6572 = vpop.f32.mrb[0].mxu0
    %v6573 = vadd.f32 %v6176, %v6572
    %v6574 = vpop.f32.mrb[0].mxu0
    %6575 = vmatprep.mubr.bf16.mxu0 0
    %6576 = vmatmul.mubr.bf16.gmra.mrb[0].mxu0 %v6348
    %v6577 = vpop.f32.mrb[0].mxu0
    %v6578 = vadd.f32 %v6181, %v6577
    %v6579 = vpop.f32.mrb[0].mxu0
    %v6580 = vpop.f32.mrb[0].mxu0
    %v6581 = vadd.f32 %v6184, %v6580
    %v6582 = vpop.f32.mrb[0].mxu0
    %6583 = vmatprep.mubr.bf16.mxu0 0
    %6584 = vmatmul.mubr.bf16.gmra.mrb[0].mxu0 %v6351
    %v6585 = vpop.f32.mrb[0].mxu0
    %v6586 = vadd.f32 %v6189, %v6585
    %v6587 = vpop.f32.mrb[0].mxu0
    %v6588 = vpop.f32.mrb[0].mxu0
    %v6589 = vadd.f32 %v6192, %v6588
    %v6590 = vpop.f32.mrb[0].mxu0
    %6591 = vmatprep.mubr.bf16.mxu0 0
    %6592 = vmatmul.mubr.bf16.gmra.mrb[0].mxu0 %v6354
    %v6593 = vpop.f32.mrb[0].mxu0
    %v6594 = vadd.f32 %v6197, %v6593
    %v6595 = vpop.f32.mrb[0].mxu0
    %v6596 = vpop.f32.mrb[0].mxu0
    %v6597 = vadd.f32 %v6200, %v6596
    %v6598 = vpop.f32.mrb[0].mxu0
    %6599 = vmatprep.mubr.bf16.mxu0 0
    %6600 = vmatmul.mubr.bf16.gmra.mrb[0].mxu0 %v6357
    %v6601 = vpop.f32.mrb[0].mxu0
    %v6602 = vadd.f32 %v6205, %v6601
    %v6603 = vpop.f32.mrb[0].mxu0
    %v6604 = vpop.f32.mrb[0].mxu0
    %v6605 = vadd.f32 %v6208, %v6604
    %v6606 = vpop.f32.mrb[0].mxu0
    %6607 = vmatprep.mubr.bf16.mxu0 0
    %6608 = vmatmul.mubr.bf16.gmra.mrb[0].mxu0 %v6360
    %v6609 = vpop.f32.mrb[0].mxu0
    %v6610 = vadd.f32 %v6213, %v6609
    %v6611 = vpop.f32.mrb[0].mxu0
    %v6612 = vpop.f32.mrb[0].mxu0
    %v6613 = vadd.f32 %v6216, %v6612
    %v6614 = vpop.f32.mrb[0].mxu0
    %6615 = vmatprep.mubr.bf16.mxu0 0
    %6616 = vmatmul.mubr.bf16.gmra.mrb[0].mxu0 %v6363
    %v6617 = vpop.f32.mrb[0].mxu0
    %v6618 = vadd.f32 %v6221, %v6617
    %v6619 = vpop.f32.mrb[0].mxu0
    %v6620 = vpop.f32.mrb[0].mxu0
    %v6621 = vadd.f32 %v6224, %v6620
    %v6622 = vpop.f32.mrb[0].mxu0
    %6623 = vmatprep.mubr.bf16.mxu0 0
    %6624 = vmatmul.mubr.bf16.gmra.mrb[0].mxu0 %v6366
    %v6625 = vpop.f32.mrb[0].mxu0
    %v6626 = vadd.f32 %v6229, %v6625
    %v6627 = vpop.f32.mrb[0].mxu0
    %v6628 = vpop.f32.mrb[0].mxu0
    %v6629 = vadd.f32 %v6232, %v6628
    %v6630 = vpop.f32.mrb[0].mxu0
    %6631 = vmatprep.mubr.bf16.mxu0 0
    %6632 = vmatmul.mubr.bf16.gmra.mrb[0].mxu0 %v6369
    %v6633 = vpop.f32.mrb[0].mxu0
    %v6634 = vadd.f32 %v6237, %v6633
    %v6635 = vpop.f32.mrb[0].mxu0
    %v6636 = vpop.f32.mrb[0].mxu0
    %v6637 = vadd.f32 %v6240, %v6636
    %v6638 = vpop.f32.mrb[0].mxu0
    %6639 = vmatprep.mubr.bf16.mxu0 0
    %6640 = vmatmul.mubr.bf16.gmra.mrb[0].mxu0 %v6372
    %v6641 = vpop.f32.mrb[0].mxu0
    %v6642 = vadd.f32 %v6245, %v6641
    %v6643 = vpop.f32.mrb[0].mxu0
    %v6644 = vpop.f32.mrb[0].mxu0
    %v6645 = vadd.f32 %v6248, %v6644
    %v6646 = vpop.f32.mrb[0].mxu0
    %6647 = vmatprep.mubr.bf16.mxu0 0
    %6648 = vmatmul.mubr.bf16.gmra.mrb[0].mxu0 %v6375
    %v6649 = vpop.f32.mrb[0].mxu0
    %v6650 = vadd.f32 %v6253, %v6649
    %v6651 = vpop.f32.mrb[0].mxu0
    %v6652 = vpop.f32.mrb[0].mxu0
    %v6653 = vadd.f32 %v6256, %v6652
    %v6654 = vpop.f32.mrb[0].mxu0
    %6655 = vmatprep.mubr.bf16.mxu0 0
    %6656 = vmatmul.mubr.bf16.gmra.mrb[0].mxu0 %v6378
    %v6657 = vpop.f32.mrb[0].mxu0
    %v6658 = vadd.f32 %v6261, %v6657
    %v6659 = vpop.f32.mrb[0].mxu0
    %v6660 = vpop.f32.mrb[0].mxu0
    %v6661 = vadd.f32 %v6264, %v6660
    %v6662 = vpop.f32.mrb[0].mxu0
    %6663 = vmatprep.mubr.bf16.mxu0 0
    %6664 = vmatmul.mubr.bf16.gmra.mrb[0].mxu0 %v6381
    %v6665 = vpop.f32.mrb[0].mxu0
    %v6666 = vadd.f32 %v6269, %v6665
    %v6667 = vpop.f32.mrb[0].mxu0
    %v6668 = vpop.f32.mrb[0].mxu0
    %v6669 = vadd.f32 %v6272, %v6668
    %v6670 = vpop.f32.mrb[0].mxu0
    %6671 = vdwg.mxu0
    %6672 = vrot.lane.b32.xlu0 %v1260, 64
    %v6673 = vpop.permute.xlu0 %6672
    %6674 = vrot.lane.b32.xlu0 %v1261, 64
    %v6675 = vpop.permute.xlu0 %6674
    %6676 = vrot.lane.b32.xlu0 %v1262, 64
    %v6677 = vpop.permute.xlu0 %6676
    %6678 = vrot.lane.b32.xlu0 %v1263, 64
    %v6679 = vpop.permute.xlu0 %6678
    %6680 = vrot.lane.b32.xlu0 %v1292, 64
    %v6681 = vpop.permute.xlu0 %6680
    %6682 = vrot.lane.b32.xlu0 %v1293, 64
    %v6683 = vpop.permute.xlu0 %6682
    %6684 = vrot.lane.b32.xlu0 %v1294, 64
    %v6685 = vpop.permute.xlu0 %6684
    %6686 = vrot.lane.b32.xlu0 %v1295, 64
    %v6687 = vpop.permute.xlu0 %6686
    %v6689 = vsel %vm1356, %v6673, 0
    %v6692 = vsel %vm1356, %v6675, 0
    %v6695 = vsel %vm1356, %v6677, 0
    %v6698 = vsel %vm1356, %v6679, 0
    %v6701 = vsel %vm1356, %v6681, 0
    %v6704 = vsel %vm1356, %v6683, 0
    %v6707 = vsel %vm1356, %v6685, 0
    %v6710 = vsel %vm1356, %v6687, 0
    %6712 = vmatprep.subr.bf16.mxu0 0
    %6713 = vmatpush1.bf16.xpose.msra.mxu0 %v6701
    %6714 = vmatprep.subr.bf16.mxu0 0
    %6715 = vmatpush1.bf16.xpose.msra.mxu0 %v6704
    %6716 = vmatprep.subr.bf16.mxu0 0
    %6717 = vmatpush1.bf16.xpose.msra.mxu0 %v6707
    %6718 = vmatprep.subr.bf16.mxu0 0
    %6719 = vmatpush1.bf16.xpose.msra.mxu0 %v6710
    %6720 = vmatprep.subr.bf16.mxu0 0
    %6721 = vmatpush1.bf16.xpose.msra.mxu0 0
    %6722 = vmatprep.subr.bf16.mxu0 0
    %6723 = vmatpush1.bf16.xpose.msra.mxu0 0
    %6724 = vmatprep.subr.bf16.mxu0 0
    %6725 = vmatpush1.bf16.xpose.msra.mxu0 0
    %6726 = vmatprep.subr.bf16.mxu0 0
    %6727 = vmatpush1.bf16.xpose.msra.mxu0 0
    %6728 = vmatprep.subr.bf16.mxu0 0
    %6729 = vmatpush1.bf16.xpose.msra.mxu0 0
    %6730 = vmatprep.subr.bf16.mxu0 0
    %6731 = vmatpush1.bf16.xpose.msra.mxu0 0
    %6732 = vmatprep.subr.bf16.mxu0 0
    %6733 = vmatpush1.bf16.xpose.msra.mxu0 0
    %6734 = vmatprep.subr.bf16.mxu0 0
    %6735 = vmatpush1.bf16.xpose.msra.mxu0 0
    %6736 = vmatprep.subr.bf16.mxu0 0
    %6737 = vmatpush1.bf16.xpose.msra.mxu0 0
    %6738 = vmatprep.subr.bf16.mxu0 0
    %6739 = vmatpush1.bf16.xpose.msra.mxu0 0
    %6740 = vmatprep.subr.bf16.mxu0 0
    %6741 = vmatpush1.bf16.xpose.msra.mxu0 0
    %6742 = vmatprep.subr.bf16.mxu0 0
    %6743 = vmatpush1.bf16.xpose.msra.mxu0 0
    %6744 = vmatprep.mubr.bf16.mxu0 0
    %6745 = vmatmul.mubr.bf16.gmra.mrb[0].mxu0 %v6689
    %v6746 = vpop.f32.mrb[0].mxu0
    %v6747 = vadd.f32 0.0, %v6746
    %v6748 = vpop.f32.mrb[0].mxu0
    %v6749 = vpop.f32.mrb[0].mxu0
    %v6750 = vadd.f32 0.0, %v6749
    %v6751 = vpop.f32.mrb[0].mxu0
    %6752 = vmatprep.mubr.bf16.mxu0 0
    %6753 = vmatmul.mubr.bf16.gmra.mrb[0].mxu0 %v6692
    %v6754 = vpop.f32.mrb[0].mxu0
    %v6755 = vadd.f32 0.0, %v6754
    %v6756 = vpop.f32.mrb[0].mxu0
    %v6757 = vpop.f32.mrb[0].mxu0
    %v6758 = vadd.f32 0.0, %v6757
    %v6759 = vpop.f32.mrb[0].mxu0
    %6760 = vmatprep.mubr.bf16.mxu0 0
    %6761 = vmatmul.mubr.bf16.gmra.mrb[0].mxu0 %v6695
    %v6762 = vpop.f32.mrb[0].mxu0
    %v6763 = vadd.f32 0.0, %v6762
    %v6764 = vpop.f32.mrb[0].mxu0
    %v6765 = vpop.f32.mrb[0].mxu0
    %v6766 = vadd.f32 0.0, %v6765
    %v6767 = vpop.f32.mrb[0].mxu0
    %6768 = vmatprep.mubr.bf16.mxu0 0
    %6769 = vmatmul.mubr.bf16.gmra.mrb[0].mxu0 %v6698
    %v6770 = vpop.f32.mrb[0].mxu0
    %v6771 = vadd.f32 0.0, %v6770
    %v6772 = vpop.f32.mrb[0].mxu0
    %v6773 = vpop.f32.mrb[0].mxu0
    %v6774 = vadd.f32 0.0, %v6773
    %v6775 = vpop.f32.mrb[0].mxu0
    %6776 = vdwg.mxu0
    %6777 = vrot.lane.b32.xlu0 %v1264, 64
    %v6778 = vpop.permute.xlu0 %6777
    %6779 = vrot.lane.b32.xlu0 %v1265, 64
    %v6780 = vpop.permute.xlu0 %6779
    %6781 = vrot.lane.b32.xlu0 %v1266, 64
    %v6782 = vpop.permute.xlu0 %6781
    %6783 = vrot.lane.b32.xlu0 %v1267, 64
    %v6784 = vpop.permute.xlu0 %6783
    %6785 = vrot.lane.b32.xlu0 %v1296, 64
    %v6786 = vpop.permute.xlu0 %6785
    %6787 = vrot.lane.b32.xlu0 %v1297, 64
    %v6788 = vpop.permute.xlu0 %6787
    %6789 = vrot.lane.b32.xlu0 %v1298, 64
    %v6790 = vpop.permute.xlu0 %6789
    %6791 = vrot.lane.b32.xlu0 %v1299, 64
    %v6792 = vpop.permute.xlu0 %6791
    %v6794 = vsel %vm1356, %v6778, 0
    %v6797 = vsel %vm1356, %v6780, 0
    %v6800 = vsel %vm1356, %v6782, 0
    %v6803 = vsel %vm1356, %v6784, 0
    %v6806 = vsel %vm1356, %v6786, 0
    %v6809 = vsel %vm1356, %v6788, 0
    %v6812 = vsel %vm1356, %v6790, 0
    %v6815 = vsel %vm1356, %v6792, 0
    %6817 = vmatprep.subr.bf16.mxu0 0
    %6818 = vmatpush1.bf16.xpose.msra.mxu0 %v6806
    %6819 = vmatprep.subr.bf16.mxu0 0
    %6820 = vmatpush1.bf16.xpose.msra.mxu0 %v6809
    %6821 = vmatprep.subr.bf16.mxu0 0
    %6822 = vmatpush1.bf16.xpose.msra.mxu0 %v6812
    %6823 = vmatprep.subr.bf16.mxu0 0
    %6824 = vmatpush1.bf16.xpose.msra.mxu0 %v6815
    %6825 = vmatprep.subr.bf16.mxu0 0
    %6826 = vmatpush1.bf16.xpose.msra.mxu0 0
    %6827 = vmatprep.subr.bf16.mxu0 0
    %6828 = vmatpush1.bf16.xpose.msra.mxu0 0
    %6829 = vmatprep.subr.bf16.mxu0 0
    %6830 = vmatpush1.bf16.xpose.msra.mxu0 0
    %6831 = vmatprep.subr.bf16.mxu0 0
    %6832 = vmatpush1.bf16.xpose.msra.mxu0 0
    %6833 = vmatprep.subr.bf16.mxu0 0
    %6834 = vmatpush1.bf16.xpose.msra.mxu0 0
    %6835 = vmatprep.subr.bf16.mxu0 0
    %6836 = vmatpush1.bf16.xpose.msra.mxu0 0
    %6837 = vmatprep.subr.bf16.mxu0 0
    %6838 = vmatpush1.bf16.xpose.msra.mxu0 0
    %6839 = vmatprep.subr.bf16.mxu0 0
    %6840 = vmatpush1.bf16.xpose.msra.mxu0 0
    %6841 = vmatprep.subr.bf16.mxu0 0
    %6842 = vmatpush1.bf16.xpose.msra.mxu0 0
    %6843 = vmatprep.subr.bf16.mxu0 0
    %6844 = vmatpush1.bf16.xpose.msra.mxu0 0
    %6845 = vmatprep.subr.bf16.mxu0 0
    %6846 = vmatpush1.bf16.xpose.msra.mxu0 0
    %6847 = vmatprep.subr.bf16.mxu0 0
    %6848 = vmatpush1.bf16.xpose.msra.mxu0 0
    %6849 = vmatprep.mubr.bf16.mxu0 0
    %6850 = vmatmul.mubr.bf16.gmra.mrb[0].mxu0 %v6794
    %v6851 = vpop.f32.mrb[0].mxu0
    %v6852 = vadd.f32 0.0, %v6851
    %v6853 = vpop.f32.mrb[0].mxu0
    %v6854 = vpop.f32.mrb[0].mxu0
    %v6855 = vadd.f32 0.0, %v6854
    %v6856 = vpop.f32.mrb[0].mxu0
    %6857 = vmatprep.mubr.bf16.mxu0 0
    %6858 = vmatmul.mubr.bf16.gmra.mrb[0].mxu0 %v6797
    %v6859 = vpop.f32.mrb[0].mxu0
    %v6860 = vadd.f32 0.0, %v6859
    %v6861 = vpop.f32.mrb[0].mxu0
    %v6862 = vpop.f32.mrb[0].mxu0
    %v6863 = vadd.f32 0.0, %v6862
    %v6864 = vpop.f32.mrb[0].mxu0
    %6865 = vmatprep.mubr.bf16.mxu0 0
    %6866 = vmatmul.mubr.bf16.gmra.mrb[0].mxu0 %v6800
    %v6867 = vpop.f32.mrb[0].mxu0
    %v6868 = vadd.f32 0.0, %v6867
    %v6869 = vpop.f32.mrb[0].mxu0
    %v6870 = vpop.f32.mrb[0].mxu0
    %v6871 = vadd.f32 0.0, %v6870
    %v6872 = vpop.f32.mrb[0].mxu0
    %6873 = vmatprep.mubr.bf16.mxu0 0
    %6874 = vmatmul.mubr.bf16.gmra.mrb[0].mxu0 %v6803
    %v6875 = vpop.f32.mrb[0].mxu0
    %v6876 = vadd.f32 0.0, %v6875
    %v6877 = vpop.f32.mrb[0].mxu0
    %v6878 = vpop.f32.mrb[0].mxu0
    %v6879 = vadd.f32 0.0, %v6878
    %v6880 = vpop.f32.mrb[0].mxu0
    %6881 = vdwg.mxu0
    %6882 = vrot.lane.b32.xlu0 %v1268, 64
    %v6883 = vpop.permute.xlu0 %6882
    %6884 = vrot.lane.b32.xlu0 %v1269, 64
    %v6885 = vpop.permute.xlu0 %6884
    %6886 = vrot.lane.b32.xlu0 %v1270, 64
    %v6887 = vpop.permute.xlu0 %6886
    %6888 = vrot.lane.b32.xlu0 %v1271, 64
    %v6889 = vpop.permute.xlu0 %6888
    %6890 = vrot.lane.b32.xlu0 %v1300, 64
    %v6891 = vpop.permute.xlu0 %6890
    %6892 = vrot.lane.b32.xlu0 %v1301, 64
    %v6893 = vpop.permute.xlu0 %6892
    %6894 = vrot.lane.b32.xlu0 %v1302, 64
    %v6895 = vpop.permute.xlu0 %6894
    %6896 = vrot.lane.b32.xlu0 %v1303, 64
    %v6897 = vpop.permute.xlu0 %6896
    %v6899 = vsel %vm1356, %v6883, 0
    %v6902 = vsel %vm1356, %v6885, 0
    %v6905 = vsel %vm1356, %v6887, 0
    %v6908 = vsel %vm1356, %v6889, 0
    %v6911 = vsel %vm1356, %v6891, 0
    %v6914 = vsel %vm1356, %v6893, 0
    %v6917 = vsel %vm1356, %v6895, 0
    %v6920 = vsel %vm1356, %v6897, 0
    %6922 = vmatprep.subr.bf16.mxu0 0
    %6923 = vmatpush1.bf16.xpose.msra.mxu0 %v6911
    %6924 = vmatprep.subr.bf16.mxu0 0
    %6925 = vmatpush1.bf16.xpose.msra.mxu0 %v6914
    %6926 = vmatprep.subr.bf16.mxu0 0
    %6927 = vmatpush1.bf16.xpose.msra.mxu0 %v6917
    %6928 = vmatprep.subr.bf16.mxu0 0
    %6929 = vmatpush1.bf16.xpose.msra.mxu0 %v6920
    %6930 = vmatprep.subr.bf16.mxu0 0
    %6931 = vmatpush1.bf16.xpose.msra.mxu0 0
    %6932 = vmatprep.subr.bf16.mxu0 0
    %6933 = vmatpush1.bf16.xpose.msra.mxu0 0
    %6934 = vmatprep.subr.bf16.mxu0 0
    %6935 = vmatpush1.bf16.xpose.msra.mxu0 0
    %6936 = vmatprep.subr.bf16.mxu0 0
    %6937 = vmatpush1.bf16.xpose.msra.mxu0 0
    %6938 = vmatprep.subr.bf16.mxu0 0
    %6939 = vmatpush1.bf16.xpose.msra.mxu0 0
    %6940 = vmatprep.subr.bf16.mxu0 0
    %6941 = vmatpush1.bf16.xpose.msra.mxu0 0
    %6942 = vmatprep.subr.bf16.mxu0 0
    %6943 = vmatpush1.bf16.xpose.msra.mxu0 0
    %6944 = vmatprep.subr.bf16.mxu0 0
    %6945 = vmatpush1.bf16.xpose.msra.mxu0 0
    %6946 = vmatprep.subr.bf16.mxu0 0
    %6947 = vmatpush1.bf16.xpose.msra.mxu0 0
    %6948 = vmatprep.subr.bf16.mxu0 0
    %6949 = vmatpush1.bf16.xpose.msra.mxu0 0
    %6950 = vmatprep.subr.bf16.mxu0 0
    %6951 = vmatpush1.bf16.xpose.msra.mxu0 0
    %6952 = vmatprep.subr.bf16.mxu0 0
    %6953 = vmatpush1.bf16.xpose.msra.mxu0 0
    %6954 = vmatprep.mubr.bf16.mxu0 0
    %6955 = vmatmul.mubr.bf16.gmra.mrb[0].mxu0 %v6899
    %v6956 = vpop.f32.mrb[0].mxu0
    %v6957 = vadd.f32 0.0, %v6956
    %v6958 = vpop.f32.mrb[0].mxu0
    %v6959 = vpop.f32.mrb[0].mxu0
    %v6960 = vadd.f32 0.0, %v6959
    %v6961 = vpop.f32.mrb[0].mxu0
    %6962 = vmatprep.mubr.bf16.mxu0 0
    %6963 = vmatmul.mubr.bf16.gmra.mrb[0].mxu0 %v6902
    %v6964 = vpop.f32.mrb[0].mxu0
    %v6965 = vadd.f32 0.0, %v6964
    %v6966 = vpop.f32.mrb[0].mxu0
    %v6967 = vpop.f32.mrb[0].mxu0
    %v6968 = vadd.f32 0.0, %v6967
    %v6969 = vpop.f32.mrb[0].mxu0
    %6970 = vmatprep.mubr.bf16.mxu0 0
    %6971 = vmatmul.mubr.bf16.gmra.mrb[0].mxu0 %v6905
    %v6972 = vpop.f32.mrb[0].mxu0
    %v6973 = vadd.f32 0.0, %v6972
    %v6974 = vpop.f32.mrb[0].mxu0
    %v6975 = vpop.f32.mrb[0].mxu0
    %v6976 = vadd.f32 0.0, %v6975
    %v6977 = vpop.f32.mrb[0].mxu0
    %6978 = vmatprep.mubr.bf16.mxu0 0
    %6979 = vmatmul.mubr.bf16.gmra.mrb[0].mxu0 %v6908
    %v6980 = vpop.f32.mrb[0].mxu0
    %v6981 = vadd.f32 0.0, %v6980
    %v6982 = vpop.f32.mrb[0].mxu0
    %v6983 = vpop.f32.mrb[0].mxu0
    %v6984 = vadd.f32 0.0, %v6983
    %v6985 = vpop.f32.mrb[0].mxu0
    %6986 = vdwg.mxu0
    %6987 = vrot.lane.b32.xlu0 %v1272, 64
    %v6988 = vpop.permute.xlu0 %6987
    %6989 = vrot.lane.b32.xlu0 %v1273, 64
    %v6990 = vpop.permute.xlu0 %6989
    %6991 = vrot.lane.b32.xlu0 %v1274, 64
    %v6992 = vpop.permute.xlu0 %6991
    %6993 = vrot.lane.b32.xlu0 %v1275, 64
    %v6994 = vpop.permute.xlu0 %6993
    %6995 = vrot.lane.b32.xlu0 %v1304, 64
    %v6996 = vpop.permute.xlu0 %6995
    %6997 = vrot.lane.b32.xlu0 %v1305, 64
    %v6998 = vpop.permute.xlu0 %6997
    %6999 = vrot.lane.b32.xlu0 %v1306, 64
    %v7000 = vpop.permute.xlu0 %6999
    %7001 = vrot.lane.b32.xlu0 %v1307, 64
    %v7002 = vpop.permute.xlu0 %7001
    %v7004 = vsel %vm1356, %v6988, 0
    %v7007 = vsel %vm1356, %v6990, 0
    %v7010 = vsel %vm1356, %v6992, 0
    %v7013 = vsel %vm1356, %v6994, 0
    %v7016 = vsel %vm1356, %v6996, 0
    %v7019 = vsel %vm1356, %v6998, 0
    %v7022 = vsel %vm1356, %v7000, 0
    %v7025 = vsel %vm1356, %v7002, 0
    %7027 = vmatprep.subr.bf16.mxu0 0
    %7028 = vmatpush1.bf16.xpose.msra.mxu0 %v7016
    %7029 = vmatprep.subr.bf16.mxu0 0
    %7030 = vmatpush1.bf16.xpose.msra.mxu0 %v7019
    %7031 = vmatprep.subr.bf16.mxu0 0
    %7032 = vmatpush1.bf16.xpose.msra.mxu0 %v7022
    %7033 = vmatprep.subr.bf16.mxu0 0
    %7034 = vmatpush1.bf16.xpose.msra.mxu0 %v7025
    %7035 = vmatprep.subr.bf16.mxu0 0
    %7036 = vmatpush1.bf16.xpose.msra.mxu0 0
    %7037 = vmatprep.subr.bf16.mxu0 0
    %7038 = vmatpush1.bf16.xpose.msra.mxu0 0
    %7039 = vmatprep.subr.bf16.mxu0 0
    %7040 = vmatpush1.bf16.xpose.msra.mxu0 0
    %7041 = vmatprep.subr.bf16.mxu0 0
    %7042 = vmatpush1.bf16.xpose.msra.mxu0 0
    %7043 = vmatprep.subr.bf16.mxu0 0
    %7044 = vmatpush1.bf16.xpose.msra.mxu0 0
    %7045 = vmatprep.subr.bf16.mxu0 0
    %7046 = vmatpush1.bf16.xpose.msra.mxu0 0
    %7047 = vmatprep.subr.bf16.mxu0 0
    %7048 = vmatpush1.bf16.xpose.msra.mxu0 0
    %7049 = vmatprep.subr.bf16.mxu0 0
    %7050 = vmatpush1.bf16.xpose.msra.mxu0 0
    %7051 = vmatprep.subr.bf16.mxu0 0
    %7052 = vmatpush1.bf16.xpose.msra.mxu0 0
    %7053 = vmatprep.subr.bf16.mxu0 0
    %7054 = vmatpush1.bf16.xpose.msra.mxu0 0
    %7055 = vmatprep.subr.bf16.mxu0 0
    %7056 = vmatpush1.bf16.xpose.msra.mxu0 0
    %7057 = vmatprep.subr.bf16.mxu0 0
    %7058 = vmatpush1.bf16.xpose.msra.mxu0 0
    %7059 = vmatprep.mubr.bf16.mxu0 0
    %7060 = vmatmul.mubr.bf16.gmra.mrb[0].mxu0 %v7004
    %v7061 = vpop.f32.mrb[0].mxu0
    %v7062 = vadd.f32 0.0, %v7061
    %v7063 = vpop.f32.mrb[0].mxu0
    %v7064 = vpop.f32.mrb[0].mxu0
    %v7065 = vadd.f32 0.0, %v7064
    %v7066 = vpop.f32.mrb[0].mxu0
    %7067 = vmatprep.mubr.bf16.mxu0 0
    %7068 = vmatmul.mubr.bf16.gmra.mrb[0].mxu0 %v7007
    %v7069 = vpop.f32.mrb[0].mxu0
    %v7070 = vadd.f32 0.0, %v7069
    %v7071 = vpop.f32.mrb[0].mxu0
    %v7072 = vpop.f32.mrb[0].mxu0
    %v7073 = vadd.f32 0.0, %v7072
    %v7074 = vpop.f32.mrb[0].mxu0
    %7075 = vmatprep.mubr.bf16.mxu0 0
    %7076 = vmatmul.mubr.bf16.gmra.mrb[0].mxu0 %v7010
    %v7077 = vpop.f32.mrb[0].mxu0
    %v7078 = vadd.f32 0.0, %v7077
    %v7079 = vpop.f32.mrb[0].mxu0
    %v7080 = vpop.f32.mrb[0].mxu0
    %v7081 = vadd.f32 0.0, %v7080
    %v7082 = vpop.f32.mrb[0].mxu0
    %7083 = vmatprep.mubr.bf16.mxu0 0
    %7084 = vmatmul.mubr.bf16.gmra.mrb[0].mxu0 %v7013
    %v7085 = vpop.f32.mrb[0].mxu0
    %v7086 = vadd.f32 0.0, %v7085
    %v7087 = vpop.f32.mrb[0].mxu0
    %v7088 = vpop.f32.mrb[0].mxu0
    %v7089 = vadd.f32 0.0, %v7088
    %v7090 = vpop.f32.mrb[0].mxu0
    %7091 = vdwg.mxu0
    %7092 = vrot.lane.b32.xlu0 %v1276, 64
    %v7093 = vpop.permute.xlu0 %7092
    %7094 = vrot.lane.b32.xlu0 %v1277, 64
    %v7095 = vpop.permute.xlu0 %7094
    %7096 = vrot.lane.b32.xlu0 %v1278, 64
    %v7097 = vpop.permute.xlu0 %7096
    %7098 = vrot.lane.b32.xlu0 %v1279, 64
    %v7099 = vpop.permute.xlu0 %7098
    %7100 = vrot.lane.b32.xlu0 %v1308, 64
    %v7101 = vpop.permute.xlu0 %7100
    %7102 = vrot.lane.b32.xlu0 %v1309, 64
    %v7103 = vpop.permute.xlu0 %7102
    %7104 = vrot.lane.b32.xlu0 %v1310, 64
    %v7105 = vpop.permute.xlu0 %7104
    %7106 = vrot.lane.b32.xlu0 %v1311, 64
    %v7107 = vpop.permute.xlu0 %7106
    %v7109 = vsel %vm1356, %v7093, 0
    %v7112 = vsel %vm1356, %v7095, 0
    %v7115 = vsel %vm1356, %v7097, 0
    %v7118 = vsel %vm1356, %v7099, 0
    %v7121 = vsel %vm1356, %v7101, 0
    %v7124 = vsel %vm1356, %v7103, 0
    %v7127 = vsel %vm1356, %v7105, 0
    %v7130 = vsel %vm1356, %v7107, 0
    %7132 = vmatprep.subr.bf16.mxu0 0
    %7133 = vmatpush1.bf16.xpose.msra.mxu0 %v7121
    %7134 = vmatprep.subr.bf16.mxu0 0
    %7135 = vmatpush1.bf16.xpose.msra.mxu0 %v7124
    %7136 = vmatprep.subr.bf16.mxu0 0
    %7137 = vmatpush1.bf16.xpose.msra.mxu0 %v7127
    %7138 = vmatprep.subr.bf16.mxu0 0
    %7139 = vmatpush1.bf16.xpose.msra.mxu0 %v7130
    %7140 = vmatprep.subr.bf16.mxu0 0
    %7141 = vmatpush1.bf16.xpose.msra.mxu0 0
    %7142 = vmatprep.subr.bf16.mxu0 0
    %7143 = vmatpush1.bf16.xpose.msra.mxu0 0
    %7144 = vmatprep.subr.bf16.mxu0 0
    %7145 = vmatpush1.bf16.xpose.msra.mxu0 0
    %7146 = vmatprep.subr.bf16.mxu0 0
    %7147 = vmatpush1.bf16.xpose.msra.mxu0 0
    %7148 = vmatprep.subr.bf16.mxu0 0
    %7149 = vmatpush1.bf16.xpose.msra.mxu0 0
    %7150 = vmatprep.subr.bf16.mxu0 0
    %7151 = vmatpush1.bf16.xpose.msra.mxu0 0
    %7152 = vmatprep.subr.bf16.mxu0 0
    %7153 = vmatpush1.bf16.xpose.msra.mxu0 0
    %7154 = vmatprep.subr.bf16.mxu0 0
    %7155 = vmatpush1.bf16.xpose.msra.mxu0 0
    %7156 = vmatprep.subr.bf16.mxu0 0
    %7157 = vmatpush1.bf16.xpose.msra.mxu0 0
    %7158 = vmatprep.subr.bf16.mxu0 0
    %7159 = vmatpush1.bf16.xpose.msra.mxu0 0
    %7160 = vmatprep.subr.bf16.mxu0 0
    %7161 = vmatpush1.bf16.xpose.msra.mxu0 0
    %7162 = vmatprep.subr.bf16.mxu0 0
    %7163 = vmatpush1.bf16.xpose.msra.mxu0 0
    %7164 = vmatprep.mubr.bf16.mxu0 0
    %7165 = vmatmul.mubr.bf16.gmra.mrb[0].mxu0 %v7109
    %v7166 = vpop.f32.mrb[0].mxu0
    %v7167 = vadd.f32 0.0, %v7166
    %v7168 = vpop.f32.mrb[0].mxu0
    %v7169 = vpop.f32.mrb[0].mxu0
    %v7170 = vadd.f32 0.0, %v7169
    %v7171 = vpop.f32.mrb[0].mxu0
    %7172 = vmatprep.mubr.bf16.mxu0 0
    %7173 = vmatmul.mubr.bf16.gmra.mrb[0].mxu0 %v7112
    %v7174 = vpop.f32.mrb[0].mxu0
    %v7175 = vadd.f32 0.0, %v7174
    %v7176 = vpop.f32.mrb[0].mxu0
    %v7177 = vpop.f32.mrb[0].mxu0
    %v7178 = vadd.f32 0.0, %v7177
    %v7179 = vpop.f32.mrb[0].mxu0
    %7180 = vmatprep.mubr.bf16.mxu0 0
    %7181 = vmatmul.mubr.bf16.gmra.mrb[0].mxu0 %v7115
    %v7182 = vpop.f32.mrb[0].mxu0
    %v7183 = vadd.f32 0.0, %v7182
    %v7184 = vpop.f32.mrb[0].mxu0
    %v7185 = vpop.f32.mrb[0].mxu0
    %v7186 = vadd.f32 0.0, %v7185
    %v7187 = vpop.f32.mrb[0].mxu0
    %7188 = vmatprep.mubr.bf16.mxu0 0
    %7189 = vmatmul.mubr.bf16.gmra.mrb[0].mxu0 %v7118
    %v7190 = vpop.f32.mrb[0].mxu0
    %v7191 = vadd.f32 0.0, %v7190
    %v7192 = vpop.f32.mrb[0].mxu0
    %v7193 = vpop.f32.mrb[0].mxu0
    %v7194 = vadd.f32 0.0, %v7193
    %v7195 = vpop.f32.mrb[0].mxu0
    %7196 = vdwg.mxu0
    %7197 = vrot.lane.b32.xlu0 %v1280, 64
    %v7198 = vpop.permute.xlu0 %7197
    %7199 = vrot.lane.b32.xlu0 %v1281, 64
    %v7200 = vpop.permute.xlu0 %7199
    %7201 = vrot.lane.b32.xlu0 %v1282, 64
    %v7202 = vpop.permute.xlu0 %7201
    %7203 = vrot.lane.b32.xlu0 %v1283, 64
    %v7204 = vpop.permute.xlu0 %7203
    %7205 = vrot.lane.b32.xlu0 %v1312, 64
    %v7206 = vpop.permute.xlu0 %7205
    %7207 = vrot.lane.b32.xlu0 %v1313, 64
    %v7208 = vpop.permute.xlu0 %7207
    %7209 = vrot.lane.b32.xlu0 %v1314, 64
    %v7210 = vpop.permute.xlu0 %7209
    %7211 = vrot.lane.b32.xlu0 %v1315, 64
    %v7212 = vpop.permute.xlu0 %7211
    %v7214 = vsel %vm1356, %v7198, 0
    %v7217 = vsel %vm1356, %v7200, 0
    %v7220 = vsel %vm1356, %v7202, 0
    %v7223 = vsel %vm1356, %v7204, 0
    %v7226 = vsel %vm1356, %v7206, 0
    %v7229 = vsel %vm1356, %v7208, 0
    %v7232 = vsel %vm1356, %v7210, 0
    %v7235 = vsel %vm1356, %v7212, 0
    %7237 = vmatprep.subr.bf16.mxu0 0
    %7238 = vmatpush1.bf16.xpose.msra.mxu0 %v7226
    %7239 = vmatprep.subr.bf16.mxu0 0
    %7240 = vmatpush1.bf16.xpose.msra.mxu0 %v7229
    %7241 = vmatprep.subr.bf16.mxu0 0
    %7242 = vmatpush1.bf16.xpose.msra.mxu0 %v7232
    %7243 = vmatprep.subr.bf16.mxu0 0
    %7244 = vmatpush1.bf16.xpose.msra.mxu0 %v7235
    %7245 = vmatprep.subr.bf16.mxu0 0
    %7246 = vmatpush1.bf16.xpose.msra.mxu0 0
    %7247 = vmatprep.subr.bf16.mxu0 0
    %7248 = vmatpush1.bf16.xpose.msra.mxu0 0
    %7249 = vmatprep.subr.bf16.mxu0 0
    %7250 = vmatpush1.bf16.xpose.msra.mxu0 0
    %7251 = vmatprep.subr.bf16.mxu0 0
    %7252 = vmatpush1.bf16.xpose.msra.mxu0 0
    %7253 = vmatprep.subr.bf16.mxu0 0
    %7254 = vmatpush1.bf16.xpose.msra.mxu0 0
    %7255 = vmatprep.subr.bf16.mxu0 0
    %7256 = vmatpush1.bf16.xpose.msra.mxu0 0
    %7257 = vmatprep.subr.bf16.mxu0 0
    %7258 = vmatpush1.bf16.xpose.msra.mxu0 0
    %7259 = vmatprep.subr.bf16.mxu0 0
    %7260 = vmatpush1.bf16.xpose.msra.mxu0 0
    %7261 = vmatprep.subr.bf16.mxu0 0
    %7262 = vmatpush1.bf16.xpose.msra.mxu0 0
    %7263 = vmatprep.subr.bf16.mxu0 0
    %7264 = vmatpush1.bf16.xpose.msra.mxu0 0
    %7265 = vmatprep.subr.bf16.mxu0 0
    %7266 = vmatpush1.bf16.xpose.msra.mxu0 0
    %7267 = vmatprep.subr.bf16.mxu0 0
    %7268 = vmatpush1.bf16.xpose.msra.mxu0 0
    %7269 = vmatprep.mubr.bf16.mxu0 0
    %7270 = vmatmul.mubr.bf16.gmra.mrb[0].mxu0 %v7214
    %v7271 = vpop.f32.mrb[0].mxu0
    %v7272 = vadd.f32 0.0, %v7271
    %v7273 = vpop.f32.mrb[0].mxu0
    %v7274 = vpop.f32.mrb[0].mxu0
    %v7275 = vadd.f32 0.0, %v7274
    %v7276 = vpop.f32.mrb[0].mxu0
    %7277 = vmatprep.mubr.bf16.mxu0 0
    %7278 = vmatmul.mubr.bf16.gmra.mrb[0].mxu0 %v7217
    %v7279 = vpop.f32.mrb[0].mxu0
    %v7280 = vadd.f32 0.0, %v7279
    %v7281 = vpop.f32.mrb[0].mxu0
    %v7282 = vpop.f32.mrb[0].mxu0
    %v7283 = vadd.f32 0.0, %v7282
    %v7284 = vpop.f32.mrb[0].mxu0
    %7285 = vmatprep.mubr.bf16.mxu0 0
    %7286 = vmatmul.mubr.bf16.gmra.mrb[0].mxu0 %v7220
    %v7287 = vpop.f32.mrb[0].mxu0
    %v7288 = vadd.f32 0.0, %v7287
    %v7289 = vpop.f32.mrb[0].mxu0
    %v7290 = vpop.f32.mrb[0].mxu0
    %v7291 = vadd.f32 0.0, %v7290
    %v7292 = vpop.f32.mrb[0].mxu0
    %7293 = vmatprep.mubr.bf16.mxu0 0
    %7294 = vmatmul.mubr.bf16.gmra.mrb[0].mxu0 %v7223
    %v7295 = vpop.f32.mrb[0].mxu0
    %v7296 = vadd.f32 0.0, %v7295
    %v7297 = vpop.f32.mrb[0].mxu0
    %v7298 = vpop.f32.mrb[0].mxu0
    %v7299 = vadd.f32 0.0, %v7298
    %v7300 = vpop.f32.mrb[0].mxu0
    %7301 = vdwg.mxu0
    %7302 = vrot.lane.b32.xlu0 %v1284, 64
    %v7303 = vpop.permute.xlu0 %7302
    %7304 = vrot.lane.b32.xlu0 %v1285, 64
    %v7305 = vpop.permute.xlu0 %7304
    %7306 = vrot.lane.b32.xlu0 %v1286, 64
    %v7307 = vpop.permute.xlu0 %7306
    %7308 = vrot.lane.b32.xlu0 %v1287, 64
    %v7309 = vpop.permute.xlu0 %7308
    %7310 = vrot.lane.b32.xlu0 %v1316, 64
    %v7311 = vpop.permute.xlu0 %7310
    %7312 = vrot.lane.b32.xlu0 %v1317, 64
    %v7313 = vpop.permute.xlu0 %7312
    %7314 = vrot.lane.b32.xlu0 %v1318, 64
    %v7315 = vpop.permute.xlu0 %7314
    %7316 = vrot.lane.b32.xlu0 %v1319, 64
    %v7317 = vpop.permute.xlu0 %7316
    %v7319 = vsel %vm1356, %v7303, 0
    %v7322 = vsel %vm1356, %v7305, 0
    %v7325 = vsel %vm1356, %v7307, 0
    %v7328 = vsel %vm1356, %v7309, 0
    %v7331 = vsel %vm1356, %v7311, 0
    %v7334 = vsel %vm1356, %v7313, 0
    %v7337 = vsel %vm1356, %v7315, 0
    %v7340 = vsel %vm1356, %v7317, 0
    %7342 = vmatprep.subr.bf16.mxu0 0
    %7343 = vmatpush1.bf16.xpose.msra.mxu0 %v7331
    %7344 = vmatprep.subr.bf16.mxu0 0
    %7345 = vmatpush1.bf16.xpose.msra.mxu0 %v7334
    %7346 = vmatprep.subr.bf16.mxu0 0
    %7347 = vmatpush1.bf16.xpose.msra.mxu0 %v7337
    %7348 = vmatprep.subr.bf16.mxu0 0
    %7349 = vmatpush1.bf16.xpose.msra.mxu0 %v7340
    %7350 = vmatprep.subr.bf16.mxu0 0
    %7351 = vmatpush1.bf16.xpose.msra.mxu0 0
    %7352 = vmatprep.subr.bf16.mxu0 0
    %7353 = vmatpush1.bf16.xpose.msra.mxu0 0
    %7354 = vmatprep.subr.bf16.mxu0 0
    %7355 = vmatpush1.bf16.xpose.msra.mxu0 0
    %7356 = vmatprep.subr.bf16.mxu0 0
    %7357 = vmatpush1.bf16.xpose.msra.mxu0 0
    %7358 = vmatprep.subr.bf16.mxu0 0
    %7359 = vmatpush1.bf16.xpose.msra.mxu0 0
    %7360 = vmatprep.subr.bf16.mxu0 0
    %7361 = vmatpush1.bf16.xpose.msra.mxu0 0
    %7362 = vmatprep.subr.bf16.mxu0 0
    %7363 = vmatpush1.bf16.xpose.msra.mxu0 0
    %7364 = vmatprep.subr.bf16.mxu0 0
    %7365 = vmatpush1.bf16.xpose.msra.mxu0 0
    %7366 = vmatprep.subr.bf16.mxu0 0
    %7367 = vmatpush1.bf16.xpose.msra.mxu0 0
    %7368 = vmatprep.subr.bf16.mxu0 0
    %7369 = vmatpush1.bf16.xpose.msra.mxu0 0
    %7370 = vmatprep.subr.bf16.mxu0 0
    %7371 = vmatpush1.bf16.xpose.msra.mxu0 0
    %7372 = vmatprep.subr.bf16.mxu0 0
    %7373 = vmatpush1.bf16.xpose.msra.mxu0 0
    %7374 = vmatprep.mubr.bf16.mxu0 0
    %7375 = vmatmul.mubr.bf16.gmra.mrb[0].mxu0 %v7319
    %v7376 = vpop.f32.mrb[0].mxu0
    %v7377 = vadd.f32 0.0, %v7376
    %v7378 = vpop.f32.mrb[0].mxu0
    %v7379 = vpop.f32.mrb[0].mxu0
    %v7380 = vadd.f32 0.0, %v7379
    %v7381 = vpop.f32.mrb[0].mxu0
    %7382 = vmatprep.mubr.bf16.mxu0 0
    %7383 = vmatmul.mubr.bf16.gmra.mrb[0].mxu0 %v7322
    %v7384 = vpop.f32.mrb[0].mxu0
    %v7385 = vadd.f32 0.0, %v7384
    %v7386 = vpop.f32.mrb[0].mxu0
    %v7387 = vpop.f32.mrb[0].mxu0
    %v7388 = vadd.f32 0.0, %v7387
    %v7389 = vpop.f32.mrb[0].mxu0
    %7390 = vmatprep.mubr.bf16.mxu0 0
    %7391 = vmatmul.mubr.bf16.gmra.mrb[0].mxu0 %v7325
    %v7392 = vpop.f32.mrb[0].mxu0
    %v7393 = vadd.f32 0.0, %v7392
    %v7394 = vpop.f32.mrb[0].mxu0
    %v7395 = vpop.f32.mrb[0].mxu0
    %v7396 = vadd.f32 0.0, %v7395
    %v7397 = vpop.f32.mrb[0].mxu0
    %7398 = vmatprep.mubr.bf16.mxu0 0
    %7399 = vmatmul.mubr.bf16.gmra.mrb[0].mxu0 %v7328
    %v7400 = vpop.f32.mrb[0].mxu0
    %v7401 = vadd.f32 0.0, %v7400
    %v7402 = vpop.f32.mrb[0].mxu0
    %v7403 = vpop.f32.mrb[0].mxu0
    %v7404 = vadd.f32 0.0, %v7403
    %v7405 = vpop.f32.mrb[0].mxu0
    %7406 = vdwg.mxu0
    %7407 = vrot.lane.b32.xlu0 %v1288, 64
    %v7408 = vpop.permute.xlu0 %7407
    %7409 = vrot.lane.b32.xlu0 %v1289, 64
    %v7410 = vpop.permute.xlu0 %7409
    %7411 = vrot.lane.b32.xlu0 %v1290, 64
    %v7412 = vpop.permute.xlu0 %7411
    %7413 = vrot.lane.b32.xlu0 %v1291, 64
    %v7414 = vpop.permute.xlu0 %7413
    %7415 = vrot.lane.b32.xlu0 %v1320, 64
    %v7416 = vpop.permute.xlu0 %7415
    %7417 = vrot.lane.b32.xlu0 %v1321, 64
    %v7418 = vpop.permute.xlu0 %7417
    %7419 = vrot.lane.b32.xlu0 %v1322, 64
    %v7420 = vpop.permute.xlu0 %7419
    %7421 = vrot.lane.b32.xlu0 %v1323, 64
    %v7422 = vpop.permute.xlu0 %7421
    %v7424 = vsel %vm1356, %v7408, 0
    %v7427 = vsel %vm1356, %v7410, 0
    %v7430 = vsel %vm1356, %v7412, 0
    %v7433 = vsel %vm1356, %v7414, 0
    %v7436 = vsel %vm1356, %v7416, 0
    %v7439 = vsel %vm1356, %v7418, 0
    %v7442 = vsel %vm1356, %v7420, 0
    %v7445 = vsel %vm1356, %v7422, 0
    %7447 = vmatprep.subr.bf16.mxu0 0
    %7448 = vmatpush1.bf16.xpose.msra.mxu0 %v7436
    %7449 = vmatprep.subr.bf16.mxu0 0
    %7450 = vmatpush1.bf16.xpose.msra.mxu0 %v7439
    %7451 = vmatprep.subr.bf16.mxu0 0
    %7452 = vmatpush1.bf16.xpose.msra.mxu0 %v7442
    %7453 = vmatprep.subr.bf16.mxu0 0
    %7454 = vmatpush1.bf16.xpose.msra.mxu0 %v7445
    %7455 = vmatprep.subr.bf16.mxu0 0
    %7456 = vmatpush1.bf16.xpose.msra.mxu0 0
    %7457 = vmatprep.subr.bf16.mxu0 0
    %7458 = vmatpush1.bf16.xpose.msra.mxu0 0
    %7459 = vmatprep.subr.bf16.mxu0 0
    %7460 = vmatpush1.bf16.xpose.msra.mxu0 0
    %7461 = vmatprep.subr.bf16.mxu0 0
    %7462 = vmatpush1.bf16.xpose.msra.mxu0 0
    %7463 = vmatprep.subr.bf16.mxu0 0
    %7464 = vmatpush1.bf16.xpose.msra.mxu0 0
    %7465 = vmatprep.subr.bf16.mxu0 0
    %7466 = vmatpush1.bf16.xpose.msra.mxu0 0
    %7467 = vmatprep.subr.bf16.mxu0 0
    %7468 = vmatpush1.bf16.xpose.msra.mxu0 0
    %7469 = vmatprep.subr.bf16.mxu0 0
    %7470 = vmatpush1.bf16.xpose.msra.mxu0 0
    %7471 = vmatprep.subr.bf16.mxu0 0
    %7472 = vmatpush1.bf16.xpose.msra.mxu0 0
    %7473 = vmatprep.subr.bf16.mxu0 0
    %7474 = vmatpush1.bf16.xpose.msra.mxu0 0
    %7475 = vmatprep.subr.bf16.mxu0 0
    %7476 = vmatpush1.bf16.xpose.msra.mxu0 0
    %7477 = vmatprep.subr.bf16.mxu0 0
    %7478 = vmatpush1.bf16.xpose.msra.mxu0 0
    %7479 = vmatprep.mubr.bf16.mxu0 0
    %7480 = vmatmul.mubr.bf16.gmra.mrb[0].mxu0 %v7424
    %v7481 = vpop.f32.mrb[0].mxu0
    %v7482 = vadd.f32 0.0, %v7481
    %v7483 = vpop.f32.mrb[0].mxu0
    %v7484 = vpop.f32.mrb[0].mxu0
    %v7485 = vadd.f32 0.0, %v7484
    %v7486 = vpop.f32.mrb[0].mxu0
    %7487 = vmatprep.mubr.bf16.mxu0 0
    %7488 = vmatmul.mubr.bf16.gmra.mrb[0].mxu0 %v7427
    %v7489 = vpop.f32.mrb[0].mxu0
    %v7490 = vadd.f32 0.0, %v7489
    %v7491 = vpop.f32.mrb[0].mxu0
    %v7492 = vpop.f32.mrb[0].mxu0
    %v7493 = vadd.f32 0.0, %v7492
    %v7494 = vpop.f32.mrb[0].mxu0
    %7495 = vmatprep.mubr.bf16.mxu0 0
    %7496 = vmatmul.mubr.bf16.gmra.mrb[0].mxu0 %v7430
    %v7497 = vpop.f32.mrb[0].mxu0
    %v7498 = vadd.f32 0.0, %v7497
    %v7499 = vpop.f32.mrb[0].mxu0
    %v7500 = vpop.f32.mrb[0].mxu0
    %v7501 = vadd.f32 0.0, %v7500
    %v7502 = vpop.f32.mrb[0].mxu0
    %7503 = vmatprep.mubr.bf16.mxu0 0
    %7504 = vmatmul.mubr.bf16.gmra.mrb[0].mxu0 %v7433
    %v7505 = vpop.f32.mrb[0].mxu0
    %v7506 = vadd.f32 0.0, %v7505
    %v7507 = vpop.f32.mrb[0].mxu0
    %v7508 = vpop.f32.mrb[0].mxu0
    %v7509 = vadd.f32 0.0, %v7508
    %v7510 = vpop.f32.mrb[0].mxu0
    %7511 = vdwg.mxu0
    %v7512 = vsel %vm2069, %v6747, -inf
    %7513 = vmax.xlane.f32.xlu0 %v7512
    %v7514 = vpop.xlane.xlu0 %7513
    %v7515 = vsel %vm2069, %v6750, -inf
    %7516 = vmax.xlane.f32.xlu0 %v7515
    %v7517 = vpop.xlane.xlu0 %7516
    %v7518 = vsel %vm2069, %v6755, -inf
    %7519 = vmax.xlane.f32.xlu0 %v7518
    %v7520 = vpop.xlane.xlu0 %7519
    %v7521 = vsel %vm2069, %v6758, -inf
    %7522 = vmax.xlane.f32.xlu0 %v7521
    %v7523 = vpop.xlane.xlu0 %7522
    %v7524 = vsel %vm2069, %v6763, -inf
    %7525 = vmax.xlane.f32.xlu0 %v7524
    %v7526 = vpop.xlane.xlu0 %7525
    %v7527 = vsel %vm2069, %v6766, -inf
    %7528 = vmax.xlane.f32.xlu0 %v7527
    %v7529 = vpop.xlane.xlu0 %7528
    %v7530 = vsel %vm2069, %v6771, -inf
    %7531 = vmax.xlane.f32.xlu0 %v7530
    %v7532 = vpop.xlane.xlu0 %7531
    %v7533 = vsel %vm2069, %v6774, -inf
    %7534 = vmax.xlane.f32.xlu0 %v7533
    %v7535 = vpop.xlane.xlu0 %7534
    %v7536 = vsel %vm2069, %v6852, -inf
    %7537 = vmax.xlane.f32.xlu0 %v7536
    %v7538 = vpop.xlane.xlu0 %7537
    %v7539 = vsel %vm2069, %v6855, -inf
    %7540 = vmax.xlane.f32.xlu0 %v7539
    %v7541 = vpop.xlane.xlu0 %7540
    %v7542 = vsel %vm2069, %v6860, -inf
    %7543 = vmax.xlane.f32.xlu0 %v7542
    %v7544 = vpop.xlane.xlu0 %7543
    %v7545 = vsel %vm2069, %v6863, -inf
    %7546 = vmax.xlane.f32.xlu0 %v7545
    %v7547 = vpop.xlane.xlu0 %7546
    %v7548 = vsel %vm2069, %v6868, -inf
    %7549 = vmax.xlane.f32.xlu0 %v7548
    %v7550 = vpop.xlane.xlu0 %7549
    %v7551 = vsel %vm2069, %v6871, -inf
    %7552 = vmax.xlane.f32.xlu0 %v7551
    %v7553 = vpop.xlane.xlu0 %7552
    %v7554 = vsel %vm2069, %v6876, -inf
    %7555 = vmax.xlane.f32.xlu0 %v7554
    %v7556 = vpop.xlane.xlu0 %7555
    %v7557 = vsel %vm2069, %v6879, -inf
    %7558 = vmax.xlane.f32.xlu0 %v7557
    %v7559 = vpop.xlane.xlu0 %7558
    %v7560 = vsel %vm2069, %v6957, -inf
    %7561 = vmax.xlane.f32.xlu0 %v7560
    %v7562 = vpop.xlane.xlu0 %7561
    %v7563 = vsel %vm2069, %v6960, -inf
    %7564 = vmax.xlane.f32.xlu0 %v7563
    %v7565 = vpop.xlane.xlu0 %7564
    %v7566 = vsel %vm2069, %v6965, -inf
    %7567 = vmax.xlane.f32.xlu0 %v7566
    %v7568 = vpop.xlane.xlu0 %7567
    %v7569 = vsel %vm2069, %v6968, -inf
    %7570 = vmax.xlane.f32.xlu0 %v7569
    %v7571 = vpop.xlane.xlu0 %7570
    %v7572 = vsel %vm2069, %v6973, -inf
    %7573 = vmax.xlane.f32.xlu0 %v7572
    %v7574 = vpop.xlane.xlu0 %7573
    %v7575 = vsel %vm2069, %v6976, -inf
    %7576 = vmax.xlane.f32.xlu0 %v7575
    %v7577 = vpop.xlane.xlu0 %7576
    %v7578 = vsel %vm2069, %v6981, -inf
    %7579 = vmax.xlane.f32.xlu0 %v7578
    %v7580 = vpop.xlane.xlu0 %7579
    %v7581 = vsel %vm2069, %v6984, -inf
    %7582 = vmax.xlane.f32.xlu0 %v7581
    %v7583 = vpop.xlane.xlu0 %7582
    %v7584 = vsel %vm2069, %v7062, -inf
    %7585 = vmax.xlane.f32.xlu0 %v7584
    %v7586 = vpop.xlane.xlu0 %7585
    %v7587 = vsel %vm2069, %v7065, -inf
    %7588 = vmax.xlane.f32.xlu0 %v7587
    %v7589 = vpop.xlane.xlu0 %7588
    %v7590 = vsel %vm2069, %v7070, -inf
    %7591 = vmax.xlane.f32.xlu0 %v7590
    %v7592 = vpop.xlane.xlu0 %7591
    %v7593 = vsel %vm2069, %v7073, -inf
    %7594 = vmax.xlane.f32.xlu0 %v7593
    %v7595 = vpop.xlane.xlu0 %7594
    %v7596 = vsel %vm2069, %v7078, -inf
    %7597 = vmax.xlane.f32.xlu0 %v7596
    %v7598 = vpop.xlane.xlu0 %7597
    %v7599 = vsel %vm2069, %v7081, -inf
    %7600 = vmax.xlane.f32.xlu0 %v7599
    %v7601 = vpop.xlane.xlu0 %7600
    %v7602 = vsel %vm2069, %v7086, -inf
    %7603 = vmax.xlane.f32.xlu0 %v7602
    %v7604 = vpop.xlane.xlu0 %7603
    %v7605 = vsel %vm2069, %v7089, -inf
    %7606 = vmax.xlane.f32.xlu0 %v7605
    %v7607 = vpop.xlane.xlu0 %7606
    %v7608 = vsel %vm2069, %v7167, -inf
    %7609 = vmax.xlane.f32.xlu0 %v7608
    %v7610 = vpop.xlane.xlu0 %7609
    %v7611 = vsel %vm2069, %v7170, -inf
    %7612 = vmax.xlane.f32.xlu0 %v7611
    %v7613 = vpop.xlane.xlu0 %7612
    %v7614 = vsel %vm2069, %v7175, -inf
    %7615 = vmax.xlane.f32.xlu0 %v7614
    %v7616 = vpop.xlane.xlu0 %7615
    %v7617 = vsel %vm2069, %v7178, -inf
    %7618 = vmax.xlane.f32.xlu0 %v7617
    %v7619 = vpop.xlane.xlu0 %7618
    %v7620 = vsel %vm2069, %v7183, -inf
    %7621 = vmax.xlane.f32.xlu0 %v7620
    %v7622 = vpop.xlane.xlu0 %7621
    %v7623 = vsel %vm2069, %v7186, -inf
    %7624 = vmax.xlane.f32.xlu0 %v7623
    %v7625 = vpop.xlane.xlu0 %7624
    %v7626 = vsel %vm2069, %v7191, -inf
    %7627 = vmax.xlane.f32.xlu0 %v7626
    %v7628 = vpop.xlane.xlu0 %7627
    %v7629 = vsel %vm2069, %v7194, -inf
    %7630 = vmax.xlane.f32.xlu0 %v7629
    %v7631 = vpop.xlane.xlu0 %7630
    %v7632 = vsel %vm2069, %v7272, -inf
    %7633 = vmax.xlane.f32.xlu0 %v7632
    %v7634 = vpop.xlane.xlu0 %7633
    %v7635 = vsel %vm2069, %v7275, -inf
    %7636 = vmax.xlane.f32.xlu0 %v7635
    %v7637 = vpop.xlane.xlu0 %7636
    %v7638 = vsel %vm2069, %v7280, -inf
    %7639 = vmax.xlane.f32.xlu0 %v7638
    %v7640 = vpop.xlane.xlu0 %7639
    %v7641 = vsel %vm2069, %v7283, -inf
    %7642 = vmax.xlane.f32.xlu0 %v7641
    %v7643 = vpop.xlane.xlu0 %7642
    %v7644 = vsel %vm2069, %v7288, -inf
    %7645 = vmax.xlane.f32.xlu0 %v7644
    %v7646 = vpop.xlane.xlu0 %7645
    %v7647 = vsel %vm2069, %v7291, -inf
    %7648 = vmax.xlane.f32.xlu0 %v7647
    %v7649 = vpop.xlane.xlu0 %7648
    %v7650 = vsel %vm2069, %v7296, -inf
    %7651 = vmax.xlane.f32.xlu0 %v7650
    %v7652 = vpop.xlane.xlu0 %7651
    %v7653 = vsel %vm2069, %v7299, -inf
    %7654 = vmax.xlane.f32.xlu0 %v7653
    %v7655 = vpop.xlane.xlu0 %7654
    %v7656 = vsel %vm2069, %v7377, -inf
    %7657 = vmax.xlane.f32.xlu0 %v7656
    %v7658 = vpop.xlane.xlu0 %7657
    %v7659 = vsel %vm2069, %v7380, -inf
    %7660 = vmax.xlane.f32.xlu0 %v7659
    %v7661 = vpop.xlane.xlu0 %7660
    %v7662 = vsel %vm2069, %v7385, -inf
    %7663 = vmax.xlane.f32.xlu0 %v7662
    %v7664 = vpop.xlane.xlu0 %7663
    %v7665 = vsel %vm2069, %v7388, -inf
    %7666 = vmax.xlane.f32.xlu0 %v7665
    %v7667 = vpop.xlane.xlu0 %7666
    %v7668 = vsel %vm2069, %v7393, -inf
    %7669 = vmax.xlane.f32.xlu0 %v7668
    %v7670 = vpop.xlane.xlu0 %7669
    %v7671 = vsel %vm2069, %v7396, -inf
    %7672 = vmax.xlane.f32.xlu0 %v7671
    %v7673 = vpop.xlane.xlu0 %7672
    %v7674 = vsel %vm2069, %v7401, -inf
    %7675 = vmax.xlane.f32.xlu0 %v7674
    %v7676 = vpop.xlane.xlu0 %7675
    %v7677 = vsel %vm2069, %v7404, -inf
    %7678 = vmax.xlane.f32.xlu0 %v7677
    %v7679 = vpop.xlane.xlu0 %7678
    %v7680 = vsel %vm2069, %v7482, -inf
    %7681 = vmax.xlane.f32.xlu0 %v7680
    %v7682 = vpop.xlane.xlu0 %7681
    %v7683 = vsel %vm2069, %v7485, -inf
    %7684 = vmax.xlane.f32.xlu0 %v7683
    %v7685 = vpop.xlane.xlu0 %7684
    %v7686 = vsel %vm2069, %v7490, -inf
    %7687 = vmax.xlane.f32.xlu0 %v7686
    %v7688 = vpop.xlane.xlu0 %7687
    %v7689 = vsel %vm2069, %v7493, -inf
    %7690 = vmax.xlane.f32.xlu0 %v7689
    %v7691 = vpop.xlane.xlu0 %7690
    %v7692 = vsel %vm2069, %v7498, -inf
    %7693 = vmax.xlane.f32.xlu0 %v7692
    %v7694 = vpop.xlane.xlu0 %7693
    %v7695 = vsel %vm2069, %v7501, -inf
    %7696 = vmax.xlane.f32.xlu0 %v7695
    %v7697 = vpop.xlane.xlu0 %7696
    %v7698 = vsel %vm2069, %v7506, -inf
    %7699 = vmax.xlane.f32.xlu0 %v7698
    %v7700 = vpop.xlane.xlu0 %7699
    %v7701 = vsel %vm2069, %v7509, -inf
    %7702 = vmax.xlane.f32.xlu0 %v7701
    %v7703 = vpop.xlane.xlu0 %7702
    %v7704 = vsub.f32 %v6747, %v7514
    %v7705 = vsub.f32 %v6750, %v7517
    %v7706 = vsub.f32 %v6755, %v7520
    %v7707 = vsub.f32 %v6758, %v7523
    %v7708 = vsub.f32 %v6763, %v7526
    %v7709 = vsub.f32 %v6766, %v7529
    %v7710 = vsub.f32 %v6771, %v7532
    %v7711 = vsub.f32 %v6774, %v7535
    %v7712 = vsub.f32 %v6852, %v7538
    %v7713 = vsub.f32 %v6855, %v7541
    %v7714 = vsub.f32 %v6860, %v7544
    %v7715 = vsub.f32 %v6863, %v7547
    %v7716 = vsub.f32 %v6868, %v7550
    %v7717 = vsub.f32 %v6871, %v7553
    %v7718 = vsub.f32 %v6876, %v7556
    %v7719 = vsub.f32 %v6879, %v7559
    %v7720 = vsub.f32 %v6957, %v7562
    %v7721 = vsub.f32 %v6960, %v7565
    %v7722 = vsub.f32 %v6965, %v7568
    %v7723 = vsub.f32 %v6968, %v7571
    %v7724 = vsub.f32 %v6973, %v7574
    %v7725 = vsub.f32 %v6976, %v7577
    %v7726 = vsub.f32 %v6981, %v7580
    %v7727 = vsub.f32 %v6984, %v7583
    %v7728 = vsub.f32 %v7062, %v7586
    %v7729 = vsub.f32 %v7065, %v7589
    %v7730 = vsub.f32 %v7070, %v7592
    %v7731 = vsub.f32 %v7073, %v7595
    %v7732 = vsub.f32 %v7078, %v7598
    %v7733 = vsub.f32 %v7081, %v7601
    %v7734 = vsub.f32 %v7086, %v7604
    %v7735 = vsub.f32 %v7089, %v7607
    %v7736 = vsub.f32 %v7167, %v7610
    %v7737 = vsub.f32 %v7170, %v7613
    %v7738 = vsub.f32 %v7175, %v7616
    %v7739 = vsub.f32 %v7178, %v7619
    %v7740 = vsub.f32 %v7183, %v7622
    %v7741 = vsub.f32 %v7186, %v7625
    %v7742 = vsub.f32 %v7191, %v7628
    %v7743 = vsub.f32 %v7194, %v7631
    %v7744 = vsub.f32 %v7272, %v7634
    %v7745 = vsub.f32 %v7275, %v7637
    %v7746 = vsub.f32 %v7280, %v7640
    %v7747 = vsub.f32 %v7283, %v7643
    %v7748 = vsub.f32 %v7288, %v7646
    %v7749 = vsub.f32 %v7291, %v7649
    %v7750 = vsub.f32 %v7296, %v7652
    %v7751 = vsub.f32 %v7299, %v7655
    %v7752 = vsub.f32 %v7377, %v7658
    %v7753 = vsub.f32 %v7380, %v7661
    %v7754 = vsub.f32 %v7385, %v7664
    %v7755 = vsub.f32 %v7388, %v7667
    %v7756 = vsub.f32 %v7393, %v7670
    %v7757 = vsub.f32 %v7396, %v7673
    %v7758 = vsub.f32 %v7401, %v7676
    %v7759 = vsub.f32 %v7404, %v7679
    %v7760 = vsub.f32 %v7482, %v7682
    %v7761 = vsub.f32 %v7485, %v7685
    %v7762 = vsub.f32 %v7490, %v7688
    %v7763 = vsub.f32 %v7493, %v7691
    %v7764 = vsub.f32 %v7498, %v7694
    %v7765 = vsub.f32 %v7501, %v7697
    %v7766 = vsub.f32 %v7506, %v7700
    %v7767 = vsub.f32 %v7509, %v7703
    %v7768 = vmul.f32 %v7704, 1.442695
    %v7769 = vpow.pop %v7768
    %v7770 = vmul.f32 %v7705, 1.442695
    %v7771 = vpow.pop %v7770
    %v7772 = vmul.f32 %v7706, 1.442695
    %v7773 = vpow.pop %v7772
    %v7774 = vmul.f32 %v7707, 1.442695
    %v7775 = vpow.pop %v7774
    %v7776 = vmul.f32 %v7708, 1.442695
    %v7777 = vpow.pop %v7776
    %v7778 = vmul.f32 %v7709, 1.442695
    %v7779 = vpow.pop %v7778
    %v7780 = vmul.f32 %v7710, 1.442695
    %v7781 = vpow.pop %v7780
    %v7782 = vmul.f32 %v7711, 1.442695
    %v7783 = vpow.pop %v7782
    %v7784 = vmul.f32 %v7712, 1.442695
    %v7785 = vpow.pop %v7784
    %v7786 = vmul.f32 %v7713, 1.442695
    %v7787 = vpow.pop %v7786
    %v7788 = vmul.f32 %v7714, 1.442695
    %v7789 = vpow.pop %v7788
    %v7790 = vmul.f32 %v7715, 1.442695
    %v7791 = vpow.pop %v7790
    %v7792 = vmul.f32 %v7716, 1.442695
    %v7793 = vpow.pop %v7792
    %v7794 = vmul.f32 %v7717, 1.442695
    %v7795 = vpow.pop %v7794
    %v7796 = vmul.f32 %v7718, 1.442695
    %v7797 = vpow.pop %v7796
    %v7798 = vmul.f32 %v7719, 1.442695
    %v7799 = vpow.pop %v7798
    %v7800 = vmul.f32 %v7720, 1.442695
    %v7801 = vpow.pop %v7800
    %v7802 = vmul.f32 %v7721, 1.442695
    %v7803 = vpow.pop %v7802
    %v7804 = vmul.f32 %v7722, 1.442695
    %v7805 = vpow.pop %v7804
    %v7806 = vmul.f32 %v7723, 1.442695
    %v7807 = vpow.pop %v7806
    %v7808 = vmul.f32 %v7724, 1.442695
    %v7809 = vpow.pop %v7808
    %v7810 = vmul.f32 %v7725, 1.442695
    %v7811 = vpow.pop %v7810
    %v7812 = vmul.f32 %v7726, 1.442695
    %v7813 = vpow.pop %v7812
    %v7814 = vmul.f32 %v7727, 1.442695
    %v7815 = vpow.pop %v7814
    %v7816 = vmul.f32 %v7728, 1.442695
    %v7817 = vpow.pop %v7816
    %v7818 = vmul.f32 %v7729, 1.442695
    %v7819 = vpow.pop %v7818
    %v7820 = vmul.f32 %v7730, 1.442695
    %v7821 = vpow.pop %v7820
    %v7822 = vmul.f32 %v7731, 1.442695
    %v7823 = vpow.pop %v7822
    %v7824 = vmul.f32 %v7732, 1.442695
    %v7825 = vpow.pop %v7824
    %v7826 = vmul.f32 %v7733, 1.442695
    %v7827 = vpow.pop %v7826
    %v7828 = vmul.f32 %v7734, 1.442695
    %v7829 = vpow.pop %v7828
    %v7830 = vmul.f32 %v7735, 1.442695
    %v7831 = vpow.pop %v7830
    %v7832 = vmul.f32 %v7736, 1.442695
    %v7833 = vpow.pop %v7832
    %v7834 = vmul.f32 %v7737, 1.442695
    %v7835 = vpow.pop %v7834
    %v7836 = vmul.f32 %v7738, 1.442695
    %v7837 = vpow.pop %v7836
    %v7838 = vmul.f32 %v7739, 1.442695
    %v7839 = vpow.pop %v7838
    %v7840 = vmul.f32 %v7740, 1.442695
    %v7841 = vpow.pop %v7840
    %v7842 = vmul.f32 %v7741, 1.442695
    %v7843 = vpow.pop %v7842
    %v7844 = vmul.f32 %v7742, 1.442695
    %v7845 = vpow.pop %v7844
    %v7846 = vmul.f32 %v7743, 1.442695
    %v7847 = vpow.pop %v7846
    %v7848 = vmul.f32 %v7744, 1.442695
    %v7849 = vpow.pop %v7848
    %v7850 = vmul.f32 %v7745, 1.442695
    %v7851 = vpow.pop %v7850
    %v7852 = vmul.f32 %v7746, 1.442695
    %v7853 = vpow.pop %v7852
    %v7854 = vmul.f32 %v7747, 1.442695
    %v7855 = vpow.pop %v7854
    %v7856 = vmul.f32 %v7748, 1.442695
    %v7857 = vpow.pop %v7856
    %v7858 = vmul.f32 %v7749, 1.442695
    %v7859 = vpow.pop %v7858
    %v7860 = vmul.f32 %v7750, 1.442695
    %v7861 = vpow.pop %v7860
    %v7862 = vmul.f32 %v7751, 1.442695
    %v7863 = vpow.pop %v7862
    %v7864 = vmul.f32 %v7752, 1.442695
    %v7865 = vpow.pop %v7864
    %v7866 = vmul.f32 %v7753, 1.442695
    %v7867 = vpow.pop %v7866
    %v7868 = vmul.f32 %v7754, 1.442695
    %v7869 = vpow.pop %v7868
    %v7870 = vmul.f32 %v7755, 1.442695
    %v7871 = vpow.pop %v7870
    %v7872 = vmul.f32 %v7756, 1.442695
    %v7873 = vpow.pop %v7872
    %v7874 = vmul.f32 %v7757, 1.442695
    %v7875 = vpow.pop %v7874
    %v7876 = vmul.f32 %v7758, 1.442695
    %v7877 = vpow.pop %v7876
    %v7878 = vmul.f32 %v7759, 1.442695
    %v7879 = vpow.pop %v7878
    %v7880 = vmul.f32 %v7760, 1.442695
    %v7881 = vpow.pop %v7880
    %v7882 = vmul.f32 %v7761, 1.442695
    %v7883 = vpow.pop %v7882
    %v7884 = vmul.f32 %v7762, 1.442695
    %v7885 = vpow.pop %v7884
    %v7886 = vmul.f32 %v7763, 1.442695
    %v7887 = vpow.pop %v7886
    %v7888 = vmul.f32 %v7764, 1.442695
    %v7889 = vpow.pop %v7888
    %v7890 = vmul.f32 %v7765, 1.442695
    %v7891 = vpow.pop %v7890
    %v7892 = vmul.f32 %v7766, 1.442695
    %v7893 = vpow.pop %v7892
    %v7894 = vmul.f32 %v7767, 1.442695
    %v7895 = vpow.pop %v7894
    %v7896 = vsel %vm2069, %v7769, 0.0
    %7897 = vadd.xlane.f32.xlu0 %v7896
    %v7898 = vpop.xlane.xlu0 %7897
    %v7899 = vsel %vm2069, %v7771, 0.0
    %7900 = vadd.xlane.f32.xlu0 %v7899
    %v7901 = vpop.xlane.xlu0 %7900
    %v7902 = vsel %vm2069, %v7773, 0.0
    %7903 = vadd.xlane.f32.xlu0 %v7902
    %v7904 = vpop.xlane.xlu0 %7903
    %v7905 = vsel %vm2069, %v7775, 0.0
    %7906 = vadd.xlane.f32.xlu0 %v7905
    %v7907 = vpop.xlane.xlu0 %7906
    %v7908 = vsel %vm2069, %v7777, 0.0
    %7909 = vadd.xlane.f32.xlu0 %v7908
    %v7910 = vpop.xlane.xlu0 %7909
    %v7911 = vsel %vm2069, %v7779, 0.0
    %7912 = vadd.xlane.f32.xlu0 %v7911
    %v7913 = vpop.xlane.xlu0 %7912
    %v7914 = vsel %vm2069, %v7781, 0.0
    %7915 = vadd.xlane.f32.xlu0 %v7914
    %v7916 = vpop.xlane.xlu0 %7915
    %v7917 = vsel %vm2069, %v7783, 0.0
    %7918 = vadd.xlane.f32.xlu0 %v7917
    %v7919 = vpop.xlane.xlu0 %7918
    %v7920 = vsel %vm2069, %v7785, 0.0
    %7921 = vadd.xlane.f32.xlu0 %v7920
    %v7922 = vpop.xlane.xlu0 %7921
    %v7923 = vsel %vm2069, %v7787, 0.0
    %7924 = vadd.xlane.f32.xlu0 %v7923
    %v7925 = vpop.xlane.xlu0 %7924
    %v7926 = vsel %vm2069, %v7789, 0.0
    %7927 = vadd.xlane.f32.xlu0 %v7926
    %v7928 = vpop.xlane.xlu0 %7927
    %v7929 = vsel %vm2069, %v7791, 0.0
    %7930 = vadd.xlane.f32.xlu0 %v7929
    %v7931 = vpop.xlane.xlu0 %7930
    %v7932 = vsel %vm2069, %v7793, 0.0
    %7933 = vadd.xlane.f32.xlu0 %v7932
    %v7934 = vpop.xlane.xlu0 %7933
    %v7935 = vsel %vm2069, %v7795, 0.0
    %7936 = vadd.xlane.f32.xlu0 %v7935
    %v7937 = vpop.xlane.xlu0 %7936
    %v7938 = vsel %vm2069, %v7797, 0.0
    %7939 = vadd.xlane.f32.xlu0 %v7938
    %v7940 = vpop.xlane.xlu0 %7939
    %v7941 = vsel %vm2069, %v7799, 0.0
    %7942 = vadd.xlane.f32.xlu0 %v7941
    %v7943 = vpop.xlane.xlu0 %7942
    %v7944 = vsel %vm2069, %v7801, 0.0
    %7945 = vadd.xlane.f32.xlu0 %v7944
    %v7946 = vpop.xlane.xlu0 %7945
    %v7947 = vsel %vm2069, %v7803, 0.0
    %7948 = vadd.xlane.f32.xlu0 %v7947
    %v7949 = vpop.xlane.xlu0 %7948
    %v7950 = vsel %vm2069, %v7805, 0.0
    %7951 = vadd.xlane.f32.xlu0 %v7950
    %v7952 = vpop.xlane.xlu0 %7951
    %v7953 = vsel %vm2069, %v7807, 0.0
    %7954 = vadd.xlane.f32.xlu0 %v7953
    %v7955 = vpop.xlane.xlu0 %7954
    %v7956 = vsel %vm2069, %v7809, 0.0
    %7957 = vadd.xlane.f32.xlu0 %v7956
    %v7958 = vpop.xlane.xlu0 %7957
    %v7959 = vsel %vm2069, %v7811, 0.0
    %7960 = vadd.xlane.f32.xlu0 %v7959
    %v7961 = vpop.xlane.xlu0 %7960
    %v7962 = vsel %vm2069, %v7813, 0.0
    %7963 = vadd.xlane.f32.xlu0 %v7962
    %v7964 = vpop.xlane.xlu0 %7963
    %v7965 = vsel %vm2069, %v7815, 0.0
    %7966 = vadd.xlane.f32.xlu0 %v7965
    %v7967 = vpop.xlane.xlu0 %7966
    %v7968 = vsel %vm2069, %v7817, 0.0
    %7969 = vadd.xlane.f32.xlu0 %v7968
    %v7970 = vpop.xlane.xlu0 %7969
    %v7971 = vsel %vm2069, %v7819, 0.0
    %7972 = vadd.xlane.f32.xlu0 %v7971
    %v7973 = vpop.xlane.xlu0 %7972
    %v7974 = vsel %vm2069, %v7821, 0.0
    %7975 = vadd.xlane.f32.xlu0 %v7974
    %v7976 = vpop.xlane.xlu0 %7975
    %v7977 = vsel %vm2069, %v7823, 0.0
    %7978 = vadd.xlane.f32.xlu0 %v7977
    %v7979 = vpop.xlane.xlu0 %7978
    %v7980 = vsel %vm2069, %v7825, 0.0
    %7981 = vadd.xlane.f32.xlu0 %v7980
    %v7982 = vpop.xlane.xlu0 %7981
    %v7983 = vsel %vm2069, %v7827, 0.0
    %7984 = vadd.xlane.f32.xlu0 %v7983
    %v7985 = vpop.xlane.xlu0 %7984
    %v7986 = vsel %vm2069, %v7829, 0.0
    %7987 = vadd.xlane.f32.xlu0 %v7986
    %v7988 = vpop.xlane.xlu0 %7987
    %v7989 = vsel %vm2069, %v7831, 0.0
    %7990 = vadd.xlane.f32.xlu0 %v7989
    %v7991 = vpop.xlane.xlu0 %7990
    %v7992 = vsel %vm2069, %v7833, 0.0
    %7993 = vadd.xlane.f32.xlu0 %v7992
    %v7994 = vpop.xlane.xlu0 %7993
    %v7995 = vsel %vm2069, %v7835, 0.0
    %7996 = vadd.xlane.f32.xlu0 %v7995
    %v7997 = vpop.xlane.xlu0 %7996
    %v7998 = vsel %vm2069, %v7837, 0.0
    %7999 = vadd.xlane.f32.xlu0 %v7998
    %v8000 = vpop.xlane.xlu0 %7999
    %v8001 = vsel %vm2069, %v7839, 0.0
    %8002 = vadd.xlane.f32.xlu0 %v8001
    %v8003 = vpop.xlane.xlu0 %8002
    %v8004 = vsel %vm2069, %v7841, 0.0
    %8005 = vadd.xlane.f32.xlu0 %v8004
    %v8006 = vpop.xlane.xlu0 %8005
    %v8007 = vsel %vm2069, %v7843, 0.0
    %8008 = vadd.xlane.f32.xlu0 %v8007
    %v8009 = vpop.xlane.xlu0 %8008
    %v8010 = vsel %vm2069, %v7845, 0.0
    %8011 = vadd.xlane.f32.xlu0 %v8010
    %v8012 = vpop.xlane.xlu0 %8011
    %v8013 = vsel %vm2069, %v7847, 0.0
    %8014 = vadd.xlane.f32.xlu0 %v8013
    %v8015 = vpop.xlane.xlu0 %8014
    %v8016 = vsel %vm2069, %v7849, 0.0
    %8017 = vadd.xlane.f32.xlu0 %v8016
    %v8018 = vpop.xlane.xlu0 %8017
    %v8019 = vsel %vm2069, %v7851, 0.0
    %8020 = vadd.xlane.f32.xlu0 %v8019
    %v8021 = vpop.xlane.xlu0 %8020
    %v8022 = vsel %vm2069, %v7853, 0.0
    %8023 = vadd.xlane.f32.xlu0 %v8022
    %v8024 = vpop.xlane.xlu0 %8023
    %v8025 = vsel %vm2069, %v7855, 0.0
    %8026 = vadd.xlane.f32.xlu0 %v8025
    %v8027 = vpop.xlane.xlu0 %8026
    %v8028 = vsel %vm2069, %v7857, 0.0
    %8029 = vadd.xlane.f32.xlu0 %v8028
    %v8030 = vpop.xlane.xlu0 %8029
    %v8031 = vsel %vm2069, %v7859, 0.0
    %8032 = vadd.xlane.f32.xlu0 %v8031
    %v8033 = vpop.xlane.xlu0 %8032
    %v8034 = vsel %vm2069, %v7861, 0.0
    %8035 = vadd.xlane.f32.xlu0 %v8034
    %v8036 = vpop.xlane.xlu0 %8035
    %v8037 = vsel %vm2069, %v7863, 0.0
    %8038 = vadd.xlane.f32.xlu0 %v8037
    %v8039 = vpop.xlane.xlu0 %8038
    %v8040 = vsel %vm2069, %v7865, 0.0
    %8041 = vadd.xlane.f32.xlu0 %v8040
    %v8042 = vpop.xlane.xlu0 %8041
    %v8043 = vsel %vm2069, %v7867, 0.0
    %8044 = vadd.xlane.f32.xlu0 %v8043
    %v8045 = vpop.xlane.xlu0 %8044
    %v8046 = vsel %vm2069, %v7869, 0.0
    %8047 = vadd.xlane.f32.xlu0 %v8046
    %v8048 = vpop.xlane.xlu0 %8047
    %v8049 = vsel %vm2069, %v7871, 0.0
    %8050 = vadd.xlane.f32.xlu0 %v8049
    %v8051 = vpop.xlane.xlu0 %8050
    %v8052 = vsel %vm2069, %v7873, 0.0
    %8053 = vadd.xlane.f32.xlu0 %v8052
    %v8054 = vpop.xlane.xlu0 %8053
    %v8055 = vsel %vm2069, %v7875, 0.0
    %8056 = vadd.xlane.f32.xlu0 %v8055
    %v8057 = vpop.xlane.xlu0 %8056
    %v8058 = vsel %vm2069, %v7877, 0.0
    %8059 = vadd.xlane.f32.xlu0 %v8058
    %v8060 = vpop.xlane.xlu0 %8059
    %v8061 = vsel %vm2069, %v7879, 0.0
    %8062 = vadd.xlane.f32.xlu0 %v8061
    %v8063 = vpop.xlane.xlu0 %8062
    %v8064 = vsel %vm2069, %v7881, 0.0
    %8065 = vadd.xlane.f32.xlu0 %v8064
    %v8066 = vpop.xlane.xlu0 %8065
    %v8067 = vsel %vm2069, %v7883, 0.0
    %8068 = vadd.xlane.f32.xlu0 %v8067
    %v8069 = vpop.xlane.xlu0 %8068
    %v8070 = vsel %vm2069, %v7885, 0.0
    %8071 = vadd.xlane.f32.xlu0 %v8070
    %v8072 = vpop.xlane.xlu0 %8071
    %v8073 = vsel %vm2069, %v7887, 0.0
    %8074 = vadd.xlane.f32.xlu0 %v8073
    %v8075 = vpop.xlane.xlu0 %8074
    %v8076 = vsel %vm2069, %v7889, 0.0
    %8077 = vadd.xlane.f32.xlu0 %v8076
    %v8078 = vpop.xlane.xlu0 %8077
    %v8079 = vsel %vm2069, %v7891, 0.0
    %8080 = vadd.xlane.f32.xlu0 %v8079
    %v8081 = vpop.xlane.xlu0 %8080
    %v8082 = vsel %vm2069, %v7893, 0.0
    %8083 = vadd.xlane.f32.xlu0 %v8082
    %v8084 = vpop.xlane.xlu0 %8083
    %v8085 = vsel %vm2069, %v7895, 0.0
    %8086 = vadd.xlane.f32.xlu0 %v8085
    %v8087 = vpop.xlane.xlu0 %8086
    %v8088 = vpack.c.bf16 %v7771, %v7769
    %v8089 = vpack.c.bf16 %v7775, %v7773
    %v8090 = vpack.c.bf16 %v7779, %v7777
    %v8091 = vpack.c.bf16 %v7783, %v7781
    %v8092 = vpack.c.bf16 %v7787, %v7785
    %v8093 = vpack.c.bf16 %v7791, %v7789
    %v8094 = vpack.c.bf16 %v7795, %v7793
    %v8095 = vpack.c.bf16 %v7799, %v7797
    %v8096 = vpack.c.bf16 %v7803, %v7801
    %v8097 = vpack.c.bf16 %v7807, %v7805
    %v8098 = vpack.c.bf16 %v7811, %v7809
    %v8099 = vpack.c.bf16 %v7815, %v7813
    %v8100 = vpack.c.bf16 %v7819, %v7817
    %v8101 = vpack.c.bf16 %v7823, %v7821
    %v8102 = vpack.c.bf16 %v7827, %v7825
    %v8103 = vpack.c.bf16 %v7831, %v7829
    %v8104 = vpack.c.bf16 %v7835, %v7833
    %v8105 = vpack.c.bf16 %v7839, %v7837
    %v8106 = vpack.c.bf16 %v7843, %v7841
    %v8107 = vpack.c.bf16 %v7847, %v7845
    %v8108 = vpack.c.bf16 %v7851, %v7849
    %v8109 = vpack.c.bf16 %v7855, %v7853
    %v8110 = vpack.c.bf16 %v7859, %v7857
    %v8111 = vpack.c.bf16 %v7863, %v7861
    %v8112 = vpack.c.bf16 %v7867, %v7865
    %v8113 = vpack.c.bf16 %v7871, %v7869
    %v8114 = vpack.c.bf16 %v7875, %v7873
    %v8115 = vpack.c.bf16 %v7879, %v7877
    %v8116 = vpack.c.bf16 %v7883, %v7881
    %v8117 = vpack.c.bf16 %v7887, %v7885
    %v8118 = vpack.c.bf16 %v7891, %v7889
    %v8119 = vpack.c.bf16 %v7895, %v7893
    %8120 = vrot.lane.b32.xlu0 %v1324, 64
    %v8121 = vpop.permute.xlu0 %8120
    %8122 = vrot.lane.b32.xlu0 %v1325, 64
    %v8123 = vpop.permute.xlu0 %8122
    %8124 = vrot.lane.b32.xlu0 %v1326, 64
    %v8125 = vpop.permute.xlu0 %8124
    %8126 = vrot.lane.b32.xlu0 %v1327, 64
    %v8127 = vpop.permute.xlu0 %8126
    %v8133 = vsel %vm2069, %v8088, 0
    %v8136 = vsel %vm2069, %v8089, 0
    %v8139 = vsel %vm2069, %v8090, 0
    %v8142 = vsel %vm2069, %v8091, 0
    %8144 = vmatprep.subr.bf16.mxu0 0
    %8145 = vmatpush1.bf16.msra.mxu0 %v8121
    %8146 = vmatprep.subr.bf16.mxu0 0
    %8147 = vmatpush1.bf16.msra.mxu0 %v8123
    %8148 = vmatprep.subr.bf16.mxu0 0
    %8149 = vmatpush1.bf16.msra.mxu0 %v8125
    %8150 = vmatprep.subr.bf16.mxu0 0
    %8151 = vmatpush1.bf16.msra.mxu0 %v8127
    %8152 = vmatprep.subr.bf16.mxu0 0
    %8153 = vmatpush1.bf16.msra.mxu0 0
    %8154 = vmatprep.subr.bf16.mxu0 0
    %8155 = vmatpush1.bf16.msra.mxu0 0
    %8156 = vmatprep.subr.bf16.mxu0 0
    %8157 = vmatpush1.bf16.msra.mxu0 0
    %8158 = vmatprep.subr.bf16.mxu0 0
    %8159 = vmatpush1.bf16.msra.mxu0 0
    %8160 = vmatprep.subr.bf16.mxu0 0
    %8161 = vmatpush1.bf16.msra.mxu0 0
    %8162 = vmatprep.subr.bf16.mxu0 0
    %8163 = vmatpush1.bf16.msra.mxu0 0
    %8164 = vmatprep.subr.bf16.mxu0 0
    %8165 = vmatpush1.bf16.msra.mxu0 0
    %8166 = vmatprep.subr.bf16.mxu0 0
    %8167 = vmatpush1.bf16.msra.mxu0 0
    %8168 = vmatprep.subr.bf16.mxu0 0
    %8169 = vmatpush1.bf16.msra.mxu0 0
    %8170 = vmatprep.subr.bf16.mxu0 0
    %8171 = vmatpush1.bf16.msra.mxu0 0
    %8172 = vmatprep.subr.bf16.mxu0 0
    %8173 = vmatpush1.bf16.msra.mxu0 0
    %8174 = vmatprep.subr.bf16.mxu0 0
    %8175 = vmatpush1.bf16.msra.mxu0 0
    %8176 = vmatprep.mubr.bf16.mxu0 0
    %8177 = vmatmul.mubr.bf16.gmra.mrb[0].mxu0 %v8133
    %v8178 = vpop.f32.mrb[0].mxu0
    %v8179 = vadd.f32 0.0, %v8178
    %v8180 = vpop.f32.mrb[0].mxu0
    %v8181 = vpop.f32.mrb[0].mxu0
    %v8182 = vadd.f32 0.0, %v8181
    %v8183 = vpop.f32.mrb[0].mxu0
    %8184 = vmatprep.mubr.bf16.mxu0 0
    %8185 = vmatmul.mubr.bf16.gmra.mrb[0].mxu0 %v8136
    %v8186 = vpop.f32.mrb[0].mxu0
    %v8187 = vadd.f32 0.0, %v8186
    %v8188 = vpop.f32.mrb[0].mxu0
    %v8189 = vpop.f32.mrb[0].mxu0
    %v8190 = vadd.f32 0.0, %v8189
    %v8191 = vpop.f32.mrb[0].mxu0
    %8192 = vmatprep.mubr.bf16.mxu0 0
    %8193 = vmatmul.mubr.bf16.gmra.mrb[0].mxu0 %v8139
    %v8194 = vpop.f32.mrb[0].mxu0
    %v8195 = vadd.f32 0.0, %v8194
    %v8196 = vpop.f32.mrb[0].mxu0
    %v8197 = vpop.f32.mrb[0].mxu0
    %v8198 = vadd.f32 0.0, %v8197
    %v8199 = vpop.f32.mrb[0].mxu0
    %8200 = vmatprep.mubr.bf16.mxu0 0
    %8201 = vmatmul.mubr.bf16.gmra.mrb[0].mxu0 %v8142
    %v8202 = vpop.f32.mrb[0].mxu0
    %v8203 = vadd.f32 0.0, %v8202
    %v8204 = vpop.f32.mrb[0].mxu0
    %v8205 = vpop.f32.mrb[0].mxu0
    %v8206 = vadd.f32 0.0, %v8205
    %v8207 = vpop.f32.mrb[0].mxu0
    %8208 = vdwg.mxu0
    %8209 = vrot.lane.b32.xlu0 %v1328, 64
    %v8210 = vpop.permute.xlu0 %8209
    %8211 = vrot.lane.b32.xlu0 %v1329, 64
    %v8212 = vpop.permute.xlu0 %8211
    %8213 = vrot.lane.b32.xlu0 %v1330, 64
    %v8214 = vpop.permute.xlu0 %8213
    %8215 = vrot.lane.b32.xlu0 %v1331, 64
    %v8216 = vpop.permute.xlu0 %8215
    %v8222 = vsel %vm2069, %v8092, 0
    %v8225 = vsel %vm2069, %v8093, 0
    %v8228 = vsel %vm2069, %v8094, 0
    %v8231 = vsel %vm2069, %v8095, 0
    %8233 = vmatprep.subr.bf16.mxu0 0
    %8234 = vmatpush1.bf16.msra.mxu0 %v8210
    %8235 = vmatprep.subr.bf16.mxu0 0
    %8236 = vmatpush1.bf16.msra.mxu0 %v8212
    %8237 = vmatprep.subr.bf16.mxu0 0
    %8238 = vmatpush1.bf16.msra.mxu0 %v8214
    %8239 = vmatprep.subr.bf16.mxu0 0
    %8240 = vmatpush1.bf16.msra.mxu0 %v8216
    %8241 = vmatprep.subr.bf16.mxu0 0
    %8242 = vmatpush1.bf16.msra.mxu0 0
    %8243 = vmatprep.subr.bf16.mxu0 0
    %8244 = vmatpush1.bf16.msra.mxu0 0
    %8245 = vmatprep.subr.bf16.mxu0 0
    %8246 = vmatpush1.bf16.msra.mxu0 0
    %8247 = vmatprep.subr.bf16.mxu0 0
    %8248 = vmatpush1.bf16.msra.mxu0 0
    %8249 = vmatprep.subr.bf16.mxu0 0
    %8250 = vmatpush1.bf16.msra.mxu0 0
    %8251 = vmatprep.subr.bf16.mxu0 0
    %8252 = vmatpush1.bf16.msra.mxu0 0
    %8253 = vmatprep.subr.bf16.mxu0 0
    %8254 = vmatpush1.bf16.msra.mxu0 0
    %8255 = vmatprep.subr.bf16.mxu0 0
    %8256 = vmatpush1.bf16.msra.mxu0 0
    %8257 = vmatprep.subr.bf16.mxu0 0
    %8258 = vmatpush1.bf16.msra.mxu0 0
    %8259 = vmatprep.subr.bf16.mxu0 0
    %8260 = vmatpush1.bf16.msra.mxu0 0
    %8261 = vmatprep.subr.bf16.mxu0 0
    %8262 = vmatpush1.bf16.msra.mxu0 0
    %8263 = vmatprep.subr.bf16.mxu0 0
    %8264 = vmatpush1.bf16.msra.mxu0 0
    %8265 = vmatprep.mubr.bf16.mxu0 0
    %8266 = vmatmul.mubr.bf16.gmra.mrb[0].mxu0 %v8222
    %v8267 = vpop.f32.mrb[0].mxu0
    %v8268 = vadd.f32 0.0, %v8267
    %v8269 = vpop.f32.mrb[0].mxu0
    %v8270 = vpop.f32.mrb[0].mxu0
    %v8271 = vadd.f32 0.0, %v8270
    %v8272 = vpop.f32.mrb[0].mxu0
    %8273 = vmatprep.mubr.bf16.mxu0 0
    %8274 = vmatmul.mubr.bf16.gmra.mrb[0].mxu0 %v8225
    %v8275 = vpop.f32.mrb[0].mxu0
    %v8276 = vadd.f32 0.0, %v8275
    %v8277 = vpop.f32.mrb[0].mxu0
    %v8278 = vpop.f32.mrb[0].mxu0
    %v8279 = vadd.f32 0.0, %v8278
    %v8280 = vpop.f32.mrb[0].mxu0
    %8281 = vmatprep.mubr.bf16.mxu0 0
    %8282 = vmatmul.mubr.bf16.gmra.mrb[0].mxu0 %v8228
    %v8283 = vpop.f32.mrb[0].mxu0
    %v8284 = vadd.f32 0.0, %v8283
    %v8285 = vpop.f32.mrb[0].mxu0
    %v8286 = vpop.f32.mrb[0].mxu0
    %v8287 = vadd.f32 0.0, %v8286
    %v8288 = vpop.f32.mrb[0].mxu0
    %8289 = vmatprep.mubr.bf16.mxu0 0
    %8290 = vmatmul.mubr.bf16.gmra.mrb[0].mxu0 %v8231
    %v8291 = vpop.f32.mrb[0].mxu0
    %v8292 = vadd.f32 0.0, %v8291
    %v8293 = vpop.f32.mrb[0].mxu0
    %v8294 = vpop.f32.mrb[0].mxu0
    %v8295 = vadd.f32 0.0, %v8294
    %v8296 = vpop.f32.mrb[0].mxu0
    %8297 = vdwg.mxu0
    %8298 = vrot.lane.b32.xlu0 %v1332, 64
    %v8299 = vpop.permute.xlu0 %8298
    %8300 = vrot.lane.b32.xlu0 %v1333, 64
    %v8301 = vpop.permute.xlu0 %8300
    %8302 = vrot.lane.b32.xlu0 %v1334, 64
    %v8303 = vpop.permute.xlu0 %8302
    %8304 = vrot.lane.b32.xlu0 %v1335, 64
    %v8305 = vpop.permute.xlu0 %8304
    %v8311 = vsel %vm2069, %v8096, 0
    %v8314 = vsel %vm2069, %v8097, 0
    %v8317 = vsel %vm2069, %v8098, 0
    %v8320 = vsel %vm2069, %v8099, 0
    %8322 = vmatprep.subr.bf16.mxu0 0
    %8323 = vmatpush1.bf16.msra.mxu0 %v8299
    %8324 = vmatprep.subr.bf16.mxu0 0
    %8325 = vmatpush1.bf16.msra.mxu0 %v8301
    %8326 = vmatprep.subr.bf16.mxu0 0
    %8327 = vmatpush1.bf16.msra.mxu0 %v8303
    %8328 = vmatprep.subr.bf16.mxu0 0
    %8329 = vmatpush1.bf16.msra.mxu0 %v8305
    %8330 = vmatprep.subr.bf16.mxu0 0
    %8331 = vmatpush1.bf16.msra.mxu0 0
    %8332 = vmatprep.subr.bf16.mxu0 0
    %8333 = vmatpush1.bf16.msra.mxu0 0
    %8334 = vmatprep.subr.bf16.mxu0 0
    %8335 = vmatpush1.bf16.msra.mxu0 0
    %8336 = vmatprep.subr.bf16.mxu0 0
    %8337 = vmatpush1.bf16.msra.mxu0 0
    %8338 = vmatprep.subr.bf16.mxu0 0
    %8339 = vmatpush1.bf16.msra.mxu0 0
    %8340 = vmatprep.subr.bf16.mxu0 0
    %8341 = vmatpush1.bf16.msra.mxu0 0
    %8342 = vmatprep.subr.bf16.mxu0 0
    %8343 = vmatpush1.bf16.msra.mxu0 0
    %8344 = vmatprep.subr.bf16.mxu0 0
    %8345 = vmatpush1.bf16.msra.mxu0 0
    %8346 = vmatprep.subr.bf16.mxu0 0
    %8347 = vmatpush1.bf16.msra.mxu0 0
    %8348 = vmatprep.subr.bf16.mxu0 0
    %8349 = vmatpush1.bf16.msra.mxu0 0
    %8350 = vmatprep.subr.bf16.mxu0 0
    %8351 = vmatpush1.bf16.msra.mxu0 0
    %8352 = vmatprep.subr.bf16.mxu0 0
    %8353 = vmatpush1.bf16.msra.mxu0 0
    %8354 = vmatprep.mubr.bf16.mxu0 0
    %8355 = vmatmul.mubr.bf16.gmra.mrb[0].mxu0 %v8311
    %v8356 = vpop.f32.mrb[0].mxu0
    %v8357 = vadd.f32 0.0, %v8356
    %v8358 = vpop.f32.mrb[0].mxu0
    %v8359 = vpop.f32.mrb[0].mxu0
    %v8360 = vadd.f32 0.0, %v8359
    %v8361 = vpop.f32.mrb[0].mxu0
    %8362 = vmatprep.mubr.bf16.mxu0 0
    %8363 = vmatmul.mubr.bf16.gmra.mrb[0].mxu0 %v8314
    %v8364 = vpop.f32.mrb[0].mxu0
    %v8365 = vadd.f32 0.0, %v8364
    %v8366 = vpop.f32.mrb[0].mxu0
    %v8367 = vpop.f32.mrb[0].mxu0
    %v8368 = vadd.f32 0.0, %v8367
    %v8369 = vpop.f32.mrb[0].mxu0
    %8370 = vmatprep.mubr.bf16.mxu0 0
    %8371 = vmatmul.mubr.bf16.gmra.mrb[0].mxu0 %v8317
    %v8372 = vpop.f32.mrb[0].mxu0
    %v8373 = vadd.f32 0.0, %v8372
    %v8374 = vpop.f32.mrb[0].mxu0
    %v8375 = vpop.f32.mrb[0].mxu0
    %v8376 = vadd.f32 0.0, %v8375
    %v8377 = vpop.f32.mrb[0].mxu0
    %8378 = vmatprep.mubr.bf16.mxu0 0
    %8379 = vmatmul.mubr.bf16.gmra.mrb[0].mxu0 %v8320
    %v8380 = vpop.f32.mrb[0].mxu0
    %v8381 = vadd.f32 0.0, %v8380
    %v8382 = vpop.f32.mrb[0].mxu0
    %v8383 = vpop.f32.mrb[0].mxu0
    %v8384 = vadd.f32 0.0, %v8383
    %v8385 = vpop.f32.mrb[0].mxu0
    %8386 = vdwg.mxu0
    %8387 = vrot.lane.b32.xlu0 %v1336, 64
    %v8388 = vpop.permute.xlu0 %8387
    %8389 = vrot.lane.b32.xlu0 %v1337, 64
    %v8390 = vpop.permute.xlu0 %8389
    %8391 = vrot.lane.b32.xlu0 %v1338, 64
    %v8392 = vpop.permute.xlu0 %8391
    %8393 = vrot.lane.b32.xlu0 %v1339, 64
    %v8394 = vpop.permute.xlu0 %8393
    %v8400 = vsel %vm2069, %v8100, 0
    %v8403 = vsel %vm2069, %v8101, 0
    %v8406 = vsel %vm2069, %v8102, 0
    %v8409 = vsel %vm2069, %v8103, 0
    %8411 = vmatprep.subr.bf16.mxu0 0
    %8412 = vmatpush1.bf16.msra.mxu0 %v8388
    %8413 = vmatprep.subr.bf16.mxu0 0
    %8414 = vmatpush1.bf16.msra.mxu0 %v8390
    %8415 = vmatprep.subr.bf16.mxu0 0
    %8416 = vmatpush1.bf16.msra.mxu0 %v8392
    %8417 = vmatprep.subr.bf16.mxu0 0
    %8418 = vmatpush1.bf16.msra.mxu0 %v8394
    %8419 = vmatprep.subr.bf16.mxu0 0
    %8420 = vmatpush1.bf16.msra.mxu0 0
    %8421 = vmatprep.subr.bf16.mxu0 0
    %8422 = vmatpush1.bf16.msra.mxu0 0
    %8423 = vmatprep.subr.bf16.mxu0 0
    %8424 = vmatpush1.bf16.msra.mxu0 0
    %8425 = vmatprep.subr.bf16.mxu0 0
    %8426 = vmatpush1.bf16.msra.mxu0 0
    %8427 = vmatprep.subr.bf16.mxu0 0
    %8428 = vmatpush1.bf16.msra.mxu0 0
    %8429 = vmatprep.subr.bf16.mxu0 0
    %8430 = vmatpush1.bf16.msra.mxu0 0
    %8431 = vmatprep.subr.bf16.mxu0 0
    %8432 = vmatpush1.bf16.msra.mxu0 0
    %8433 = vmatprep.subr.bf16.mxu0 0
    %8434 = vmatpush1.bf16.msra.mxu0 0
    %8435 = vmatprep.subr.bf16.mxu0 0
    %8436 = vmatpush1.bf16.msra.mxu0 0
    %8437 = vmatprep.subr.bf16.mxu0 0
    %8438 = vmatpush1.bf16.msra.mxu0 0
    %8439 = vmatprep.subr.bf16.mxu0 0
    %8440 = vmatpush1.bf16.msra.mxu0 0
    %8441 = vmatprep.subr.bf16.mxu0 0
    %8442 = vmatpush1.bf16.msra.mxu0 0
    %8443 = vmatprep.mubr.bf16.mxu0 0
    %8444 = vmatmul.mubr.bf16.gmra.mrb[0].mxu0 %v8400
    %v8445 = vpop.f32.mrb[0].mxu0
    %v8446 = vadd.f32 0.0, %v8445
    %v8447 = vpop.f32.mrb[0].mxu0
    %v8448 = vpop.f32.mrb[0].mxu0
    %v8449 = vadd.f32 0.0, %v8448
    %v8450 = vpop.f32.mrb[0].mxu0
    %8451 = vmatprep.mubr.bf16.mxu0 0
    %8452 = vmatmul.mubr.bf16.gmra.mrb[0].mxu0 %v8403
    %v8453 = vpop.f32.mrb[0].mxu0
    %v8454 = vadd.f32 0.0, %v8453
    %v8455 = vpop.f32.mrb[0].mxu0
    %v8456 = vpop.f32.mrb[0].mxu0
    %v8457 = vadd.f32 0.0, %v8456
    %v8458 = vpop.f32.mrb[0].mxu0
    %8459 = vmatprep.mubr.bf16.mxu0 0
    %8460 = vmatmul.mubr.bf16.gmra.mrb[0].mxu0 %v8406
    %v8461 = vpop.f32.mrb[0].mxu0
    %v8462 = vadd.f32 0.0, %v8461
    %v8463 = vpop.f32.mrb[0].mxu0
    %v8464 = vpop.f32.mrb[0].mxu0
    %v8465 = vadd.f32 0.0, %v8464
    %v8466 = vpop.f32.mrb[0].mxu0
    %8467 = vmatprep.mubr.bf16.mxu0 0
    %8468 = vmatmul.mubr.bf16.gmra.mrb[0].mxu0 %v8409
    %v8469 = vpop.f32.mrb[0].mxu0
    %v8470 = vadd.f32 0.0, %v8469
    %v8471 = vpop.f32.mrb[0].mxu0
    %v8472 = vpop.f32.mrb[0].mxu0
    %v8473 = vadd.f32 0.0, %v8472
    %v8474 = vpop.f32.mrb[0].mxu0
    %8475 = vdwg.mxu0
    %8476 = vrot.lane.b32.xlu0 %v1340, 64
    %v8477 = vpop.permute.xlu0 %8476
    %8478 = vrot.lane.b32.xlu0 %v1341, 64
    %v8479 = vpop.permute.xlu0 %8478
    %8480 = vrot.lane.b32.xlu0 %v1342, 64
    %v8481 = vpop.permute.xlu0 %8480
    %8482 = vrot.lane.b32.xlu0 %v1343, 64
    %v8483 = vpop.permute.xlu0 %8482
    %v8489 = vsel %vm2069, %v8104, 0
    %v8492 = vsel %vm2069, %v8105, 0
    %v8495 = vsel %vm2069, %v8106, 0
    %v8498 = vsel %vm2069, %v8107, 0
    %8500 = vmatprep.subr.bf16.mxu0 0
    %8501 = vmatpush1.bf16.msra.mxu0 %v8477
    %8502 = vmatprep.subr.bf16.mxu0 0
    %8503 = vmatpush1.bf16.msra.mxu0 %v8479
    %8504 = vmatprep.subr.bf16.mxu0 0
    %8505 = vmatpush1.bf16.msra.mxu0 %v8481
    %8506 = vmatprep.subr.bf16.mxu0 0
    %8507 = vmatpush1.bf16.msra.mxu0 %v8483
    %8508 = vmatprep.subr.bf16.mxu0 0
    %8509 = vmatpush1.bf16.msra.mxu0 0
    %8510 = vmatprep.subr.bf16.mxu0 0
    %8511 = vmatpush1.bf16.msra.mxu0 0
    %8512 = vmatprep.subr.bf16.mxu0 0
    %8513 = vmatpush1.bf16.msra.mxu0 0
    %8514 = vmatprep.subr.bf16.mxu0 0
    %8515 = vmatpush1.bf16.msra.mxu0 0
    %8516 = vmatprep.subr.bf16.mxu0 0
    %8517 = vmatpush1.bf16.msra.mxu0 0
    %8518 = vmatprep.subr.bf16.mxu0 0
    %8519 = vmatpush1.bf16.msra.mxu0 0
    %8520 = vmatprep.subr.bf16.mxu0 0
    %8521 = vmatpush1.bf16.msra.mxu0 0
    %8522 = vmatprep.subr.bf16.mxu0 0
    %8523 = vmatpush1.bf16.msra.mxu0 0
    %8524 = vmatprep.subr.bf16.mxu0 0
    %8525 = vmatpush1.bf16.msra.mxu0 0
    %8526 = vmatprep.subr.bf16.mxu0 0
    %8527 = vmatpush1.bf16.msra.mxu0 0
    %8528 = vmatprep.subr.bf16.mxu0 0
    %8529 = vmatpush1.bf16.msra.mxu0 0
    %8530 = vmatprep.subr.bf16.mxu0 0
    %8531 = vmatpush1.bf16.msra.mxu0 0
    %8532 = vmatprep.mubr.bf16.mxu0 0
    %8533 = vmatmul.mubr.bf16.gmra.mrb[0].mxu0 %v8489
    %v8534 = vpop.f32.mrb[0].mxu0
    %v8535 = vadd.f32 0.0, %v8534
    %v8536 = vpop.f32.mrb[0].mxu0
    %v8537 = vpop.f32.mrb[0].mxu0
    %v8538 = vadd.f32 0.0, %v8537
    %v8539 = vpop.f32.mrb[0].mxu0
    %8540 = vmatprep.mubr.bf16.mxu0 0
    %8541 = vmatmul.mubr.bf16.gmra.mrb[0].mxu0 %v8492
    %v8542 = vpop.f32.mrb[0].mxu0
    %v8543 = vadd.f32 0.0, %v8542
    %v8544 = vpop.f32.mrb[0].mxu0
    %v8545 = vpop.f32.mrb[0].mxu0
    %v8546 = vadd.f32 0.0, %v8545
    %v8547 = vpop.f32.mrb[0].mxu0
    %8548 = vmatprep.mubr.bf16.mxu0 0
    %8549 = vmatmul.mubr.bf16.gmra.mrb[0].mxu0 %v8495
    %v8550 = vpop.f32.mrb[0].mxu0
    %v8551 = vadd.f32 0.0, %v8550
    %v8552 = vpop.f32.mrb[0].mxu0
    %v8553 = vpop.f32.mrb[0].mxu0
    %v8554 = vadd.f32 0.0, %v8553
    %v8555 = vpop.f32.mrb[0].mxu0
    %8556 = vmatprep.mubr.bf16.mxu0 0
    %8557 = vmatmul.mubr.bf16.gmra.mrb[0].mxu0 %v8498
    %v8558 = vpop.f32.mrb[0].mxu0
    %v8559 = vadd.f32 0.0, %v8558
    %v8560 = vpop.f32.mrb[0].mxu0
    %v8561 = vpop.f32.mrb[0].mxu0
    %v8562 = vadd.f32 0.0, %v8561
    %v8563 = vpop.f32.mrb[0].mxu0
    %8564 = vdwg.mxu0
    %8565 = vrot.lane.b32.xlu0 %v1344, 64
    %v8566 = vpop.permute.xlu0 %8565
    %8567 = vrot.lane.b32.xlu0 %v1345, 64
    %v8568 = vpop.permute.xlu0 %8567
    %8569 = vrot.lane.b32.xlu0 %v1346, 64
    %v8570 = vpop.permute.xlu0 %8569
    %8571 = vrot.lane.b32.xlu0 %v1347, 64
    %v8572 = vpop.permute.xlu0 %8571
    %v8578 = vsel %vm2069, %v8108, 0
    %v8581 = vsel %vm2069, %v8109, 0
    %v8584 = vsel %vm2069, %v8110, 0
    %v8587 = vsel %vm2069, %v8111, 0
    %8589 = vmatprep.subr.bf16.mxu0 0
    %8590 = vmatpush1.bf16.msra.mxu0 %v8566
    %8591 = vmatprep.subr.bf16.mxu0 0
    %8592 = vmatpush1.bf16.msra.mxu0 %v8568
    %8593 = vmatprep.subr.bf16.mxu0 0
    %8594 = vmatpush1.bf16.msra.mxu0 %v8570
    %8595 = vmatprep.subr.bf16.mxu0 0
    %8596 = vmatpush1.bf16.msra.mxu0 %v8572
    %8597 = vmatprep.subr.bf16.mxu0 0
    %8598 = vmatpush1.bf16.msra.mxu0 0
    %8599 = vmatprep.subr.bf16.mxu0 0
    %8600 = vmatpush1.bf16.msra.mxu0 0
    %8601 = vmatprep.subr.bf16.mxu0 0
    %8602 = vmatpush1.bf16.msra.mxu0 0
    %8603 = vmatprep.subr.bf16.mxu0 0
    %8604 = vmatpush1.bf16.msra.mxu0 0
    %8605 = vmatprep.subr.bf16.mxu0 0
    %8606 = vmatpush1.bf16.msra.mxu0 0
    %8607 = vmatprep.subr.bf16.mxu0 0
    %8608 = vmatpush1.bf16.msra.mxu0 0
    %8609 = vmatprep.subr.bf16.mxu0 0
    %8610 = vmatpush1.bf16.msra.mxu0 0
    %8611 = vmatprep.subr.bf16.mxu0 0
    %8612 = vmatpush1.bf16.msra.mxu0 0
    %8613 = vmatprep.subr.bf16.mxu0 0
    %8614 = vmatpush1.bf16.msra.mxu0 0
    %8615 = vmatprep.subr.bf16.mxu0 0
    %8616 = vmatpush1.bf16.msra.mxu0 0
    %8617 = vmatprep.subr.bf16.mxu0 0
    %8618 = vmatpush1.bf16.msra.mxu0 0
    %8619 = vmatprep.subr.bf16.mxu0 0
    %8620 = vmatpush1.bf16.msra.mxu0 0
    %8621 = vmatprep.mubr.bf16.mxu0 0
    %8622 = vmatmul.mubr.bf16.gmra.mrb[0].mxu0 %v8578
    %v8623 = vpop.f32.mrb[0].mxu0
    %v8624 = vadd.f32 0.0, %v8623
    %v8625 = vpop.f32.mrb[0].mxu0
    %v8626 = vpop.f32.mrb[0].mxu0
    %v8627 = vadd.f32 0.0, %v8626
    %v8628 = vpop.f32.mrb[0].mxu0
    %8629 = vmatprep.mubr.bf16.mxu0 0
    %8630 = vmatmul.mubr.bf16.gmra.mrb[0].mxu0 %v8581
    %v8631 = vpop.f32.mrb[0].mxu0
    %v8632 = vadd.f32 0.0, %v8631
    %v8633 = vpop.f32.mrb[0].mxu0
    %v8634 = vpop.f32.mrb[0].mxu0
    %v8635 = vadd.f32 0.0, %v8634
    %v8636 = vpop.f32.mrb[0].mxu0
    %8637 = vmatprep.mubr.bf16.mxu0 0
    %8638 = vmatmul.mubr.bf16.gmra.mrb[0].mxu0 %v8584
    %v8639 = vpop.f32.mrb[0].mxu0
    %v8640 = vadd.f32 0.0, %v8639
    %v8641 = vpop.f32.mrb[0].mxu0
    %v8642 = vpop.f32.mrb[0].mxu0
    %v8643 = vadd.f32 0.0, %v8642
    %v8644 = vpop.f32.mrb[0].mxu0
    %8645 = vmatprep.mubr.bf16.mxu0 0
    %8646 = vmatmul.mubr.bf16.gmra.mrb[0].mxu0 %v8587
    %v8647 = vpop.f32.mrb[0].mxu0
    %v8648 = vadd.f32 0.0, %v8647
    %v8649 = vpop.f32.mrb[0].mxu0
    %v8650 = vpop.f32.mrb[0].mxu0
    %v8651 = vadd.f32 0.0, %v8650
    %v8652 = vpop.f32.mrb[0].mxu0
    %8653 = vdwg.mxu0
    %8654 = vrot.lane.b32.xlu0 %v1348, 64
    %v8655 = vpop.permute.xlu0 %8654
    %8656 = vrot.lane.b32.xlu0 %v1349, 64
    %v8657 = vpop.permute.xlu0 %8656
    %8658 = vrot.lane.b32.xlu0 %v1350, 64
    %v8659 = vpop.permute.xlu0 %8658
    %8660 = vrot.lane.b32.xlu0 %v1351, 64
    %v8661 = vpop.permute.xlu0 %8660
    %v8667 = vsel %vm2069, %v8112, 0
    %v8670 = vsel %vm2069, %v8113, 0
    %v8673 = vsel %vm2069, %v8114, 0
    %v8676 = vsel %vm2069, %v8115, 0
    %8678 = vmatprep.subr.bf16.mxu0 0
    %8679 = vmatpush1.bf16.msra.mxu0 %v8655
    %8680 = vmatprep.subr.bf16.mxu0 0
    %8681 = vmatpush1.bf16.msra.mxu0 %v8657
    %8682 = vmatprep.subr.bf16.mxu0 0
    %8683 = vmatpush1.bf16.msra.mxu0 %v8659
    %8684 = vmatprep.subr.bf16.mxu0 0
    %8685 = vmatpush1.bf16.msra.mxu0 %v8661
    %8686 = vmatprep.subr.bf16.mxu0 0
    %8687 = vmatpush1.bf16.msra.mxu0 0
    %8688 = vmatprep.subr.bf16.mxu0 0
    %8689 = vmatpush1.bf16.msra.mxu0 0
    %8690 = vmatprep.subr.bf16.mxu0 0
    %8691 = vmatpush1.bf16.msra.mxu0 0
    %8692 = vmatprep.subr.bf16.mxu0 0
    %8693 = vmatpush1.bf16.msra.mxu0 0
    %8694 = vmatprep.subr.bf16.mxu0 0
    %8695 = vmatpush1.bf16.msra.mxu0 0
    %8696 = vmatprep.subr.bf16.mxu0 0
    %8697 = vmatpush1.bf16.msra.mxu0 0
    %8698 = vmatprep.subr.bf16.mxu0 0
    %8699 = vmatpush1.bf16.msra.mxu0 0
    %8700 = vmatprep.subr.bf16.mxu0 0
    %8701 = vmatpush1.bf16.msra.mxu0 0
    %8702 = vmatprep.subr.bf16.mxu0 0
    %8703 = vmatpush1.bf16.msra.mxu0 0
    %8704 = vmatprep.subr.bf16.mxu0 0
    %8705 = vmatpush1.bf16.msra.mxu0 0
    %8706 = vmatprep.subr.bf16.mxu0 0
    %8707 = vmatpush1.bf16.msra.mxu0 0
    %8708 = vmatprep.subr.bf16.mxu0 0
    %8709 = vmatpush1.bf16.msra.mxu0 0
    %8710 = vmatprep.mubr.bf16.mxu0 0
    %8711 = vmatmul.mubr.bf16.gmra.mrb[0].mxu0 %v8667
    %v8712 = vpop.f32.mrb[0].mxu0
    %v8713 = vadd.f32 0.0, %v8712
    %v8714 = vpop.f32.mrb[0].mxu0
    %v8715 = vpop.f32.mrb[0].mxu0
    %v8716 = vadd.f32 0.0, %v8715
    %v8717 = vpop.f32.mrb[0].mxu0
    %8718 = vmatprep.mubr.bf16.mxu0 0
    %8719 = vmatmul.mubr.bf16.gmra.mrb[0].mxu0 %v8670
    %v8720 = vpop.f32.mrb[0].mxu0
    %v8721 = vadd.f32 0.0, %v8720
    %v8722 = vpop.f32.mrb[0].mxu0
    %v8723 = vpop.f32.mrb[0].mxu0
    %v8724 = vadd.f32 0.0, %v8723
    %v8725 = vpop.f32.mrb[0].mxu0
    %8726 = vmatprep.mubr.bf16.mxu0 0
    %8727 = vmatmul.mubr.bf16.gmra.mrb[0].mxu0 %v8673
    %v8728 = vpop.f32.mrb[0].mxu0
    %v8729 = vadd.f32 0.0, %v8728
    %v8730 = vpop.f32.mrb[0].mxu0
    %v8731 = vpop.f32.mrb[0].mxu0
    %v8732 = vadd.f32 0.0, %v8731
    %v8733 = vpop.f32.mrb[0].mxu0
    %8734 = vmatprep.mubr.bf16.mxu0 0
    %8735 = vmatmul.mubr.bf16.gmra.mrb[0].mxu0 %v8676
    %v8736 = vpop.f32.mrb[0].mxu0
    %v8737 = vadd.f32 0.0, %v8736
    %v8738 = vpop.f32.mrb[0].mxu0
    %v8739 = vpop.f32.mrb[0].mxu0
    %v8740 = vadd.f32 0.0, %v8739
    %v8741 = vpop.f32.mrb[0].mxu0
    %8742 = vdwg.mxu0
    %8743 = vrot.lane.b32.xlu0 %v1352, 64
    %v8744 = vpop.permute.xlu0 %8743
    %8745 = vrot.lane.b32.xlu0 %v1353, 64
    %v8746 = vpop.permute.xlu0 %8745
    %8747 = vrot.lane.b32.xlu0 %v1354, 64
    %v8748 = vpop.permute.xlu0 %8747
    %8749 = vrot.lane.b32.xlu0 %v1355, 64
    %v8750 = vpop.permute.xlu0 %8749
    %v8756 = vsel %vm2069, %v8116, 0
    %v8759 = vsel %vm2069, %v8117, 0
    %v8762 = vsel %vm2069, %v8118, 0
    %v8765 = vsel %vm2069, %v8119, 0
    %8767 = vmatprep.subr.bf16.mxu0 0
    %8768 = vmatpush1.bf16.msra.mxu0 %v8744
    %8769 = vmatprep.subr.bf16.mxu0 0
    %8770 = vmatpush1.bf16.msra.mxu0 %v8746
    %8771 = vmatprep.subr.bf16.mxu0 0
    %8772 = vmatpush1.bf16.msra.mxu0 %v8748
    %8773 = vmatprep.subr.bf16.mxu0 0
    %8774 = vmatpush1.bf16.msra.mxu0 %v8750
    %8775 = vmatprep.subr.bf16.mxu0 0
    %8776 = vmatpush1.bf16.msra.mxu0 0
    %8777 = vmatprep.subr.bf16.mxu0 0
    %8778 = vmatpush1.bf16.msra.mxu0 0
    %8779 = vmatprep.subr.bf16.mxu0 0
    %8780 = vmatpush1.bf16.msra.mxu0 0
    %8781 = vmatprep.subr.bf16.mxu0 0
    %8782 = vmatpush1.bf16.msra.mxu0 0
    %8783 = vmatprep.subr.bf16.mxu0 0
    %8784 = vmatpush1.bf16.msra.mxu0 0
    %8785 = vmatprep.subr.bf16.mxu0 0
    %8786 = vmatpush1.bf16.msra.mxu0 0
    %8787 = vmatprep.subr.bf16.mxu0 0
    %8788 = vmatpush1.bf16.msra.mxu0 0
    %8789 = vmatprep.subr.bf16.mxu0 0
    %8790 = vmatpush1.bf16.msra.mxu0 0
    %8791 = vmatprep.subr.bf16.mxu0 0
    %8792 = vmatpush1.bf16.msra.mxu0 0
    %8793 = vmatprep.subr.bf16.mxu0 0
    %8794 = vmatpush1.bf16.msra.mxu0 0
    %8795 = vmatprep.subr.bf16.mxu0 0
    %8796 = vmatpush1.bf16.msra.mxu0 0
    %8797 = vmatprep.subr.bf16.mxu0 0
    %8798 = vmatpush1.bf16.msra.mxu0 0
    %8799 = vmatprep.mubr.bf16.mxu0 0
    %8800 = vmatmul.mubr.bf16.gmra.mrb[0].mxu0 %v8756
    %v8801 = vpop.f32.mrb[0].mxu0
    %v8802 = vadd.f32 0.0, %v8801
    %v8803 = vpop.f32.mrb[0].mxu0
    %v8804 = vpop.f32.mrb[0].mxu0
    %v8805 = vadd.f32 0.0, %v8804
    %v8806 = vpop.f32.mrb[0].mxu0
    %8807 = vmatprep.mubr.bf16.mxu0 0
    %8808 = vmatmul.mubr.bf16.gmra.mrb[0].mxu0 %v8759
    %v8809 = vpop.f32.mrb[0].mxu0
    %v8810 = vadd.f32 0.0, %v8809
    %v8811 = vpop.f32.mrb[0].mxu0
    %v8812 = vpop.f32.mrb[0].mxu0
    %v8813 = vadd.f32 0.0, %v8812
    %v8814 = vpop.f32.mrb[0].mxu0
    %8815 = vmatprep.mubr.bf16.mxu0 0
    %8816 = vmatmul.mubr.bf16.gmra.mrb[0].mxu0 %v8762
    %v8817 = vpop.f32.mrb[0].mxu0
    %v8818 = vadd.f32 0.0, %v8817
    %v8819 = vpop.f32.mrb[0].mxu0
    %v8820 = vpop.f32.mrb[0].mxu0
    %v8821 = vadd.f32 0.0, %v8820
    %v8822 = vpop.f32.mrb[0].mxu0
    %8823 = vmatprep.mubr.bf16.mxu0 0
    %8824 = vmatmul.mubr.bf16.gmra.mrb[0].mxu0 %v8765
    %v8825 = vpop.f32.mrb[0].mxu0
    %v8826 = vadd.f32 0.0, %v8825
    %v8827 = vpop.f32.mrb[0].mxu0
    %v8828 = vpop.f32.mrb[0].mxu0
    %v8829 = vadd.f32 0.0, %v8828
    %v8830 = vpop.f32.mrb[0].mxu0
    %8831 = vdwg.mxu0
    %v8832 = vrcp.pop %v7898
    %v8833 = vrcp.pop %v7901
    %v8834 = vrcp.pop %v7904
    %v8835 = vrcp.pop %v7907
    %v8836 = vrcp.pop %v7910
    %v8837 = vrcp.pop %v7913
    %v8838 = vrcp.pop %v7916
    %v8839 = vrcp.pop %v7919
    %v8840 = vrcp.pop %v7922
    %v8841 = vrcp.pop %v7925
    %v8842 = vrcp.pop %v7928
    %v8843 = vrcp.pop %v7931
    %v8844 = vrcp.pop %v7934
    %v8845 = vrcp.pop %v7937
    %v8846 = vrcp.pop %v7940
    %v8847 = vrcp.pop %v7943
    %v8848 = vrcp.pop %v7946
    %v8849 = vrcp.pop %v7949
    %v8850 = vrcp.pop %v7952
    %v8851 = vrcp.pop %v7955
    %v8852 = vrcp.pop %v7958
    %v8853 = vrcp.pop %v7961
    %v8854 = vrcp.pop %v7964
    %v8855 = vrcp.pop %v7967
    %v8856 = vrcp.pop %v7970
    %v8857 = vrcp.pop %v7973
    %v8858 = vrcp.pop %v7976
    %v8859 = vrcp.pop %v7979
    %v8860 = vrcp.pop %v7982
    %v8861 = vrcp.pop %v7985
    %v8862 = vrcp.pop %v7988
    %v8863 = vrcp.pop %v7991
    %v8864 = vrcp.pop %v7994
    %v8865 = vrcp.pop %v7997
    %v8866 = vrcp.pop %v8000
    %v8867 = vrcp.pop %v8003
    %v8868 = vrcp.pop %v8006
    %v8869 = vrcp.pop %v8009
    %v8870 = vrcp.pop %v8012
    %v8871 = vrcp.pop %v8015
    %v8872 = vrcp.pop %v8018
    %v8873 = vrcp.pop %v8021
    %v8874 = vrcp.pop %v8024
    %v8875 = vrcp.pop %v8027
    %v8876 = vrcp.pop %v8030
    %v8877 = vrcp.pop %v8033
    %v8878 = vrcp.pop %v8036
    %v8879 = vrcp.pop %v8039
    %v8880 = vrcp.pop %v8042
    %v8881 = vrcp.pop %v8045
    %v8882 = vrcp.pop %v8048
    %v8883 = vrcp.pop %v8051
    %v8884 = vrcp.pop %v8054
    %v8885 = vrcp.pop %v8057
    %v8886 = vrcp.pop %v8060
    %v8887 = vrcp.pop %v8063
    %v8888 = vrcp.pop %v8066
    %v8889 = vrcp.pop %v8069
    %v8890 = vrcp.pop %v8072
    %v8891 = vrcp.pop %v8075
    %v8892 = vrcp.pop %v8078
    %v8893 = vrcp.pop %v8081
    %v8894 = vrcp.pop %v8084
    %v8895 = vrcp.pop %v8087
    %v8896 = vmul.f32 %v8179, %v8832
    %v8897 = vmul.f32 %v8182, %v8833
    %v8898 = vmul.f32 %v8187, %v8834
    %v8899 = vmul.f32 %v8190, %v8835
    %v8900 = vmul.f32 %v8195, %v8836
    %v8901 = vmul.f32 %v8198, %v8837
    %v8902 = vmul.f32 %v8203, %v8838
    %v8903 = vmul.f32 %v8206, %v8839
    %v8904 = vmul.f32 %v8268, %v8840
    %v8905 = vmul.f32 %v8271, %v8841
    %v8906 = vmul.f32 %v8276, %v8842
    %v8907 = vmul.f32 %v8279, %v8843
    %v8908 = vmul.f32 %v8284, %v8844
    %v8909 = vmul.f32 %v8287, %v8845
    %v8910 = vmul.f32 %v8292, %v8846
    %v8911 = vmul.f32 %v8295, %v8847
    %v8912 = vmul.f32 %v8357, %v8848
    %v8913 = vmul.f32 %v8360, %v8849
    %v8914 = vmul.f32 %v8365, %v8850
    %v8915 = vmul.f32 %v8368, %v8851
    %v8916 = vmul.f32 %v8373, %v8852
    %v8917 = vmul.f32 %v8376, %v8853
    %v8918 = vmul.f32 %v8381, %v8854
    %v8919 = vmul.f32 %v8384, %v8855
    %v8920 = vmul.f32 %v8446, %v8856
    %v8921 = vmul.f32 %v8449, %v8857
    %v8922 = vmul.f32 %v8454, %v8858
    %v8923 = vmul.f32 %v8457, %v8859
    %v8924 = vmul.f32 %v8462, %v8860
    %v8925 = vmul.f32 %v8465, %v8861
    %v8926 = vmul.f32 %v8470, %v8862
    %v8927 = vmul.f32 %v8473, %v8863
    %v8928 = vmul.f32 %v8535, %v8864
    %v8929 = vmul.f32 %v8538, %v8865
    %v8930 = vmul.f32 %v8543, %v8866
    %v8931 = vmul.f32 %v8546, %v8867
    %v8932 = vmul.f32 %v8551, %v8868
    %v8933 = vmul.f32 %v8554, %v8869
    %v8934 = vmul.f32 %v8559, %v8870
    %v8935 = vmul.f32 %v8562, %v8871
    %v8936 = vmul.f32 %v8624, %v8872
    %v8937 = vmul.f32 %v8627, %v8873
    %v8938 = vmul.f32 %v8632, %v8874
    %v8939 = vmul.f32 %v8635, %v8875
    %v8940 = vmul.f32 %v8640, %v8876
    %v8941 = vmul.f32 %v8643, %v8877
    %v8942 = vmul.f32 %v8648, %v8878
    %v8943 = vmul.f32 %v8651, %v8879
    %v8944 = vmul.f32 %v8713, %v8880
    %v8945 = vmul.f32 %v8716, %v8881
    %v8946 = vmul.f32 %v8721, %v8882
    %v8947 = vmul.f32 %v8724, %v8883
    %v8948 = vmul.f32 %v8729, %v8884
    %v8949 = vmul.f32 %v8732, %v8885
    %v8950 = vmul.f32 %v8737, %v8886
    %v8951 = vmul.f32 %v8740, %v8887
    %v8952 = vmul.f32 %v8802, %v8888
    %v8953 = vmul.f32 %v8805, %v8889
    %v8954 = vmul.f32 %v8810, %v8890
    %v8955 = vmul.f32 %v8813, %v8891
    %v8956 = vmul.f32 %v8818, %v8892
    %v8957 = vmul.f32 %v8821, %v8893
    %v8958 = vmul.f32 %v8826, %v8894
    %v8959 = vmul.f32 %v8829, %v8895
    %v8960 = vpack.c.bf16 %v8897, %v8896
    %v8961 = vpack.c.bf16 %v8899, %v8898
    %v8962 = vpack.c.bf16 %v8901, %v8900
    %v8963 = vpack.c.bf16 %v8903, %v8902
    %v8964 = vpack.c.bf16 %v8905, %v8904
    %v8965 = vpack.c.bf16 %v8907, %v8906
    %v8966 = vpack.c.bf16 %v8909, %v8908
    %v8967 = vpack.c.bf16 %v8911, %v8910
    %v8968 = vpack.c.bf16 %v8913, %v8912
    %v8969 = vpack.c.bf16 %v8915, %v8914
    %v8970 = vpack.c.bf16 %v8917, %v8916
    %v8971 = vpack.c.bf16 %v8919, %v8918
    %v8972 = vpack.c.bf16 %v8921, %v8920
    %v8973 = vpack.c.bf16 %v8923, %v8922
    %v8974 = vpack.c.bf16 %v8925, %v8924
    %v8975 = vpack.c.bf16 %v8927, %v8926
    %v8976 = vpack.c.bf16 %v8929, %v8928
    %v8977 = vpack.c.bf16 %v8931, %v8930
    %v8978 = vpack.c.bf16 %v8933, %v8932
    %v8979 = vpack.c.bf16 %v8935, %v8934
    %v8980 = vpack.c.bf16 %v8937, %v8936
    %v8981 = vpack.c.bf16 %v8939, %v8938
    %v8982 = vpack.c.bf16 %v8941, %v8940
    %v8983 = vpack.c.bf16 %v8943, %v8942
    %v8984 = vpack.c.bf16 %v8945, %v8944
    %v8985 = vpack.c.bf16 %v8947, %v8946
    %v8986 = vpack.c.bf16 %v8949, %v8948
    %v8987 = vpack.c.bf16 %v8951, %v8950
    %v8988 = vpack.c.bf16 %v8953, %v8952
    %v8989 = vpack.c.bf16 %v8955, %v8954
    %v8990 = vpack.c.bf16 %v8957, %v8956
    %v8991 = vpack.c.bf16 %v8959, %v8958
    %v8992 = vld [vmem:[#allocation10 + $0x20] sm:$0xf]
    %v8993 = vld [vmem:[#allocation10 + $0x24] sm:$0xf]
    %v8994 = vld [vmem:[#allocation10 + $0x28] sm:$0xf]
    %v8995 = vld [vmem:[#allocation10 + $0x2c] sm:$0xf]
    %v9000 = vunpack.c.l.b16 %v8992
    %v9001 = vunpack.c.l.b16 %v8993
    %v9002 = vunpack.c.l.b16 %v8994
    %v9003 = vunpack.c.l.b16 %v8995
    %v9004 = vpack.c.b16 %v9001, %v9000
    %v9005 = vpack.c.b16 %v9003, %v9002
    %v9009 = vsel %vm1356, %v8960, 0
    %v9012 = vsel %vm1356, %v8961, 0
    %v9015 = vsel %vm1356, %v8962, 0
    %v9018 = vsel %vm1356, %v8963, 0
    %v9021 = vsel %vm1356, %v8964, 0
    %v9024 = vsel %vm1356, %v8965, 0
    %v9027 = vsel %vm1356, %v8966, 0
    %v9030 = vsel %vm1356, %v8967, 0
    %v9033 = vsel %vm1356, %v8968, 0
    %v9036 = vsel %vm1356, %v8969, 0
    %v9039 = vsel %vm1356, %v8970, 0
    %v9042 = vsel %vm1356, %v8971, 0
    %v9045 = vsel %vm1356, %v8972, 0
    %v9048 = vsel %vm1356, %v8973, 0
    %v9051 = vsel %vm1356, %v8974, 0
    %v9054 = vsel %vm1356, %v8975, 0
    %v9057 = vsel %vm1356, %v8976, 0
    %v9060 = vsel %vm1356, %v8977, 0
    %v9063 = vsel %vm1356, %v8978, 0
    %v9066 = vsel %vm1356, %v8979, 0
    %v9069 = vsel %vm1356, %v8980, 0
    %v9072 = vsel %vm1356, %v8981, 0
    %v9075 = vsel %vm1356, %v8982, 0
    %v9078 = vsel %vm1356, %v8983, 0
    %v9081 = vsel %vm1356, %v8984, 0
    %v9084 = vsel %vm1356, %v8985, 0
    %v9087 = vsel %vm1356, %v8986, 0
    %v9090 = vsel %vm1356, %v8987, 0
    %v9093 = vsel %vm1356, %v8988, 0
    %v9096 = vsel %vm1356, %v8989, 0
    %v9099 = vsel %vm1356, %v8990, 0
    %v9102 = vsel %vm1356, %v8991, 0
    %9104 = vmatprep.subr.bf16.mxu0 0
    %9105 = vmatpush1.bf16.msra.mxu0 %v9004
    %9106 = vmatprep.subr.bf16.mxu0 0
    %9107 = vmatpush1.bf16.msra.mxu0 %v9005
    %9108 = vmatprep.subr.bf16.mxu0 0
    %9109 = vmatpush1.bf16.msra.mxu0 0
    %9110 = vmatprep.subr.bf16.mxu0 0
    %9111 = vmatpush1.bf16.msra.mxu0 0
    %9112 = vmatprep.subr.bf16.mxu0 0
    %9113 = vmatpush1.bf16.msra.mxu0 0
    %9114 = vmatprep.subr.bf16.mxu0 0
    %9115 = vmatpush1.bf16.msra.mxu0 0
    %9116 = vmatprep.subr.bf16.mxu0 0
    %9117 = vmatpush1.bf16.msra.mxu0 0
    %9118 = vmatprep.subr.bf16.mxu0 0
    %9119 = vmatpush1.bf16.msra.mxu0 0
    %9120 = vmatprep.subr.bf16.mxu0 0
    %9121 = vmatpush1.bf16.msra.mxu0 0
    %9122 = vmatprep.subr.bf16.mxu0 0
    %9123 = vmatpush1.bf16.msra.mxu0 0
    %9124 = vmatprep.subr.bf16.mxu0 0
    %9125 = vmatpush1.bf16.msra.mxu0 0
    %9126 = vmatprep.subr.bf16.mxu0 0
    %9127 = vmatpush1.bf16.msra.mxu0 0
    %9128 = vmatprep.subr.bf16.mxu0 0
    %9129 = vmatpush1.bf16.msra.mxu0 0
    %9130 = vmatprep.subr.bf16.mxu0 0
    %9131 = vmatpush1.bf16.msra.mxu0 0
    %9132 = vmatprep.subr.bf16.mxu0 0
    %9133 = vmatpush1.bf16.msra.mxu0 0
    %9134 = vmatprep.subr.bf16.mxu0 0
    %9135 = vmatpush1.bf16.msra.mxu0 0
    %9136 = vmatprep.mubr.bf16.mxu0 0
    %9137 = vmatmul.mubr.bf16.gmra.mrb[0].mxu0 %v9009
    %v9138 = vpop.f32.mrb[0].mxu0
    %v9139 = vadd.f32 0.0, %v9138
    %v9140 = vpop.f32.mrb[0].mxu0
    %v9141 = vpop.f32.mrb[0].mxu0
    %v9142 = vadd.f32 0.0, %v9141
    %v9143 = vpop.f32.mrb[0].mxu0
    %9144 = vmatprep.mubr.bf16.mxu0 0
    %9145 = vmatmul.mubr.bf16.gmra.mrb[0].mxu0 %v9012
    %v9146 = vpop.f32.mrb[0].mxu0
    %v9147 = vadd.f32 0.0, %v9146
    %v9148 = vpop.f32.mrb[0].mxu0
    %v9149 = vpop.f32.mrb[0].mxu0
    %v9150 = vadd.f32 0.0, %v9149
    %v9151 = vpop.f32.mrb[0].mxu0
    %9152 = vmatprep.mubr.bf16.mxu0 0
    %9153 = vmatmul.mubr.bf16.gmra.mrb[0].mxu0 %v9015
    %v9154 = vpop.f32.mrb[0].mxu0
    %v9155 = vadd.f32 0.0, %v9154
    %v9156 = vpop.f32.mrb[0].mxu0
    %v9157 = vpop.f32.mrb[0].mxu0
    %v9158 = vadd.f32 0.0, %v9157
    %v9159 = vpop.f32.mrb[0].mxu0
    %9160 = vmatprep.mubr.bf16.mxu0 0
    %9161 = vmatmul.mubr.bf16.gmra.mrb[0].mxu0 %v9018
    %v9162 = vpop.f32.mrb[0].mxu0
    %v9163 = vadd.f32 0.0, %v9162
    %v9164 = vpop.f32.mrb[0].mxu0
    %v9165 = vpop.f32.mrb[0].mxu0
    %v9166 = vadd.f32 0.0, %v9165
    %v9167 = vpop.f32.mrb[0].mxu0
    %9168 = vmatprep.mubr.bf16.mxu0 0
    %9169 = vmatmul.mubr.bf16.gmra.mrb[0].mxu0 %v9021
    %v9170 = vpop.f32.mrb[0].mxu0
    %v9171 = vadd.f32 0.0, %v9170
    %v9172 = vpop.f32.mrb[0].mxu0
    %v9173 = vpop.f32.mrb[0].mxu0
    %v9174 = vadd.f32 0.0, %v9173
    %v9175 = vpop.f32.mrb[0].mxu0
    %9176 = vmatprep.mubr.bf16.mxu0 0
    %9177 = vmatmul.mubr.bf16.gmra.mrb[0].mxu0 %v9024
    %v9178 = vpop.f32.mrb[0].mxu0
    %v9179 = vadd.f32 0.0, %v9178
    %v9180 = vpop.f32.mrb[0].mxu0
    %v9181 = vpop.f32.mrb[0].mxu0
    %v9182 = vadd.f32 0.0, %v9181
    %v9183 = vpop.f32.mrb[0].mxu0
    %9184 = vmatprep.mubr.bf16.mxu0 0
    %9185 = vmatmul.mubr.bf16.gmra.mrb[0].mxu0 %v9027
    %v9186 = vpop.f32.mrb[0].mxu0
    %v9187 = vadd.f32 0.0, %v9186
    %v9188 = vpop.f32.mrb[0].mxu0
    %v9189 = vpop.f32.mrb[0].mxu0
    %v9190 = vadd.f32 0.0, %v9189
    %v9191 = vpop.f32.mrb[0].mxu0
    %9192 = vmatprep.mubr.bf16.mxu0 0
    %9193 = vmatmul.mubr.bf16.gmra.mrb[0].mxu0 %v9030
    %v9194 = vpop.f32.mrb[0].mxu0
    %v9195 = vadd.f32 0.0, %v9194
    %v9196 = vpop.f32.mrb[0].mxu0
    %v9197 = vpop.f32.mrb[0].mxu0
    %v9198 = vadd.f32 0.0, %v9197
    %v9199 = vpop.f32.mrb[0].mxu0
    %9200 = vmatprep.mubr.bf16.mxu0 0
    %9201 = vmatmul.mubr.bf16.gmra.mrb[0].mxu0 %v9033
    %v9202 = vpop.f32.mrb[0].mxu0
    %v9203 = vadd.f32 0.0, %v9202
    %v9204 = vpop.f32.mrb[0].mxu0
    %v9205 = vpop.f32.mrb[0].mxu0
    %v9206 = vadd.f32 0.0, %v9205
    %v9207 = vpop.f32.mrb[0].mxu0
    %9208 = vmatprep.mubr.bf16.mxu0 0
    %9209 = vmatmul.mubr.bf16.gmra.mrb[0].mxu0 %v9036
    %v9210 = vpop.f32.mrb[0].mxu0
    %v9211 = vadd.f32 0.0, %v9210
    %v9212 = vpop.f32.mrb[0].mxu0
    %v9213 = vpop.f32.mrb[0].mxu0
    %v9214 = vadd.f32 0.0, %v9213
    %v9215 = vpop.f32.mrb[0].mxu0
    %9216 = vmatprep.mubr.bf16.mxu0 0
    %9217 = vmatmul.mubr.bf16.gmra.mrb[0].mxu0 %v9039
    %v9218 = vpop.f32.mrb[0].mxu0
    %v9219 = vadd.f32 0.0, %v9218
    %v9220 = vpop.f32.mrb[0].mxu0
    %v9221 = vpop.f32.mrb[0].mxu0
    %v9222 = vadd.f32 0.0, %v9221
    %v9223 = vpop.f32.mrb[0].mxu0
    %9224 = vmatprep.mubr.bf16.mxu0 0
    %9225 = vmatmul.mubr.bf16.gmra.mrb[0].mxu0 %v9042
    %v9226 = vpop.f32.mrb[0].mxu0
    %v9227 = vadd.f32 0.0, %v9226
    %v9228 = vpop.f32.mrb[0].mxu0
    %v9229 = vpop.f32.mrb[0].mxu0
    %v9230 = vadd.f32 0.0, %v9229
    %v9231 = vpop.f32.mrb[0].mxu0
    %9232 = vmatprep.mubr.bf16.mxu0 0
    %9233 = vmatmul.mubr.bf16.gmra.mrb[0].mxu0 %v9045
    %v9234 = vpop.f32.mrb[0].mxu0
    %v9235 = vadd.f32 0.0, %v9234
    %v9236 = vpop.f32.mrb[0].mxu0
    %v9237 = vpop.f32.mrb[0].mxu0
    %v9238 = vadd.f32 0.0, %v9237
    %v9239 = vpop.f32.mrb[0].mxu0
    %9240 = vmatprep.mubr.bf16.mxu0 0
    %9241 = vmatmul.mubr.bf16.gmra.mrb[0].mxu0 %v9048
    %v9242 = vpop.f32.mrb[0].mxu0
    %v9243 = vadd.f32 0.0, %v9242
    %v9244 = vpop.f32.mrb[0].mxu0
    %v9245 = vpop.f32.mrb[0].mxu0
    %v9246 = vadd.f32 0.0, %v9245
    %v9247 = vpop.f32.mrb[0].mxu0
    %9248 = vmatprep.mubr.bf16.mxu0 0
    %9249 = vmatmul.mubr.bf16.gmra.mrb[0].mxu0 %v9051
    %v9250 = vpop.f32.mrb[0].mxu0
    %v9251 = vadd.f32 0.0, %v9250
    %v9252 = vpop.f32.mrb[0].mxu0
    %v9253 = vpop.f32.mrb[0].mxu0
    %v9254 = vadd.f32 0.0, %v9253
    %v9255 = vpop.f32.mrb[0].mxu0
    %9256 = vmatprep.mubr.bf16.mxu0 0
    %9257 = vmatmul.mubr.bf16.gmra.mrb[0].mxu0 %v9054
    %v9258 = vpop.f32.mrb[0].mxu0
    %v9259 = vadd.f32 0.0, %v9258
    %v9260 = vpop.f32.mrb[0].mxu0
    %v9261 = vpop.f32.mrb[0].mxu0
    %v9262 = vadd.f32 0.0, %v9261
    %v9263 = vpop.f32.mrb[0].mxu0
    %9264 = vmatprep.mubr.bf16.mxu0 0
    %9265 = vmatmul.mubr.bf16.gmra.mrb[0].mxu0 %v9057
    %v9266 = vpop.f32.mrb[0].mxu0
    %v9267 = vadd.f32 0.0, %v9266
    %v9268 = vpop.f32.mrb[0].mxu0
    %v9269 = vpop.f32.mrb[0].mxu0
    %v9270 = vadd.f32 0.0, %v9269
    %v9271 = vpop.f32.mrb[0].mxu0
    %9272 = vmatprep.mubr.bf16.mxu0 0
    %9273 = vmatmul.mubr.bf16.gmra.mrb[0].mxu0 %v9060
    %v9274 = vpop.f32.mrb[0].mxu0
    %v9275 = vadd.f32 0.0, %v9274
    %v9276 = vpop.f32.mrb[0].mxu0
    %v9277 = vpop.f32.mrb[0].mxu0
    %v9278 = vadd.f32 0.0, %v9277
    %v9279 = vpop.f32.mrb[0].mxu0
    %9280 = vmatprep.mubr.bf16.mxu0 0
    %9281 = vmatmul.mubr.bf16.gmra.mrb[0].mxu0 %v9063
    %v9282 = vpop.f32.mrb[0].mxu0
    %v9283 = vadd.f32 0.0, %v9282
    %v9284 = vpop.f32.mrb[0].mxu0
    %v9285 = vpop.f32.mrb[0].mxu0
    %v9286 = vadd.f32 0.0, %v9285
    %v9287 = vpop.f32.mrb[0].mxu0
    %9288 = vmatprep.mubr.bf16.mxu0 0
    %9289 = vmatmul.mubr.bf16.gmra.mrb[0].mxu0 %v9066
    %v9290 = vpop.f32.mrb[0].mxu0
    %v9291 = vadd.f32 0.0, %v9290
    %v9292 = vpop.f32.mrb[0].mxu0
    %v9293 = vpop.f32.mrb[0].mxu0
    %v9294 = vadd.f32 0.0, %v9293
    %v9295 = vpop.f32.mrb[0].mxu0
    %9296 = vmatprep.mubr.bf16.mxu0 0
    %9297 = vmatmul.mubr.bf16.gmra.mrb[0].mxu0 %v9069
    %v9298 = vpop.f32.mrb[0].mxu0
    %v9299 = vadd.f32 0.0, %v9298
    %v9300 = vpop.f32.mrb[0].mxu0
    %v9301 = vpop.f32.mrb[0].mxu0
    %v9302 = vadd.f32 0.0, %v9301
    %v9303 = vpop.f32.mrb[0].mxu0
    %9304 = vmatprep.mubr.bf16.mxu0 0
    %9305 = vmatmul.mubr.bf16.gmra.mrb[0].mxu0 %v9072
    %v9306 = vpop.f32.mrb[0].mxu0
    %v9307 = vadd.f32 0.0, %v9306
    %v9308 = vpop.f32.mrb[0].mxu0
    %v9309 = vpop.f32.mrb[0].mxu0
    %v9310 = vadd.f32 0.0, %v9309
    %v9311 = vpop.f32.mrb[0].mxu0
    %9312 = vmatprep.mubr.bf16.mxu0 0
    %9313 = vmatmul.mubr.bf16.gmra.mrb[0].mxu0 %v9075
    %v9314 = vpop.f32.mrb[0].mxu0
    %v9315 = vadd.f32 0.0, %v9314
    %v9316 = vpop.f32.mrb[0].mxu0
    %v9317 = vpop.f32.mrb[0].mxu0
    %v9318 = vadd.f32 0.0, %v9317
    %v9319 = vpop.f32.mrb[0].mxu0
    %9320 = vmatprep.mubr.bf16.mxu0 0
    %9321 = vmatmul.mubr.bf16.gmra.mrb[0].mxu0 %v9078
    %v9322 = vpop.f32.mrb[0].mxu0
    %v9323 = vadd.f32 0.0, %v9322
    %v9324 = vpop.f32.mrb[0].mxu0
    %v9325 = vpop.f32.mrb[0].mxu0
    %v9326 = vadd.f32 0.0, %v9325
    %v9327 = vpop.f32.mrb[0].mxu0
    %9328 = vmatprep.mubr.bf16.mxu0 0
    %9329 = vmatmul.mubr.bf16.gmra.mrb[0].mxu0 %v9081
    %v9330 = vpop.f32.mrb[0].mxu0
    %v9331 = vadd.f32 0.0, %v9330
    %v9332 = vpop.f32.mrb[0].mxu0
    %v9333 = vpop.f32.mrb[0].mxu0
    %v9334 = vadd.f32 0.0, %v9333
    %v9335 = vpop.f32.mrb[0].mxu0
    %9336 = vmatprep.mubr.bf16.mxu0 0
    %9337 = vmatmul.mubr.bf16.gmra.mrb[0].mxu0 %v9084
    %v9338 = vpop.f32.mrb[0].mxu0
    %v9339 = vadd.f32 0.0, %v9338
    %v9340 = vpop.f32.mrb[0].mxu0
    %v9341 = vpop.f32.mrb[0].mxu0
    %v9342 = vadd.f32 0.0, %v9341
    %v9343 = vpop.f32.mrb[0].mxu0
    %9344 = vmatprep.mubr.bf16.mxu0 0
    %9345 = vmatmul.mubr.bf16.gmra.mrb[0].mxu0 %v9087
    %v9346 = vpop.f32.mrb[0].mxu0
    %v9347 = vadd.f32 0.0, %v9346
    %v9348 = vpop.f32.mrb[0].mxu0
    %v9349 = vpop.f32.mrb[0].mxu0
    %v9350 = vadd.f32 0.0, %v9349
    %v9351 = vpop.f32.mrb[0].mxu0
    %9352 = vmatprep.mubr.bf16.mxu0 0
    %9353 = vmatmul.mubr.bf16.gmra.mrb[0].mxu0 %v9090
    %v9354 = vpop.f32.mrb[0].mxu0
    %v9355 = vadd.f32 0.0, %v9354
    %v9356 = vpop.f32.mrb[0].mxu0
    %v9357 = vpop.f32.mrb[0].mxu0
    %v9358 = vadd.f32 0.0, %v9357
    %v9359 = vpop.f32.mrb[0].mxu0
    %9360 = vmatprep.mubr.bf16.mxu0 0
    %9361 = vmatmul.mubr.bf16.gmra.mrb[0].mxu0 %v9093
    %v9362 = vpop.f32.mrb[0].mxu0
    %v9363 = vadd.f32 0.0, %v9362
    %v9364 = vpop.f32.mrb[0].mxu0
    %v9365 = vpop.f32.mrb[0].mxu0
    %v9366 = vadd.f32 0.0, %v9365
    %v9367 = vpop.f32.mrb[0].mxu0
    %9368 = vmatprep.mubr.bf16.mxu0 0
    %9369 = vmatmul.mubr.bf16.gmra.mrb[0].mxu0 %v9096
    %v9370 = vpop.f32.mrb[0].mxu0
    %v9371 = vadd.f32 0.0, %v9370
    %v9372 = vpop.f32.mrb[0].mxu0
    %v9373 = vpop.f32.mrb[0].mxu0
    %v9374 = vadd.f32 0.0, %v9373
    %v9375 = vpop.f32.mrb[0].mxu0
    %9376 = vmatprep.mubr.bf16.mxu0 0
    %9377 = vmatmul.mubr.bf16.gmra.mrb[0].mxu0 %v9099
    %v9378 = vpop.f32.mrb[0].mxu0
    %v9379 = vadd.f32 0.0, %v9378
    %v9380 = vpop.f32.mrb[0].mxu0
    %v9381 = vpop.f32.mrb[0].mxu0
    %v9382 = vadd.f32 0.0, %v9381
    %v9383 = vpop.f32.mrb[0].mxu0
    %9384 = vmatprep.mubr.bf16.mxu0 0
    %9385 = vmatmul.mubr.bf16.gmra.mrb[0].mxu0 %v9102
    %v9386 = vpop.f32.mrb[0].mxu0
    %v9387 = vadd.f32 0.0, %v9386
    %v9388 = vpop.f32.mrb[0].mxu0
    %v9389 = vpop.f32.mrb[0].mxu0
    %v9390 = vadd.f32 0.0, %v9389
    %v9391 = vpop.f32.mrb[0].mxu0
    %9392 = vdwg.mxu0
    %v9393 = vadd.f32 %v6418, %v9139
    %v9394 = vadd.f32 %v6421, %v9142
    %v9395 = vadd.f32 %v6426, %v9147
    %v9396 = vadd.f32 %v6429, %v9150
    %v9397 = vadd.f32 %v6434, %v9155
    %v9398 = vadd.f32 %v6437, %v9158
    %v9399 = vadd.f32 %v6442, %v9163
    %v9400 = vadd.f32 %v6445, %v9166
    %v9401 = vadd.f32 %v6450, %v9171
    %v9402 = vadd.f32 %v6453, %v9174
    %v9403 = vadd.f32 %v6458, %v9179
    %v9404 = vadd.f32 %v6461, %v9182
    %v9405 = vadd.f32 %v6466, %v9187
    %v9406 = vadd.f32 %v6469, %v9190
    %v9407 = vadd.f32 %v6474, %v9195
    %v9408 = vadd.f32 %v6477, %v9198
    %v9409 = vadd.f32 %v6482, %v9203
    %v9410 = vadd.f32 %v6485, %v9206
    %v9411 = vadd.f32 %v6490, %v9211
    %v9412 = vadd.f32 %v6493, %v9214
    %v9413 = vadd.f32 %v6498, %v9219
    %v9414 = vadd.f32 %v6501, %v9222
    %v9415 = vadd.f32 %v6506, %v9227
    %v9416 = vadd.f32 %v6509, %v9230
    %v9417 = vadd.f32 %v6514, %v9235
    %v9418 = vadd.f32 %v6517, %v9238
    %v9419 = vadd.f32 %v6522, %v9243
    %v9420 = vadd.f32 %v6525, %v9246
    %v9421 = vadd.f32 %v6530, %v9251
    %v9422 = vadd.f32 %v6533, %v9254
    %v9423 = vadd.f32 %v6538, %v9259
    %v9424 = vadd.f32 %v6541, %v9262
    %v9425 = vadd.f32 %v6546, %v9267
    %v9426 = vadd.f32 %v6549, %v9270
    %v9427 = vadd.f32 %v6554, %v9275
    %v9428 = vadd.f32 %v6557, %v9278
    %v9429 = vadd.f32 %v6562, %v9283
    %v9430 = vadd.f32 %v6565, %v9286
    %v9431 = vadd.f32 %v6570, %v9291
    %v9432 = vadd.f32 %v6573, %v9294
    %v9433 = vadd.f32 %v6578, %v9299
    %v9434 = vadd.f32 %v6581, %v9302
    %v9435 = vadd.f32 %v6586, %v9307
    %v9436 = vadd.f32 %v6589, %v9310
    %v9437 = vadd.f32 %v6594, %v9315
    %v9438 = vadd.f32 %v6597, %v9318
    %v9439 = vadd.f32 %v6602, %v9323
    %v9440 = vadd.f32 %v6605, %v9326
    %v9441 = vadd.f32 %v6610, %v9331
    %v9442 = vadd.f32 %v6613, %v9334
    %v9443 = vadd.f32 %v6618, %v9339
    %v9444 = vadd.f32 %v6621, %v9342
    %v9445 = vadd.f32 %v6626, %v9347
    %v9446 = vadd.f32 %v6629, %v9350
    %v9447 = vadd.f32 %v6634, %v9355
    %v9448 = vadd.f32 %v6637, %v9358
    %v9449 = vadd.f32 %v6642, %v9363
    %v9450 = vadd.f32 %v6645, %v9366
    %v9451 = vadd.f32 %v6650, %v9371
    %v9452 = vadd.f32 %v6653, %v9374
    %v9453 = vadd.f32 %v6658, %v9379
    %v9454 = vadd.f32 %v6661, %v9382
    %v9455 = vadd.f32 %v6666, %v9387
    %v9456 = vadd.f32 %v6669, %v9390
    %9457 = vrot.lane.b32.xlu0 %v1260, 32
    %v9458 = vpop.permute.xlu0 %9457
    %9459 = vrot.lane.b32.xlu0 %v1261, 32
    %v9460 = vpop.permute.xlu0 %9459
    %9461 = vrot.lane.b32.xlu0 %v1262, 32
    %v9462 = vpop.permute.xlu0 %9461
    %9463 = vrot.lane.b32.xlu0 %v1263, 32
    %v9464 = vpop.permute.xlu0 %9463
    %9465 = vrot.lane.b32.xlu0 %v1292, 32
    %v9466 = vpop.permute.xlu0 %9465
    %9467 = vrot.lane.b32.xlu0 %v1293, 32
    %v9468 = vpop.permute.xlu0 %9467
    %9469 = vrot.lane.b32.xlu0 %v1294, 32
    %v9470 = vpop.permute.xlu0 %9469
    %9471 = vrot.lane.b32.xlu0 %v1295, 32
    %v9472 = vpop.permute.xlu0 %9471
    %v9474 = vsel %vm1356, %v9458, 0
    %v9477 = vsel %vm1356, %v9460, 0
    %v9480 = vsel %vm1356, %v9462, 0
    %v9483 = vsel %vm1356, %v9464, 0
    %v9486 = vsel %vm1356, %v9466, 0
    %v9489 = vsel %vm1356, %v9468, 0
    %v9492 = vsel %vm1356, %v9470, 0
    %v9495 = vsel %vm1356, %v9472, 0
    %9497 = vmatprep.subr.bf16.mxu0 0
    %9498 = vmatpush1.bf16.xpose.msra.mxu0 %v9486
    %9499 = vmatprep.subr.bf16.mxu0 0
    %9500 = vmatpush1.bf16.xpose.msra.mxu0 %v9489
    %9501 = vmatprep.subr.bf16.mxu0 0
    %9502 = vmatpush1.bf16.xpose.msra.mxu0 %v9492
    %9503 = vmatprep.subr.bf16.mxu0 0
    %9504 = vmatpush1.bf16.xpose.msra.mxu0 %v9495
    %9505 = vmatprep.subr.bf16.mxu0 0
    %9506 = vmatpush1.bf16.xpose.msra.mxu0 0
    %9507 = vmatprep.subr.bf16.mxu0 0
    %9508 = vmatpush1.bf16.xpose.msra.mxu0 0
    %9509 = vmatprep.subr.bf16.mxu0 0
    %9510 = vmatpush1.bf16.xpose.msra.mxu0 0
    %9511 = vmatprep.subr.bf16.mxu0 0
    %9512 = vmatpush1.bf16.xpose.msra.mxu0 0
    %9513 = vmatprep.subr.bf16.mxu0 0
    %9514 = vmatpush1.bf16.xpose.msra.mxu0 0
    %9515 = vmatprep.subr.bf16.mxu0 0
    %9516 = vmatpush1.bf16.xpose.msra.mxu0 0
    %9517 = vmatprep.subr.bf16.mxu0 0
    %9518 = vmatpush1.bf16.xpose.msra.mxu0 0
    %9519 = vmatprep.subr.bf16.mxu0 0
    %9520 = vmatpush1.bf16.xpose.msra.mxu0 0
    %9521 = vmatprep.subr.bf16.mxu0 0
    %9522 = vmatpush1.bf16.xpose.msra.mxu0 0
    %9523 = vmatprep.subr.bf16.mxu0 0
    %9524 = vmatpush1.bf16.xpose.msra.mxu0 0
    %9525 = vmatprep.subr.bf16.mxu0 0
    %9526 = vmatpush1.bf16.xpose.msra.mxu0 0
    %9527 = vmatprep.subr.bf16.mxu0 0
    %9528 = vmatpush1.bf16.xpose.msra.mxu0 0
    %9529 = vmatprep.mubr.bf16.mxu0 0
    %9530 = vmatmul.mubr.bf16.gmra.mrb[0].mxu0 %v9474
    %v9531 = vpop.f32.mrb[0].mxu0
    %v9532 = vadd.f32 0.0, %v9531
    %v9533 = vpop.f32.mrb[0].mxu0
    %v9534 = vpop.f32.mrb[0].mxu0
    %v9535 = vadd.f32 0.0, %v9534
    %v9536 = vpop.f32.mrb[0].mxu0
    %9537 = vmatprep.mubr.bf16.mxu0 0
    %9538 = vmatmul.mubr.bf16.gmra.mrb[0].mxu0 %v9477
    %v9539 = vpop.f32.mrb[0].mxu0
    %v9540 = vadd.f32 0.0, %v9539
    %v9541 = vpop.f32.mrb[0].mxu0
    %v9542 = vpop.f32.mrb[0].mxu0
    %v9543 = vadd.f32 0.0, %v9542
    %v9544 = vpop.f32.mrb[0].mxu0
    %9545 = vmatprep.mubr.bf16.mxu0 0
    %9546 = vmatmul.mubr.bf16.gmra.mrb[0].mxu0 %v9480
    %v9547 = vpop.f32.mrb[0].mxu0
    %v9548 = vadd.f32 0.0, %v9547
    %v9549 = vpop.f32.mrb[0].mxu0
    %v9550 = vpop.f32.mrb[0].mxu0
    %v9551 = vadd.f32 0.0, %v9550
    %v9552 = vpop.f32.mrb[0].mxu0
    %9553 = vmatprep.mubr.bf16.mxu0 0
    %9554 = vmatmul.mubr.bf16.gmra.mrb[0].mxu0 %v9483
    %v9555 = vpop.f32.mrb[0].mxu0
    %v9556 = vadd.f32 0.0, %v9555
    %v9557 = vpop.f32.mrb[0].mxu0
    %v9558 = vpop.f32.mrb[0].mxu0
    %v9559 = vadd.f32 0.0, %v9558
    %v9560 = vpop.f32.mrb[0].mxu0
    %9561 = vdwg.mxu0
    %9562 = vrot.lane.b32.xlu0 %v1264, 32
    %v9563 = vpop.permute.xlu0 %9562
    %9564 = vrot.lane.b32.xlu0 %v1265, 32
    %v9565 = vpop.permute.xlu0 %9564
    %9566 = vrot.lane.b32.xlu0 %v1266, 32
    %v9567 = vpop.permute.xlu0 %9566
    %9568 = vrot.lane.b32.xlu0 %v1267, 32
    %v9569 = vpop.permute.xlu0 %9568
    %9570 = vrot.lane.b32.xlu0 %v1296, 32
    %v9571 = vpop.permute.xlu0 %9570
    %9572 = vrot.lane.b32.xlu0 %v1297, 32
    %v9573 = vpop.permute.xlu0 %9572
    %9574 = vrot.lane.b32.xlu0 %v1298, 32
    %v9575 = vpop.permute.xlu0 %9574
    %9576 = vrot.lane.b32.xlu0 %v1299, 32
    %v9577 = vpop.permute.xlu0 %9576
    %v9579 = vsel %vm1356, %v9563, 0
    %v9582 = vsel %vm1356, %v9565, 0
    %v9585 = vsel %vm1356, %v9567, 0
    %v9588 = vsel %vm1356, %v9569, 0
    %v9591 = vsel %vm1356, %v9571, 0
    %v9594 = vsel %vm1356, %v9573, 0
    %v9597 = vsel %vm1356, %v9575, 0
    %v9600 = vsel %vm1356, %v9577, 0
    %9602 = vmatprep.subr.bf16.mxu0 0
    %9603 = vmatpush1.bf16.xpose.msra.mxu0 %v9591
    %9604 = vmatprep.subr.bf16.mxu0 0
    %9605 = vmatpush1.bf16.xpose.msra.mxu0 %v9594
    %9606 = vmatprep.subr.bf16.mxu0 0
    %9607 = vmatpush1.bf16.xpose.msra.mxu0 %v9597
    %9608 = vmatprep.subr.bf16.mxu0 0
    %9609 = vmatpush1.bf16.xpose.msra.mxu0 %v9600
    %9610 = vmatprep.subr.bf16.mxu0 0
    %9611 = vmatpush1.bf16.xpose.msra.mxu0 0
    %9612 = vmatprep.subr.bf16.mxu0 0
    %9613 = vmatpush1.bf16.xpose.msra.mxu0 0
    %9614 = vmatprep.subr.bf16.mxu0 0
    %9615 = vmatpush1.bf16.xpose.msra.mxu0 0
    %9616 = vmatprep.subr.bf16.mxu0 0
    %9617 = vmatpush1.bf16.xpose.msra.mxu0 0
    %9618 = vmatprep.subr.bf16.mxu0 0
    %9619 = vmatpush1.bf16.xpose.msra.mxu0 0
    %9620 = vmatprep.subr.bf16.mxu0 0
    %9621 = vmatpush1.bf16.xpose.msra.mxu0 0
    %9622 = vmatprep.subr.bf16.mxu0 0
    %9623 = vmatpush1.bf16.xpose.msra.mxu0 0
    %9624 = vmatprep.subr.bf16.mxu0 0
    %9625 = vmatpush1.bf16.xpose.msra.mxu0 0
    %9626 = vmatprep.subr.bf16.mxu0 0
    %9627 = vmatpush1.bf16.xpose.msra.mxu0 0
    %9628 = vmatprep.subr.bf16.mxu0 0
    %9629 = vmatpush1.bf16.xpose.msra.mxu0 0
    %9630 = vmatprep.subr.bf16.mxu0 0
    %9631 = vmatpush1.bf16.xpose.msra.mxu0 0
    %9632 = vmatprep.subr.bf16.mxu0 0
    %9633 = vmatpush1.bf16.xpose.msra.mxu0 0
    %9634 = vmatprep.mubr.bf16.mxu0 0
    %9635 = vmatmul.mubr.bf16.gmra.mrb[0].mxu0 %v9579
    %v9636 = vpop.f32.mrb[0].mxu0
    %v9637 = vadd.f32 0.0, %v9636
    %v9638 = vpop.f32.mrb[0].mxu0
    %v9639 = vpop.f32.mrb[0].mxu0
    %v9640 = vadd.f32 0.0, %v9639
    %v9641 = vpop.f32.mrb[0].mxu0
    %9642 = vmatprep.mubr.bf16.mxu0 0
    %9643 = vmatmul.mubr.bf16.gmra.mrb[0].mxu0 %v9582
    %v9644 = vpop.f32.mrb[0].mxu0
    %v9645 = vadd.f32 0.0, %v9644
    %v9646 = vpop.f32.mrb[0].mxu0
    %v9647 = vpop.f32.mrb[0].mxu0
    %v9648 = vadd.f32 0.0, %v9647
    %v9649 = vpop.f32.mrb[0].mxu0
    %9650 = vmatprep.mubr.bf16.mxu0 0
    %9651 = vmatmul.mubr.bf16.gmra.mrb[0].mxu0 %v9585
    %v9652 = vpop.f32.mrb[0].mxu0
    %v9653 = vadd.f32 0.0, %v9652
    %v9654 = vpop.f32.mrb[0].mxu0
    %v9655 = vpop.f32.mrb[0].mxu0
    %v9656 = vadd.f32 0.0, %v9655
    %v9657 = vpop.f32.mrb[0].mxu0
    %9658 = vmatprep.mubr.bf16.mxu0 0
    %9659 = vmatmul.mubr.bf16.gmra.mrb[0].mxu0 %v9588
    %v9660 = vpop.f32.mrb[0].mxu0
    %v9661 = vadd.f32 0.0, %v9660
    %v9662 = vpop.f32.mrb[0].mxu0
    %v9663 = vpop.f32.mrb[0].mxu0
    %v9664 = vadd.f32 0.0, %v9663
    %v9665 = vpop.f32.mrb[0].mxu0
    %9666 = vdwg.mxu0
    %9667 = vrot.lane.b32.xlu0 %v1268, 32
    %v9668 = vpop.permute.xlu0 %9667
    %9669 = vrot.lane.b32.xlu0 %v1269, 32
    %v9670 = vpop.permute.xlu0 %9669
    %9671 = vrot.lane.b32.xlu0 %v1270, 32
    %v9672 = vpop.permute.xlu0 %9671
    %9673 = vrot.lane.b32.xlu0 %v1271, 32
    %v9674 = vpop.permute.xlu0 %9673
    %9675 = vrot.lane.b32.xlu0 %v1300, 32
    %v9676 = vpop.permute.xlu0 %9675
    %9677 = vrot.lane.b32.xlu0 %v1301, 32
    %v9678 = vpop.permute.xlu0 %9677
    %9679 = vrot.lane.b32.xlu0 %v1302, 32
    %v9680 = vpop.permute.xlu0 %9679
    %9681 = vrot.lane.b32.xlu0 %v1303, 32
    %v9682 = vpop.permute.xlu0 %9681
    %v9684 = vsel %vm1356, %v9668, 0
    %v9687 = vsel %vm1356, %v9670, 0
    %v9690 = vsel %vm1356, %v9672, 0
    %v9693 = vsel %vm1356, %v9674, 0
    %v9696 = vsel %vm1356, %v9676, 0
    %v9699 = vsel %vm1356, %v9678, 0
    %v9702 = vsel %vm1356, %v9680, 0
    %v9705 = vsel %vm1356, %v9682, 0
    %9707 = vmatprep.subr.bf16.mxu0 0
    %9708 = vmatpush1.bf16.xpose.msra.mxu0 %v9696
    %9709 = vmatprep.subr.bf16.mxu0 0
    %9710 = vmatpush1.bf16.xpose.msra.mxu0 %v9699
    %9711 = vmatprep.subr.bf16.mxu0 0
    %9712 = vmatpush1.bf16.xpose.msra.mxu0 %v9702
    %9713 = vmatprep.subr.bf16.mxu0 0
    %9714 = vmatpush1.bf16.xpose.msra.mxu0 %v9705
    %9715 = vmatprep.subr.bf16.mxu0 0
    %9716 = vmatpush1.bf16.xpose.msra.mxu0 0
    %9717 = vmatprep.subr.bf16.mxu0 0
    %9718 = vmatpush1.bf16.xpose.msra.mxu0 0
    %9719 = vmatprep.subr.bf16.mxu0 0
    %9720 = vmatpush1.bf16.xpose.msra.mxu0 0
    %9721 = vmatprep.subr.bf16.mxu0 0
    %9722 = vmatpush1.bf16.xpose.msra.mxu0 0
    %9723 = vmatprep.subr.bf16.mxu0 0
    %9724 = vmatpush1.bf16.xpose.msra.mxu0 0
    %9725 = vmatprep.subr.bf16.mxu0 0
    %9726 = vmatpush1.bf16.xpose.msra.mxu0 0
    %9727 = vmatprep.subr.bf16.mxu0 0
    %9728 = vmatpush1.bf16.xpose.msra.mxu0 0
    %9729 = vmatprep.subr.bf16.mxu0 0
    %9730 = vmatpush1.bf16.xpose.msra.mxu0 0
    %9731 = vmatprep.subr.bf16.mxu0 0
    %9732 = vmatpush1.bf16.xpose.msra.mxu0 0
    %9733 = vmatprep.subr.bf16.mxu0 0
    %9734 = vmatpush1.bf16.xpose.msra.mxu0 0
    %9735 = vmatprep.subr.bf16.mxu0 0
    %9736 = vmatpush1.bf16.xpose.msra.mxu0 0
    %9737 = vmatprep.subr.bf16.mxu0 0
    %9738 = vmatpush1.bf16.xpose.msra.mxu0 0
    %9739 = vmatprep.mubr.bf16.mxu0 0
    %9740 = vmatmul.mubr.bf16.gmra.mrb[0].mxu0 %v9684
    %v9741 = vpop.f32.mrb[0].mxu0
    %v9742 = vadd.f32 0.0, %v9741
    %v9743 = vpop.f32.mrb[0].mxu0
    %v9744 = vpop.f32.mrb[0].mxu0
    %v9745 = vadd.f32 0.0, %v9744
    %v9746 = vpop.f32.mrb[0].mxu0
    %9747 = vmatprep.mubr.bf16.mxu0 0
    %9748 = vmatmul.mubr.bf16.gmra.mrb[0].mxu0 %v9687
    %v9749 = vpop.f32.mrb[0].mxu0
    %v9750 = vadd.f32 0.0, %v9749
    %v9751 = vpop.f32.mrb[0].mxu0
    %v9752 = vpop.f32.mrb[0].mxu0
    %v9753 = vadd.f32 0.0, %v9752
    %v9754 = vpop.f32.mrb[0].mxu0
    %9755 = vmatprep.mubr.bf16.mxu0 0
    %9756 = vmatmul.mubr.bf16.gmra.mrb[0].mxu0 %v9690
    %v9757 = vpop.f32.mrb[0].mxu0
    %v9758 = vadd.f32 0.0, %v9757
    %v9759 = vpop.f32.mrb[0].mxu0
    %v9760 = vpop.f32.mrb[0].mxu0
    %v9761 = vadd.f32 0.0, %v9760
    %v9762 = vpop.f32.mrb[0].mxu0
    %9763 = vmatprep.mubr.bf16.mxu0 0
    %9764 = vmatmul.mubr.bf16.gmra.mrb[0].mxu0 %v9693
    %v9765 = vpop.f32.mrb[0].mxu0
    %v9766 = vadd.f32 0.0, %v9765
    %v9767 = vpop.f32.mrb[0].mxu0
    %v9768 = vpop.f32.mrb[0].mxu0
    %v9769 = vadd.f32 0.0, %v9768
    %v9770 = vpop.f32.mrb[0].mxu0
    %9771 = vdwg.mxu0
    %9772 = vrot.lane.b32.xlu0 %v1272, 32
    %v9773 = vpop.permute.xlu0 %9772
    %9774 = vrot.lane.b32.xlu0 %v1273, 32
    %v9775 = vpop.permute.xlu0 %9774
    %9776 = vrot.lane.b32.xlu0 %v1274, 32
    %v9777 = vpop.permute.xlu0 %9776
    %9778 = vrot.lane.b32.xlu0 %v1275, 32
    %v9779 = vpop.permute.xlu0 %9778
    %9780 = vrot.lane.b32.xlu0 %v1304, 32
    %v9781 = vpop.permute.xlu0 %9780
    %9782 = vrot.lane.b32.xlu0 %v1305, 32
    %v9783 = vpop.permute.xlu0 %9782
    %9784 = vrot.lane.b32.xlu0 %v1306, 32
    %v9785 = vpop.permute.xlu0 %9784
    %9786 = vrot.lane.b32.xlu0 %v1307, 32
    %v9787 = vpop.permute.xlu0 %9786
    %v9789 = vsel %vm1356, %v9773, 0
    %v9792 = vsel %vm1356, %v9775, 0
    %v9795 = vsel %vm1356, %v9777, 0
    %v9798 = vsel %vm1356, %v9779, 0
    %v9801 = vsel %vm1356, %v9781, 0
    %v9804 = vsel %vm1356, %v9783, 0
    %v9807 = vsel %vm1356, %v9785, 0
    %v9810 = vsel %vm1356, %v9787, 0
    %9812 = vmatprep.subr.bf16.mxu0 0
    %9813 = vmatpush1.bf16.xpose.msra.mxu0 %v9801
    %9814 = vmatprep.subr.bf16.mxu0 0
    %9815 = vmatpush1.bf16.xpose.msra.mxu0 %v9804
    %9816 = vmatprep.subr.bf16.mxu0 0
    %9817 = vmatpush1.bf16.xpose.msra.mxu0 %v9807
    %9818 = vmatprep.subr.bf16.mxu0 0
    %9819 = vmatpush1.bf16.xpose.msra.mxu0 %v9810
    %9820 = vmatprep.subr.bf16.mxu0 0
    %9821 = vmatpush1.bf16.xpose.msra.mxu0 0
    %9822 = vmatprep.subr.bf16.mxu0 0
    %9823 = vmatpush1.bf16.xpose.msra.mxu0 0
    %9824 = vmatprep.subr.bf16.mxu0 0
    %9825 = vmatpush1.bf16.xpose.msra.mxu0 0
    %9826 = vmatprep.subr.bf16.mxu0 0
    %9827 = vmatpush1.bf16.xpose.msra.mxu0 0
    %9828 = vmatprep.subr.bf16.mxu0 0
    %9829 = vmatpush1.bf16.xpose.msra.mxu0 0
    %9830 = vmatprep.subr.bf16.mxu0 0
    %9831 = vmatpush1.bf16.xpose.msra.mxu0 0
    %9832 = vmatprep.subr.bf16.mxu0 0
    %9833 = vmatpush1.bf16.xpose.msra.mxu0 0
    %9834 = vmatprep.subr.bf16.mxu0 0
    %9835 = vmatpush1.bf16.xpose.msra.mxu0 0
    %9836 = vmatprep.subr.bf16.mxu0 0
    %9837 = vmatpush1.bf16.xpose.msra.mxu0 0
    %9838 = vmatprep.subr.bf16.mxu0 0
    %9839 = vmatpush1.bf16.xpose.msra.mxu0 0
    %9840 = vmatprep.subr.bf16.mxu0 0
    %9841 = vmatpush1.bf16.xpose.msra.mxu0 0
    %9842 = vmatprep.subr.bf16.mxu0 0
    %9843 = vmatpush1.bf16.xpose.msra.mxu0 0
    %9844 = vmatprep.mubr.bf16.mxu0 0
    %9845 = vmatmul.mubr.bf16.gmra.mrb[0].mxu0 %v9789
    %v9846 = vpop.f32.mrb[0].mxu0
    %v9847 = vadd.f32 0.0, %v9846
    %v9848 = vpop.f32.mrb[0].mxu0
    %v9849 = vpop.f32.mrb[0].mxu0
    %v9850 = vadd.f32 0.0, %v9849
    %v9851 = vpop.f32.mrb[0].mxu0
    %9852 = vmatprep.mubr.bf16.mxu0 0
    %9853 = vmatmul.mubr.bf16.gmra.mrb[0].mxu0 %v9792
    %v9854 = vpop.f32.mrb[0].mxu0
    %v9855 = vadd.f32 0.0, %v9854
    %v9856 = vpop.f32.mrb[0].mxu0
    %v9857 = vpop.f32.mrb[0].mxu0
    %v9858 = vadd.f32 0.0, %v9857
    %v9859 = vpop.f32.mrb[0].mxu0
    %9860 = vmatprep.mubr.bf16.mxu0 0
    %9861 = vmatmul.mubr.bf16.gmra.mrb[0].mxu0 %v9795
    %v9862 = vpop.f32.mrb[0].mxu0
    %v9863 = vadd.f32 0.0, %v9862
    %v9864 = vpop.f32.mrb[0].mxu0
    %v9865 = vpop.f32.mrb[0].mxu0
    %v9866 = vadd.f32 0.0, %v9865
    %v9867 = vpop.f32.mrb[0].mxu0
    %9868 = vmatprep.mubr.bf16.mxu0 0
    %9869 = vmatmul.mubr.bf16.gmra.mrb[0].mxu0 %v9798
    %v9870 = vpop.f32.mrb[0].mxu0
    %v9871 = vadd.f32 0.0, %v9870
    %v9872 = vpop.f32.mrb[0].mxu0
    %v9873 = vpop.f32.mrb[0].mxu0
    %v9874 = vadd.f32 0.0, %v9873
    %v9875 = vpop.f32.mrb[0].mxu0
    %9876 = vdwg.mxu0
    %9877 = vrot.lane.b32.xlu0 %v1276, 32
    %v9878 = vpop.permute.xlu0 %9877
    %9879 = vrot.lane.b32.xlu0 %v1277, 32
    %v9880 = vpop.permute.xlu0 %9879
    %9881 = vrot.lane.b32.xlu0 %v1278, 32
    %v9882 = vpop.permute.xlu0 %9881
    %9883 = vrot.lane.b32.xlu0 %v1279, 32
    %v9884 = vpop.permute.xlu0 %9883
    %9885 = vrot.lane.b32.xlu0 %v1308, 32
    %v9886 = vpop.permute.xlu0 %9885
    %9887 = vrot.lane.b32.xlu0 %v1309, 32
    %v9888 = vpop.permute.xlu0 %9887
    %9889 = vrot.lane.b32.xlu0 %v1310, 32
    %v9890 = vpop.permute.xlu0 %9889
    %9891 = vrot.lane.b32.xlu0 %v1311, 32
    %v9892 = vpop.permute.xlu0 %9891
    %v9894 = vsel %vm1356, %v9878, 0
    %v9897 = vsel %vm1356, %v9880, 0
    %v9900 = vsel %vm1356, %v9882, 0
    %v9903 = vsel %vm1356, %v9884, 0
    %v9906 = vsel %vm1356, %v9886, 0
    %v9909 = vsel %vm1356, %v9888, 0
    %v9912 = vsel %vm1356, %v9890, 0
    %v9915 = vsel %vm1356, %v9892, 0
    %9917 = vmatprep.subr.bf16.mxu0 0
    %9918 = vmatpush1.bf16.xpose.msra.mxu0 %v9906
    %9919 = vmatprep.subr.bf16.mxu0 0
    %9920 = vmatpush1.bf16.xpose.msra.mxu0 %v9909
    %9921 = vmatprep.subr.bf16.mxu0 0
    %9922 = vmatpush1.bf16.xpose.msra.mxu0 %v9912
    %9923 = vmatprep.subr.bf16.mxu0 0
    %9924 = vmatpush1.bf16.xpose.msra.mxu0 %v9915
    %9925 = vmatprep.subr.bf16.mxu0 0
    %9926 = vmatpush1.bf16.xpose.msra.mxu0 0
    %9927 = vmatprep.subr.bf16.mxu0 0
    %9928 = vmatpush1.bf16.xpose.msra.mxu0 0
    %9929 = vmatprep.subr.bf16.mxu0 0
    %9930 = vmatpush1.bf16.xpose.msra.mxu0 0
    %9931 = vmatprep.subr.bf16.mxu0 0
    %9932 = vmatpush1.bf16.xpose.msra.mxu0 0
    %9933 = vmatprep.subr.bf16.mxu0 0
    %9934 = vmatpush1.bf16.xpose.msra.mxu0 0
    %9935 = vmatprep.subr.bf16.mxu0 0
    %9936 = vmatpush1.bf16.xpose.msra.mxu0 0
    %9937 = vmatprep.subr.bf16.mxu0 0
    %9938 = vmatpush1.bf16.xpose.msra.mxu0 0
    %9939 = vmatprep.subr.bf16.mxu0 0
    %9940 = vmatpush1.bf16.xpose.msra.mxu0 0
    %9941 = vmatprep.subr.bf16.mxu0 0
    %9942 = vmatpush1.bf16.xpose.msra.mxu0 0
    %9943 = vmatprep.subr.bf16.mxu0 0
    %9944 = vmatpush1.bf16.xpose.msra.mxu0 0
    %9945 = vmatprep.subr.bf16.mxu0 0
    %9946 = vmatpush1.bf16.xpose.msra.mxu0 0
    %9947 = vmatprep.subr.bf16.mxu0 0
    %9948 = vmatpush1.bf16.xpose.msra.mxu0 0
    %9949 = vmatprep.mubr.bf16.mxu0 0
    %9950 = vmatmul.mubr.bf16.gmra.mrb[0].mxu0 %v9894
    %v9951 = vpop.f32.mrb[0].mxu0
    %v9952 = vadd.f32 0.0, %v9951
    %v9953 = vpop.f32.mrb[0].mxu0
    %v9954 = vpop.f32.mrb[0].mxu0
    %v9955 = vadd.f32 0.0, %v9954
    %v9956 = vpop.f32.mrb[0].mxu0
    %9957 = vmatprep.mubr.bf16.mxu0 0
    %9958 = vmatmul.mubr.bf16.gmra.mrb[0].mxu0 %v9897
    %v9959 = vpop.f32.mrb[0].mxu0
    %v9960 = vadd.f32 0.0, %v9959
    %v9961 = vpop.f32.mrb[0].mxu0
    %v9962 = vpop.f32.mrb[0].mxu0
    %v9963 = vadd.f32 0.0, %v9962
    %v9964 = vpop.f32.mrb[0].mxu0
    %9965 = vmatprep.mubr.bf16.mxu0 0
    %9966 = vmatmul.mubr.bf16.gmra.mrb[0].mxu0 %v9900
    %v9967 = vpop.f32.mrb[0].mxu0
    %v9968 = vadd.f32 0.0, %v9967
    %v9969 = vpop.f32.mrb[0].mxu0
    %v9970 = vpop.f32.mrb[0].mxu0
    %v9971 = vadd.f32 0.0, %v9970
    %v9972 = vpop.f32.mrb[0].mxu0
    %9973 = vmatprep.mubr.bf16.mxu0 0
    %9974 = vmatmul.mubr.bf16.gmra.mrb[0].mxu0 %v9903
    %v9975 = vpop.f32.mrb[0].mxu0
    %v9976 = vadd.f32 0.0, %v9975
    %v9977 = vpop.f32.mrb[0].mxu0
    %v9978 = vpop.f32.mrb[0].mxu0
    %v9979 = vadd.f32 0.0, %v9978
    %v9980 = vpop.f32.mrb[0].mxu0
    %9981 = vdwg.mxu0
    %9982 = vrot.lane.b32.xlu0 %v1280, 32
    %v9983 = vpop.permute.xlu0 %9982
    %9984 = vrot.lane.b32.xlu0 %v1281, 32
    %v9985 = vpop.permute.xlu0 %9984
    %9986 = vrot.lane.b32.xlu0 %v1282, 32
    %v9987 = vpop.permute.xlu0 %9986
    %9988 = vrot.lane.b32.xlu0 %v1283, 32
    %v9989 = vpop.permute.xlu0 %9988
    %9990 = vrot.lane.b32.xlu0 %v1312, 32
    %v9991 = vpop.permute.xlu0 %9990
    %9992 = vrot.lane.b32.xlu0 %v1313, 32
    %v9993 = vpop.permute.xlu0 %9992
    %9994 = vrot.lane.b32.xlu0 %v1314, 32
    %v9995 = vpop.permute.xlu0 %9994
    %9996 = vrot.lane.b32.xlu0 %v1315, 32
    %v9997 = vpop.permute.xlu0 %9996
    %v9999 = vsel %vm1356, %v9983, 0
    %v10002 = vsel %vm1356, %v9985, 0
    %v10005 = vsel %vm1356, %v9987, 0
    %v10008 = vsel %vm1356, %v9989, 0
    %v10011 = vsel %vm1356, %v9991, 0
    %v10014 = vsel %vm1356, %v9993, 0
    %v10017 = vsel %vm1356, %v9995, 0
    %v10020 = vsel %vm1356, %v9997, 0
    %10022 = vmatprep.subr.bf16.mxu0 0
    %10023 = vmatpush1.bf16.xpose.msra.mxu0 %v10011
    %10024 = vmatprep.subr.bf16.mxu0 0
    %10025 = vmatpush1.bf16.xpose.msra.mxu0 %v10014
    %10026 = vmatprep.subr.bf16.mxu0 0
    %10027 = vmatpush1.bf16.xpose.msra.mxu0 %v10017
    %10028 = vmatprep.subr.bf16.mxu0 0
    %10029 = vmatpush1.bf16.xpose.msra.mxu0 %v10020
    %10030 = vmatprep.subr.bf16.mxu0 0
    %10031 = vmatpush1.bf16.xpose.msra.mxu0 0
    %10032 = vmatprep.subr.bf16.mxu0 0
    %10033 = vmatpush1.bf16.xpose.msra.mxu0 0
    %10034 = vmatprep.subr.bf16.mxu0 0
    %10035 = vmatpush1.bf16.xpose.msra.mxu0 0
    %10036 = vmatprep.subr.bf16.mxu0 0
    %10037 = vmatpush1.bf16.xpose.msra.mxu0 0
    %10038 = vmatprep.subr.bf16.mxu0 0
    %10039 = vmatpush1.bf16.xpose.msra.mxu0 0
    %10040 = vmatprep.subr.bf16.mxu0 0
    %10041 = vmatpush1.bf16.xpose.msra.mxu0 0
    %10042 = vmatprep.subr.bf16.mxu0 0
    %10043 = vmatpush1.bf16.xpose.msra.mxu0 0
    %10044 = vmatprep.subr.bf16.mxu0 0
    %10045 = vmatpush1.bf16.xpose.msra.mxu0 0
    %10046 = vmatprep.subr.bf16.mxu0 0
    %10047 = vmatpush1.bf16.xpose.msra.mxu0 0
    %10048 = vmatprep.subr.bf16.mxu0 0
    %10049 = vmatpush1.bf16.xpose.msra.mxu0 0
    %10050 = vmatprep.subr.bf16.mxu0 0
    %10051 = vmatpush1.bf16.xpose.msra.mxu0 0
    %10052 = vmatprep.subr.bf16.mxu0 0
    %10053 = vmatpush1.bf16.xpose.msra.mxu0 0
    %10054 = vmatprep.mubr.bf16.mxu0 0
    %10055 = vmatmul.mubr.bf16.gmra.mrb[0].mxu0 %v9999
    %v10056 = vpop.f32.mrb[0].mxu0
    %v10057 = vadd.f32 0.0, %v10056
    %v10058 = vpop.f32.mrb[0].mxu0
    %v10059 = vpop.f32.mrb[0].mxu0
    %v10060 = vadd.f32 0.0, %v10059
    %v10061 = vpop.f32.mrb[0].mxu0
    %10062 = vmatprep.mubr.bf16.mxu0 0
    %10063 = vmatmul.mubr.bf16.gmra.mrb[0].mxu0 %v10002
    %v10064 = vpop.f32.mrb[0].mxu0
    %v10065 = vadd.f32 0.0, %v10064
    %v10066 = vpop.f32.mrb[0].mxu0
    %v10067 = vpop.f32.mrb[0].mxu0
    %v10068 = vadd.f32 0.0, %v10067
    %v10069 = vpop.f32.mrb[0].mxu0
    %10070 = vmatprep.mubr.bf16.mxu0 0
    %10071 = vmatmul.mubr.bf16.gmra.mrb[0].mxu0 %v10005
    %v10072 = vpop.f32.mrb[0].mxu0
    %v10073 = vadd.f32 0.0, %v10072
    %v10074 = vpop.f32.mrb[0].mxu0
    %v10075 = vpop.f32.mrb[0].mxu0
    %v10076 = vadd.f32 0.0, %v10075
    %v10077 = vpop.f32.mrb[0].mxu0
    %10078 = vmatprep.mubr.bf16.mxu0 0
    %10079 = vmatmul.mubr.bf16.gmra.mrb[0].mxu0 %v10008
    %v10080 = vpop.f32.mrb[0].mxu0
    %v10081 = vadd.f32 0.0, %v10080
    %v10082 = vpop.f32.mrb[0].mxu0
    %v10083 = vpop.f32.mrb[0].mxu0
    %v10084 = vadd.f32 0.0, %v10083
    %v10085 = vpop.f32.mrb[0].mxu0
    %10086 = vdwg.mxu0
    %10087 = vrot.lane.b32.xlu0 %v1284, 32
    %v10088 = vpop.permute.xlu0 %10087
    %10089 = vrot.lane.b32.xlu0 %v1285, 32
    %v10090 = vpop.permute.xlu0 %10089
    %10091 = vrot.lane.b32.xlu0 %v1286, 32
    %v10092 = vpop.permute.xlu0 %10091
    %10093 = vrot.lane.b32.xlu0 %v1287, 32
    %v10094 = vpop.permute.xlu0 %10093
    %10095 = vrot.lane.b32.xlu0 %v1316, 32
    %v10096 = vpop.permute.xlu0 %10095
    %10097 = vrot.lane.b32.xlu0 %v1317, 32
    %v10098 = vpop.permute.xlu0 %10097
    %10099 = vrot.lane.b32.xlu0 %v1318, 32
    %v10100 = vpop.permute.xlu0 %10099
    %10101 = vrot.lane.b32.xlu0 %v1319, 32
    %v10102 = vpop.permute.xlu0 %10101
    %v10104 = vsel %vm1356, %v10088, 0
    %v10107 = vsel %vm1356, %v10090, 0
    %v10110 = vsel %vm1356, %v10092, 0
    %v10113 = vsel %vm1356, %v10094, 0
    %v10116 = vsel %vm1356, %v10096, 0
    %v10119 = vsel %vm1356, %v10098, 0
    %v10122 = vsel %vm1356, %v10100, 0
    %v10125 = vsel %vm1356, %v10102, 0
    %10127 = vmatprep.subr.bf16.mxu0 0
    %10128 = vmatpush1.bf16.xpose.msra.mxu0 %v10116
    %10129 = vmatprep.subr.bf16.mxu0 0
    %10130 = vmatpush1.bf16.xpose.msra.mxu0 %v10119
    %10131 = vmatprep.subr.bf16.mxu0 0
    %10132 = vmatpush1.bf16.xpose.msra.mxu0 %v10122
    %10133 = vmatprep.subr.bf16.mxu0 0
    %10134 = vmatpush1.bf16.xpose.msra.mxu0 %v10125
    %10135 = vmatprep.subr.bf16.mxu0 0
    %10136 = vmatpush1.bf16.xpose.msra.mxu0 0
    %10137 = vmatprep.subr.bf16.mxu0 0
    %10138 = vmatpush1.bf16.xpose.msra.mxu0 0
    %10139 = vmatprep.subr.bf16.mxu0 0
    %10140 = vmatpush1.bf16.xpose.msra.mxu0 0
    %10141 = vmatprep.subr.bf16.mxu0 0
    %10142 = vmatpush1.bf16.xpose.msra.mxu0 0
    %10143 = vmatprep.subr.bf16.mxu0 0
    %10144 = vmatpush1.bf16.xpose.msra.mxu0 0
    %10145 = vmatprep.subr.bf16.mxu0 0
    %10146 = vmatpush1.bf16.xpose.msra.mxu0 0
    %10147 = vmatprep.subr.bf16.mxu0 0
    %10148 = vmatpush1.bf16.xpose.msra.mxu0 0
    %10149 = vmatprep.subr.bf16.mxu0 0
    %10150 = vmatpush1.bf16.xpose.msra.mxu0 0
    %10151 = vmatprep.subr.bf16.mxu0 0
    %10152 = vmatpush1.bf16.xpose.msra.mxu0 0
    %10153 = vmatprep.subr.bf16.mxu0 0
    %10154 = vmatpush1.bf16.xpose.msra.mxu0 0
    %10155 = vmatprep.subr.bf16.mxu0 0
    %10156 = vmatpush1.bf16.xpose.msra.mxu0 0
    %10157 = vmatprep.subr.bf16.mxu0 0
    %10158 = vmatpush1.bf16.xpose.msra.mxu0 0
    %10159 = vmatprep.mubr.bf16.mxu0 0
    %10160 = vmatmul.mubr.bf16.gmra.mrb[0].mxu0 %v10104
    %v10161 = vpop.f32.mrb[0].mxu0
    %v10162 = vadd.f32 0.0, %v10161
    %v10163 = vpop.f32.mrb[0].mxu0
    %v10164 = vpop.f32.mrb[0].mxu0
    %v10165 = vadd.f32 0.0, %v10164
    %v10166 = vpop.f32.mrb[0].mxu0
    %10167 = vmatprep.mubr.bf16.mxu0 0
    %10168 = vmatmul.mubr.bf16.gmra.mrb[0].mxu0 %v10107
    %v10169 = vpop.f32.mrb[0].mxu0
    %v10170 = vadd.f32 0.0, %v10169
    %v10171 = vpop.f32.mrb[0].mxu0
    %v10172 = vpop.f32.mrb[0].mxu0
    %v10173 = vadd.f32 0.0, %v10172
    %v10174 = vpop.f32.mrb[0].mxu0
    %10175 = vmatprep.mubr.bf16.mxu0 0
    %10176 = vmatmul.mubr.bf16.gmra.mrb[0].mxu0 %v10110
    %v10177 = vpop.f32.mrb[0].mxu0
    %v10178 = vadd.f32 0.0, %v10177
    %v10179 = vpop.f32.mrb[0].mxu0
    %v10180 = vpop.f32.mrb[0].mxu0
    %v10181 = vadd.f32 0.0, %v10180
    %v10182 = vpop.f32.mrb[0].mxu0
    %10183 = vmatprep.mubr.bf16.mxu0 0
    %10184 = vmatmul.mubr.bf16.gmra.mrb[0].mxu0 %v10113
    %v10185 = vpop.f32.mrb[0].mxu0
    %v10186 = vadd.f32 0.0, %v10185
    %v10187 = vpop.f32.mrb[0].mxu0
    %v10188 = vpop.f32.mrb[0].mxu0
    %v10189 = vadd.f32 0.0, %v10188
    %v10190 = vpop.f32.mrb[0].mxu0
    %10191 = vdwg.mxu0
    %10192 = vrot.lane.b32.xlu0 %v1288, 32
    %v10193 = vpop.permute.xlu0 %10192
    %10194 = vrot.lane.b32.xlu0 %v1289, 32
    %v10195 = vpop.permute.xlu0 %10194
    %10196 = vrot.lane.b32.xlu0 %v1290, 32
    %v10197 = vpop.permute.xlu0 %10196
    %10198 = vrot.lane.b32.xlu0 %v1291, 32
    %v10199 = vpop.permute.xlu0 %10198
    %10200 = vrot.lane.b32.xlu0 %v1320, 32
    %v10201 = vpop.permute.xlu0 %10200
    %10202 = vrot.lane.b32.xlu0 %v1321, 32
    %v10203 = vpop.permute.xlu0 %10202
    %10204 = vrot.lane.b32.xlu0 %v1322, 32
    %v10205 = vpop.permute.xlu0 %10204
    %10206 = vrot.lane.b32.xlu0 %v1323, 32
    %v10207 = vpop.permute.xlu0 %10206
    %v10209 = vsel %vm1356, %v10193, 0
    %v10212 = vsel %vm1356, %v10195, 0
    %v10215 = vsel %vm1356, %v10197, 0
    %v10218 = vsel %vm1356, %v10199, 0
    %v10221 = vsel %vm1356, %v10201, 0
    %v10224 = vsel %vm1356, %v10203, 0
    %v10227 = vsel %vm1356, %v10205, 0
    %v10230 = vsel %vm1356, %v10207, 0
    %10232 = vmatprep.subr.bf16.mxu0 0
    %10233 = vmatpush1.bf16.xpose.msra.mxu0 %v10221
    %10234 = vmatprep.subr.bf16.mxu0 0
    %10235 = vmatpush1.bf16.xpose.msra.mxu0 %v10224
    %10236 = vmatprep.subr.bf16.mxu0 0
    %10237 = vmatpush1.bf16.xpose.msra.mxu0 %v10227
    %10238 = vmatprep.subr.bf16.mxu0 0
    %10239 = vmatpush1.bf16.xpose.msra.mxu0 %v10230
    %10240 = vmatprep.subr.bf16.mxu0 0
    %10241 = vmatpush1.bf16.xpose.msra.mxu0 0
    %10242 = vmatprep.subr.bf16.mxu0 0
    %10243 = vmatpush1.bf16.xpose.msra.mxu0 0
    %10244 = vmatprep.subr.bf16.mxu0 0
    %10245 = vmatpush1.bf16.xpose.msra.mxu0 0
    %10246 = vmatprep.subr.bf16.mxu0 0
    %10247 = vmatpush1.bf16.xpose.msra.mxu0 0
    %10248 = vmatprep.subr.bf16.mxu0 0
    %10249 = vmatpush1.bf16.xpose.msra.mxu0 0
    %10250 = vmatprep.subr.bf16.mxu0 0
    %10251 = vmatpush1.bf16.xpose.msra.mxu0 0
    %10252 = vmatprep.subr.bf16.mxu0 0
    %10253 = vmatpush1.bf16.xpose.msra.mxu0 0
    %10254 = vmatprep.subr.bf16.mxu0 0
    %10255 = vmatpush1.bf16.xpose.msra.mxu0 0
    %10256 = vmatprep.subr.bf16.mxu0 0
    %10257 = vmatpush1.bf16.xpose.msra.mxu0 0
    %10258 = vmatprep.subr.bf16.mxu0 0
    %10259 = vmatpush1.bf16.xpose.msra.mxu0 0
    %10260 = vmatprep.subr.bf16.mxu0 0
    %10261 = vmatpush1.bf16.xpose.msra.mxu0 0
    %10262 = vmatprep.subr.bf16.mxu0 0
    %10263 = vmatpush1.bf16.xpose.msra.mxu0 0
    %10264 = vmatprep.mubr.bf16.mxu0 0
    %10265 = vmatmul.mubr.bf16.gmra.mrb[0].mxu0 %v10209
    %v10266 = vpop.f32.mrb[0].mxu0
    %v10267 = vadd.f32 0.0, %v10266
    %v10268 = vpop.f32.mrb[0].mxu0
    %v10269 = vpop.f32.mrb[0].mxu0
    %v10270 = vadd.f32 0.0, %v10269
    %v10271 = vpop.f32.mrb[0].mxu0
    %10272 = vmatprep.mubr.bf16.mxu0 0
    %10273 = vmatmul.mubr.bf16.gmra.mrb[0].mxu0 %v10212
    %v10274 = vpop.f32.mrb[0].mxu0
    %v10275 = vadd.f32 0.0, %v10274
    %v10276 = vpop.f32.mrb[0].mxu0
    %v10277 = vpop.f32.mrb[0].mxu0
    %v10278 = vadd.f32 0.0, %v10277
    %v10279 = vpop.f32.mrb[0].mxu0
    %10280 = vmatprep.mubr.bf16.mxu0 0
    %10281 = vmatmul.mubr.bf16.gmra.mrb[0].mxu0 %v10215
    %v10282 = vpop.f32.mrb[0].mxu0
    %v10283 = vadd.f32 0.0, %v10282
    %v10284 = vpop.f32.mrb[0].mxu0
    %v10285 = vpop.f32.mrb[0].mxu0
    %v10286 = vadd.f32 0.0, %v10285
    %v10287 = vpop.f32.mrb[0].mxu0
    %10288 = vmatprep.mubr.bf16.mxu0 0
    %10289 = vmatmul.mubr.bf16.gmra.mrb[0].mxu0 %v10218
    %v10290 = vpop.f32.mrb[0].mxu0
    %v10291 = vadd.f32 0.0, %v10290
    %v10292 = vpop.f32.mrb[0].mxu0
    %v10293 = vpop.f32.mrb[0].mxu0
    %v10294 = vadd.f32 0.0, %v10293
    %v10295 = vpop.f32.mrb[0].mxu0
    %10296 = vdwg.mxu0
    %v10297 = vsel %vm2069, %v9532, -inf
    %10298 = vmax.xlane.f32.xlu0 %v10297
    %v10299 = vpop.xlane.xlu0 %10298
    %v10300 = vsel %vm2069, %v9535, -inf
    %10301 = vmax.xlane.f32.xlu0 %v10300
    %v10302 = vpop.xlane.xlu0 %10301
    %v10303 = vsel %vm2069, %v9540, -inf
    %10304 = vmax.xlane.f32.xlu0 %v10303
    %v10305 = vpop.xlane.xlu0 %10304
    %v10306 = vsel %vm2069, %v9543, -inf
    %10307 = vmax.xlane.f32.xlu0 %v10306
    %v10308 = vpop.xlane.xlu0 %10307
    %v10309 = vsel %vm2069, %v9548, -inf
    %10310 = vmax.xlane.f32.xlu0 %v10309
    %v10311 = vpop.xlane.xlu0 %10310
    %v10312 = vsel %vm2069, %v9551, -inf
    %10313 = vmax.xlane.f32.xlu0 %v10312
    %v10314 = vpop.xlane.xlu0 %10313
    %v10315 = vsel %vm2069, %v9556, -inf
    %10316 = vmax.xlane.f32.xlu0 %v10315
    %v10317 = vpop.xlane.xlu0 %10316
    %v10318 = vsel %vm2069, %v9559, -inf
    %10319 = vmax.xlane.f32.xlu0 %v10318
    %v10320 = vpop.xlane.xlu0 %10319
    %v10321 = vsel %vm2069, %v9637, -inf
    %10322 = vmax.xlane.f32.xlu0 %v10321
    %v10323 = vpop.xlane.xlu0 %10322
    %v10324 = vsel %vm2069, %v9640, -inf
    %10325 = vmax.xlane.f32.xlu0 %v10324
    %v10326 = vpop.xlane.xlu0 %10325
    %v10327 = vsel %vm2069, %v9645, -inf
    %10328 = vmax.xlane.f32.xlu0 %v10327
    %v10329 = vpop.xlane.xlu0 %10328
    %v10330 = vsel %vm2069, %v9648, -inf
    %10331 = vmax.xlane.f32.xlu0 %v10330
    %v10332 = vpop.xlane.xlu0 %10331
    %v10333 = vsel %vm2069, %v9653, -inf
    %10334 = vmax.xlane.f32.xlu0 %v10333
    %v10335 = vpop.xlane.xlu0 %10334
    %v10336 = vsel %vm2069, %v9656, -inf
    %10337 = vmax.xlane.f32.xlu0 %v10336
    %v10338 = vpop.xlane.xlu0 %10337
    %v10339 = vsel %vm2069, %v9661, -inf
    %10340 = vmax.xlane.f32.xlu0 %v10339
    %v10341 = vpop.xlane.xlu0 %10340
    %v10342 = vsel %vm2069, %v9664, -inf
    %10343 = vmax.xlane.f32.xlu0 %v10342
    %v10344 = vpop.xlane.xlu0 %10343
    %v10345 = vsel %vm2069, %v9742, -inf
    %10346 = vmax.xlane.f32.xlu0 %v10345
    %v10347 = vpop.xlane.xlu0 %10346
    %v10348 = vsel %vm2069, %v9745, -inf
    %10349 = vmax.xlane.f32.xlu0 %v10348
    %v10350 = vpop.xlane.xlu0 %10349
    %v10351 = vsel %vm2069, %v9750, -inf
    %10352 = vmax.xlane.f32.xlu0 %v10351
    %v10353 = vpop.xlane.xlu0 %10352
    %v10354 = vsel %vm2069, %v9753, -inf
    %10355 = vmax.xlane.f32.xlu0 %v10354
    %v10356 = vpop.xlane.xlu0 %10355
    %v10357 = vsel %vm2069, %v9758, -inf
    %10358 = vmax.xlane.f32.xlu0 %v10357
    %v10359 = vpop.xlane.xlu0 %10358
    %v10360 = vsel %vm2069, %v9761, -inf
    %10361 = vmax.xlane.f32.xlu0 %v10360
    %v10362 = vpop.xlane.xlu0 %10361
    %v10363 = vsel %vm2069, %v9766, -inf
    %10364 = vmax.xlane.f32.xlu0 %v10363
    %v10365 = vpop.xlane.xlu0 %10364
    %v10366 = vsel %vm2069, %v9769, -inf
    %10367 = vmax.xlane.f32.xlu0 %v10366
    %v10368 = vpop.xlane.xlu0 %10367
    %v10369 = vsel %vm2069, %v9847, -inf
    %10370 = vmax.xlane.f32.xlu0 %v10369
    %v10371 = vpop.xlane.xlu0 %10370
    %v10372 = vsel %vm2069, %v9850, -inf
    %10373 = vmax.xlane.f32.xlu0 %v10372
    %v10374 = vpop.xlane.xlu0 %10373
    %v10375 = vsel %vm2069, %v9855, -inf
    %10376 = vmax.xlane.f32.xlu0 %v10375
    %v10377 = vpop.xlane.xlu0 %10376
    %v10378 = vsel %vm2069, %v9858, -inf
    %10379 = vmax.xlane.f32.xlu0 %v10378
    %v10380 = vpop.xlane.xlu0 %10379
    %v10381 = vsel %vm2069, %v9863, -inf
    %10382 = vmax.xlane.f32.xlu0 %v10381
    %v10383 = vpop.xlane.xlu0 %10382
    %v10384 = vsel %vm2069, %v9866, -inf
    %10385 = vmax.xlane.f32.xlu0 %v10384
    %v10386 = vpop.xlane.xlu0 %10385
    %v10387 = vsel %vm2069, %v9871, -inf
    %10388 = vmax.xlane.f32.xlu0 %v10387
    %v10389 = vpop.xlane.xlu0 %10388
    %v10390 = vsel %vm2069, %v9874, -inf
    %10391 = vmax.xlane.f32.xlu0 %v10390
    %v10392 = vpop.xlane.xlu0 %10391
    %v10393 = vsel %vm2069, %v9952, -inf
    %10394 = vmax.xlane.f32.xlu0 %v10393
    %v10395 = vpop.xlane.xlu0 %10394
    %v10396 = vsel %vm2069, %v9955, -inf
    %10397 = vmax.xlane.f32.xlu0 %v10396
    %v10398 = vpop.xlane.xlu0 %10397
    %v10399 = vsel %vm2069, %v9960, -inf
    %10400 = vmax.xlane.f32.xlu0 %v10399
    %v10401 = vpop.xlane.xlu0 %10400
    %v10402 = vsel %vm2069, %v9963, -inf
    %10403 = vmax.xlane.f32.xlu0 %v10402
    %v10404 = vpop.xlane.xlu0 %10403
    %v10405 = vsel %vm2069, %v9968, -inf
    %10406 = vmax.xlane.f32.xlu0 %v10405
    %v10407 = vpop.xlane.xlu0 %10406
    %v10408 = vsel %vm2069, %v9971, -inf
    %10409 = vmax.xlane.f32.xlu0 %v10408
    %v10410 = vpop.xlane.xlu0 %10409
    %v10411 = vsel %vm2069, %v9976, -inf
    %10412 = vmax.xlane.f32.xlu0 %v10411
    %v10413 = vpop.xlane.xlu0 %10412
    %v10414 = vsel %vm2069, %v9979, -inf
    %10415 = vmax.xlane.f32.xlu0 %v10414
    %v10416 = vpop.xlane.xlu0 %10415
    %v10417 = vsel %vm2069, %v10057, -inf
    %10418 = vmax.xlane.f32.xlu0 %v10417
    %v10419 = vpop.xlane.xlu0 %10418
    %v10420 = vsel %vm2069, %v10060, -inf
    %10421 = vmax.xlane.f32.xlu0 %v10420
    %v10422 = vpop.xlane.xlu0 %10421
    %v10423 = vsel %vm2069, %v10065, -inf
    %10424 = vmax.xlane.f32.xlu0 %v10423
    %v10425 = vpop.xlane.xlu0 %10424
    %v10426 = vsel %vm2069, %v10068, -inf
    %10427 = vmax.xlane.f32.xlu0 %v10426
    %v10428 = vpop.xlane.xlu0 %10427
    %v10429 = vsel %vm2069, %v10073, -inf
    %10430 = vmax.xlane.f32.xlu0 %v10429
    %v10431 = vpop.xlane.xlu0 %10430
    %v10432 = vsel %vm2069, %v10076, -inf
    %10433 = vmax.xlane.f32.xlu0 %v10432
    %v10434 = vpop.xlane.xlu0 %10433
    %v10435 = vsel %vm2069, %v10081, -inf
    %10436 = vmax.xlane.f32.xlu0 %v10435
    %v10437 = vpop.xlane.xlu0 %10436
    %v10438 = vsel %vm2069, %v10084, -inf
    %10439 = vmax.xlane.f32.xlu0 %v10438
    %v10440 = vpop.xlane.xlu0 %10439
    %v10441 = vsel %vm2069, %v10162, -inf
    %10442 = vmax.xlane.f32.xlu0 %v10441
    %v10443 = vpop.xlane.xlu0 %10442
    %v10444 = vsel %vm2069, %v10165, -inf
    %10445 = vmax.xlane.f32.xlu0 %v10444
    %v10446 = vpop.xlane.xlu0 %10445
    %v10447 = vsel %vm2069, %v10170, -inf
    %10448 = vmax.xlane.f32.xlu0 %v10447
    %v10449 = vpop.xlane.xlu0 %10448
    %v10450 = vsel %vm2069, %v10173, -inf
    %10451 = vmax.xlane.f32.xlu0 %v10450
    %v10452 = vpop.xlane.xlu0 %10451
    %v10453 = vsel %vm2069, %v10178, -inf
    %10454 = vmax.xlane.f32.xlu0 %v10453
    %v10455 = vpop.xlane.xlu0 %10454
    %v10456 = vsel %vm2069, %v10181, -inf
    %10457 = vmax.xlane.f32.xlu0 %v10456
    %v10458 = vpop.xlane.xlu0 %10457
    %v10459 = vsel %vm2069, %v10186, -inf
    %10460 = vmax.xlane.f32.xlu0 %v10459
    %v10461 = vpop.xlane.xlu0 %10460
    %v10462 = vsel %vm2069, %v10189, -inf
    %10463 = vmax.xlane.f32.xlu0 %v10462
    %v10464 = vpop.xlane.xlu0 %10463
    %v10465 = vsel %vm2069, %v10267, -inf
    %10466 = vmax.xlane.f32.xlu0 %v10465
    %v10467 = vpop.xlane.xlu0 %10466
    %v10468 = vsel %vm2069, %v10270, -inf
    %10469 = vmax.xlane.f32.xlu0 %v10468
    %v10470 = vpop.xlane.xlu0 %10469
    %v10471 = vsel %vm2069, %v10275, -inf
    %10472 = vmax.xlane.f32.xlu0 %v10471
    %v10473 = vpop.xlane.xlu0 %10472
    %v10474 = vsel %vm2069, %v10278, -inf
    %10475 = vmax.xlane.f32.xlu0 %v10474
    %v10476 = vpop.xlane.xlu0 %10475
    %v10477 = vsel %vm2069, %v10283, -inf
    %10478 = vmax.xlane.f32.xlu0 %v10477
    %v10479 = vpop.xlane.xlu0 %10478
    %v10480 = vsel %vm2069, %v10286, -inf
    %10481 = vmax.xlane.f32.xlu0 %v10480
    %v10482 = vpop.xlane.xlu0 %10481
    %v10483 = vsel %vm2069, %v10291, -inf
    %10484 = vmax.xlane.f32.xlu0 %v10483
    %v10485 = vpop.xlane.xlu0 %10484
    %v10486 = vsel %vm2069, %v10294, -inf
    %10487 = vmax.xlane.f32.xlu0 %v10486
    %v10488 = vpop.xlane.xlu0 %10487
    %v10489 = vsub.f32 %v9532, %v10299
    %v10490 = vsub.f32 %v9535, %v10302
    %v10491 = vsub.f32 %v9540, %v10305
    %v10492 = vsub.f32 %v9543, %v10308
    %v10493 = vsub.f32 %v9548, %v10311
    %v10494 = vsub.f32 %v9551, %v10314
    %v10495 = vsub.f32 %v9556, %v10317
    %v10496 = vsub.f32 %v9559, %v10320
    %v10497 = vsub.f32 %v9637, %v10323
    %v10498 = vsub.f32 %v9640, %v10326
    %v10499 = vsub.f32 %v9645, %v10329
    %v10500 = vsub.f32 %v9648, %v10332
    %v10501 = vsub.f32 %v9653, %v10335
    %v10502 = vsub.f32 %v9656, %v10338
    %v10503 = vsub.f32 %v9661, %v10341
    %v10504 = vsub.f32 %v9664, %v10344
    %v10505 = vsub.f32 %v9742, %v10347
    %v10506 = vsub.f32 %v9745, %v10350
    %v10507 = vsub.f32 %v9750, %v10353
    %v10508 = vsub.f32 %v9753, %v10356
    %v10509 = vsub.f32 %v9758, %v10359
    %v10510 = vsub.f32 %v9761, %v10362
    %v10511 = vsub.f32 %v9766, %v10365
    %v10512 = vsub.f32 %v9769, %v10368
    %v10513 = vsub.f32 %v9847, %v10371
    %v10514 = vsub.f32 %v9850, %v10374
    %v10515 = vsub.f32 %v9855, %v10377
    %v10516 = vsub.f32 %v9858, %v10380
    %v10517 = vsub.f32 %v9863, %v10383
    %v10518 = vsub.f32 %v9866, %v10386
    %v10519 = vsub.f32 %v9871, %v10389
    %v10520 = vsub.f32 %v9874, %v10392
    %v10521 = vsub.f32 %v9952, %v10395
    %v10522 = vsub.f32 %v9955, %v10398
    %v10523 = vsub.f32 %v9960, %v10401
    %v10524 = vsub.f32 %v9963, %v10404
    %v10525 = vsub.f32 %v9968, %v10407
    %v10526 = vsub.f32 %v9971, %v10410
    %v10527 = vsub.f32 %v9976, %v10413
    %v10528 = vsub.f32 %v9979, %v10416
    %v10529 = vsub.f32 %v10057, %v10419
    %v10530 = vsub.f32 %v10060, %v10422
    %v10531 = vsub.f32 %v10065, %v10425
    %v10532 = vsub.f32 %v10068, %v10428
    %v10533 = vsub.f32 %v10073, %v10431
    %v10534 = vsub.f32 %v10076, %v10434
    %v10535 = vsub.f32 %v10081, %v10437
    %v10536 = vsub.f32 %v10084, %v10440
    %v10537 = vsub.f32 %v10162, %v10443
    %v10538 = vsub.f32 %v10165, %v10446
    %v10539 = vsub.f32 %v10170, %v10449
    %v10540 = vsub.f32 %v10173, %v10452
    %v10541 = vsub.f32 %v10178, %v10455
    %v10542 = vsub.f32 %v10181, %v10458
    %v10543 = vsub.f32 %v10186, %v10461
    %v10544 = vsub.f32 %v10189, %v10464
    %v10545 = vsub.f32 %v10267, %v10467
    %v10546 = vsub.f32 %v10270, %v10470
    %v10547 = vsub.f32 %v10275, %v10473
    %v10548 = vsub.f32 %v10278, %v10476
    %v10549 = vsub.f32 %v10283, %v10479
    %v10550 = vsub.f32 %v10286, %v10482
    %v10551 = vsub.f32 %v10291, %v10485
    %v10552 = vsub.f32 %v10294, %v10488
    %v10553 = vmul.f32 %v10489, 1.442695
    %v10554 = vpow.pop %v10553
    %v10555 = vmul.f32 %v10490, 1.442695
    %v10556 = vpow.pop %v10555
    %v10557 = vmul.f32 %v10491, 1.442695
    %v10558 = vpow.pop %v10557
    %v10559 = vmul.f32 %v10492, 1.442695
    %v10560 = vpow.pop %v10559
    %v10561 = vmul.f32 %v10493, 1.442695
    %v10562 = vpow.pop %v10561
    %v10563 = vmul.f32 %v10494, 1.442695
    %v10564 = vpow.pop %v10563
    %v10565 = vmul.f32 %v10495, 1.442695
    %v10566 = vpow.pop %v10565
    %v10567 = vmul.f32 %v10496, 1.442695
    %v10568 = vpow.pop %v10567
    %v10569 = vmul.f32 %v10497, 1.442695
    %v10570 = vpow.pop %v10569
    %v10571 = vmul.f32 %v10498, 1.442695
    %v10572 = vpow.pop %v10571
    %v10573 = vmul.f32 %v10499, 1.442695
    %v10574 = vpow.pop %v10573
    %v10575 = vmul.f32 %v10500, 1.442695
    %v10576 = vpow.pop %v10575
    %v10577 = vmul.f32 %v10501, 1.442695
    %v10578 = vpow.pop %v10577
    %v10579 = vmul.f32 %v10502, 1.442695
    %v10580 = vpow.pop %v10579
    %v10581 = vmul.f32 %v10503, 1.442695
    %v10582 = vpow.pop %v10581
    %v10583 = vmul.f32 %v10504, 1.442695
    %v10584 = vpow.pop %v10583
    %v10585 = vmul.f32 %v10505, 1.442695
    %v10586 = vpow.pop %v10585
    %v10587 = vmul.f32 %v10506, 1.442695
    %v10588 = vpow.pop %v10587
    %v10589 = vmul.f32 %v10507, 1.442695
    %v10590 = vpow.pop %v10589
    %v10591 = vmul.f32 %v10508, 1.442695
    %v10592 = vpow.pop %v10591
    %v10593 = vmul.f32 %v10509, 1.442695
    %v10594 = vpow.pop %v10593
    %v10595 = vmul.f32 %v10510, 1.442695
    %v10596 = vpow.pop %v10595
    %v10597 = vmul.f32 %v10511, 1.442695
    %v10598 = vpow.pop %v10597
    %v10599 = vmul.f32 %v10512, 1.442695
    %v10600 = vpow.pop %v10599
    %v10601 = vmul.f32 %v10513, 1.442695
    %v10602 = vpow.pop %v10601
    %v10603 = vmul.f32 %v10514, 1.442695
    %v10604 = vpow.pop %v10603
    %v10605 = vmul.f32 %v10515, 1.442695
    %v10606 = vpow.pop %v10605
    %v10607 = vmul.f32 %v10516, 1.442695
    %v10608 = vpow.pop %v10607
    %v10609 = vmul.f32 %v10517, 1.442695
    %v10610 = vpow.pop %v10609
    %v10611 = vmul.f32 %v10518, 1.442695
    %v10612 = vpow.pop %v10611
    %v10613 = vmul.f32 %v10519, 1.442695
    %v10614 = vpow.pop %v10613
    %v10615 = vmul.f32 %v10520, 1.442695
    %v10616 = vpow.pop %v10615
    %v10617 = vmul.f32 %v10521, 1.442695
    %v10618 = vpow.pop %v10617
    %v10619 = vmul.f32 %v10522, 1.442695
    %v10620 = vpow.pop %v10619
    %v10621 = vmul.f32 %v10523, 1.442695
    %v10622 = vpow.pop %v10621
    %v10623 = vmul.f32 %v10524, 1.442695
    %v10624 = vpow.pop %v10623
    %v10625 = vmul.f32 %v10525, 1.442695
    %v10626 = vpow.pop %v10625
    %v10627 = vmul.f32 %v10526, 1.442695
    %v10628 = vpow.pop %v10627
    %v10629 = vmul.f32 %v10527, 1.442695
    %v10630 = vpow.pop %v10629
    %v10631 = vmul.f32 %v10528, 1.442695
    %v10632 = vpow.pop %v10631
    %v10633 = vmul.f32 %v10529, 1.442695
    %v10634 = vpow.pop %v10633
    %v10635 = vmul.f32 %v10530, 1.442695
    %v10636 = vpow.pop %v10635
    %v10637 = vmul.f32 %v10531, 1.442695
    %v10638 = vpow.pop %v10637
    %v10639 = vmul.f32 %v10532, 1.442695
    %v10640 = vpow.pop %v10639
    %v10641 = vmul.f32 %v10533, 1.442695
    %v10642 = vpow.pop %v10641
    %v10643 = vmul.f32 %v10534, 1.442695
    %v10644 = vpow.pop %v10643
    %v10645 = vmul.f32 %v10535, 1.442695
    %v10646 = vpow.pop %v10645
    %v10647 = vmul.f32 %v10536, 1.442695
    %v10648 = vpow.pop %v10647
    %v10649 = vmul.f32 %v10537, 1.442695
    %v10650 = vpow.pop %v10649
    %v10651 = vmul.f32 %v10538, 1.442695
    %v10652 = vpow.pop %v10651
    %v10653 = vmul.f32 %v10539, 1.442695
    %v10654 = vpow.pop %v10653
    %v10655 = vmul.f32 %v10540, 1.442695
    %v10656 = vpow.pop %v10655
    %v10657 = vmul.f32 %v10541, 1.442695
    %v10658 = vpow.pop %v10657
    %v10659 = vmul.f32 %v10542, 1.442695
    %v10660 = vpow.pop %v10659
    %v10661 = vmul.f32 %v10543, 1.442695
    %v10662 = vpow.pop %v10661
    %v10663 = vmul.f32 %v10544, 1.442695
    %v10664 = vpow.pop %v10663
    %v10665 = vmul.f32 %v10545, 1.442695
    %v10666 = vpow.pop %v10665
    %v10667 = vmul.f32 %v10546, 1.442695
    %v10668 = vpow.pop %v10667
    %v10669 = vmul.f32 %v10547, 1.442695
    %v10670 = vpow.pop %v10669
    %v10671 = vmul.f32 %v10548, 1.442695
    %v10672 = vpow.pop %v10671
    %v10673 = vmul.f32 %v10549, 1.442695
    %v10674 = vpow.pop %v10673
    %v10675 = vmul.f32 %v10550, 1.442695
    %v10676 = vpow.pop %v10675
    %v10677 = vmul.f32 %v10551, 1.442695
    %v10678 = vpow.pop %v10677
    %v10679 = vmul.f32 %v10552, 1.442695
    %v10680 = vpow.pop %v10679
    %v10681 = vsel %vm2069, %v10554, 0.0
    %10682 = vadd.xlane.f32.xlu0 %v10681
    %v10683 = vpop.xlane.xlu0 %10682
    %v10684 = vsel %vm2069, %v10556, 0.0
    %10685 = vadd.xlane.f32.xlu0 %v10684
    %v10686 = vpop.xlane.xlu0 %10685
    %v10687 = vsel %vm2069, %v10558, 0.0
    %10688 = vadd.xlane.f32.xlu0 %v10687
    %v10689 = vpop.xlane.xlu0 %10688
    %v10690 = vsel %vm2069, %v10560, 0.0
    %10691 = vadd.xlane.f32.xlu0 %v10690
    %v10692 = vpop.xlane.xlu0 %10691
    %v10693 = vsel %vm2069, %v10562, 0.0
    %10694 = vadd.xlane.f32.xlu0 %v10693
    %v10695 = vpop.xlane.xlu0 %10694
    %v10696 = vsel %vm2069, %v10564, 0.0
    %10697 = vadd.xlane.f32.xlu0 %v10696
    %v10698 = vpop.xlane.xlu0 %10697
    %v10699 = vsel %vm2069, %v10566, 0.0
    %10700 = vadd.xlane.f32.xlu0 %v10699
    %v10701 = vpop.xlane.xlu0 %10700
    %v10702 = vsel %vm2069, %v10568, 0.0
    %10703 = vadd.xlane.f32.xlu0 %v10702
    %v10704 = vpop.xlane.xlu0 %10703
    %v10705 = vsel %vm2069, %v10570, 0.0
    %10706 = vadd.xlane.f32.xlu0 %v10705
    %v10707 = vpop.xlane.xlu0 %10706
    %v10708 = vsel %vm2069, %v10572, 0.0
    %10709 = vadd.xlane.f32.xlu0 %v10708
    %v10710 = vpop.xlane.xlu0 %10709
    %v10711 = vsel %vm2069, %v10574, 0.0
    %10712 = vadd.xlane.f32.xlu0 %v10711
    %v10713 = vpop.xlane.xlu0 %10712
    %v10714 = vsel %vm2069, %v10576, 0.0
    %10715 = vadd.xlane.f32.xlu0 %v10714
    %v10716 = vpop.xlane.xlu0 %10715
    %v10717 = vsel %vm2069, %v10578, 0.0
    %10718 = vadd.xlane.f32.xlu0 %v10717
    %v10719 = vpop.xlane.xlu0 %10718
    %v10720 = vsel %vm2069, %v10580, 0.0
    %10721 = vadd.xlane.f32.xlu0 %v10720
    %v10722 = vpop.xlane.xlu0 %10721
    %v10723 = vsel %vm2069, %v10582, 0.0
    %10724 = vadd.xlane.f32.xlu0 %v10723
    %v10725 = vpop.xlane.xlu0 %10724
    %v10726 = vsel %vm2069, %v10584, 0.0
    %10727 = vadd.xlane.f32.xlu0 %v10726
    %v10728 = vpop.xlane.xlu0 %10727
    %v10729 = vsel %vm2069, %v10586, 0.0
    %10730 = vadd.xlane.f32.xlu0 %v10729
    %v10731 = vpop.xlane.xlu0 %10730
    %v10732 = vsel %vm2069, %v10588, 0.0
    %10733 = vadd.xlane.f32.xlu0 %v10732
    %v10734 = vpop.xlane.xlu0 %10733
    %v10735 = vsel %vm2069, %v10590, 0.0
    %10736 = vadd.xlane.f32.xlu0 %v10735
    %v10737 = vpop.xlane.xlu0 %10736
    %v10738 = vsel %vm2069, %v10592, 0.0
    %10739 = vadd.xlane.f32.xlu0 %v10738
    %v10740 = vpop.xlane.xlu0 %10739
    %v10741 = vsel %vm2069, %v10594, 0.0
    %10742 = vadd.xlane.f32.xlu0 %v10741
    %v10743 = vpop.xlane.xlu0 %10742
    %v10744 = vsel %vm2069, %v10596, 0.0
    %10745 = vadd.xlane.f32.xlu0 %v10744
    %v10746 = vpop.xlane.xlu0 %10745
    %v10747 = vsel %vm2069, %v10598, 0.0
    %10748 = vadd.xlane.f32.xlu0 %v10747
    %v10749 = vpop.xlane.xlu0 %10748
    %v10750 = vsel %vm2069, %v10600, 0.0
    %10751 = vadd.xlane.f32.xlu0 %v10750
    %v10752 = vpop.xlane.xlu0 %10751
    %v10753 = vsel %vm2069, %v10602, 0.0
    %10754 = vadd.xlane.f32.xlu0 %v10753
    %v10755 = vpop.xlane.xlu0 %10754
    %v10756 = vsel %vm2069, %v10604, 0.0
    %10757 = vadd.xlane.f32.xlu0 %v10756
    %v10758 = vpop.xlane.xlu0 %10757
    %v10759 = vsel %vm2069, %v10606, 0.0
    %10760 = vadd.xlane.f32.xlu0 %v10759
    %v10761 = vpop.xlane.xlu0 %10760
    %v10762 = vsel %vm2069, %v10608, 0.0
    %10763 = vadd.xlane.f32.xlu0 %v10762
    %v10764 = vpop.xlane.xlu0 %10763
    %v10765 = vsel %vm2069, %v10610, 0.0
    %10766 = vadd.xlane.f32.xlu0 %v10765
    %v10767 = vpop.xlane.xlu0 %10766
    %v10768 = vsel %vm2069, %v10612, 0.0
    %10769 = vadd.xlane.f32.xlu0 %v10768
    %v10770 = vpop.xlane.xlu0 %10769
    %v10771 = vsel %vm2069, %v10614, 0.0
    %10772 = vadd.xlane.f32.xlu0 %v10771
    %v10773 = vpop.xlane.xlu0 %10772
    %v10774 = vsel %vm2069, %v10616, 0.0
    %10775 = vadd.xlane.f32.xlu0 %v10774
    %v10776 = vpop.xlane.xlu0 %10775
    %v10777 = vsel %vm2069, %v10618, 0.0
    %10778 = vadd.xlane.f32.xlu0 %v10777
    %v10779 = vpop.xlane.xlu0 %10778
    %v10780 = vsel %vm2069, %v10620, 0.0
    %10781 = vadd.xlane.f32.xlu0 %v10780
    %v10782 = vpop.xlane.xlu0 %10781
    %v10783 = vsel %vm2069, %v10622, 0.0
    %10784 = vadd.xlane.f32.xlu0 %v10783
    %v10785 = vpop.xlane.xlu0 %10784
    %v10786 = vsel %vm2069, %v10624, 0.0
    %10787 = vadd.xlane.f32.xlu0 %v10786
    %v10788 = vpop.xlane.xlu0 %10787
    %v10789 = vsel %vm2069, %v10626, 0.0
    %10790 = vadd.xlane.f32.xlu0 %v10789
    %v10791 = vpop.xlane.xlu0 %10790
    %v10792 = vsel %vm2069, %v10628, 0.0
    %10793 = vadd.xlane.f32.xlu0 %v10792
    %v10794 = vpop.xlane.xlu0 %10793
    %v10795 = vsel %vm2069, %v10630, 0.0
    %10796 = vadd.xlane.f32.xlu0 %v10795
    %v10797 = vpop.xlane.xlu0 %10796
    %v10798 = vsel %vm2069, %v10632, 0.0
    %10799 = vadd.xlane.f32.xlu0 %v10798
    %v10800 = vpop.xlane.xlu0 %10799
    %v10801 = vsel %vm2069, %v10634, 0.0
    %10802 = vadd.xlane.f32.xlu0 %v10801
    %v10803 = vpop.xlane.xlu0 %10802
    %v10804 = vsel %vm2069, %v10636, 0.0
    %10805 = vadd.xlane.f32.xlu0 %v10804
    %v10806 = vpop.xlane.xlu0 %10805
    %v10807 = vsel %vm2069, %v10638, 0.0
    %10808 = vadd.xlane.f32.xlu0 %v10807
    %v10809 = vpop.xlane.xlu0 %10808
    %v10810 = vsel %vm2069, %v10640, 0.0
    %10811 = vadd.xlane.f32.xlu0 %v10810
    %v10812 = vpop.xlane.xlu0 %10811
    %v10813 = vsel %vm2069, %v10642, 0.0
    %10814 = vadd.xlane.f32.xlu0 %v10813
    %v10815 = vpop.xlane.xlu0 %10814
    %v10816 = vsel %vm2069, %v10644, 0.0
    %10817 = vadd.xlane.f32.xlu0 %v10816
    %v10818 = vpop.xlane.xlu0 %10817
    %v10819 = vsel %vm2069, %v10646, 0.0
    %10820 = vadd.xlane.f32.xlu0 %v10819
    %v10821 = vpop.xlane.xlu0 %10820
    %v10822 = vsel %vm2069, %v10648, 0.0
    %10823 = vadd.xlane.f32.xlu0 %v10822
    %v10824 = vpop.xlane.xlu0 %10823
    %v10825 = vsel %vm2069, %v10650, 0.0
    %10826 = vadd.xlane.f32.xlu0 %v10825
    %v10827 = vpop.xlane.xlu0 %10826
    %v10828 = vsel %vm2069, %v10652, 0.0
    %10829 = vadd.xlane.f32.xlu0 %v10828
    %v10830 = vpop.xlane.xlu0 %10829
    %v10831 = vsel %vm2069, %v10654, 0.0
    %10832 = vadd.xlane.f32.xlu0 %v10831
    %v10833 = vpop.xlane.xlu0 %10832
    %v10834 = vsel %vm2069, %v10656, 0.0
    %10835 = vadd.xlane.f32.xlu0 %v10834
    %v10836 = vpop.xlane.xlu0 %10835
    %v10837 = vsel %vm2069, %v10658, 0.0
    %10838 = vadd.xlane.f32.xlu0 %v10837
    %v10839 = vpop.xlane.xlu0 %10838
    %v10840 = vsel %vm2069, %v10660, 0.0
    %10841 = vadd.xlane.f32.xlu0 %v10840
    %v10842 = vpop.xlane.xlu0 %10841
    %v10843 = vsel %vm2069, %v10662, 0.0
    %10844 = vadd.xlane.f32.xlu0 %v10843
    %v10845 = vpop.xlane.xlu0 %10844
    %v10846 = vsel %vm2069, %v10664, 0.0
    %10847 = vadd.xlane.f32.xlu0 %v10846
    %v10848 = vpop.xlane.xlu0 %10847
    %v10849 = vsel %vm2069, %v10666, 0.0
    %10850 = vadd.xlane.f32.xlu0 %v10849
    %v10851 = vpop.xlane.xlu0 %10850
    %v10852 = vsel %vm2069, %v10668, 0.0
    %10853 = vadd.xlane.f32.xlu0 %v10852
    %v10854 = vpop.xlane.xlu0 %10853
    %v10855 = vsel %vm2069, %v10670, 0.0
    %10856 = vadd.xlane.f32.xlu0 %v10855
    %v10857 = vpop.xlane.xlu0 %10856
    %v10858 = vsel %vm2069, %v10672, 0.0
    %10859 = vadd.xlane.f32.xlu0 %v10858
    %v10860 = vpop.xlane.xlu0 %10859
    %v10861 = vsel %vm2069, %v10674, 0.0
    %10862 = vadd.xlane.f32.xlu0 %v10861
    %v10863 = vpop.xlane.xlu0 %10862
    %v10864 = vsel %vm2069, %v10676, 0.0
    %10865 = vadd.xlane.f32.xlu0 %v10864
    %v10866 = vpop.xlane.xlu0 %10865
    %v10867 = vsel %vm2069, %v10678, 0.0
    %10868 = vadd.xlane.f32.xlu0 %v10867
    %v10869 = vpop.xlane.xlu0 %10868
    %v10870 = vsel %vm2069, %v10680, 0.0
    %10871 = vadd.xlane.f32.xlu0 %v10870
    %v10872 = vpop.xlane.xlu0 %10871
    %v10873 = vpack.c.bf16 %v10556, %v10554
    %v10874 = vpack.c.bf16 %v10560, %v10558
    %v10875 = vpack.c.bf16 %v10564, %v10562
    %v10876 = vpack.c.bf16 %v10568, %v10566
    %v10877 = vpack.c.bf16 %v10572, %v10570
    %v10878 = vpack.c.bf16 %v10576, %v10574
    %v10879 = vpack.c.bf16 %v10580, %v10578
    %v10880 = vpack.c.bf16 %v10584, %v10582
    %v10881 = vpack.c.bf16 %v10588, %v10586
    %v10882 = vpack.c.bf16 %v10592, %v10590
    %v10883 = vpack.c.bf16 %v10596, %v10594
    %v10884 = vpack.c.bf16 %v10600, %v10598
    %v10885 = vpack.c.bf16 %v10604, %v10602
    %v10886 = vpack.c.bf16 %v10608, %v10606
    %v10887 = vpack.c.bf16 %v10612, %v10610
    %v10888 = vpack.c.bf16 %v10616, %v10614
    %v10889 = vpack.c.bf16 %v10620, %v10618
    %v10890 = vpack.c.bf16 %v10624, %v10622
    %v10891 = vpack.c.bf16 %v10628, %v10626
    %v10892 = vpack.c.bf16 %v10632, %v10630
    %v10893 = vpack.c.bf16 %v10636, %v10634
    %v10894 = vpack.c.bf16 %v10640, %v10638
    %v10895 = vpack.c.bf16 %v10644, %v10642
    %v10896 = vpack.c.bf16 %v10648, %v10646
    %v10897 = vpack.c.bf16 %v10652, %v10650
    %v10898 = vpack.c.bf16 %v10656, %v10654
    %v10899 = vpack.c.bf16 %v10660, %v10658
    %v10900 = vpack.c.bf16 %v10664, %v10662
    %v10901 = vpack.c.bf16 %v10668, %v10666
    %v10902 = vpack.c.bf16 %v10672, %v10670
    %v10903 = vpack.c.bf16 %v10676, %v10674
    %v10904 = vpack.c.bf16 %v10680, %v10678
    %10905 = vrot.lane.b32.xlu0 %v1324, 32
    %v10906 = vpop.permute.xlu0 %10905
    %10907 = vrot.lane.b32.xlu0 %v1325, 32
    %v10908 = vpop.permute.xlu0 %10907
    %10909 = vrot.lane.b32.xlu0 %v1326, 32
    %v10910 = vpop.permute.xlu0 %10909
    %10911 = vrot.lane.b32.xlu0 %v1327, 32
    %v10912 = vpop.permute.xlu0 %10911
    %v10918 = vsel %vm2069, %v10873, 0
    %v10921 = vsel %vm2069, %v10874, 0
    %v10924 = vsel %vm2069, %v10875, 0
    %v10927 = vsel %vm2069, %v10876, 0
    %10929 = vmatprep.subr.bf16.mxu0 0
    %10930 = vmatpush1.bf16.msra.mxu0 %v10906
    %10931 = vmatprep.subr.bf16.mxu0 0
    %10932 = vmatpush1.bf16.msra.mxu0 %v10908
    %10933 = vmatprep.subr.bf16.mxu0 0
    %10934 = vmatpush1.bf16.msra.mxu0 %v10910
    %10935 = vmatprep.subr.bf16.mxu0 0
    %10936 = vmatpush1.bf16.msra.mxu0 %v10912
    %10937 = vmatprep.subr.bf16.mxu0 0
    %10938 = vmatpush1.bf16.msra.mxu0 0
    %10939 = vmatprep.subr.bf16.mxu0 0
    %10940 = vmatpush1.bf16.msra.mxu0 0
    %10941 = vmatprep.subr.bf16.mxu0 0
    %10942 = vmatpush1.bf16.msra.mxu0 0
    %10943 = vmatprep.subr.bf16.mxu0 0
    %10944 = vmatpush1.bf16.msra.mxu0 0
    %10945 = vmatprep.subr.bf16.mxu0 0
    %10946 = vmatpush1.bf16.msra.mxu0 0
    %10947 = vmatprep.subr.bf16.mxu0 0
    %10948 = vmatpush1.bf16.msra.mxu0 0
    %10949 = vmatprep.subr.bf16.mxu0 0
    %10950 = vmatpush1.bf16.msra.mxu0 0
    %10951 = vmatprep.subr.bf16.mxu0 0
    %10952 = vmatpush1.bf16.msra.mxu0 0
    %10953 = vmatprep.subr.bf16.mxu0 0
    %10954 = vmatpush1.bf16.msra.mxu0 0
    %10955 = vmatprep.subr.bf16.mxu0 0
    %10956 = vmatpush1.bf16.msra.mxu0 0
    %10957 = vmatprep.subr.bf16.mxu0 0
    %10958 = vmatpush1.bf16.msra.mxu0 0
    %10959 = vmatprep.subr.bf16.mxu0 0
    %10960 = vmatpush1.bf16.msra.mxu0 0
    %10961 = vmatprep.mubr.bf16.mxu0 0
    %10962 = vmatmul.mubr.bf16.gmra.mrb[0].mxu0 %v10918
    %v10963 = vpop.f32.mrb[0].mxu0
    %v10964 = vadd.f32 0.0, %v10963
    %v10965 = vpop.f32.mrb[0].mxu0
    %v10966 = vpop.f32.mrb[0].mxu0
    %v10967 = vadd.f32 0.0, %v10966
    %v10968 = vpop.f32.mrb[0].mxu0
    %10969 = vmatprep.mubr.bf16.mxu0 0
    %10970 = vmatmul.mubr.bf16.gmra.mrb[0].mxu0 %v10921
    %v10971 = vpop.f32.mrb[0].mxu0
    %v10972 = vadd.f32 0.0, %v10971
    %v10973 = vpop.f32.mrb[0].mxu0
    %v10974 = vpop.f32.mrb[0].mxu0
    %v10975 = vadd.f32 0.0, %v10974
    %v10976 = vpop.f32.mrb[0].mxu0
    %10977 = vmatprep.mubr.bf16.mxu0 0
    %10978 = vmatmul.mubr.bf16.gmra.mrb[0].mxu0 %v10924
    %v10979 = vpop.f32.mrb[0].mxu0
    %v10980 = vadd.f32 0.0, %v10979
    %v10981 = vpop.f32.mrb[0].mxu0
    %v10982 = vpop.f32.mrb[0].mxu0
    %v10983 = vadd.f32 0.0, %v10982
    %v10984 = vpop.f32.mrb[0].mxu0
    %10985 = vmatprep.mubr.bf16.mxu0 0
    %10986 = vmatmul.mubr.bf16.gmra.mrb[0].mxu0 %v10927
    %v10987 = vpop.f32.mrb[0].mxu0
    %v10988 = vadd.f32 0.0, %v10987
    %v10989 = vpop.f32.mrb[0].mxu0
    %v10990 = vpop.f32.mrb[0].mxu0
    %v10991 = vadd.f32 0.0, %v10990
    %v10992 = vpop.f32.mrb[0].mxu0
    %10993 = vdwg.mxu0
    %10994 = vrot.lane.b32.xlu0 %v1328, 32
    %v10995 = vpop.permute.xlu0 %10994
    %10996 = vrot.lane.b32.xlu0 %v1329, 32
    %v10997 = vpop.permute.xlu0 %10996
    %10998 = vrot.lane.b32.xlu0 %v1330, 32
    %v10999 = vpop.permute.xlu0 %10998
    %11000 = vrot.lane.b32.xlu0 %v1331, 32
    %v11001 = vpop.permute.xlu0 %11000
    %v11007 = vsel %vm2069, %v10877, 0
    %v11010 = vsel %vm2069, %v10878, 0
    %v11013 = vsel %vm2069, %v10879, 0
    %v11016 = vsel %vm2069, %v10880, 0
    %11018 = vmatprep.subr.bf16.mxu0 0
    %11019 = vmatpush1.bf16.msra.mxu0 %v10995
    %11020 = vmatprep.subr.bf16.mxu0 0
    %11021 = vmatpush1.bf16.msra.mxu0 %v10997
    %11022 = vmatprep.subr.bf16.mxu0 0
    %11023 = vmatpush1.bf16.msra.mxu0 %v10999
    %11024 = vmatprep.subr.bf16.mxu0 0
    %11025 = vmatpush1.bf16.msra.mxu0 %v11001
    %11026 = vmatprep.subr.bf16.mxu0 0
    %11027 = vmatpush1.bf16.msra.mxu0 0
    %11028 = vmatprep.subr.bf16.mxu0 0
    %11029 = vmatpush1.bf16.msra.mxu0 0
    %11030 = vmatprep.subr.bf16.mxu0 0
    %11031 = vmatpush1.bf16.msra.mxu0 0
    %11032 = vmatprep.subr.bf16.mxu0 0
    %11033 = vmatpush1.bf16.msra.mxu0 0
    %11034 = vmatprep.subr.bf16.mxu0 0
    %11035 = vmatpush1.bf16.msra.mxu0 0
    %11036 = vmatprep.subr.bf16.mxu0 0
    %11037 = vmatpush1.bf16.msra.mxu0 0
    %11038 = vmatprep.subr.bf16.mxu0 0
    %11039 = vmatpush1.bf16.msra.mxu0 0
    %11040 = vmatprep.subr.bf16.mxu0 0
    %11041 = vmatpush1.bf16.msra.mxu0 0
    %11042 = vmatprep.subr.bf16.mxu0 0
    %11043 = vmatpush1.bf16.msra.mxu0 0
    %11044 = vmatprep.subr.bf16.mxu0 0
    %11045 = vmatpush1.bf16.msra.mxu0 0
    %11046 = vmatprep.subr.bf16.mxu0 0
    %11047 = vmatpush1.bf16.msra.mxu0 0
    %11048 = vmatprep.subr.bf16.mxu0 0
    %11049 = vmatpush1.bf16.msra.mxu0 0
    %11050 = vmatprep.mubr.bf16.mxu0 0
    %11051 = vmatmul.mubr.bf16.gmra.mrb[0].mxu0 %v11007
    %v11052 = vpop.f32.mrb[0].mxu0
    %v11053 = vadd.f32 0.0, %v11052
    %v11054 = vpop.f32.mrb[0].mxu0
    %v11055 = vpop.f32.mrb[0].mxu0
    %v11056 = vadd.f32 0.0, %v11055
    %v11057 = vpop.f32.mrb[0].mxu0
    %11058 = vmatprep.mubr.bf16.mxu0 0
    %11059 = vmatmul.mubr.bf16.gmra.mrb[0].mxu0 %v11010
    %v11060 = vpop.f32.mrb[0].mxu0
    %v11061 = vadd.f32 0.0, %v11060
    %v11062 = vpop.f32.mrb[0].mxu0
    %v11063 = vpop.f32.mrb[0].mxu0
    %v11064 = vadd.f32 0.0, %v11063
    %v11065 = vpop.f32.mrb[0].mxu0
    %11066 = vmatprep.mubr.bf16.mxu0 0
    %11067 = vmatmul.mubr.bf16.gmra.mrb[0].mxu0 %v11013
    %v11068 = vpop.f32.mrb[0].mxu0
    %v11069 = vadd.f32 0.0, %v11068
    %v11070 = vpop.f32.mrb[0].mxu0
    %v11071 = vpop.f32.mrb[0].mxu0
    %v11072 = vadd.f32 0.0, %v11071
    %v11073 = vpop.f32.mrb[0].mxu0
    %11074 = vmatprep.mubr.bf16.mxu0 0
    %11075 = vmatmul.mubr.bf16.gmra.mrb[0].mxu0 %v11016
    %v11076 = vpop.f32.mrb[0].mxu0
    %v11077 = vadd.f32 0.0, %v11076
    %v11078 = vpop.f32.mrb[0].mxu0
    %v11079 = vpop.f32.mrb[0].mxu0
    %v11080 = vadd.f32 0.0, %v11079
    %v11081 = vpop.f32.mrb[0].mxu0
    %11082 = vdwg.mxu0
    %11083 = vrot.lane.b32.xlu0 %v1332, 32
    %v11084 = vpop.permute.xlu0 %11083
    %11085 = vrot.lane.b32.xlu0 %v1333, 32
    %v11086 = vpop.permute.xlu0 %11085
    %11087 = vrot.lane.b32.xlu0 %v1334, 32
    %v11088 = vpop.permute.xlu0 %11087
    %11089 = vrot.lane.b32.xlu0 %v1335, 32
    %v11090 = vpop.permute.xlu0 %11089
    %v11096 = vsel %vm2069, %v10881, 0
    %v11099 = vsel %vm2069, %v10882, 0
    %v11102 = vsel %vm2069, %v10883, 0
    %v11105 = vsel %vm2069, %v10884, 0
    %11107 = vmatprep.subr.bf16.mxu0 0
    %11108 = vmatpush1.bf16.msra.mxu0 %v11084
    %11109 = vmatprep.subr.bf16.mxu0 0
    %11110 = vmatpush1.bf16.msra.mxu0 %v11086
    %11111 = vmatprep.subr.bf16.mxu0 0
    %11112 = vmatpush1.bf16.msra.mxu0 %v11088
    %11113 = vmatprep.subr.bf16.mxu0 0
    %11114 = vmatpush1.bf16.msra.mxu0 %v11090
    %11115 = vmatprep.subr.bf16.mxu0 0
    %11116 = vmatpush1.bf16.msra.mxu0 0
    %11117 = vmatprep.subr.bf16.mxu0 0
    %11118 = vmatpush1.bf16.msra.mxu0 0
    %11119 = vmatprep.subr.bf16.mxu0 0
    %11120 = vmatpush1.bf16.msra.mxu0 0
    %11121 = vmatprep.subr.bf16.mxu0 0
    %11122 = vmatpush1.bf16.msra.mxu0 0
    %11123 = vmatprep.subr.bf16.mxu0 0
    %11124 = vmatpush1.bf16.msra.mxu0 0
    %11125 = vmatprep.subr.bf16.mxu0 0
    %11126 = vmatpush1.bf16.msra.mxu0 0
    %11127 = vmatprep.subr.bf16.mxu0 0
    %11128 = vmatpush1.bf16.msra.mxu0 0
    %11129 = vmatprep.subr.bf16.mxu0 0
    %11130 = vmatpush1.bf16.msra.mxu0 0
    %11131 = vmatprep.subr.bf16.mxu0 0
    %11132 = vmatpush1.bf16.msra.mxu0 0
    %11133 = vmatprep.subr.bf16.mxu0 0
    %11134 = vmatpush1.bf16.msra.mxu0 0
    %11135 = vmatprep.subr.bf16.mxu0 0
    %11136 = vmatpush1.bf16.msra.mxu0 0
    %11137 = vmatprep.subr.bf16.mxu0 0
    %11138 = vmatpush1.bf16.msra.mxu0 0
    %11139 = vmatprep.mubr.bf16.mxu0 0
    %11140 = vmatmul.mubr.bf16.gmra.mrb[0].mxu0 %v11096
    %v11141 = vpop.f32.mrb[0].mxu0
    %v11142 = vadd.f32 0.0, %v11141
    %v11143 = vpop.f32.mrb[0].mxu0
    %v11144 = vpop.f32.mrb[0].mxu0
    %v11145 = vadd.f32 0.0, %v11144
    %v11146 = vpop.f32.mrb[0].mxu0
    %11147 = vmatprep.mubr.bf16.mxu0 0
    %11148 = vmatmul.mubr.bf16.gmra.mrb[0].mxu0 %v11099
    %v11149 = vpop.f32.mrb[0].mxu0
    %v11150 = vadd.f32 0.0, %v11149
    %v11151 = vpop.f32.mrb[0].mxu0
    %v11152 = vpop.f32.mrb[0].mxu0
    %v11153 = vadd.f32 0.0, %v11152
    %v11154 = vpop.f32.mrb[0].mxu0
    %11155 = vmatprep.mubr.bf16.mxu0 0
    %11156 = vmatmul.mubr.bf16.gmra.mrb[0].mxu0 %v11102
    %v11157 = vpop.f32.mrb[0].mxu0
    %v11158 = vadd.f32 0.0, %v11157
    %v11159 = vpop.f32.mrb[0].mxu0
    %v11160 = vpop.f32.mrb[0].mxu0
    %v11161 = vadd.f32 0.0, %v11160
    %v11162 = vpop.f32.mrb[0].mxu0
    %11163 = vmatprep.mubr.bf16.mxu0 0
    %11164 = vmatmul.mubr.bf16.gmra.mrb[0].mxu0 %v11105
    %v11165 = vpop.f32.mrb[0].mxu0
    %v11166 = vadd.f32 0.0, %v11165
    %v11167 = vpop.f32.mrb[0].mxu0
    %v11168 = vpop.f32.mrb[0].mxu0
    %v11169 = vadd.f32 0.0, %v11168
    %v11170 = vpop.f32.mrb[0].mxu0
    %11171 = vdwg.mxu0
    %11172 = vrot.lane.b32.xlu0 %v1336, 32
    %v11173 = vpop.permute.xlu0 %11172
    %11174 = vrot.lane.b32.xlu0 %v1337, 32
    %v11175 = vpop.permute.xlu0 %11174
    %11176 = vrot.lane.b32.xlu0 %v1338, 32
    %v11177 = vpop.permute.xlu0 %11176
    %11178 = vrot.lane.b32.xlu0 %v1339, 32
    %v11179 = vpop.permute.xlu0 %11178
    %v11185 = vsel %vm2069, %v10885, 0
    %v11188 = vsel %vm2069, %v10886, 0
    %v11191 = vsel %vm2069, %v10887, 0
    %v11194 = vsel %vm2069, %v10888, 0
    %11196 = vmatprep.subr.bf16.mxu0 0
    %11197 = vmatpush1.bf16.msra.mxu0 %v11173
    %11198 = vmatprep.subr.bf16.mxu0 0
    %11199 = vmatpush1.bf16.msra.mxu0 %v11175
    %11200 = vmatprep.subr.bf16.mxu0 0
    %11201 = vmatpush1.bf16.msra.mxu0 %v11177
    %11202 = vmatprep.subr.bf16.mxu0 0
    %11203 = vmatpush1.bf16.msra.mxu0 %v11179
    %11204 = vmatprep.subr.bf16.mxu0 0
    %11205 = vmatpush1.bf16.msra.mxu0 0
    %11206 = vmatprep.subr.bf16.mxu0 0
    %11207 = vmatpush1.bf16.msra.mxu0 0
    %11208 = vmatprep.subr.bf16.mxu0 0
    %11209 = vmatpush1.bf16.msra.mxu0 0
    %11210 = vmatprep.subr.bf16.mxu0 0
    %11211 = vmatpush1.bf16.msra.mxu0 0
    %11212 = vmatprep.subr.bf16.mxu0 0
    %11213 = vmatpush1.bf16.msra.mxu0 0
    %11214 = vmatprep.subr.bf16.mxu0 0
    %11215 = vmatpush1.bf16.msra.mxu0 0
    %11216 = vmatprep.subr.bf16.mxu0 0
    %11217 = vmatpush1.bf16.msra.mxu0 0
    %11218 = vmatprep.subr.bf16.mxu0 0
    %11219 = vmatpush1.bf16.msra.mxu0 0
    %11220 = vmatprep.subr.bf16.mxu0 0
    %11221 = vmatpush1.bf16.msra.mxu0 0
    %11222 = vmatprep.subr.bf16.mxu0 0
    %11223 = vmatpush1.bf16.msra.mxu0 0
    %11224 = vmatprep.subr.bf16.mxu0 0
    %11225 = vmatpush1.bf16.msra.mxu0 0
    %11226 = vmatprep.subr.bf16.mxu0 0
    %11227 = vmatpush1.bf16.msra.mxu0 0
    %11228 = vmatprep.mubr.bf16.mxu0 0
    %11229 = vmatmul.mubr.bf16.gmra.mrb[0].mxu0 %v11185
    %v11230 = vpop.f32.mrb[0].mxu0
    %v11231 = vadd.f32 0.0, %v11230
    %v11232 = vpop.f32.mrb[0].mxu0
    %v11233 = vpop.f32.mrb[0].mxu0
    %v11234 = vadd.f32 0.0, %v11233
    %v11235 = vpop.f32.mrb[0].mxu0
    %11236 = vmatprep.mubr.bf16.mxu0 0
    %11237 = vmatmul.mubr.bf16.gmra.mrb[0].mxu0 %v11188
    %v11238 = vpop.f32.mrb[0].mxu0
    %v11239 = vadd.f32 0.0, %v11238
    %v11240 = vpop.f32.mrb[0].mxu0
    %v11241 = vpop.f32.mrb[0].mxu0
    %v11242 = vadd.f32 0.0, %v11241
    %v11243 = vpop.f32.mrb[0].mxu0
    %11244 = vmatprep.mubr.bf16.mxu0 0
    %11245 = vmatmul.mubr.bf16.gmra.mrb[0].mxu0 %v11191
    %v11246 = vpop.f32.mrb[0].mxu0
    %v11247 = vadd.f32 0.0, %v11246
    %v11248 = vpop.f32.mrb[0].mxu0
    %v11249 = vpop.f32.mrb[0].mxu0
    %v11250 = vadd.f32 0.0, %v11249
    %v11251 = vpop.f32.mrb[0].mxu0
    %11252 = vmatprep.mubr.bf16.mxu0 0
    %11253 = vmatmul.mubr.bf16.gmra.mrb[0].mxu0 %v11194
    %v11254 = vpop.f32.mrb[0].mxu0
    %v11255 = vadd.f32 0.0, %v11254
    %v11256 = vpop.f32.mrb[0].mxu0
    %v11257 = vpop.f32.mrb[0].mxu0
    %v11258 = vadd.f32 0.0, %v11257
    %v11259 = vpop.f32.mrb[0].mxu0
    %11260 = vdwg.mxu0
    %11261 = vrot.lane.b32.xlu0 %v1340, 32
    %v11262 = vpop.permute.xlu0 %11261
    %11263 = vrot.lane.b32.xlu0 %v1341, 32
    %v11264 = vpop.permute.xlu0 %11263
    %11265 = vrot.lane.b32.xlu0 %v1342, 32
    %v11266 = vpop.permute.xlu0 %11265
    %11267 = vrot.lane.b32.xlu0 %v1343, 32
    %v11268 = vpop.permute.xlu0 %11267
    %v11274 = vsel %vm2069, %v10889, 0
    %v11277 = vsel %vm2069, %v10890, 0
    %v11280 = vsel %vm2069, %v10891, 0
    %v11283 = vsel %vm2069, %v10892, 0
    %11285 = vmatprep.subr.bf16.mxu0 0
    %11286 = vmatpush1.bf16.msra.mxu0 %v11262
    %11287 = vmatprep.subr.bf16.mxu0 0
    %11288 = vmatpush1.bf16.msra.mxu0 %v11264
    %11289 = vmatprep.subr.bf16.mxu0 0
    %11290 = vmatpush1.bf16.msra.mxu0 %v11266
    %11291 = vmatprep.subr.bf16.mxu0 0
    %11292 = vmatpush1.bf16.msra.mxu0 %v11268
    %11293 = vmatprep.subr.bf16.mxu0 0
    %11294 = vmatpush1.bf16.msra.mxu0 0
    %11295 = vmatprep.subr.bf16.mxu0 0
    %11296 = vmatpush1.bf16.msra.mxu0 0
    %11297 = vmatprep.subr.bf16.mxu0 0
    %11298 = vmatpush1.bf16.msra.mxu0 0
    %11299 = vmatprep.subr.bf16.mxu0 0
    %11300 = vmatpush1.bf16.msra.mxu0 0
    %11301 = vmatprep.subr.bf16.mxu0 0
    %11302 = vmatpush1.bf16.msra.mxu0 0
    %11303 = vmatprep.subr.bf16.mxu0 0
    %11304 = vmatpush1.bf16.msra.mxu0 0
    %11305 = vmatprep.subr.bf16.mxu0 0
    %11306 = vmatpush1.bf16.msra.mxu0 0
    %11307 = vmatprep.subr.bf16.mxu0 0
    %11308 = vmatpush1.bf16.msra.mxu0 0
    %11309 = vmatprep.subr.bf16.mxu0 0
    %11310 = vmatpush1.bf16.msra.mxu0 0
    %11311 = vmatprep.subr.bf16.mxu0 0
    %11312 = vmatpush1.bf16.msra.mxu0 0
    %11313 = vmatprep.subr.bf16.mxu0 0
    %11314 = vmatpush1.bf16.msra.mxu0 0
    %11315 = vmatprep.subr.bf16.mxu0 0
    %11316 = vmatpush1.bf16.msra.mxu0 0
    %11317 = vmatprep.mubr.bf16.mxu0 0
    %11318 = vmatmul.mubr.bf16.gmra.mrb[0].mxu0 %v11274
    %v11319 = vpop.f32.mrb[0].mxu0
    %v11320 = vadd.f32 0.0, %v11319
    %v11321 = vpop.f32.mrb[0].mxu0
    %v11322 = vpop.f32.mrb[0].mxu0
    %v11323 = vadd.f32 0.0, %v11322
    %v11324 = vpop.f32.mrb[0].mxu0
    %11325 = vmatprep.mubr.bf16.mxu0 0
    %11326 = vmatmul.mubr.bf16.gmra.mrb[0].mxu0 %v11277
    %v11327 = vpop.f32.mrb[0].mxu0
    %v11328 = vadd.f32 0.0, %v11327
    %v11329 = vpop.f32.mrb[0].mxu0
    %v11330 = vpop.f32.mrb[0].mxu0
    %v11331 = vadd.f32 0.0, %v11330
    %v11332 = vpop.f32.mrb[0].mxu0
    %11333 = vmatprep.mubr.bf16.mxu0 0
    %11334 = vmatmul.mubr.bf16.gmra.mrb[0].mxu0 %v11280
    %v11335 = vpop.f32.mrb[0].mxu0
    %v11336 = vadd.f32 0.0, %v11335
    %v11337 = vpop.f32.mrb[0].mxu0
    %v11338 = vpop.f32.mrb[0].mxu0
    %v11339 = vadd.f32 0.0, %v11338
    %v11340 = vpop.f32.mrb[0].mxu0
    %11341 = vmatprep.mubr.bf16.mxu0 0
    %11342 = vmatmul.mubr.bf16.gmra.mrb[0].mxu0 %v11283
    %v11343 = vpop.f32.mrb[0].mxu0
    %v11344 = vadd.f32 0.0, %v11343
    %v11345 = vpop.f32.mrb[0].mxu0
    %v11346 = vpop.f32.mrb[0].mxu0
    %v11347 = vadd.f32 0.0, %v11346
    %v11348 = vpop.f32.mrb[0].mxu0
    %11349 = vdwg.mxu0
    %11350 = vrot.lane.b32.xlu0 %v1344, 32
    %v11351 = vpop.permute.xlu0 %11350
    %11352 = vrot.lane.b32.xlu0 %v1345, 32
    %v11353 = vpop.permute.xlu0 %11352
    %11354 = vrot.lane.b32.xlu0 %v1346, 32
    %v11355 = vpop.permute.xlu0 %11354
    %11356 = vrot.lane.b32.xlu0 %v1347, 32
    %v11357 = vpop.permute.xlu0 %11356
    %v11363 = vsel %vm2069, %v10893, 0
    %v11366 = vsel %vm2069, %v10894, 0
    %v11369 = vsel %vm2069, %v10895, 0
    %v11372 = vsel %vm2069, %v10896, 0
    %11374 = vmatprep.subr.bf16.mxu0 0
    %11375 = vmatpush1.bf16.msra.mxu0 %v11351
    %11376 = vmatprep.subr.bf16.mxu0 0
    %11377 = vmatpush1.bf16.msra.mxu0 %v11353
    %11378 = vmatprep.subr.bf16.mxu0 0
    %11379 = vmatpush1.bf16.msra.mxu0 %v11355
    %11380 = vmatprep.subr.bf16.mxu0 0
    %11381 = vmatpush1.bf16.msra.mxu0 %v11357
    %11382 = vmatprep.subr.bf16.mxu0 0
    %11383 = vmatpush1.bf16.msra.mxu0 0
    %11384 = vmatprep.subr.bf16.mxu0 0
    %11385 = vmatpush1.bf16.msra.mxu0 0
    %11386 = vmatprep.subr.bf16.mxu0 0
    %11387 = vmatpush1.bf16.msra.mxu0 0
    %11388 = vmatprep.subr.bf16.mxu0 0
    %11389 = vmatpush1.bf16.msra.mxu0 0
    %11390 = vmatprep.subr.bf16.mxu0 0
    %11391 = vmatpush1.bf16.msra.mxu0 0
    %11392 = vmatprep.subr.bf16.mxu0 0
    %11393 = vmatpush1.bf16.msra.mxu0 0
    %11394 = vmatprep.subr.bf16.mxu0 0
    %11395 = vmatpush1.bf16.msra.mxu0 0
    %11396 = vmatprep.subr.bf16.mxu0 0
    %11397 = vmatpush1.bf16.msra.mxu0 0
    %11398 = vmatprep.subr.bf16.mxu0 0
    %11399 = vmatpush1.bf16.msra.mxu0 0
    %11400 = vmatprep.subr.bf16.mxu0 0
    %11401 = vmatpush1.bf16.msra.mxu0 0
    %11402 = vmatprep.subr.bf16.mxu0 0
    %11403 = vmatpush1.bf16.msra.mxu0 0
    %11404 = vmatprep.subr.bf16.mxu0 0
    %11405 = vmatpush1.bf16.msra.mxu0 0
    %11406 = vmatprep.mubr.bf16.mxu0 0
    %11407 = vmatmul.mubr.bf16.gmra.mrb[0].mxu0 %v11363
    %v11408 = vpop.f32.mrb[0].mxu0
    %v11409 = vadd.f32 0.0, %v11408
    %v11410 = vpop.f32.mrb[0].mxu0
    %v11411 = vpop.f32.mrb[0].mxu0
    %v11412 = vadd.f32 0.0, %v11411
    %v11413 = vpop.f32.mrb[0].mxu0
    %11414 = vmatprep.mubr.bf16.mxu0 0
    %11415 = vmatmul.mubr.bf16.gmra.mrb[0].mxu0 %v11366
    %v11416 = vpop.f32.mrb[0].mxu0
    %v11417 = vadd.f32 0.0, %v11416
    %v11418 = vpop.f32.mrb[0].mxu0
    %v11419 = vpop.f32.mrb[0].mxu0
    %v11420 = vadd.f32 0.0, %v11419
    %v11421 = vpop.f32.mrb[0].mxu0
    %11422 = vmatprep.mubr.bf16.mxu0 0
    %11423 = vmatmul.mubr.bf16.gmra.mrb[0].mxu0 %v11369
    %v11424 = vpop.f32.mrb[0].mxu0
    %v11425 = vadd.f32 0.0, %v11424
    %v11426 = vpop.f32.mrb[0].mxu0
    %v11427 = vpop.f32.mrb[0].mxu0
    %v11428 = vadd.f32 0.0, %v11427
    %v11429 = vpop.f32.mrb[0].mxu0
    %11430 = vmatprep.mubr.bf16.mxu0 0
    %11431 = vmatmul.mubr.bf16.gmra.mrb[0].mxu0 %v11372
    %v11432 = vpop.f32.mrb[0].mxu0
    %v11433 = vadd.f32 0.0, %v11432
    %v11434 = vpop.f32.mrb[0].mxu0
    %v11435 = vpop.f32.mrb[0].mxu0
    %v11436 = vadd.f32 0.0, %v11435
    %v11437 = vpop.f32.mrb[0].mxu0
    %11438 = vdwg.mxu0
    %11439 = vrot.lane.b32.xlu0 %v1348, 32
    %v11440 = vpop.permute.xlu0 %11439
    %11441 = vrot.lane.b32.xlu0 %v1349, 32
    %v11442 = vpop.permute.xlu0 %11441
    %11443 = vrot.lane.b32.xlu0 %v1350, 32
    %v11444 = vpop.permute.xlu0 %11443
    %11445 = vrot.lane.b32.xlu0 %v1351, 32
    %v11446 = vpop.permute.xlu0 %11445
    %v11452 = vsel %vm2069, %v10897, 0
    %v11455 = vsel %vm2069, %v10898, 0
    %v11458 = vsel %vm2069, %v10899, 0
    %v11461 = vsel %vm2069, %v10900, 0
    %11463 = vmatprep.subr.bf16.mxu0 0
    %11464 = vmatpush1.bf16.msra.mxu0 %v11440
    %11465 = vmatprep.subr.bf16.mxu0 0
    %11466 = vmatpush1.bf16.msra.mxu0 %v11442
    %11467 = vmatprep.subr.bf16.mxu0 0
    %11468 = vmatpush1.bf16.msra.mxu0 %v11444
    %11469 = vmatprep.subr.bf16.mxu0 0
    %11470 = vmatpush1.bf16.msra.mxu0 %v11446
    %11471 = vmatprep.subr.bf16.mxu0 0
    %11472 = vmatpush1.bf16.msra.mxu0 0
    %11473 = vmatprep.subr.bf16.mxu0 0
    %11474 = vmatpush1.bf16.msra.mxu0 0
    %11475 = vmatprep.subr.bf16.mxu0 0
    %11476 = vmatpush1.bf16.msra.mxu0 0
    %11477 = vmatprep.subr.bf16.mxu0 0
    %11478 = vmatpush1.bf16.msra.mxu0 0
    %11479 = vmatprep.subr.bf16.mxu0 0
    %11480 = vmatpush1.bf16.msra.mxu0 0
    %11481 = vmatprep.subr.bf16.mxu0 0
    %11482 = vmatpush1.bf16.msra.mxu0 0
    %11483 = vmatprep.subr.bf16.mxu0 0
    %11484 = vmatpush1.bf16.msra.mxu0 0
    %11485 = vmatprep.subr.bf16.mxu0 0
    %11486 = vmatpush1.bf16.msra.mxu0 0
    %11487 = vmatprep.subr.bf16.mxu0 0
    %11488 = vmatpush1.bf16.msra.mxu0 0
    %11489 = vmatprep.subr.bf16.mxu0 0
    %11490 = vmatpush1.bf16.msra.mxu0 0
    %11491 = vmatprep.subr.bf16.mxu0 0
    %11492 = vmatpush1.bf16.msra.mxu0 0
    %11493 = vmatprep.subr.bf16.mxu0 0
    %11494 = vmatpush1.bf16.msra.mxu0 0
    %11495 = vmatprep.mubr.bf16.mxu0 0
    %11496 = vmatmul.mubr.bf16.gmra.mrb[0].mxu0 %v11452
    %v11497 = vpop.f32.mrb[0].mxu0
    %v11498 = vadd.f32 0.0, %v11497
    %v11499 = vpop.f32.mrb[0].mxu0
    %v11500 = vpop.f32.mrb[0].mxu0
    %v11501 = vadd.f32 0.0, %v11500
    %v11502 = vpop.f32.mrb[0].mxu0
    %11503 = vmatprep.mubr.bf16.mxu0 0
    %11504 = vmatmul.mubr.bf16.gmra.mrb[0].mxu0 %v11455
    %v11505 = vpop.f32.mrb[0].mxu0
    %v11506 = vadd.f32 0.0, %v11505
    %v11507 = vpop.f32.mrb[0].mxu0
    %v11508 = vpop.f32.mrb[0].mxu0
    %v11509 = vadd.f32 0.0, %v11508
    %v11510 = vpop.f32.mrb[0].mxu0
    %11511 = vmatprep.mubr.bf16.mxu0 0
    %11512 = vmatmul.mubr.bf16.gmra.mrb[0].mxu0 %v11458
    %v11513 = vpop.f32.mrb[0].mxu0
    %v11514 = vadd.f32 0.0, %v11513
    %v11515 = vpop.f32.mrb[0].mxu0
    %v11516 = vpop.f32.mrb[0].mxu0
    %v11517 = vadd.f32 0.0, %v11516
    %v11518 = vpop.f32.mrb[0].mxu0
    %11519 = vmatprep.mubr.bf16.mxu0 0
    %11520 = vmatmul.mubr.bf16.gmra.mrb[0].mxu0 %v11461
    %v11521 = vpop.f32.mrb[0].mxu0
    %v11522 = vadd.f32 0.0, %v11521
    %v11523 = vpop.f32.mrb[0].mxu0
    %v11524 = vpop.f32.mrb[0].mxu0
    %v11525 = vadd.f32 0.0, %v11524
    %v11526 = vpop.f32.mrb[0].mxu0
    %11527 = vdwg.mxu0
    %11528 = vrot.lane.b32.xlu0 %v1352, 32
    %v11529 = vpop.permute.xlu0 %11528
    %11530 = vrot.lane.b32.xlu0 %v1353, 32
    %v11531 = vpop.permute.xlu0 %11530
    %11532 = vrot.lane.b32.xlu0 %v1354, 32
    %v11533 = vpop.permute.xlu0 %11532
    %11534 = vrot.lane.b32.xlu0 %v1355, 32
    %v11535 = vpop.permute.xlu0 %11534
    %v11541 = vsel %vm2069, %v10901, 0
    %v11544 = vsel %vm2069, %v10902, 0
    %v11547 = vsel %vm2069, %v10903, 0
    %v11550 = vsel %vm2069, %v10904, 0
    %11552 = vmatprep.subr.bf16.mxu0 0
    %11553 = vmatpush1.bf16.msra.mxu0 %v11529
    %11554 = vmatprep.subr.bf16.mxu0 0
    %11555 = vmatpush1.bf16.msra.mxu0 %v11531
    %11556 = vmatprep.subr.bf16.mxu0 0
    %11557 = vmatpush1.bf16.msra.mxu0 %v11533
    %11558 = vmatprep.subr.bf16.mxu0 0
    %11559 = vmatpush1.bf16.msra.mxu0 %v11535
    %11560 = vmatprep.subr.bf16.mxu0 0
    %11561 = vmatpush1.bf16.msra.mxu0 0
    %11562 = vmatprep.subr.bf16.mxu0 0
    %11563 = vmatpush1.bf16.msra.mxu0 0
    %11564 = vmatprep.subr.bf16.mxu0 0
    %11565 = vmatpush1.bf16.msra.mxu0 0
    %11566 = vmatprep.subr.bf16.mxu0 0
    %11567 = vmatpush1.bf16.msra.mxu0 0
    %11568 = vmatprep.subr.bf16.mxu0 0
    %11569 = vmatpush1.bf16.msra.mxu0 0
    %11570 = vmatprep.subr.bf16.mxu0 0
    %11571 = vmatpush1.bf16.msra.mxu0 0
    %11572 = vmatprep.subr.bf16.mxu0 0
    %11573 = vmatpush1.bf16.msra.mxu0 0
    %11574 = vmatprep.subr.bf16.mxu0 0
    %11575 = vmatpush1.bf16.msra.mxu0 0
    %11576 = vmatprep.subr.bf16.mxu0 0
    %11577 = vmatpush1.bf16.msra.mxu0 0
    %11578 = vmatprep.subr.bf16.mxu0 0
    %11579 = vmatpush1.bf16.msra.mxu0 0
    %11580 = vmatprep.subr.bf16.mxu0 0
    %11581 = vmatpush1.bf16.msra.mxu0 0
    %11582 = vmatprep.subr.bf16.mxu0 0
    %11583 = vmatpush1.bf16.msra.mxu0 0
    %11584 = vmatprep.mubr.bf16.mxu0 0
    %11585 = vmatmul.mubr.bf16.gmra.mrb[0].mxu0 %v11541
    %v11586 = vpop.f32.mrb[0].mxu0
    %v11587 = vadd.f32 0.0, %v11586
    %v11588 = vpop.f32.mrb[0].mxu0
    %v11589 = vpop.f32.mrb[0].mxu0
    %v11590 = vadd.f32 0.0, %v11589
    %v11591 = vpop.f32.mrb[0].mxu0
    %11592 = vmatprep.mubr.bf16.mxu0 0
    %11593 = vmatmul.mubr.bf16.gmra.mrb[0].mxu0 %v11544
    %v11594 = vpop.f32.mrb[0].mxu0
    %v11595 = vadd.f32 0.0, %v11594
    %v11596 = vpop.f32.mrb[0].mxu0
    %v11597 = vpop.f32.mrb[0].mxu0
    %v11598 = vadd.f32 0.0, %v11597
    %v11599 = vpop.f32.mrb[0].mxu0
    %11600 = vmatprep.mubr.bf16.mxu0 0
    %11601 = vmatmul.mubr.bf16.gmra.mrb[0].mxu0 %v11547
    %v11602 = vpop.f32.mrb[0].mxu0
    %v11603 = vadd.f32 0.0, %v11602
    %v11604 = vpop.f32.mrb[0].mxu0
    %v11605 = vpop.f32.mrb[0].mxu0
    %v11606 = vadd.f32 0.0, %v11605
    %v11607 = vpop.f32.mrb[0].mxu0
    %11608 = vmatprep.mubr.bf16.mxu0 0
    %11609 = vmatmul.mubr.bf16.gmra.mrb[0].mxu0 %v11550
    %v11610 = vpop.f32.mrb[0].mxu0
    %v11611 = vadd.f32 0.0, %v11610
    %v11612 = vpop.f32.mrb[0].mxu0
    %v11613 = vpop.f32.mrb[0].mxu0
    %v11614 = vadd.f32 0.0, %v11613
    %v11615 = vpop.f32.mrb[0].mxu0
    %11616 = vdwg.mxu0
    %v11617 = vrcp.pop %v10683
    %v11618 = vrcp.pop %v10686
    %v11619 = vrcp.pop %v10689
    %v11620 = vrcp.pop %v10692
    %v11621 = vrcp.pop %v10695
    %v11622 = vrcp.pop %v10698
    %v11623 = vrcp.pop %v10701
    %v11624 = vrcp.pop %v10704
    %v11625 = vrcp.pop %v10707
    %v11626 = vrcp.pop %v10710
    %v11627 = vrcp.pop %v10713
    %v11628 = vrcp.pop %v10716
    %v11629 = vrcp.pop %v10719
    %v11630 = vrcp.pop %v10722
    %v11631 = vrcp.pop %v10725
    %v11632 = vrcp.pop %v10728
    %v11633 = vrcp.pop %v10731
    %v11634 = vrcp.pop %v10734
    %v11635 = vrcp.pop %v10737
    %v11636 = vrcp.pop %v10740
    %v11637 = vrcp.pop %v10743
    %v11638 = vrcp.pop %v10746
    %v11639 = vrcp.pop %v10749
    %v11640 = vrcp.pop %v10752
    %v11641 = vrcp.pop %v10755
    %v11642 = vrcp.pop %v10758
    %v11643 = vrcp.pop %v10761
    %v11644 = vrcp.pop %v10764
    %v11645 = vrcp.pop %v10767
    %v11646 = vrcp.pop %v10770
    %v11647 = vrcp.pop %v10773
    %v11648 = vrcp.pop %v10776
    %v11649 = vrcp.pop %v10779
    %v11650 = vrcp.pop %v10782
    %v11651 = vrcp.pop %v10785
    %v11652 = vrcp.pop %v10788
    %v11653 = vrcp.pop %v10791
    %v11654 = vrcp.pop %v10794
    %v11655 = vrcp.pop %v10797
    %v11656 = vrcp.pop %v10800
    %v11657 = vrcp.pop %v10803
    %v11658 = vrcp.pop %v10806
    %v11659 = vrcp.pop %v10809
    %v11660 = vrcp.pop %v10812
    %v11661 = vrcp.pop %v10815
    %v11662 = vrcp.pop %v10818
    %v11663 = vrcp.pop %v10821
    %v11664 = vrcp.pop %v10824
    %v11665 = vrcp.pop %v10827
    %v11666 = vrcp.pop %v10830
    %v11667 = vrcp.pop %v10833
    %v11668 = vrcp.pop %v10836
    %v11669 = vrcp.pop %v10839
    %v11670 = vrcp.pop %v10842
    %v11671 = vrcp.pop %v10845
    %v11672 = vrcp.pop %v10848
    %v11673 = vrcp.pop %v10851
    %v11674 = vrcp.pop %v10854
    %v11675 = vrcp.pop %v10857
    %v11676 = vrcp.pop %v10860
    %v11677 = vrcp.pop %v10863
    %v11678 = vrcp.pop %v10866
    %v11679 = vrcp.pop %v10869
    %v11680 = vrcp.pop %v10872
    %v11681 = vmul.f32 %v10964, %v11617
    %v11682 = vmul.f32 %v10967, %v11618
    %v11683 = vmul.f32 %v10972, %v11619
    %v11684 = vmul.f32 %v10975, %v11620
    %v11685 = vmul.f32 %v10980, %v11621
    %v11686 = vmul.f32 %v10983, %v11622
    %v11687 = vmul.f32 %v10988, %v11623
    %v11688 = vmul.f32 %v10991, %v11624
    %v11689 = vmul.f32 %v11053, %v11625
    %v11690 = vmul.f32 %v11056, %v11626
    %v11691 = vmul.f32 %v11061, %v11627
    %v11692 = vmul.f32 %v11064, %v11628
    %v11693 = vmul.f32 %v11069, %v11629
    %v11694 = vmul.f32 %v11072, %v11630
    %v11695 = vmul.f32 %v11077, %v11631
    %v11696 = vmul.f32 %v11080, %v11632
    %v11697 = vmul.f32 %v11142, %v11633
    %v11698 = vmul.f32 %v11145, %v11634
    %v11699 = vmul.f32 %v11150, %v11635
    %v11700 = vmul.f32 %v11153, %v11636
    %v11701 = vmul.f32 %v11158, %v11637
    %v11702 = vmul.f32 %v11161, %v11638
    %v11703 = vmul.f32 %v11166, %v11639
    %v11704 = vmul.f32 %v11169, %v11640
    %v11705 = vmul.f32 %v11231, %v11641
    %v11706 = vmul.f32 %v11234, %v11642
    %v11707 = vmul.f32 %v11239, %v11643
    %v11708 = vmul.f32 %v11242, %v11644
    %v11709 = vmul.f32 %v11247, %v11645
    %v11710 = vmul.f32 %v11250, %v11646
    %v11711 = vmul.f32 %v11255, %v11647
    %v11712 = vmul.f32 %v11258, %v11648
    %v11713 = vmul.f32 %v11320, %v11649
    %v11714 = vmul.f32 %v11323, %v11650
    %v11715 = vmul.f32 %v11328, %v11651
    %v11716 = vmul.f32 %v11331, %v11652
    %v11717 = vmul.f32 %v11336, %v11653
    %v11718 = vmul.f32 %v11339, %v11654
    %v11719 = vmul.f32 %v11344, %v11655
    %v11720 = vmul.f32 %v11347, %v11656
    %v11721 = vmul.f32 %v11409, %v11657
    %v11722 = vmul.f32 %v11412, %v11658
    %v11723 = vmul.f32 %v11417, %v11659
    %v11724 = vmul.f32 %v11420, %v11660
    %v11725 = vmul.f32 %v11425, %v11661
    %v11726 = vmul.f32 %v11428, %v11662
    %v11727 = vmul.f32 %v11433, %v11663
    %v11728 = vmul.f32 %v11436, %v11664
    %v11729 = vmul.f32 %v11498, %v11665
    %v11730 = vmul.f32 %v11501, %v11666
    %v11731 = vmul.f32 %v11506, %v11667
    %v11732 = vmul.f32 %v11509, %v11668
    %v11733 = vmul.f32 %v11514, %v11669
    %v11734 = vmul.f32 %v11517, %v11670
    %v11735 = vmul.f32 %v11522, %v11671
    %v11736 = vmul.f32 %v11525, %v11672
    %v11737 = vmul.f32 %v11587, %v11673
    %v11738 = vmul.f32 %v11590, %v11674
    %v11739 = vmul.f32 %v11595, %v11675
    %v11740 = vmul.f32 %v11598, %v11676
    %v11741 = vmul.f32 %v11603, %v11677
    %v11742 = vmul.f32 %v11606, %v11678
    %v11743 = vmul.f32 %v11611, %v11679
    %v11744 = vmul.f32 %v11614, %v11680
    %v11745 = vpack.c.bf16 %v11682, %v11681
    %v11746 = vpack.c.bf16 %v11684, %v11683
    %v11747 = vpack.c.bf16 %v11686, %v11685
    %v11748 = vpack.c.bf16 %v11688, %v11687
    %v11749 = vpack.c.bf16 %v11690, %v11689
    %v11750 = vpack.c.bf16 %v11692, %v11691
    %v11751 = vpack.c.bf16 %v11694, %v11693
    %v11752 = vpack.c.bf16 %v11696, %v11695
    %v11753 = vpack.c.bf16 %v11698, %v11697
    %v11754 = vpack.c.bf16 %v11700, %v11699
    %v11755 = vpack.c.bf16 %v11702, %v11701
    %v11756 = vpack.c.bf16 %v11704, %v11703
    %v11757 = vpack.c.bf16 %v11706, %v11705
    %v11758 = vpack.c.bf16 %v11708, %v11707
    %v11759 = vpack.c.bf16 %v11710, %v11709
    %v11760 = vpack.c.bf16 %v11712, %v11711
    %v11761 = vpack.c.bf16 %v11714, %v11713
    %v11762 = vpack.c.bf16 %v11716, %v11715
    %v11763 = vpack.c.bf16 %v11718, %v11717
    %v11764 = vpack.c.bf16 %v11720, %v11719
    %v11765 = vpack.c.bf16 %v11722, %v11721
    %v11766 = vpack.c.bf16 %v11724, %v11723
    %v11767 = vpack.c.bf16 %v11726, %v11725
    %v11768 = vpack.c.bf16 %v11728, %v11727
    %v11769 = vpack.c.bf16 %v11730, %v11729
    %v11770 = vpack.c.bf16 %v11732, %v11731
    %v11771 = vpack.c.bf16 %v11734, %v11733
    %v11772 = vpack.c.bf16 %v11736, %v11735
    %v11773 = vpack.c.bf16 %v11738, %v11737
    %v11774 = vpack.c.bf16 %v11740, %v11739
    %v11775 = vpack.c.bf16 %v11742, %v11741
    %v11776 = vpack.c.bf16 %v11744, %v11743
    %v11777 = vld [vmem:[#allocation10 + $0x30] sm:$0xf]
    %v11778 = vld [vmem:[#allocation10 + $0x34] sm:$0xf]
    %v11779 = vld [vmem:[#allocation10 + $0x38] sm:$0xf]
    %v11780 = vld [vmem:[#allocation10 + $0x3c] sm:$0xf]
    %v11785 = vunpack.c.l.b16 %v11777
    %v11786 = vunpack.c.l.b16 %v11778
    %v11787 = vunpack.c.l.b16 %v11779
    %v11788 = vunpack.c.l.b16 %v11780
    %v11789 = vpack.c.b16 %v11786, %v11785
    %v11790 = vpack.c.b16 %v11788, %v11787
    %v11794 = vsel %vm1356, %v11745, 0
    %v11797 = vsel %vm1356, %v11746, 0
    %v11800 = vsel %vm1356, %v11747, 0
    %v11803 = vsel %vm1356, %v11748, 0
    %v11806 = vsel %vm1356, %v11749, 0
    %v11809 = vsel %vm1356, %v11750, 0
    %v11812 = vsel %vm1356, %v11751, 0
    %v11815 = vsel %vm1356, %v11752, 0
    %v11818 = vsel %vm1356, %v11753, 0
    %v11821 = vsel %vm1356, %v11754, 0
    %v11824 = vsel %vm1356, %v11755, 0
    %v11827 = vsel %vm1356, %v11756, 0
    %v11830 = vsel %vm1356, %v11757, 0
    %v11833 = vsel %vm1356, %v11758, 0
    %v11836 = vsel %vm1356, %v11759, 0
    %v11839 = vsel %vm1356, %v11760, 0
    %v11842 = vsel %vm1356, %v11761, 0
    %v11845 = vsel %vm1356, %v11762, 0
    %v11848 = vsel %vm1356, %v11763, 0
    %v11851 = vsel %vm1356, %v11764, 0
    %v11854 = vsel %vm1356, %v11765, 0
    %v11857 = vsel %vm1356, %v11766, 0
    %v11860 = vsel %vm1356, %v11767, 0
    %v11863 = vsel %vm1356, %v11768, 0
    %v11866 = vsel %vm1356, %v11769, 0
    %v11869 = vsel %vm1356, %v11770, 0
    %v11872 = vsel %vm1356, %v11771, 0
    %v11875 = vsel %vm1356, %v11772, 0
    %v11878 = vsel %vm1356, %v11773, 0
    %v11881 = vsel %vm1356, %v11774, 0
    %v11884 = vsel %vm1356, %v11775, 0
    %v11887 = vsel %vm1356, %v11776, 0
    %11889 = vmatprep.subr.bf16.mxu0 0
    %11890 = vmatpush1.bf16.msra.mxu0 %v11789
    %11891 = vmatprep.subr.bf16.mxu0 0
    %11892 = vmatpush1.bf16.msra.mxu0 %v11790
    %11893 = vmatprep.subr.bf16.mxu0 0
    %11894 = vmatpush1.bf16.msra.mxu0 0
    %11895 = vmatprep.subr.bf16.mxu0 0
    %11896 = vmatpush1.bf16.msra.mxu0 0
    %11897 = vmatprep.subr.bf16.mxu0 0
    %11898 = vmatpush1.bf16.msra.mxu0 0
    %11899 = vmatprep.subr.bf16.mxu0 0
    %11900 = vmatpush1.bf16.msra.mxu0 0
    %11901 = vmatprep.subr.bf16.mxu0 0
    %11902 = vmatpush1.bf16.msra.mxu0 0
    %11903 = vmatprep.subr.bf16.mxu0 0
    %11904 = vmatpush1.bf16.msra.mxu0 0
    %11905 = vmatprep.subr.bf16.mxu0 0
    %11906 = vmatpush1.bf16.msra.mxu0 0
    %11907 = vmatprep.subr.bf16.mxu0 0
    %11908 = vmatpush1.bf16.msra.mxu0 0
    %11909 = vmatprep.subr.bf16.mxu0 0
    %11910 = vmatpush1.bf16.msra.mxu0 0
    %11911 = vmatprep.subr.bf16.mxu0 0
    %11912 = vmatpush1.bf16.msra.mxu0 0
    %11913 = vmatprep.subr.bf16.mxu0 0
    %11914 = vmatpush1.bf16.msra.mxu0 0
    %11915 = vmatprep.subr.bf16.mxu0 0
    %11916 = vmatpush1.bf16.msra.mxu0 0
    %11917 = vmatprep.subr.bf16.mxu0 0
    %11918 = vmatpush1.bf16.msra.mxu0 0
    %11919 = vmatprep.subr.bf16.mxu0 0
    %11920 = vmatpush1.bf16.msra.mxu0 0
    %11921 = vmatprep.mubr.bf16.mxu0 0
    %11922 = vmatmul.mubr.bf16.gmra.mrb[0].mxu0 %v11794
    %v11923 = vpop.f32.mrb[0].mxu0
    %v11924 = vadd.f32 0.0, %v11923
    %v11925 = vpop.f32.mrb[0].mxu0
    %v11926 = vpop.f32.mrb[0].mxu0
    %v11927 = vadd.f32 0.0, %v11926
    %v11928 = vpop.f32.mrb[0].mxu0
    %11929 = vmatprep.mubr.bf16.mxu0 0
    %11930 = vmatmul.mubr.bf16.gmra.mrb[0].mxu0 %v11797
    %v11931 = vpop.f32.mrb[0].mxu0
    %v11932 = vadd.f32 0.0, %v11931
    %v11933 = vpop.f32.mrb[0].mxu0
    %v11934 = vpop.f32.mrb[0].mxu0
    %v11935 = vadd.f32 0.0, %v11934
    %v11936 = vpop.f32.mrb[0].mxu0
    %11937 = vmatprep.mubr.bf16.mxu0 0
    %11938 = vmatmul.mubr.bf16.gmra.mrb[0].mxu0 %v11800
    %v11939 = vpop.f32.mrb[0].mxu0
    %v11940 = vadd.f32 0.0, %v11939
    %v11941 = vpop.f32.mrb[0].mxu0
    %v11942 = vpop.f32.mrb[0].mxu0
    %v11943 = vadd.f32 0.0, %v11942
    %v11944 = vpop.f32.mrb[0].mxu0
    %11945 = vmatprep.mubr.bf16.mxu0 0
    %11946 = vmatmul.mubr.bf16.gmra.mrb[0].mxu0 %v11803
    %v11947 = vpop.f32.mrb[0].mxu0
    %v11948 = vadd.f32 0.0, %v11947
    %v11949 = vpop.f32.mrb[0].mxu0
    %v11950 = vpop.f32.mrb[0].mxu0
    %v11951 = vadd.f32 0.0, %v11950
    %v11952 = vpop.f32.mrb[0].mxu0
    %11953 = vmatprep.mubr.bf16.mxu0 0
    %11954 = vmatmul.mubr.bf16.gmra.mrb[0].mxu0 %v11806
    %v11955 = vpop.f32.mrb[0].mxu0
    %v11956 = vadd.f32 0.0, %v11955
    %v11957 = vpop.f32.mrb[0].mxu0
    %v11958 = vpop.f32.mrb[0].mxu0
    %v11959 = vadd.f32 0.0, %v11958
    %v11960 = vpop.f32.mrb[0].mxu0
    %11961 = vmatprep.mubr.bf16.mxu0 0
    %11962 = vmatmul.mubr.bf16.gmra.mrb[0].mxu0 %v11809
    %v11963 = vpop.f32.mrb[0].mxu0
    %v11964 = vadd.f32 0.0, %v11963
    %v11965 = vpop.f32.mrb[0].mxu0
    %v11966 = vpop.f32.mrb[0].mxu0
    %v11967 = vadd.f32 0.0, %v11966
    %v11968 = vpop.f32.mrb[0].mxu0
    %11969 = vmatprep.mubr.bf16.mxu0 0
    %11970 = vmatmul.mubr.bf16.gmra.mrb[0].mxu0 %v11812
    %v11971 = vpop.f32.mrb[0].mxu0
    %v11972 = vadd.f32 0.0, %v11971
    %v11973 = vpop.f32.mrb[0].mxu0
    %v11974 = vpop.f32.mrb[0].mxu0
    %v11975 = vadd.f32 0.0, %v11974
    %v11976 = vpop.f32.mrb[0].mxu0
    %11977 = vmatprep.mubr.bf16.mxu0 0
    %11978 = vmatmul.mubr.bf16.gmra.mrb[0].mxu0 %v11815
    %v11979 = vpop.f32.mrb[0].mxu0
    %v11980 = vadd.f32 0.0, %v11979
    %v11981 = vpop.f32.mrb[0].mxu0
    %v11982 = vpop.f32.mrb[0].mxu0
    %v11983 = vadd.f32 0.0, %v11982
    %v11984 = vpop.f32.mrb[0].mxu0
    %11985 = vmatprep.mubr.bf16.mxu0 0
    %11986 = vmatmul.mubr.bf16.gmra.mrb[0].mxu0 %v11818
    %v11987 = vpop.f32.mrb[0].mxu0
    %v11988 = vadd.f32 0.0, %v11987
    %v11989 = vpop.f32.mrb[0].mxu0
    %v11990 = vpop.f32.mrb[0].mxu0
    %v11991 = vadd.f32 0.0, %v11990
    %v11992 = vpop.f32.mrb[0].mxu0
    %11993 = vmatprep.mubr.bf16.mxu0 0
    %11994 = vmatmul.mubr.bf16.gmra.mrb[0].mxu0 %v11821
    %v11995 = vpop.f32.mrb[0].mxu0
    %v11996 = vadd.f32 0.0, %v11995
    %v11997 = vpop.f32.mrb[0].mxu0
    %v11998 = vpop.f32.mrb[0].mxu0
    %v11999 = vadd.f32 0.0, %v11998
    %v12000 = vpop.f32.mrb[0].mxu0
    %12001 = vmatprep.mubr.bf16.mxu0 0
    %12002 = vmatmul.mubr.bf16.gmra.mrb[0].mxu0 %v11824
    %v12003 = vpop.f32.mrb[0].mxu0
    %v12004 = vadd.f32 0.0, %v12003
    %v12005 = vpop.f32.mrb[0].mxu0
    %v12006 = vpop.f32.mrb[0].mxu0
    %v12007 = vadd.f32 0.0, %v12006
    %v12008 = vpop.f32.mrb[0].mxu0
    %12009 = vmatprep.mubr.bf16.mxu0 0
    %12010 = vmatmul.mubr.bf16.gmra.mrb[0].mxu0 %v11827
    %v12011 = vpop.f32.mrb[0].mxu0
    %v12012 = vadd.f32 0.0, %v12011
    %v12013 = vpop.f32.mrb[0].mxu0
    %v12014 = vpop.f32.mrb[0].mxu0
    %v12015 = vadd.f32 0.0, %v12014
    %v12016 = vpop.f32.mrb[0].mxu0
    %12017 = vmatprep.mubr.bf16.mxu0 0
    %12018 = vmatmul.mubr.bf16.gmra.mrb[0].mxu0 %v11830
    %v12019 = vpop.f32.mrb[0].mxu0
    %v12020 = vadd.f32 0.0, %v12019
    %v12021 = vpop.f32.mrb[0].mxu0
    %v12022 = vpop.f32.mrb[0].mxu0
    %v12023 = vadd.f32 0.0, %v12022
    %v12024 = vpop.f32.mrb[0].mxu0
    %12025 = vmatprep.mubr.bf16.mxu0 0
    %12026 = vmatmul.mubr.bf16.gmra.mrb[0].mxu0 %v11833
    %v12027 = vpop.f32.mrb[0].mxu0
    %v12028 = vadd.f32 0.0, %v12027
    %v12029 = vpop.f32.mrb[0].mxu0
    %v12030 = vpop.f32.mrb[0].mxu0
    %v12031 = vadd.f32 0.0, %v12030
    %v12032 = vpop.f32.mrb[0].mxu0
    %12033 = vmatprep.mubr.bf16.mxu0 0
    %12034 = vmatmul.mubr.bf16.gmra.mrb[0].mxu0 %v11836
    %v12035 = vpop.f32.mrb[0].mxu0
    %v12036 = vadd.f32 0.0, %v12035
    %v12037 = vpop.f32.mrb[0].mxu0
    %v12038 = vpop.f32.mrb[0].mxu0
    %v12039 = vadd.f32 0.0, %v12038
    %v12040 = vpop.f32.mrb[0].mxu0
    %12041 = vmatprep.mubr.bf16.mxu0 0
    %12042 = vmatmul.mubr.bf16.gmra.mrb[0].mxu0 %v11839
    %v12043 = vpop.f32.mrb[0].mxu0
    %v12044 = vadd.f32 0.0, %v12043
    %v12045 = vpop.f32.mrb[0].mxu0
    %v12046 = vpop.f32.mrb[0].mxu0
    %v12047 = vadd.f32 0.0, %v12046
    %v12048 = vpop.f32.mrb[0].mxu0
    %12049 = vmatprep.mubr.bf16.mxu0 0
    %12050 = vmatmul.mubr.bf16.gmra.mrb[0].mxu0 %v11842
    %v12051 = vpop.f32.mrb[0].mxu0
    %v12052 = vadd.f32 0.0, %v12051
    %v12053 = vpop.f32.mrb[0].mxu0
    %v12054 = vpop.f32.mrb[0].mxu0
    %v12055 = vadd.f32 0.0, %v12054
    %v12056 = vpop.f32.mrb[0].mxu0
    %12057 = vmatprep.mubr.bf16.mxu0 0
    %12058 = vmatmul.mubr.bf16.gmra.mrb[0].mxu0 %v11845
    %v12059 = vpop.f32.mrb[0].mxu0
    %v12060 = vadd.f32 0.0, %v12059
    %v12061 = vpop.f32.mrb[0].mxu0
    %v12062 = vpop.f32.mrb[0].mxu0
    %v12063 = vadd.f32 0.0, %v12062
    %v12064 = vpop.f32.mrb[0].mxu0
    %12065 = vmatprep.mubr.bf16.mxu0 0
    %12066 = vmatmul.mubr.bf16.gmra.mrb[0].mxu0 %v11848
    %v12067 = vpop.f32.mrb[0].mxu0
    %v12068 = vadd.f32 0.0, %v12067
    %v12069 = vpop.f32.mrb[0].mxu0
    %v12070 = vpop.f32.mrb[0].mxu0
    %v12071 = vadd.f32 0.0, %v12070
    %v12072 = vpop.f32.mrb[0].mxu0
    %12073 = vmatprep.mubr.bf16.mxu0 0
    %12074 = vmatmul.mubr.bf16.gmra.mrb[0].mxu0 %v11851
    %v12075 = vpop.f32.mrb[0].mxu0
    %v12076 = vadd.f32 0.0, %v12075
    %v12077 = vpop.f32.mrb[0].mxu0
    %v12078 = vpop.f32.mrb[0].mxu0
    %v12079 = vadd.f32 0.0, %v12078
    %v12080 = vpop.f32.mrb[0].mxu0
    %12081 = vmatprep.mubr.bf16.mxu0 0
    %12082 = vmatmul.mubr.bf16.gmra.mrb[0].mxu0 %v11854
    %v12083 = vpop.f32.mrb[0].mxu0
    %v12084 = vadd.f32 0.0, %v12083
    %v12085 = vpop.f32.mrb[0].mxu0
    %v12086 = vpop.f32.mrb[0].mxu0
    %v12087 = vadd.f32 0.0, %v12086
    %v12088 = vpop.f32.mrb[0].mxu0
    %12089 = vmatprep.mubr.bf16.mxu0 0
    %12090 = vmatmul.mubr.bf16.gmra.mrb[0].mxu0 %v11857
    %v12091 = vpop.f32.mrb[0].mxu0
    %v12092 = vadd.f32 0.0, %v12091
    %v12093 = vpop.f32.mrb[0].mxu0
    %v12094 = vpop.f32.mrb[0].mxu0
    %v12095 = vadd.f32 0.0, %v12094
    %v12096 = vpop.f32.mrb[0].mxu0
    %12097 = vmatprep.mubr.bf16.mxu0 0
    %12098 = vmatmul.mubr.bf16.gmra.mrb[0].mxu0 %v11860
    %v12099 = vpop.f32.mrb[0].mxu0
    %v12100 = vadd.f32 0.0, %v12099
    %v12101 = vpop.f32.mrb[0].mxu0
    %v12102 = vpop.f32.mrb[0].mxu0
    %v12103 = vadd.f32 0.0, %v12102
    %v12104 = vpop.f32.mrb[0].mxu0
    %12105 = vmatprep.mubr.bf16.mxu0 0
    %12106 = vmatmul.mubr.bf16.gmra.mrb[0].mxu0 %v11863
    %v12107 = vpop.f32.mrb[0].mxu0
    %v12108 = vadd.f32 0.0, %v12107
    %v12109 = vpop.f32.mrb[0].mxu0
    %v12110 = vpop.f32.mrb[0].mxu0
    %v12111 = vadd.f32 0.0, %v12110
    %v12112 = vpop.f32.mrb[0].mxu0
    %12113 = vmatprep.mubr.bf16.mxu0 0
    %12114 = vmatmul.mubr.bf16.gmra.mrb[0].mxu0 %v11866
    %v12115 = vpop.f32.mrb[0].mxu0
    %v12116 = vadd.f32 0.0, %v12115
    %v12117 = vpop.f32.mrb[0].mxu0
    %v12118 = vpop.f32.mrb[0].mxu0
    %v12119 = vadd.f32 0.0, %v12118
    %v12120 = vpop.f32.mrb[0].mxu0
    %12121 = vmatprep.mubr.bf16.mxu0 0
    %12122 = vmatmul.mubr.bf16.gmra.mrb[0].mxu0 %v11869
    %v12123 = vpop.f32.mrb[0].mxu0
    %v12124 = vadd.f32 0.0, %v12123
    %v12125 = vpop.f32.mrb[0].mxu0
    %v12126 = vpop.f32.mrb[0].mxu0
    %v12127 = vadd.f32 0.0, %v12126
    %v12128 = vpop.f32.mrb[0].mxu0
    %12129 = vmatprep.mubr.bf16.mxu0 0
    %12130 = vmatmul.mubr.bf16.gmra.mrb[0].mxu0 %v11872
    %v12131 = vpop.f32.mrb[0].mxu0
    %v12132 = vadd.f32 0.0, %v12131
    %v12133 = vpop.f32.mrb[0].mxu0
    %v12134 = vpop.f32.mrb[0].mxu0
    %v12135 = vadd.f32 0.0, %v12134
    %v12136 = vpop.f32.mrb[0].mxu0
    %12137 = vmatprep.mubr.bf16.mxu0 0
    %12138 = vmatmul.mubr.bf16.gmra.mrb[0].mxu0 %v11875
    %v12139 = vpop.f32.mrb[0].mxu0
    %v12140 = vadd.f32 0.0, %v12139
    %v12141 = vpop.f32.mrb[0].mxu0
    %v12142 = vpop.f32.mrb[0].mxu0
    %v12143 = vadd.f32 0.0, %v12142
    %v12144 = vpop.f32.mrb[0].mxu0
    %12145 = vmatprep.mubr.bf16.mxu0 0
    %12146 = vmatmul.mubr.bf16.gmra.mrb[0].mxu0 %v11878
    %v12147 = vpop.f32.mrb[0].mxu0
    %v12148 = vadd.f32 0.0, %v12147
    %v12149 = vpop.f32.mrb[0].mxu0
    %v12150 = vpop.f32.mrb[0].mxu0
    %v12151 = vadd.f32 0.0, %v12150
    %v12152 = vpop.f32.mrb[0].mxu0
    %12153 = vmatprep.mubr.bf16.mxu0 0
    %12154 = vmatmul.mubr.bf16.gmra.mrb[0].mxu0 %v11881
    %v12155 = vpop.f32.mrb[0].mxu0
    %v12156 = vadd.f32 0.0, %v12155
    %v12157 = vpop.f32.mrb[0].mxu0
    %v12158 = vpop.f32.mrb[0].mxu0
    %v12159 = vadd.f32 0.0, %v12158
    %v12160 = vpop.f32.mrb[0].mxu0
    %12161 = vmatprep.mubr.bf16.mxu0 0
    %12162 = vmatmul.mubr.bf16.gmra.mrb[0].mxu0 %v11884
    %v12163 = vpop.f32.mrb[0].mxu0
    %v12164 = vadd.f32 0.0, %v12163
    %v12165 = vpop.f32.mrb[0].mxu0
    %v12166 = vpop.f32.mrb[0].mxu0
    %v12167 = vadd.f32 0.0, %v12166
    %v12168 = vpop.f32.mrb[0].mxu0
    %12169 = vmatprep.mubr.bf16.mxu0 0
    %12170 = vmatmul.mubr.bf16.gmra.mrb[0].mxu0 %v11887
    %v12171 = vpop.f32.mrb[0].mxu0
    %v12172 = vadd.f32 0.0, %v12171
    %v12173 = vpop.f32.mrb[0].mxu0
    %v12174 = vpop.f32.mrb[0].mxu0
    %v12175 = vadd.f32 0.0, %v12174
    %v12176 = vpop.f32.mrb[0].mxu0
    %12177 = vdwg.mxu0
    %v12178 = vadd.f32 %v9393, %v11924
    %v12179 = vadd.f32 %v9394, %v11927
    %v12180 = vadd.f32 %v9395, %v11932
    %v12181 = vadd.f32 %v9396, %v11935
    %v12182 = vadd.f32 %v9397, %v11940
    %v12183 = vadd.f32 %v9398, %v11943
    %v12184 = vadd.f32 %v9399, %v11948
    %v12185 = vadd.f32 %v9400, %v11951
    %v12186 = vadd.f32 %v9401, %v11956
    %v12187 = vadd.f32 %v9402, %v11959
    %v12188 = vadd.f32 %v9403, %v11964
    %v12189 = vadd.f32 %v9404, %v11967
    %v12190 = vadd.f32 %v9405, %v11972
    %v12191 = vadd.f32 %v9406, %v11975
    %v12192 = vadd.f32 %v9407, %v11980
    %v12193 = vadd.f32 %v9408, %v11983
    %v12194 = vadd.f32 %v9409, %v11988
    %v12195 = vadd.f32 %v9410, %v11991
    %v12196 = vadd.f32 %v9411, %v11996
    %v12197 = vadd.f32 %v9412, %v11999
    %v12198 = vadd.f32 %v9413, %v12004
    %v12199 = vadd.f32 %v9414, %v12007
    %v12200 = vadd.f32 %v9415, %v12012
    %v12201 = vadd.f32 %v9416, %v12015
    %v12202 = vadd.f32 %v9417, %v12020
    %v12203 = vadd.f32 %v9418, %v12023
    %v12204 = vadd.f32 %v9419, %v12028
    %v12205 = vadd.f32 %v9420, %v12031
    %v12206 = vadd.f32 %v9421, %v12036
    %v12207 = vadd.f32 %v9422, %v12039
    %v12208 = vadd.f32 %v9423, %v12044
    %v12209 = vadd.f32 %v9424, %v12047
    %v12210 = vadd.f32 %v9425, %v12052
    %v12211 = vadd.f32 %v9426, %v12055
    %v12212 = vadd.f32 %v9427, %v12060
    %v12213 = vadd.f32 %v9428, %v12063
    %v12214 = vadd.f32 %v9429, %v12068
    %v12215 = vadd.f32 %v9430, %v12071
    %v12216 = vadd.f32 %v9431, %v12076
    %v12217 = vadd.f32 %v9432, %v12079
    %v12218 = vadd.f32 %v9433, %v12084
    %v12219 = vadd.f32 %v9434, %v12087
    %v12220 = vadd.f32 %v9435, %v12092
    %v12221 = vadd.f32 %v9436, %v12095
    %v12222 = vadd.f32 %v9437, %v12100
    %v12223 = vadd.f32 %v9438, %v12103
    %v12224 = vadd.f32 %v9439, %v12108
    %v12225 = vadd.f32 %v9440, %v12111
    %v12226 = vadd.f32 %v9441, %v12116
    %v12227 = vadd.f32 %v9442, %v12119
    %v12228 = vadd.f32 %v9443, %v12124
    %v12229 = vadd.f32 %v9444, %v12127
    %v12230 = vadd.f32 %v9445, %v12132
    %v12231 = vadd.f32 %v9446, %v12135
    %v12232 = vadd.f32 %v9447, %v12140
    %v12233 = vadd.f32 %v9448, %v12143
    %v12234 = vadd.f32 %v9449, %v12148
    %v12235 = vadd.f32 %v9450, %v12151
    %v12236 = vadd.f32 %v9451, %v12156
    %v12237 = vadd.f32 %v9452, %v12159
    %v12238 = vadd.f32 %v9453, %v12164
    %v12239 = vadd.f32 %v9454, %v12167
    %v12240 = vadd.f32 %v9455, %v12172
    %v12241 = vadd.f32 %v9456, %v12175
    %v12242 = vld [vmem:[#allocation11] sm:$0x1]
    %v12244 = vlaneseq
    %v12245 = vshrl.u32 %v12244, 7
    %v12246 = vsub.s32 0, %v12245
    %v12247 = vrot.slane %v12242, %v12246
    %v12249 = vadd.f32 %v12178, %v12247
    %v12250 = vadd.f32 %v12179, %v12247
    %v12251 = vadd.f32 %v12180, %v12247
    %v12252 = vadd.f32 %v12181, %v12247
    %v12253 = vadd.f32 %v12182, %v12247
    %v12254 = vadd.f32 %v12183, %v12247
    %v12255 = vadd.f32 %v12184, %v12247
    %v12256 = vadd.f32 %v12185, %v12247
    %v12257 = vadd.f32 %v12186, %v12247
    %v12258 = vadd.f32 %v12187, %v12247
    %v12259 = vadd.f32 %v12188, %v12247
    %v12260 = vadd.f32 %v12189, %v12247
    %v12261 = vadd.f32 %v12190, %v12247
    %v12262 = vadd.f32 %v12191, %v12247
    %v12263 = vadd.f32 %v12192, %v12247
    %v12264 = vadd.f32 %v12193, %v12247
    %v12265 = vadd.f32 %v12194, %v12247
    %v12266 = vadd.f32 %v12195, %v12247
    %v12267 = vadd.f32 %v12196, %v12247
    %v12268 = vadd.f32 %v12197, %v12247
    %v12269 = vadd.f32 %v12198, %v12247
    %v12270 = vadd.f32 %v12199, %v12247
    %v12271 = vadd.f32 %v12200, %v12247
    %v12272 = vadd.f32 %v12201, %v12247
    %v12273 = vadd.f32 %v12202, %v12247
    %v12274 = vadd.f32 %v12203, %v12247
    %v12275 = vadd.f32 %v12204, %v12247
    %v12276 = vadd.f32 %v12205, %v12247
    %v12277 = vadd.f32 %v12206, %v12247
    %v12278 = vadd.f32 %v12207, %v12247
    %v12279 = vadd.f32 %v12208, %v12247
    %v12280 = vadd.f32 %v12209, %v12247
    %v12281 = vadd.f32 %v12210, %v12247
    %v12282 = vadd.f32 %v12211, %v12247
    %v12283 = vadd.f32 %v12212, %v12247
    %v12284 = vadd.f32 %v12213, %v12247
    %v12285 = vadd.f32 %v12214, %v12247
    %v12286 = vadd.f32 %v12215, %v12247
    %v12287 = vadd.f32 %v12216, %v12247
    %v12288 = vadd.f32 %v12217, %v12247
    %v12289 = vadd.f32 %v12218, %v12247
    %v12290 = vadd.f32 %v12219, %v12247
    %v12291 = vadd.f32 %v12220, %v12247
    %v12292 = vadd.f32 %v12221, %v12247
    %v12293 = vadd.f32 %v12222, %v12247
    %v12294 = vadd.f32 %v12223, %v12247
    %v12295 = vadd.f32 %v12224, %v12247
    %v12296 = vadd.f32 %v12225, %v12247
    %v12297 = vadd.f32 %v12226, %v12247
    %v12298 = vadd.f32 %v12227, %v12247
    %v12299 = vadd.f32 %v12228, %v12247
    %v12300 = vadd.f32 %v12229, %v12247
    %v12301 = vadd.f32 %v12230, %v12247
    %v12302 = vadd.f32 %v12231, %v12247
    %v12303 = vadd.f32 %v12232, %v12247
    %v12304 = vadd.f32 %v12233, %v12247
    %v12305 = vadd.f32 %v12234, %v12247
    %v12306 = vadd.f32 %v12235, %v12247
    %v12307 = vadd.f32 %v12236, %v12247
    %v12308 = vadd.f32 %v12237, %v12247
    %v12309 = vadd.f32 %v12238, %v12247
    %v12310 = vadd.f32 %v12239, %v12247
    %v12311 = vadd.f32 %v12240, %v12247
    %v12312 = vadd.f32 %v12241, %v12247
    %12313 = vst [vmem:[#allocation13] sm:$0xff] %v12249
    %12314 = vst [vmem:[#allocation13 + $0x8] sm:$0xff] %v12250
    %12315 = vst [vmem:[#allocation13 + $0x10] sm:$0xff] %v12251
    %12316 = vst [vmem:[#allocation13 + $0x18] sm:$0xff] %v12252
    %12317 = vst [vmem:[#allocation13 + $0x20] sm:$0xff] %v12253
    %12318 = vst [vmem:[#allocation13 + $0x28] sm:$0xff] %v12254
    %12319 = vst [vmem:[#allocation13 + $0x30] sm:$0xff] %v12255
    %12320 = vst [vmem:[#allocation13 + $0x38] sm:$0xff] %v12256
    %12321 = vst [vmem:[#allocation13 + $0x40] sm:$0xff] %v12257
    %12322 = vst [vmem:[#allocation13 + $0x48] sm:$0xff] %v12258
    %12323 = vst [vmem:[#allocation13 + $0x50] sm:$0xff] %v12259
    %12324 = vst [vmem:[#allocation13 + $0x58] sm:$0xff] %v12260
    %12325 = vst [vmem:[#allocation13 + $0x60] sm:$0xff] %v12261
    %12326 = vst [vmem:[#allocation13 + $0x68] sm:$0xff] %v12262
    %12327 = vst [vmem:[#allocation13 + $0x70] sm:$0xff] %v12263
    %12328 = vst [vmem:[#allocation13 + $0x78] sm:$0xff] %v12264
    %12329 = vst [vmem:[#allocation13 + $0x80] sm:$0xff] %v12265
    %12330 = vst [vmem:[#allocation13 + $0x88] sm:$0xff] %v12266
    %12331 = vst [vmem:[#allocation13 + $0x90] sm:$0xff] %v12267
    %12332 = vst [vmem:[#allocation13 + $0x98] sm:$0xff] %v12268
    %12333 = vst [vmem:[#allocation13 + $0xa0] sm:$0xff] %v12269
    %12334 = vst [vmem:[#allocation13 + $0xa8] sm:$0xff] %v12270
    %12335 = vst [vmem:[#allocation13 + $0xb0] sm:$0xff] %v12271
    %12336 = vst [vmem:[#allocation13 + $0xb8] sm:$0xff] %v12272
    %12337 = vst [vmem:[#allocation13 + $0xc0] sm:$0xff] %v12273
    %12338 = vst [vmem:[#allocation13 + $0xc8] sm:$0xff] %v12274
    %12339 = vst [vmem:[#allocation13 + $0xd0] sm:$0xff] %v12275
    %12340 = vst [vmem:[#allocation13 + $0xd8] sm:$0xff] %v12276
    %12341 = vst [vmem:[#allocation13 + $0xe0] sm:$0xff] %v12277
    %12342 = vst [vmem:[#allocation13 + $0xe8] sm:$0xff] %v12278
    %12343 = vst [vmem:[#allocation13 + $0xf0] sm:$0xff] %v12279
    %12344 = vst [vmem:[#allocation13 + $0xf8] sm:$0xff] %v12280
    %12345 = vst [vmem:[#allocation13 + $0x100] sm:$0xff] %v12281
    %12346 = vst [vmem:[#allocation13 + $0x108] sm:$0xff] %v12282
    %12347 = vst [vmem:[#allocation13 + $0x110] sm:$0xff] %v12283
    %12348 = vst [vmem:[#allocation13 + $0x118] sm:$0xff] %v12284
    %12349 = vst [vmem:[#allocation13 + $0x120] sm:$0xff] %v12285
    %12350 = vst [vmem:[#allocation13 + $0x128] sm:$0xff] %v12286
    %12351 = vst [vmem:[#allocation13 + $0x130] sm:$0xff] %v12287
    %12352 = vst [vmem:[#allocation13 + $0x138] sm:$0xff] %v12288
    %12353 = vst [vmem:[#allocation13 + $0x140] sm:$0xff] %v12289
    %12354 = vst [vmem:[#allocation13 + $0x148] sm:$0xff] %v12290
    %12355 = vst [vmem:[#allocation13 + $0x150] sm:$0xff] %v12291
    %12356 = vst [vmem:[#allocation13 + $0x158] sm:$0xff] %v12292
    %12357 = vst [vmem:[#allocation13 + $0x160] sm:$0xff] %v12293
    %12358 = vst [vmem:[#allocation13 + $0x168] sm:$0xff] %v12294
    %12359 = vst [vmem:[#allocation13 + $0x170] sm:$0xff] %v12295
    %12360 = vst [vmem:[#allocation13 + $0x178] sm:$0xff] %v12296
    %12361 = vst [vmem:[#allocation13 + $0x180] sm:$0xff] %v12297
    %12362 = vst [vmem:[#allocation13 + $0x188] sm:$0xff] %v12298
    %12363 = vst [vmem:[#allocation13 + $0x190] sm:$0xff] %v12299
    %12364 = vst [vmem:[#allocation13 + $0x198] sm:$0xff] %v12300
    %12365 = vst [vmem:[#allocation13 + $0x1a0] sm:$0xff] %v12301
    %12366 = vst [vmem:[#allocation13 + $0x1a8] sm:$0xff] %v12302
    %12367 = vst [vmem:[#allocation13 + $0x1b0] sm:$0xff] %v12303
    %12368 = vst [vmem:[#allocation13 + $0x1b8] sm:$0xff] %v12304
    %12369 = vst [vmem:[#allocation13 + $0x1c0] sm:$0xff] %v12305
    %12370 = vst [vmem:[#allocation13 + $0x1c8] sm:$0xff] %v12306
    %12371 = vst [vmem:[#allocation13 + $0x1d0] sm:$0xff] %v12307
    %12372 = vst [vmem:[#allocation13 + $0x1d8] sm:$0xff] %v12308
    %12373 = vst [vmem:[#allocation13 + $0x1e0] sm:$0xff] %v12309
    %12374 = vst [vmem:[#allocation13 + $0x1e8] sm:$0xff] %v12310
    %12375 = vst [vmem:[#allocation13 + $0x1f0] sm:$0xff] %v12311
    %12376 = vst [vmem:[#allocation13 + $0x1f8] sm:$0xff] %v12312
    // Predicated region
    $region50: #{tpu_custom_call.1} parent=1 // pred_check
      _
    $region51: #{tpu_custom_call.1} parent=1 // pred_check_branch
      %12378 = sbr.rel (0) target = $region53
    $region52: #{tpu_custom_call.1} parent=1 // pred_region
      %s12380 = ssub.s32 8192, 8192
      %12381 = vsyncadd [#allocation4], %s12380
      %s12382 = sshll.u32 [#allocation13], 4
      %s12383 = int_to_ptr.vmem [resolvable:$true] %s12382
      %12388 = dma.vmem_to_hbm [thread:$0]  %s12383, 8192, %s6, [#allocation4], 128, 128, 8
    $region53: #{tpu_custom_call.1} parent=1 // pred_fallthru
      _
    // Predicated region
    $region54: #{tpu_custom_call.1} parent=1 // pred_check
      _
    $region55: #{tpu_custom_call.1} parent=1 // pred_check_branch
      %12390 = sbr.rel (0) target = $region57
    $region56: #{tpu_custom_call.1} parent=1 // pred_region
      %12391 = dma.done [#allocation4], 8192
    $region57: #{tpu_custom_call.1} parent=1 // pred_fallthru
      _
    %12392 = vsyncpa [#allocation3], 1
    %12393 = vsyncpa [#allocation6], 1
    %12394 = vsyncpa [#allocation9], 1
    %12395 = vsyncpa [#allocation12], 1
    %12396 = vsyncpa [#allocation4], 1

</llo_original>
